<compile_context>
chip_gen: v5e
topology: v5e:2x2
jax: 0.10.0
libtpu: 0.0.40
codegen_flags: <defaults>
</compile_context>

<pallas_src>
import numpy as np
import jax
import jax.numpy as jnp
from jax.experimental import pallas as pl
from jax.experimental.pallas import tpu as pltpu

L_IN = 1024          # input length implied by fc1: 8 branches * seq_len(2) * 32 ch = 512
N_BRANCH = 8
CH = 32
NUM_HEADS = 8
HEAD_DIM = CH // NUM_HEADS   # 4
SEQ = 2
EPS = 1e-5

SMALL_BRANCHES = (0, 1, 2, 3, 4)   # conv kernels 2..32  -> packed against 128-sample groups
BIG_BRANCHES = (5, 6, 7)           # conv kernels 64..256 -> packed against 256-sample segments
SMALL_GROUP = 128
BIG_SEG = 256


def _slab_table(branch_ids, seg_len, groups):
    slabs, off = [], 0
    for i in branch_ids:
        w_b = groups * (seg_len // 2 ** (i + 1)) * CH
        slabs.append((off, w_b))
        off += w_b
    return tuple(slabs), off


SMALL_SLABS, SMALL_W = _slab_table(SMALL_BRANCHES, 32, 4)   # 2048,1024,512,256,128 -> 3968 lanes
BIG_SLABS, BIG_W_RAW = _slab_table(BIG_BRANCHES, 256, 1)    # 128,64,32 -> 224 lanes
BIG_W = 256                                                 # padded to a 128-lane multiple

CONV_CHUNK = 1024    # max lane width per small-conv matmul chunk (bounds f32 temporaries)
TB_MAX = 128         # batch tile cap: ~26 MB VMEM peak, fits v7x (64 MiB) / v5e / v6e
                     # (per-generation tunable: v5e/v6e could run 192-256 with a ~96 MiB limit)


# ------------------------------ fused Pallas kernel ------------------------------

def mscnn3am_kernel(x_ref,
                    wsm_ref, bsm_ref, ssm_ref, hsm_ref,
                    wbg_ref, bbg_ref, sbg_ref, hbg_ref,
                    wqkv_ref, bqkv_ref, smat_ref, emat_ref, wo_ref, bo_ref,
                    w1_ref, b1_ref, w2_ref, b2_ref,
                    fc_ref, prob_ref):
    """Whole MSCNN3AM forward for one batch tile of TB rows."""
    TB = fc_ref.shape[0]
    bf16 = jnp.bfloat16

    x = x_ref[...]                                            # (TB, 1024) bf16

    # ---- segment-major conv LHS, built in VMEM from 128-aligned lane slices of x ----
    # xs rows = g*2*TB + s*TB + b, lanes = 128 consecutive samples of group (s, g)
    xs = jnp.concatenate(
        [x[:, s * 512 + g * 128: s * 512 + (g + 1) * 128]
         for g in range(4) for s in range(2)], axis=0)        # (8*TB, 128)
    # xb rows = seg*2*TB + s*TB + b, lanes = 256 consecutive samples of segment (s, seg)
    xb = jnp.concatenate(
        [x[:, s * 512 + seg * 256: s * 512 + (seg + 1) * 256]
         for seg in range(2) for s in range(2)], axis=0)      # (4*TB, 256)

    def fold_lanes(a):
        """Max over the (segment, tap) lane groups, keeping the 32 channel lanes."""
        w = a.shape[-1]
        while w > CH:
            w //= 2
            a = jnp.maximum(a[:, :w], a[:, w:2 * w])
        return a

    def fold_rows(a, rows_out):
        """Max over the leading segment-group row blocks, down to rows = s*TB + b."""
        r = a.shape[0]
        while r > rows_out:
            r //= 2
            a = jnp.maximum(a[:r], a[r:2 * r])
        return a

    # ---- conv + bias + ReLU + eval-BN + max-pool, small branches (kernels 2..32) ----
    pooled = []
    for off, w_b in SMALL_SLABS:
        acc = None
        for coff in range(off, off + w_b, CONV_CHUNK):
            cw = min(CONV_CHUNK, off + w_b - coff)
            h = jnp.dot(xs, wsm_ref[:, coff:coff + cw],
                        preferred_element_type=jnp.float32)   # (8*TB, cw) f32
            h = jnp.maximum(h + bsm_ref[:, coff:coff + cw], 0.0)
            h = h * ssm_ref[:, coff:coff + cw] + hsm_ref[:, coff:coff + cw]
            part = fold_lanes(h.astype(bf16))                 # (8*TB, 32)
            acc = part if acc is None else jnp.maximum(acc, part)
        pooled.append(fold_rows(acc, 2 * TB))                 # (2*TB, 32), rows = s*TB + b

    # ---- big branches (kernels 64..256): one small matmul, then per-branch pooling ----
    hb = jnp.dot(xb, wbg_ref[...], preferred_element_type=jnp.float32)
    hb = jnp.maximum(hb + bbg_ref[...], 0.0)
    hb = (hb * sbg_ref[...] + hbg_ref[...]).astype(bf16)      # (4*TB, 256)
    for off, w_b in BIG_SLABS:
        pooled.append(fold_rows(fold_lanes(hb[:, off:off + w_b]), 2 * TB))

    # ---- pooled features, lane layout = branch*64 + s*32 + c ----
    pieces = []
    for p in pooled:
        pieces.append(p[:TB])                                 # s = 0
        pieces.append(p[TB:])                                 # s = 1
    P = jnp.concatenate(pieces, axis=-1)                      # (TB, 512) bf16

    # ---- multi-head attention for all 8 branches (block-diagonal folded weights) ----
    qkv = jnp.dot(P, wqkv_ref[...], preferred_element_type=jnp.float32) + bqkv_ref[...]
    q0, q1 = qkv[:, 0:256], qkv[:, 256:512]                   # lanes = branch*32 + head*4 + d
    k0, k1 = qkv[:, 512:768], qkv[:, 768:1024]
    v0, v1 = qkv[:, 1024:1280], qkv[:, 1280:1536]

    kd = k0 - k1
    qk = jnp.concatenate([q0 * kd, q1 * kd], axis=0)          # (2*TB, 256), rows = n*TB + b
    # per-(branch, head) logit difference l_{n,0} - l_{n,1}; 1/sqrt(head_dim) folded into smat
    dlog = jnp.dot(qk.astype(bf16), smat_ref[...],
                   preferred_element_type=jnp.float32)        # (2*TB, 64)
    w0 = pl.reciprocal(1.0 + jnp.exp(-dlog), approx=True)     # softmax over 2 keys == sigmoid
    gate = jnp.dot(w0.astype(bf16), emat_ref[...],
                   preferred_element_type=jnp.float32)        # (2*TB, 256) head-broadcast
    vd = v0 - v1
    attn = jnp.concatenate([gate[:TB] * vd + v1,
                            gate[TB:] * vd + v1], axis=0)     # (2*TB, 256)
    fproj = jnp.dot(attn.astype(bf16), wo_ref[...],
                    preferred_element_type=jnp.float32) + bo_ref[...]
    # torch flatten order: flat[b, s*256 + branch*32 + c]
    flat = jnp.concatenate([fproj[:TB], fproj[TB:]], axis=-1)  # (TB, 512) f32

    # ---- head: fc1 + ReLU (+ eval Dropout = identity) + fc2 + softmax (padded to 128) ----
    a1 = jnp.dot(flat.astype(bf16), w1_ref[...],
                 preferred_element_type=jnp.float32) + b1_ref[...]
    a1 = jnp.maximum(a1, 0.0)
    fc_ref[...] = a1
    logits = jnp.dot(a1.astype(bf16), w2_ref[...],
                     preferred_element_type=jnp.float32) + b2_ref[...]
    m = jnp.max(logits, axis=-1, keepdims=True)
    e = jnp.exp(logits - m)                                   # padded lanes: bias -1e30 -> exp == 0
    prob_ref[...] = e * pl.reciprocal(jnp.sum(e, axis=-1, keepdims=True), approx=True)


# ----------------------- host-side parameter folding -----------------------

def _fold_qk(w, b):
    """Fold Linear(2,2) on x_att (32,2) + .view(2,8,4).permute into one (64,64) matmul acting on
    the flattened pooled features (input lanes = s*32 + c, output lanes = n*32 + h*4 + d)."""
    Wb = np.zeros((2 * CH, 2 * CH), np.float32)
    bb = np.zeros((2 * CH,), np.float32)
    for n in range(SEQ):
        for h in range(NUM_HEADS):
            for d in range(HEAD_DIM):
                j = n * CH + h * HEAD_DIM + d
                c = j // 2
                t = d % 2
                for s in range(SEQ):
                    Wb[s * CH + c, j] = w[t, s]
                bb[j] = b[t]
    return Wb, bb


def _fold_v(w, b):
    """Fold Linear(32,32) on x^T (2,32) + .view(8,2,4) into one (64,64) matmul
    (input lanes = s*32 + c, output lanes = m*32 + h*4 + d)."""
    Wb = np.zeros((2 * CH, 2 * CH), np.float32)
    bb = np.zeros((2 * CH,), np.float32)
    for m in range(SEQ):
        for h in range(NUM_HEADS):
            for d in range(HEAD_DIM):
                j = m * CH + h * HEAD_DIM + d
                flat = h * (SEQ * HEAD_DIM) + m * HEAD_DIM + d
                sp, cp = flat // CH, flat % CH
                Wb[sp * CH:(sp + 1) * CH, j] = w[cp, :]
                bb[j] = b[cp]
    return Wb, bb


def init_params(seed=0):
    rng = np.random.default_rng(seed)
    branch = []
    for i in range(N_BRANCH):
        ksz = 2 ** (i + 1)
        conv_w = (rng.standard_normal((CH, 1, ksz)) / np.sqrt(ksz)).astype(np.float32)
        conv_b = (0.1 * rng.standard_normal(CH)).astype(np.float32)
        gamma = (1.0 + 0.1 * rng.standard_normal(CH)).astype(np.float32)
        beta = (0.1 * rng.standard_normal(CH)).astype(np.float32)
        rmean = (0.1 * rng.standard_normal(CH)).astype(np.float32)
        rvar = (0.5 + rng.random(CH)).astype(np.float32)
        bn_scale = (gamma / np.sqrt(rvar + EPS)).astype(np.float32)
        bn_shift = (beta - rmean * bn_scale).astype(np.float32)
        wq = (rng.standard_normal((SEQ, SEQ)) / np.sqrt(SEQ)).astype(np.float32)
        bq = (0.1 * rng.standard_normal(SEQ)).astype(np.float32)
        wk = (rng.standard_normal((SEQ, SEQ)) / np.sqrt(SEQ)).astype(np.float32)
        bk = (0.1 * rng.standard_normal(SEQ)).astype(np.float32)
        wv = (rng.standard_normal((CH, CH)) / np.sqrt(CH)).astype(np.float32)
        bv = (0.1 * rng.standard_normal(CH)).astype(np.float32)
        wo = (rng.standard_normal((CH, CH)) / np.sqrt(CH)).astype(np.float32)
        bo = (0.1 * rng.standard_normal(CH)).astype(np.float32)
        branch.append(dict(conv_w=conv_w, conv_b=conv_b, gamma=gamma, beta=beta,
                           rmean=rmean, rvar=rvar, bn_scale=bn_scale, bn_shift=bn_shift,
                           wq=wq, bq=bq, wk=wk, bk=bk, wv=wv, bv=bv, wo=wo, bo=bo))

    # ---- small-branch convs: lane-dense 128-sample groups, 4-block-diagonal per branch ----
    def pack_conv_small():
        W = np.zeros((SMALL_GROUP, SMALL_W), np.float32)
        bias = np.zeros((1, SMALL_W), np.float32)
        scale = np.zeros((1, SMALL_W), np.float32)
        shift = np.zeros((1, SMALL_W), np.float32)
        for (off, _w_b), i in zip(SMALL_SLABS, SMALL_BRANCHES):
            K = 2 ** (i + 1)
            n_t = 32 // K
            br = branch[i]
            w = br["conv_w"][:, 0, :]          # (32, K)
            for s4 in range(4):                # 4 x 32-sample segments per 128-lane group
                for t in range(n_t):
                    c0 = off + s4 * n_t * CH + t * CH
                    cols = slice(c0, c0 + CH)
                    for k in range(K):
                        W[s4 * 32 + t * K + k, cols] = w[:, k]
                    bias[0, cols] = br["conv_b"]
                    scale[0, cols] = br["bn_scale"]
                    shift[0, cols] = br["bn_shift"]
        return W, bias, scale, shift

    # ---- big-branch convs: 256-sample segments, padded from 224 to 256 output lanes ----
    def pack_conv_big():
        W = np.zeros((BIG_SEG, BIG_W), np.float32)
        bias = np.zeros((1, BIG_W), np.float32)
        scale = np.zeros((1, BIG_W), np.float32)
        shift = np.zeros((1, BIG_W), np.float32)
        for (off, _w_b), i in zip(BIG_SLABS, BIG_BRANCHES):
            K = 2 ** (i + 1)
            n_t = BIG_SEG // K
            br = branch[i]
            w = br["conv_w"][:, 0, :]
            for t in range(n_t):
                cols = slice(off + t * CH, off + (t + 1) * CH)
                for k in range(K):
                    W[t * K + k, cols] = w[:, k]
                bias[0, cols] = br["conv_b"]
                scale[0, cols] = br["bn_scale"]
                shift[0, cols] = br["bn_shift"]
        return W, bias, scale, shift

    wsm, bsm, ssm, hsm = pack_conv_small()     # (128, 3968)
    wbg, bbg, sbg, hbg = pack_conv_big()       # (256, 256)

    # ---- attention stage: block-diagonal folded projections for all 8 branches ----
    wqkv = np.zeros((N_BRANCH * 2 * CH, 3 * SEQ * N_BRANCH * CH), np.float32)   # (512, 1536)
    bqkv = np.zeros((1, 3 * SEQ * N_BRANCH * CH), np.float32)
    smat = np.zeros((N_BRANCH * CH, N_BRANCH * NUM_HEADS), np.float32)          # (256, 64)
    emat = np.zeros((N_BRANCH * NUM_HEADS, N_BRANCH * CH), np.float32)          # (64, 256)
    wo_big = np.zeros((N_BRANCH * CH, N_BRANCH * CH), np.float32)               # (256, 256)
    bo_big = np.zeros((1, N_BRANCH * CH), np.float32)
    for bi in range(N_BRANCH):
        br = branch[bi]
        wqf, bqf = _fold_qk(br["wq"], br["bq"])
        wkf, bkf = _fold_qk(br["wk"], br["bk"])
        wvf, bvf = _fold_v(br["wv"], br["bv"])
        rows = slice(bi * 64, (bi + 1) * 64)
        for n in range(SEQ):
            for blk, (wf, bf_) in enumerate(((wqf, bqf), (wkf, bkf), (wvf, bvf))):
                cols = slice(blk * 512 + n * 256 + bi * CH,
                             blk * 512 + n * 256 + (bi + 1) * CH)
                wqkv[rows, cols] = wf[:, n * CH:(n + 1) * CH]
                bqkv[0, cols] = bf_[n * CH:(n + 1) * CH]
        for h in range(NUM_HEADS):
            for d in range(HEAD_DIM):
                smat[bi * CH + h * HEAD_DIM + d, bi * NUM_HEADS + h] = 1.0 / np.sqrt(HEAD_DIM)
                emat[bi * NUM_HEADS + h, bi * CH + h * HEAD_DIM + d] = 1.0
        wo_big[bi * CH:(bi + 1) * CH, bi * CH:(bi + 1) * CH] = br["wo"].T
        bo_big[0, bi * CH:(bi + 1) * CH] = br["bo"]

    # ---- head ----
    fc1_w = (rng.standard_normal((128, 512)) / np.sqrt(512)).astype(np.float32)
    fc1_b = (0.1 * rng.standard_normal(128)).astype(np.float32)
    fc2_w = (rng.standard_normal((15, 128)) / np.sqrt(128)).astype(np.float32)
    fc2_b = (0.1 * rng.standard_normal(15)).astype(np.float32)
    fc2_wt_pad = np.zeros((128, 128), np.float32)
    fc2_wt_pad[:, :15] = fc2_w.T
    fc2_b_pad = np.full((1, 128), -1e30, np.float32)   # padded classes get ~ -inf logits
    fc2_b_pad[0, :15] = fc2_b

    bf = lambda a: jnp.asarray(a, dtype=jnp.bfloat16)   # MXU operands
    f32 = lambda a: jnp.asarray(a, dtype=jnp.float32)   # biases / BN affine stay f32
    packed = dict(
        wsm=bf(wsm), bsm=f32(bsm), ssm=f32(ssm), hsm=f32(hsm),
        wbg=bf(wbg), bbg=f32(bbg), sbg=f32(sbg), hbg=f32(hbg),
        wqkv=bf(wqkv), bqkv=f32(bqkv), smat=bf(smat), emat=bf(emat),
        wo=bf(wo_big), bo=f32(bo_big),
        fc1_wt=bf(fc1_w.T), fc1_b=f32(fc1_b.reshape(1, 128)),
        fc2_wt=bf(fc2_wt_pad), fc2_b=f32(fc2_b_pad),
    )
    return dict(packed=packed, branch=branch,
                fc1_w=fc1_w, fc1_b=fc1_b, fc2_w=fc2_w, fc2_b=fc2_b)


# ------------------------------- forward pass -------------------------------

def _pick_tb(batch):
    """Batch tile: multiple of 8, capped at TB_MAX, split into >=2 tiles when possible so the
    'parallel' grid axis gives both v7x TensorCores work."""
    b8 = ((batch + 7) // 8) * 8
    tb = min(TB_MAX, b8)
    if b8 > 8 and b8 // tb < 2:
        tb = max(8, (((b8 + 1) // 2 + 7) // 8) * 8)
    return tb


@jax.jit
def mscnn3am_forward(x, packed):
    B = x.shape[0]
    x2 = x.reshape(B, L_IN).astype(jnp.bfloat16)      # natural lane-dense layout, bf16 DMA

    TB = _pick_tb(B)
    Bp = ((B + TB - 1) // TB) * TB
    if Bp != B:
        x2 = jnp.pad(x2, ((0, Bp - B), (0, 0)))

    def wspec(shape):
        # grid-invariant weights: constant block index -> fetched once by the pipeline
        return pl.BlockSpec(shape, lambda g: (0,) * len(shape))

    fc, prob = pl.pallas_call(
        mscnn3am_kernel,
        out_shape=(jax.ShapeDtypeStruct((Bp, 128), jnp.float32),
                   jax.ShapeDtypeStruct((Bp, 128), jnp.float32)),
        grid=(Bp // TB,),
        in_specs=[
            pl.BlockSpec((TB, L_IN), lambda g: (g, 0)),
            wspec((SMALL_GROUP, SMALL_W)), wspec((1, SMALL_W)),
            wspec((1, SMALL_W)), wspec((1, SMALL_W)),
            wspec((BIG_SEG, BIG_W)), wspec((1, BIG_W)),
            wspec((1, BIG_W)), wspec((1, BIG_W)),
            wspec((512, 1536)), wspec((1, 1536)),
            wspec((256, 64)), wspec((64, 256)),
            wspec((256, 256)), wspec((1, 256)),
            wspec((512, 128)), wspec((1, 128)),
            wspec((128, 128)), wspec((1, 128)),
        ],
        out_specs=[pl.BlockSpec((TB, 128), lambda g: (g, 0)),
                   pl.BlockSpec((TB, 128), lambda g: (g, 0))],
        compiler_params=pltpu.CompilerParams(
            dimension_semantics=("parallel",),
            vmem_limit_bytes=48 * 1024 * 1024),
    )(x2,
      packed["wsm"], packed["bsm"], packed["ssm"], packed["hsm"],
      packed["wbg"], packed["bbg"], packed["sbg"], packed["hbg"],
      packed["wqkv"], packed["bqkv"], packed["smat"], packed["emat"],
      packed["wo"], packed["bo"],
      packed["fc1_wt"], packed["fc1_b"], packed["fc2_wt"], packed["fc2_b"])

    return fc[:B], prob[:B, :15]


# --------------------------- pure-JAX reference -----------------------------

def reference_forward(x, params):
    B = x.shape[0]
    x2 = x.reshape(B, L_IN)
    feats = []
    for i in range(N_BRANCH):
        ksz = 2 ** (i + 1)
        T = L_IN // ksz
        br = params["branch"][i]
        xr = x2.reshape(B, T, ksz)
        h = jnp.einsum("btk,ck->btc", xr, br["conv_w"][:, 0, :]) + br["conv_b"]
        h = jnp.maximum(h, 0.0)
        h = (h - br["rmean"]) / jnp.sqrt(br["rvar"] + EPS) * br["gamma"] + br["beta"]
        pooled = jnp.max(h.reshape(B, SEQ, T // 2, CH), axis=2)          # (B, 2, 32)
        x_att = jnp.transpose(pooled, (0, 2, 1))                         # (B, 32, 2)
        Q = jnp.einsum("bcs,ts->bct", x_att, br["wq"]) + br["bq"]
        Km = jnp.einsum("bcs,ts->bct", x_att, br["wk"]) + br["bk"]
        Q4 = jnp.transpose(Q.reshape(B, SEQ, NUM_HEADS, HEAD_DIM), (0, 2, 1, 3))
        K4 = jnp.transpose(Km.reshape(B, SEQ, NUM_HEADS, HEAD_DIM), (0, 2, 1, 3))
        V = jnp.einsum("bsc,dc->bsd", pooled, br["wv"]) + br["bv"]
        V4 = V.reshape(B, NUM_HEADS, SEQ, HEAD_DIM)
        logits = jnp.einsum("bhnd,bhmd->bhnm", Q4, K4) / (HEAD_DIM ** 0.5)
        w = jax.nn.softmax(logits, axis=-1)
        o = jnp.einsum("bhnm,bhmd->bhnd", w, V4)
        o = jnp.transpose(o, (0, 2, 1, 3)).reshape(B, SEQ, CH)
        feats.append(jnp.einsum("bsc,dc->bsd", o, br["wo"]) + br["bo"])
    concat = jnp.concatenate(feats, axis=2)
    flat = concat.reshape(B, -1)
    fc = jnp.maximum(flat @ params["fc1_w"].T + params["fc1_b"], 0.0)
    logits = fc @ params["fc2_w"].T + params["fc2_b"]
    return fc, jax.nn.softmax(logits, axis=1)


if __name__ == "__main__":
    params = init_params(seed=0)
    key = jax.random.PRNGKey(0)
    B = 2
    x = jax.random.normal(key, (B, 1, L_IN), dtype=jnp.float32)   # NCL like torch Conv1d input

    fc_out, probs = mscnn3am_forward(x, params["packed"])
    jax.block_until_ready((fc_out, probs))

    with jax.default_matmul_precision("highest"):
        fc_ref, probs_ref = reference_forward(x, params)
        fc_ref, probs_ref = jax.block_until_ready((fc_ref, probs_ref))

    # kernel runs the matmuls in bf16 (f32 accumulation); tolerances sized for bf16 noise
    np.testing.assert_allclose(np.asarray(fc_out), np.asarray(fc_ref), rtol=3e-2, atol=5e-2)
    np.testing.assert_allclose(np.asarray(probs), np.asarray(probs_ref), rtol=3e-2, atol=3e-2)

    print("KERNEL_OK")
</pallas_src>

<mosaic_0001>
module attributes {stable_mosaic.version = 11 : i64} {
  func.func @mscnn3am_kernel(%arg0: i32, %arg1: memref<8x1024xbf16, #tpu.memory_space<vmem>>, %arg2: memref<128x3968xbf16, #tpu.memory_space<vmem>>, %arg3: memref<1x3968xf32, #tpu.memory_space<vmem>>, %arg4: memref<1x3968xf32, #tpu.memory_space<vmem>>, %arg5: memref<1x3968xf32, #tpu.memory_space<vmem>>, %arg6: memref<256x256xbf16, #tpu.memory_space<vmem>>, %arg7: memref<1x256xf32, #tpu.memory_space<vmem>>, %arg8: memref<1x256xf32, #tpu.memory_space<vmem>>, %arg9: memref<1x256xf32, #tpu.memory_space<vmem>>, %arg10: memref<512x1536xbf16, #tpu.memory_space<vmem>>, %arg11: memref<1x1536xf32, #tpu.memory_space<vmem>>, %arg12: memref<256x64xbf16, #tpu.memory_space<vmem>>, %arg13: memref<64x256xbf16, #tpu.memory_space<vmem>>, %arg14: memref<256x256xbf16, #tpu.memory_space<vmem>>, %arg15: memref<1x256xf32, #tpu.memory_space<vmem>>, %arg16: memref<512x128xbf16, #tpu.memory_space<vmem>>, %arg17: memref<1x128xf32, #tpu.memory_space<vmem>>, %arg18: memref<128x128xbf16, #tpu.memory_space<vmem>>, %arg19: memref<1x128xf32, #tpu.memory_space<vmem>>, %arg20: memref<8x128xf32, #tpu.memory_space<vmem>>, %arg21: memref<8x128xf32, #tpu.memory_space<vmem>>) attributes {dimension_semantics = [#tpu.dimension_semantics<parallel>], iteration_bounds = array<i64: 1>, scalar_prefetch = 0 : i64, scratch_operands = 0 : i64, tpu.core_type = #tpu.core_type<tc>, window_params = [{transform_indices = @transform_0, window_bounds = array<i64: 8, 1024>}, {pipeline_mode = #tpu.pipeline_mode<synchronous>, transform_indices = @transform_1, window_bounds = array<i64: 128, 3968>}, {pipeline_mode = #tpu.pipeline_mode<synchronous>, transform_indices = @transform_2, window_bounds = array<i64: 1, 3968>}, {pipeline_mode = #tpu.pipeline_mode<synchronous>, transform_indices = @transform_3, window_bounds = array<i64: 1, 3968>}, {pipeline_mode = #tpu.pipeline_mode<synchronous>, transform_indices = @transform_4, window_bounds = array<i64: 1, 3968>}, {pipeline_mode = #tpu.pipeline_mode<synchronous>, transform_indices = @transform_5, window_bounds = array<i64: 256, 256>}, {pipeline_mode = #tpu.pipeline_mode<synchronous>, transform_indices = @transform_6, window_bounds = array<i64: 1, 256>}, {pipeline_mode = #tpu.pipeline_mode<synchronous>, transform_indices = @transform_7, window_bounds = array<i64: 1, 256>}, {pipeline_mode = #tpu.pipeline_mode<synchronous>, transform_indices = @transform_8, window_bounds = array<i64: 1, 256>}, {pipeline_mode = #tpu.pipeline_mode<synchronous>, transform_indices = @transform_9, window_bounds = array<i64: 512, 1536>}, {pipeline_mode = #tpu.pipeline_mode<synchronous>, transform_indices = @transform_10, window_bounds = array<i64: 1, 1536>}, {pipeline_mode = #tpu.pipeline_mode<synchronous>, transform_indices = @transform_11, window_bounds = array<i64: 256, 64>}, {pipeline_mode = #tpu.pipeline_mode<synchronous>, transform_indices = @transform_12, window_bounds = array<i64: 64, 256>}, {pipeline_mode = #tpu.pipeline_mode<synchronous>, transform_indices = @transform_13, window_bounds = array<i64: 256, 256>}, {pipeline_mode = #tpu.pipeline_mode<synchronous>, transform_indices = @transform_14, window_bounds = array<i64: 1, 256>}, {pipeline_mode = #tpu.pipeline_mode<synchronous>, transform_indices = @transform_15, window_bounds = array<i64: 512, 128>}, {pipeline_mode = #tpu.pipeline_mode<synchronous>, transform_indices = @transform_16, window_bounds = array<i64: 1, 128>}, {pipeline_mode = #tpu.pipeline_mode<synchronous>, transform_indices = @transform_17, window_bounds = array<i64: 128, 128>}, {pipeline_mode = #tpu.pipeline_mode<synchronous>, transform_indices = @transform_18, window_bounds = array<i64: 1, 128>}, {transform_indices = @transform_19, window_bounds = array<i64: 8, 128>}, {transform_indices = @transform_20, window_bounds = array<i64: 8, 128>}]} {
    %c0 = arith.constant 0 : index
    %c0_0 = arith.constant 0 : index
    %0 = vector.load %arg1[%c0, %c0_0] : memref<8x1024xbf16, #tpu.memory_space<vmem>>, vector<8x1024xbf16>
    %1 = vector.extract_strided_slice %0 {offsets = [0, 0], sizes = [8, 128], strides = [1, 1]} : vector<8x1024xbf16> to vector<8x128xbf16>
    %2 = vector.extract_strided_slice %0 {offsets = [0, 512], sizes = [8, 128], strides = [1, 1]} : vector<8x1024xbf16> to vector<8x128xbf16>
    %3 = vector.extract_strided_slice %0 {offsets = [0, 128], sizes = [8, 128], strides = [1, 1]} : vector<8x1024xbf16> to vector<8x128xbf16>
    %4 = vector.extract_strided_slice %0 {offsets = [0, 640], sizes = [8, 128], strides = [1, 1]} : vector<8x1024xbf16> to vector<8x128xbf16>
    %5 = vector.extract_strided_slice %0 {offsets = [0, 256], sizes = [8, 128], strides = [1, 1]} : vector<8x1024xbf16> to vector<8x128xbf16>
    %6 = vector.extract_strided_slice %0 {offsets = [0, 768], sizes = [8, 128], strides = [1, 1]} : vector<8x1024xbf16> to vector<8x128xbf16>
    %7 = vector.extract_strided_slice %0 {offsets = [0, 384], sizes = [8, 128], strides = [1, 1]} : vector<8x1024xbf16> to vector<8x128xbf16>
    %8 = vector.extract_strided_slice %0 {offsets = [0, 896], sizes = [8, 128], strides = [1, 1]} : vector<8x1024xbf16> to vector<8x128xbf16>
    %9 = tpu.concatenate %1, %2, %3, %4, %5, %6, %7, %8 in 0 : vector<8x128xbf16>, vector<8x128xbf16>, vector<8x128xbf16>, vector<8x128xbf16>, vector<8x128xbf16>, vector<8x128xbf16>, vector<8x128xbf16>, vector<8x128xbf16> -> vector<64x128xbf16>
    %10 = vector.extract_strided_slice %0 {offsets = [0, 0], sizes = [8, 256], strides = [1, 1]} : vector<8x1024xbf16> to vector<8x256xbf16>
    %11 = vector.extract_strided_slice %0 {offsets = [0, 512], sizes = [8, 256], strides = [1, 1]} : vector<8x1024xbf16> to vector<8x256xbf16>
    %12 = vector.extract_strided_slice %0 {offsets = [0, 256], sizes = [8, 256], strides = [1, 1]} : vector<8x1024xbf16> to vector<8x256xbf16>
    %13 = vector.extract_strided_slice %0 {offsets = [0, 768], sizes = [8, 256], strides = [1, 1]} : vector<8x1024xbf16> to vector<8x256xbf16>
    %14 = tpu.concatenate %10, %11, %12, %13 in 0 : vector<8x256xbf16>, vector<8x256xbf16>, vector<8x256xbf16>, vector<8x256xbf16> -> vector<32x256xbf16>
    %c0_1 = arith.constant 0 : index
    %c0_2 = arith.constant 0 : index
    %15 = vector.load %arg2[%c0_1, %c0_2] : memref<128x3968xbf16, #tpu.memory_space<vmem>>, vector<128x1024xbf16>
    %cst = arith.constant dense<0.000000e+00> : vector<64x1024xf32>
    %16 = tpu.matmul %9, %15, %cst {dimension_numbers = #tpu.dot_dimension_numbers<[1], [0], [0], [1], [0, 0, 1, 1], [], []>} : vector<64x128xbf16>, vector<128x1024xbf16>, vector<64x1024xf32> -> vector<64x1024xf32>
    %c0_3 = arith.constant 0 : index
    %c0_4 = arith.constant 0 : index
    %17 = vector.load %arg3[%c0_3, %c0_4] : memref<1x3968xf32, #tpu.memory_space<vmem>>, vector<1x1024xf32>
    %18 = vector.broadcast %17 : vector<1x1024xf32> to vector<64x1024xf32>
    %19 = arith.addf %16, %18 : vector<64x1024xf32>
    %cst_5 = arith.constant 0.000000e+00 : f32
    %20 = vector.broadcast %cst_5 : f32 to vector<64x1024xf32>
    %21 = arith.maximumf %19, %20 : vector<64x1024xf32>
    %c0_6 = arith.constant 0 : index
    %c0_7 = arith.constant 0 : index
    %22 = vector.load %arg4[%c0_6, %c0_7] : memref<1x3968xf32, #tpu.memory_space<vmem>>, vector<1x1024xf32>
    %23 = vector.broadcast %22 : vector<1x1024xf32> to vector<64x1024xf32>
    %24 = arith.mulf %21, %23 : vector<64x1024xf32>
    %c0_8 = arith.constant 0 : index
    %c0_9 = arith.constant 0 : index
    %25 = vector.load %arg5[%c0_8, %c0_9] : memref<1x3968xf32, #tpu.memory_space<vmem>>, vector<1x1024xf32>
    %26 = vector.broadcast %25 : vector<1x1024xf32> to vector<64x1024xf32>
    %27 = arith.addf %24, %26 : vector<64x1024xf32>
    %28 = arith.truncf %27 : vector<64x1024xf32> to vector<64x1024xbf16>
    %29 = vector.extract_strided_slice %28 {offsets = [0, 0], sizes = [64, 512], strides = [1, 1]} : vector<64x1024xbf16> to vector<64x512xbf16>
    %30 = vector.extract_strided_slice %28 {offsets = [0, 512], sizes = [64, 512], strides = [1, 1]} : vector<64x1024xbf16> to vector<64x512xbf16>
    %31 = arith.maximumf %29, %30 : vector<64x512xbf16>
    %32 = vector.extract_strided_slice %31 {offsets = [0, 0], sizes = [64, 256], strides = [1, 1]} : vector<64x512xbf16> to vector<64x256xbf16>
    %33 = vector.extract_strided_slice %31 {offsets = [0, 256], sizes = [64, 256], strides = [1, 1]} : vector<64x512xbf16> to vector<64x256xbf16>
    %34 = arith.maximumf %32, %33 : vector<64x256xbf16>
    %35 = vector.extract_strided_slice %34 {offsets = [0, 0], sizes = [64, 128], strides = [1, 1]} : vector<64x256xbf16> to vector<64x128xbf16>
    %36 = vector.extract_strided_slice %34 {offsets = [0, 128], sizes = [64, 128], strides = [1, 1]} : vector<64x256xbf16> to vector<64x128xbf16>
    %37 = arith.maximumf %35, %36 : vector<64x128xbf16>
    %38 = vector.extract_strided_slice %37 {offsets = [0, 0], sizes = [64, 64], strides = [1, 1]} : vector<64x128xbf16> to vector<64x64xbf16>
    %39 = vector.extract_strided_slice %37 {offsets = [0, 64], sizes = [64, 64], strides = [1, 1]} : vector<64x128xbf16> to vector<64x64xbf16>
    %40 = arith.maximumf %38, %39 : vector<64x64xbf16>
    %41 = vector.extract_strided_slice %40 {offsets = [0, 0], sizes = [64, 32], strides = [1, 1]} : vector<64x64xbf16> to vector<64x32xbf16>
    %42 = vector.extract_strided_slice %40 {offsets = [0, 32], sizes = [64, 32], strides = [1, 1]} : vector<64x64xbf16> to vector<64x32xbf16>
    %43 = arith.maximumf %41, %42 : vector<64x32xbf16>
    %c0_10 = arith.constant 0 : index
    %c1024 = arith.constant 1024 : index
    %44 = vector.load %arg2[%c0_10, %c1024] : memref<128x3968xbf16, #tpu.memory_space<vmem>>, vector<128x1024xbf16>
    %cst_11 = arith.constant dense<0.000000e+00> : vector<64x1024xf32>
    %45 = tpu.matmul %9, %44, %cst_11 {dimension_numbers = #tpu.dot_dimension_numbers<[1], [0], [0], [1], [0, 0, 1, 1], [], []>} : vector<64x128xbf16>, vector<128x1024xbf16>, vector<64x1024xf32> -> vector<64x1024xf32>
    %c0_12 = arith.constant 0 : index
    %c1024_13 = arith.constant 1024 : index
    %46 = vector.load %arg3[%c0_12, %c1024_13] : memref<1x3968xf32, #tpu.memory_space<vmem>>, vector<1x1024xf32>
    %47 = vector.broadcast %46 : vector<1x1024xf32> to vector<64x1024xf32>
    %48 = arith.addf %45, %47 : vector<64x1024xf32>
    %cst_14 = arith.constant 0.000000e+00 : f32
    %49 = vector.broadcast %cst_14 : f32 to vector<64x1024xf32>
    %50 = arith.maximumf %48, %49 : vector<64x1024xf32>
    %c0_15 = arith.constant 0 : index
    %c1024_16 = arith.constant 1024 : index
    %51 = vector.load %arg4[%c0_15, %c1024_16] : memref<1x3968xf32, #tpu.memory_space<vmem>>, vector<1x1024xf32>
    %52 = vector.broadcast %51 : vector<1x1024xf32> to vector<64x1024xf32>
    %53 = arith.mulf %50, %52 : vector<64x1024xf32>
    %c0_17 = arith.constant 0 : index
    %c1024_18 = arith.constant 1024 : index
    %54 = vector.load %arg5[%c0_17, %c1024_18] : memref<1x3968xf32, #tpu.memory_space<vmem>>, vector<1x1024xf32>
    %55 = vector.broadcast %54 : vector<1x1024xf32> to vector<64x1024xf32>
    %56 = arith.addf %53, %55 : vector<64x1024xf32>
    %57 = arith.truncf %56 : vector<64x1024xf32> to vector<64x1024xbf16>
    %58 = vector.extract_strided_slice %57 {offsets = [0, 0], sizes = [64, 512], strides = [1, 1]} : vector<64x1024xbf16> to vector<64x512xbf16>
    %59 = vector.extract_strided_slice %57 {offsets = [0, 512], sizes = [64, 512], strides = [1, 1]} : vector<64x1024xbf16> to vector<64x512xbf16>
    %60 = arith.maximumf %58, %59 : vector<64x512xbf16>
    %61 = vector.extract_strided_slice %60 {offsets = [0, 0], sizes = [64, 256], strides = [1, 1]} : vector<64x512xbf16> to vector<64x256xbf16>
    %62 = vector.extract_strided_slice %60 {offsets = [0, 256], sizes = [64, 256], strides = [1, 1]} : vector<64x512xbf16> to vector<64x256xbf16>
    %63 = arith.maximumf %61, %62 : vector<64x256xbf16>
    %64 = vector.extract_strided_slice %63 {offsets = [0, 0], sizes = [64, 128], strides = [1, 1]} : vector<64x256xbf16> to vector<64x128xbf16>
    %65 = vector.extract_strided_slice %63 {offsets = [0, 128], sizes = [64, 128], strides = [1, 1]} : vector<64x256xbf16> to vector<64x128xbf16>
    %66 = arith.maximumf %64, %65 : vector<64x128xbf16>
    %67 = vector.extract_strided_slice %66 {offsets = [0, 0], sizes = [64, 64], strides = [1, 1]} : vector<64x128xbf16> to vector<64x64xbf16>
    %68 = vector.extract_strided_slice %66 {offsets = [0, 64], sizes = [64, 64], strides = [1, 1]} : vector<64x128xbf16> to vector<64x64xbf16>
    %69 = arith.maximumf %67, %68 : vector<64x64xbf16>
    %70 = vector.extract_strided_slice %69 {offsets = [0, 0], sizes = [64, 32], strides = [1, 1]} : vector<64x64xbf16> to vector<64x32xbf16>
    %71 = vector.extract_strided_slice %69 {offsets = [0, 32], sizes = [64, 32], strides = [1, 1]} : vector<64x64xbf16> to vector<64x32xbf16>
    %72 = arith.maximumf %70, %71 : vector<64x32xbf16>
    %73 = arith.maximumf %43, %72 : vector<64x32xbf16>
    %74 = vector.extract_strided_slice %73 {offsets = [0, 0], sizes = [32, 32], strides = [1, 1]} : vector<64x32xbf16> to vector<32x32xbf16>
    %75 = vector.extract_strided_slice %73 {offsets = [32, 0], sizes = [32, 32], strides = [1, 1]} : vector<64x32xbf16> to vector<32x32xbf16>
    %76 = arith.maximumf %74, %75 : vector<32x32xbf16>
    %77 = vector.extract_strided_slice %76 {offsets = [0, 0], sizes = [16, 32], strides = [1, 1]} : vector<32x32xbf16> to vector<16x32xbf16>
    %78 = vector.extract_strided_slice %76 {offsets = [16, 0], sizes = [16, 32], strides = [1, 1]} : vector<32x32xbf16> to vector<16x32xbf16>
    %79 = arith.maximumf %77, %78 : vector<16x32xbf16>
    %c0_19 = arith.constant 0 : index
    %c2048 = arith.constant 2048 : index
    %80 = vector.load %arg2[%c0_19, %c2048] : memref<128x3968xbf16, #tpu.memory_space<vmem>>, vector<128x1024xbf16>
    %cst_20 = arith.constant dense<0.000000e+00> : vector<64x1024xf32>
    %81 = tpu.matmul %9, %80, %cst_20 {dimension_numbers = #tpu.dot_dimension_numbers<[1], [0], [0], [1], [0, 0, 1, 1], [], []>} : vector<64x128xbf16>, vector<128x1024xbf16>, vector<64x1024xf32> -> vector<64x1024xf32>
    %c0_21 = arith.constant 0 : index
    %c2048_22 = arith.constant 2048 : index
    %82 = vector.load %arg3[%c0_21, %c2048_22] : memref<1x3968xf32, #tpu.memory_space<vmem>>, vector<1x1024xf32>
    %83 = vector.broadcast %82 : vector<1x1024xf32> to vector<64x1024xf32>
    %84 = arith.addf %81, %83 : vector<64x1024xf32>
    %cst_23 = arith.constant 0.000000e+00 : f32
    %85 = vector.broadcast %cst_23 : f32 to vector<64x1024xf32>
    %86 = arith.maximumf %84, %85 : vector<64x1024xf32>
    %c0_24 = arith.constant 0 : index
    %c2048_25 = arith.constant 2048 : index
    %87 = vector.load %arg4[%c0_24, %c2048_25] : memref<1x3968xf32, #tpu.memory_space<vmem>>, vector<1x1024xf32>
    %88 = vector.broadcast %87 : vector<1x1024xf32> to vector<64x1024xf32>
    %89 = arith.mulf %86, %88 : vector<64x1024xf32>
    %c0_26 = arith.constant 0 : index
    %c2048_27 = arith.constant 2048 : index
    %90 = vector.load %arg5[%c0_26, %c2048_27] : memref<1x3968xf32, #tpu.memory_space<vmem>>, vector<1x1024xf32>
    %91 = vector.broadcast %90 : vector<1x1024xf32> to vector<64x1024xf32>
    %92 = arith.addf %89, %91 : vector<64x1024xf32>
    %93 = arith.truncf %92 : vector<64x1024xf32> to vector<64x1024xbf16>
    %94 = vector.extract_strided_slice %93 {offsets = [0, 0], sizes = [64, 512], strides = [1, 1]} : vector<64x1024xbf16> to vector<64x512xbf16>
    %95 = vector.extract_strided_slice %93 {offsets = [0, 512], sizes = [64, 512], strides = [1, 1]} : vector<64x1024xbf16> to vector<64x512xbf16>
    %96 = arith.maximumf %94, %95 : vector<64x512xbf16>
    %97 = vector.extract_strided_slice %96 {offsets = [0, 0], sizes = [64, 256], strides = [1, 1]} : vector<64x512xbf16> to vector<64x256xbf16>
    %98 = vector.extract_strided_slice %96 {offsets = [0, 256], sizes = [64, 256], strides = [1, 1]} : vector<64x512xbf16> to vector<64x256xbf16>
    %99 = arith.maximumf %97, %98 : vector<64x256xbf16>
    %100 = vector.extract_strided_slice %99 {offsets = [0, 0], sizes = [64, 128], strides = [1, 1]} : vector<64x256xbf16> to vector<64x128xbf16>
    %101 = vector.extract_strided_slice %99 {offsets = [0, 128], sizes = [64, 128], strides = [1, 1]} : vector<64x256xbf16> to vector<64x128xbf16>
    %102 = arith.maximumf %100, %101 : vector<64x128xbf16>
    %103 = vector.extract_strided_slice %102 {offsets = [0, 0], sizes = [64, 64], strides = [1, 1]} : vector<64x128xbf16> to vector<64x64xbf16>
    %104 = vector.extract_strided_slice %102 {offsets = [0, 64], sizes = [64, 64], strides = [1, 1]} : vector<64x128xbf16> to vector<64x64xbf16>
    %105 = arith.maximumf %103, %104 : vector<64x64xbf16>
    %106 = vector.extract_strided_slice %105 {offsets = [0, 0], sizes = [64, 32], strides = [1, 1]} : vector<64x64xbf16> to vector<64x32xbf16>
    %107 = vector.extract_strided_slice %105 {offsets = [0, 32], sizes = [64, 32], strides = [1, 1]} : vector<64x64xbf16> to vector<64x32xbf16>
    %108 = arith.maximumf %106, %107 : vector<64x32xbf16>
    %109 = vector.extract_strided_slice %108 {offsets = [0, 0], sizes = [32, 32], strides = [1, 1]} : vector<64x32xbf16> to vector<32x32xbf16>
    %110 = vector.extract_strided_slice %108 {offsets = [32, 0], sizes = [32, 32], strides = [1, 1]} : vector<64x32xbf16> to vector<32x32xbf16>
    %111 = arith.maximumf %109, %110 : vector<32x32xbf16>
    %112 = vector.extract_strided_slice %111 {offsets = [0, 0], sizes = [16, 32], strides = [1, 1]} : vector<32x32xbf16> to vector<16x32xbf16>
    %113 = vector.extract_strided_slice %111 {offsets = [16, 0], sizes = [16, 32], strides = [1, 1]} : vector<32x32xbf16> to vector<16x32xbf16>
    %114 = arith.maximumf %112, %113 : vector<16x32xbf16>
    %c0_28 = arith.constant 0 : index
    %c3072 = arith.constant 3072 : index
    %115 = vector.load %arg2[%c0_28, %c3072] : memref<128x3968xbf16, #tpu.memory_space<vmem>>, vector<128x512xbf16>
    %cst_29 = arith.constant dense<0.000000e+00> : vector<64x512xf32>
    %116 = tpu.matmul %9, %115, %cst_29 {dimension_numbers = #tpu.dot_dimension_numbers<[1], [0], [0], [1], [0, 0, 1, 1], [], []>} : vector<64x128xbf16>, vector<128x512xbf16>, vector<64x512xf32> -> vector<64x512xf32>
    %c0_30 = arith.constant 0 : index
    %c3072_31 = arith.constant 3072 : index
    %117 = vector.load %arg3[%c0_30, %c3072_31] : memref<1x3968xf32, #tpu.memory_space<vmem>>, vector<1x512xf32>
    %118 = vector.broadcast %117 : vector<1x512xf32> to vector<64x512xf32>
    %119 = arith.addf %116, %118 : vector<64x512xf32>
    %cst_32 = arith.constant 0.000000e+00 : f32
    %120 = vector.broadcast %cst_32 : f32 to vector<64x512xf32>
    %121 = arith.maximumf %119, %120 : vector<64x512xf32>
    %c0_33 = arith.constant 0 : index
    %c3072_34 = arith.constant 3072 : index
    %122 = vector.load %arg4[%c0_33, %c3072_34] : memref<1x3968xf32, #tpu.memory_space<vmem>>, vector<1x512xf32>
    %123 = vector.broadcast %122 : vector<1x512xf32> to vector<64x512xf32>
    %124 = arith.mulf %121, %123 : vector<64x512xf32>
    %c0_35 = arith.constant 0 : index
    %c3072_36 = arith.constant 3072 : index
    %125 = vector.load %arg5[%c0_35, %c3072_36] : memref<1x3968xf32, #tpu.memory_space<vmem>>, vector<1x512xf32>
    %126 = vector.broadcast %125 : vector<1x512xf32> to vector<64x512xf32>
    %127 = arith.addf %124, %126 : vector<64x512xf32>
    %128 = arith.truncf %127 : vector<64x512xf32> to vector<64x512xbf16>
    %129 = vector.extract_strided_slice %128 {offsets = [0, 0], sizes = [64, 256], strides = [1, 1]} : vector<64x512xbf16> to vector<64x256xbf16>
    %130 = vector.extract_strided_slice %128 {offsets = [0, 256], sizes = [64, 256], strides = [1, 1]} : vector<64x512xbf16> to vector<64x256xbf16>
    %131 = arith.maximumf %129, %130 : vector<64x256xbf16>
    %132 = vector.extract_strided_slice %131 {offsets = [0, 0], sizes = [64, 128], strides = [1, 1]} : vector<64x256xbf16> to vector<64x128xbf16>
    %133 = vector.extract_strided_slice %131 {offsets = [0, 128], sizes = [64, 128], strides = [1, 1]} : vector<64x256xbf16> to vector<64x128xbf16>
    %134 = arith.maximumf %132, %133 : vector<64x128xbf16>
    %135 = vector.extract_strided_slice %134 {offsets = [0, 0], sizes = [64, 64], strides = [1, 1]} : vector<64x128xbf16> to vector<64x64xbf16>
    %136 = vector.extract_strided_slice %134 {offsets = [0, 64], sizes = [64, 64], strides = [1, 1]} : vector<64x128xbf16> to vector<64x64xbf16>
    %137 = arith.maximumf %135, %136 : vector<64x64xbf16>
    %138 = vector.extract_strided_slice %137 {offsets = [0, 0], sizes = [64, 32], strides = [1, 1]} : vector<64x64xbf16> to vector<64x32xbf16>
    %139 = vector.extract_strided_slice %137 {offsets = [0, 32], sizes = [64, 32], strides = [1, 1]} : vector<64x64xbf16> to vector<64x32xbf16>
    %140 = arith.maximumf %138, %139 : vector<64x32xbf16>
    %141 = vector.extract_strided_slice %140 {offsets = [0, 0], sizes = [32, 32], strides = [1, 1]} : vector<64x32xbf16> to vector<32x32xbf16>
    %142 = vector.extract_strided_slice %140 {offsets = [32, 0], sizes = [32, 32], strides = [1, 1]} : vector<64x32xbf16> to vector<32x32xbf16>
    %143 = arith.maximumf %141, %142 : vector<32x32xbf16>
    %144 = vector.extract_strided_slice %143 {offsets = [0, 0], sizes = [16, 32], strides = [1, 1]} : vector<32x32xbf16> to vector<16x32xbf16>
    %145 = vector.extract_strided_slice %143 {offsets = [16, 0], sizes = [16, 32], strides = [1, 1]} : vector<32x32xbf16> to vector<16x32xbf16>
    %146 = arith.maximumf %144, %145 : vector<16x32xbf16>
    %c0_37 = arith.constant 0 : index
    %c3584 = arith.constant 3584 : index
    %147 = vector.load %arg2[%c0_37, %c3584] : memref<128x3968xbf16, #tpu.memory_space<vmem>>, vector<128x256xbf16>
    %cst_38 = arith.constant dense<0.000000e+00> : vector<64x256xf32>
    %148 = tpu.matmul %9, %147, %cst_38 {dimension_numbers = #tpu.dot_dimension_numbers<[1], [0], [0], [1], [0, 0, 1, 1], [], []>} : vector<64x128xbf16>, vector<128x256xbf16>, vector<64x256xf32> -> vector<64x256xf32>
    %c0_39 = arith.constant 0 : index
    %c3584_40 = arith.constant 3584 : index
    %149 = vector.load %arg3[%c0_39, %c3584_40] : memref<1x3968xf32, #tpu.memory_space<vmem>>, vector<1x256xf32>
    %150 = vector.broadcast %149 : vector<1x256xf32> to vector<64x256xf32>
    %151 = arith.addf %148, %150 : vector<64x256xf32>
    %cst_41 = arith.constant 0.000000e+00 : f32
    %152 = vector.broadcast %cst_41 : f32 to vector<64x256xf32>
    %153 = arith.maximumf %151, %152 : vector<64x256xf32>
    %c0_42 = arith.constant 0 : index
    %c3584_43 = arith.constant 3584 : index
    %154 = vector.load %arg4[%c0_42, %c3584_43] : memref<1x3968xf32, #tpu.memory_space<vmem>>, vector<1x256xf32>
    %155 = vector.broadcast %154 : vector<1x256xf32> to vector<64x256xf32>
    %156 = arith.mulf %153, %155 : vector<64x256xf32>
    %c0_44 = arith.constant 0 : index
    %c3584_45 = arith.constant 3584 : index
    %157 = vector.load %arg5[%c0_44, %c3584_45] : memref<1x3968xf32, #tpu.memory_space<vmem>>, vector<1x256xf32>
    %158 = vector.broadcast %157 : vector<1x256xf32> to vector<64x256xf32>
    %159 = arith.addf %156, %158 : vector<64x256xf32>
    %160 = arith.truncf %159 : vector<64x256xf32> to vector<64x256xbf16>
    %161 = vector.extract_strided_slice %160 {offsets = [0, 0], sizes = [64, 128], strides = [1, 1]} : vector<64x256xbf16> to vector<64x128xbf16>
    %162 = vector.extract_strided_slice %160 {offsets = [0, 128], sizes = [64, 128], strides = [1, 1]} : vector<64x256xbf16> to vector<64x128xbf16>
    %163 = arith.maximumf %161, %162 : vector<64x128xbf16>
    %164 = vector.extract_strided_slice %163 {offsets = [0, 0], sizes = [64, 64], strides = [1, 1]} : vector<64x128xbf16> to vector<64x64xbf16>
    %165 = vector.extract_strided_slice %163 {offsets = [0, 64], sizes = [64, 64], strides = [1, 1]} : vector<64x128xbf16> to vector<64x64xbf16>
    %166 = arith.maximumf %164, %165 : vector<64x64xbf16>
    %167 = vector.extract_strided_slice %166 {offsets = [0, 0], sizes = [64, 32], strides = [1, 1]} : vector<64x64xbf16> to vector<64x32xbf16>
    %168 = vector.extract_strided_slice %166 {offsets = [0, 32], sizes = [64, 32], strides = [1, 1]} : vector<64x64xbf16> to vector<64x32xbf16>
    %169 = arith.maximumf %167, %168 : vector<64x32xbf16>
    %170 = vector.extract_strided_slice %169 {offsets = [0, 0], sizes = [32, 32], strides = [1, 1]} : vector<64x32xbf16> to vector<32x32xbf16>
    %171 = vector.extract_strided_slice %169 {offsets = [32, 0], sizes = [32, 32], strides = [1, 1]} : vector<64x32xbf16> to vector<32x32xbf16>
    %172 = arith.maximumf %170, %171 : vector<32x32xbf16>
    %173 = vector.extract_strided_slice %172 {offsets = [0, 0], sizes = [16, 32], strides = [1, 1]} : vector<32x32xbf16> to vector<16x32xbf16>
    %174 = vector.extract_strided_slice %172 {offsets = [16, 0], sizes = [16, 32], strides = [1, 1]} : vector<32x32xbf16> to vector<16x32xbf16>
    %175 = arith.maximumf %173, %174 : vector<16x32xbf16>
    %c0_46 = arith.constant 0 : index
    %c3840 = arith.constant 3840 : index
    %176 = vector.load %arg2[%c0_46, %c3840] : memref<128x3968xbf16, #tpu.memory_space<vmem>>, vector<128x128xbf16>
    %cst_47 = arith.constant dense<0.000000e+00> : vector<64x128xf32>
    %177 = tpu.matmul %9, %176, %cst_47 {dimension_numbers = #tpu.dot_dimension_numbers<[1], [0], [0], [1], [0, 0, 1, 1], [], []>} : vector<64x128xbf16>, vector<128x128xbf16>, vector<64x128xf32> -> vector<64x128xf32>
    %c0_48 = arith.constant 0 : index
    %c3840_49 = arith.constant 3840 : index
    %178 = vector.load %arg3[%c0_48, %c3840_49] : memref<1x3968xf32, #tpu.memory_space<vmem>>, vector<1x128xf32>
    %179 = vector.broadcast %178 : vector<1x128xf32> to vector<64x128xf32>
    %180 = arith.addf %177, %179 : vector<64x128xf32>
    %cst_50 = arith.constant 0.000000e+00 : f32
    %181 = vector.broadcast %cst_50 : f32 to vector<64x128xf32>
    %182 = arith.maximumf %180, %181 : vector<64x128xf32>
    %c0_51 = arith.constant 0 : index
    %c3840_52 = arith.constant 3840 : index
    %183 = vector.load %arg4[%c0_51, %c3840_52] : memref<1x3968xf32, #tpu.memory_space<vmem>>, vector<1x128xf32>
    %184 = vector.broadcast %183 : vector<1x128xf32> to vector<64x128xf32>
    %185 = arith.mulf %182, %184 : vector<64x128xf32>
    %c0_53 = arith.constant 0 : index
    %c3840_54 = arith.constant 3840 : index
    %186 = vector.load %arg5[%c0_53, %c3840_54] : memref<1x3968xf32, #tpu.memory_space<vmem>>, vector<1x128xf32>
    %187 = vector.broadcast %186 : vector<1x128xf32> to vector<64x128xf32>
    %188 = arith.addf %185, %187 : vector<64x128xf32>
    %189 = arith.truncf %188 : vector<64x128xf32> to vector<64x128xbf16>
    %190 = vector.extract_strided_slice %189 {offsets = [0, 0], sizes = [64, 64], strides = [1, 1]} : vector<64x128xbf16> to vector<64x64xbf16>
    %191 = vector.extract_strided_slice %189 {offsets = [0, 64], sizes = [64, 64], strides = [1, 1]} : vector<64x128xbf16> to vector<64x64xbf16>
    %192 = arith.maximumf %190, %191 : vector<64x64xbf16>
    %193 = vector.extract_strided_slice %192 {offsets = [0, 0], sizes = [64, 32], strides = [1, 1]} : vector<64x64xbf16> to vector<64x32xbf16>
    %194 = vector.extract_strided_slice %192 {offsets = [0, 32], sizes = [64, 32], strides = [1, 1]} : vector<64x64xbf16> to vector<64x32xbf16>
    %195 = arith.maximumf %193, %194 : vector<64x32xbf16>
    %196 = vector.extract_strided_slice %195 {offsets = [0, 0], sizes = [32, 32], strides = [1, 1]} : vector<64x32xbf16> to vector<32x32xbf16>
    %197 = vector.extract_strided_slice %195 {offsets = [32, 0], sizes = [32, 32], strides = [1, 1]} : vector<64x32xbf16> to vector<32x32xbf16>
    %198 = arith.maximumf %196, %197 : vector<32x32xbf16>
    %199 = vector.extract_strided_slice %198 {offsets = [0, 0], sizes = [16, 32], strides = [1, 1]} : vector<32x32xbf16> to vector<16x32xbf16>
    %200 = vector.extract_strided_slice %198 {offsets = [16, 0], sizes = [16, 32], strides = [1, 1]} : vector<32x32xbf16> to vector<16x32xbf16>
    %201 = arith.maximumf %199, %200 : vector<16x32xbf16>
    %c0_55 = arith.constant 0 : index
    %c0_56 = arith.constant 0 : index
    %202 = vector.load %arg6[%c0_55, %c0_56] : memref<256x256xbf16, #tpu.memory_space<vmem>>, vector<256x256xbf16>
    %cst_57 = arith.constant dense<0.000000e+00> : vector<32x256xf32>
    %203 = tpu.matmul %14, %202, %cst_57 {dimension_numbers = #tpu.dot_dimension_numbers<[1], [0], [0], [1], [0, 0, 1, 1], [], []>} : vector<32x256xbf16>, vector<256x256xbf16>, vector<32x256xf32> -> vector<32x256xf32>
    %c0_58 = arith.constant 0 : index
    %c0_59 = arith.constant 0 : index
    %204 = vector.load %arg7[%c0_58, %c0_59] : memref<1x256xf32, #tpu.memory_space<vmem>>, vector<1x256xf32>
    %205 = vector.broadcast %204 : vector<1x256xf32> to vector<32x256xf32>
    %206 = arith.addf %203, %205 : vector<32x256xf32>
    %cst_60 = arith.constant 0.000000e+00 : f32
    %207 = vector.broadcast %cst_60 : f32 to vector<32x256xf32>
    %208 = arith.maximumf %206, %207 : vector<32x256xf32>
    %c0_61 = arith.constant 0 : index
    %c0_62 = arith.constant 0 : index
    %209 = vector.load %arg8[%c0_61, %c0_62] : memref<1x256xf32, #tpu.memory_space<vmem>>, vector<1x256xf32>
    %210 = vector.broadcast %209 : vector<1x256xf32> to vector<32x256xf32>
    %211 = arith.mulf %208, %210 : vector<32x256xf32>
    %c0_63 = arith.constant 0 : index
    %c0_64 = arith.constant 0 : index
    %212 = vector.load %arg9[%c0_63, %c0_64] : memref<1x256xf32, #tpu.memory_space<vmem>>, vector<1x256xf32>
    %213 = vector.broadcast %212 : vector<1x256xf32> to vector<32x256xf32>
    %214 = arith.addf %211, %213 : vector<32x256xf32>
    %215 = arith.truncf %214 : vector<32x256xf32> to vector<32x256xbf16>
    %216 = vector.extract_strided_slice %215 {offsets = [0, 0], sizes = [32, 128], strides = [1, 1]} : vector<32x256xbf16> to vector<32x128xbf16>
    %217 = vector.extract_strided_slice %216 {offsets = [0, 0], sizes = [32, 64], strides = [1, 1]} : vector<32x128xbf16> to vector<32x64xbf16>
    %218 = vector.extract_strided_slice %216 {offsets = [0, 64], sizes = [32, 64], strides = [1, 1]} : vector<32x128xbf16> to vector<32x64xbf16>
    %219 = arith.maximumf %217, %218 : vector<32x64xbf16>
    %220 = vector.extract_strided_slice %219 {offsets = [0, 0], sizes = [32, 32], strides = [1, 1]} : vector<32x64xbf16> to vector<32x32xbf16>
    %221 = vector.extract_strided_slice %219 {offsets = [0, 32], sizes = [32, 32], strides = [1, 1]} : vector<32x64xbf16> to vector<32x32xbf16>
    %222 = arith.maximumf %220, %221 : vector<32x32xbf16>
    %223 = vector.extract_strided_slice %222 {offsets = [0, 0], sizes = [16, 32], strides = [1, 1]} : vector<32x32xbf16> to vector<16x32xbf16>
    %224 = vector.extract_strided_slice %222 {offsets = [16, 0], sizes = [16, 32], strides = [1, 1]} : vector<32x32xbf16> to vector<16x32xbf16>
    %225 = arith.maximumf %223, %224 : vector<16x32xbf16>
    %226 = vector.extract_strided_slice %215 {offsets = [0, 128], sizes = [32, 64], strides = [1, 1]} : vector<32x256xbf16> to vector<32x64xbf16>
    %227 = vector.extract_strided_slice %226 {offsets = [0, 0], sizes = [32, 32], strides = [1, 1]} : vector<32x64xbf16> to vector<32x32xbf16>
    %228 = vector.extract_strided_slice %226 {offsets = [0, 32], sizes = [32, 32], strides = [1, 1]} : vector<32x64xbf16> to vector<32x32xbf16>
    %229 = arith.maximumf %227, %228 : vector<32x32xbf16>
    %230 = vector.extract_strided_slice %229 {offsets = [0, 0], sizes = [16, 32], strides = [1, 1]} : vector<32x32xbf16> to vector<16x32xbf16>
    %231 = vector.extract_strided_slice %229 {offsets = [16, 0], sizes = [16, 32], strides = [1, 1]} : vector<32x32xbf16> to vector<16x32xbf16>
    %232 = arith.maximumf %230, %231 : vector<16x32xbf16>
    %233 = vector.extract_strided_slice %215 {offsets = [0, 192], sizes = [32, 32], strides = [1, 1]} : vector<32x256xbf16> to vector<32x32xbf16>
    %234 = vector.extract_strided_slice %233 {offsets = [0, 0], sizes = [16, 32], strides = [1, 1]} : vector<32x32xbf16> to vector<16x32xbf16>
    %235 = vector.extract_strided_slice %233 {offsets = [16, 0], sizes = [16, 32], strides = [1, 1]} : vector<32x32xbf16> to vector<16x32xbf16>
    %236 = arith.maximumf %234, %235 : vector<16x32xbf16>
    %237 = vector.extract_strided_slice %79 {offsets = [0, 0], sizes = [8, 32], strides = [1, 1]} : vector<16x32xbf16> to vector<8x32xbf16>
    %238 = vector.extract_strided_slice %79 {offsets = [8, 0], sizes = [8, 32], strides = [1, 1]} : vector<16x32xbf16> to vector<8x32xbf16>
    %239 = vector.extract_strided_slice %114 {offsets = [0, 0], sizes = [8, 32], strides = [1, 1]} : vector<16x32xbf16> to vector<8x32xbf16>
    %240 = vector.extract_strided_slice %114 {offsets = [8, 0], sizes = [8, 32], strides = [1, 1]} : vector<16x32xbf16> to vector<8x32xbf16>
    %241 = vector.extract_strided_slice %146 {offsets = [0, 0], sizes = [8, 32], strides = [1, 1]} : vector<16x32xbf16> to vector<8x32xbf16>
    %242 = vector.extract_strided_slice %146 {offsets = [8, 0], sizes = [8, 32], strides = [1, 1]} : vector<16x32xbf16> to vector<8x32xbf16>
    %243 = vector.extract_strided_slice %175 {offsets = [0, 0], sizes = [8, 32], strides = [1, 1]} : vector<16x32xbf16> to vector<8x32xbf16>
    %244 = vector.extract_strided_slice %175 {offsets = [8, 0], sizes = [8, 32], strides = [1, 1]} : vector<16x32xbf16> to vector<8x32xbf16>
    %245 = vector.extract_strided_slice %201 {offsets = [0, 0], sizes = [8, 32], strides = [1, 1]} : vector<16x32xbf16> to vector<8x32xbf16>
    %246 = vector.extract_strided_slice %201 {offsets = [8, 0], sizes = [8, 32], strides = [1, 1]} : vector<16x32xbf16> to vector<8x32xbf16>
    %247 = vector.extract_strided_slice %225 {offsets = [0, 0], sizes = [8, 32], strides = [1, 1]} : vector<16x32xbf16> to vector<8x32xbf16>
    %248 = vector.extract_strided_slice %225 {offsets = [8, 0], sizes = [8, 32], strides = [1, 1]} : vector<16x32xbf16> to vector<8x32xbf16>
    %249 = vector.extract_strided_slice %232 {offsets = [0, 0], sizes = [8, 32], strides = [1, 1]} : vector<16x32xbf16> to vector<8x32xbf16>
    %250 = vector.extract_strided_slice %232 {offsets = [8, 0], sizes = [8, 32], strides = [1, 1]} : vector<16x32xbf16> to vector<8x32xbf16>
    %251 = vector.extract_strided_slice %236 {offsets = [0, 0], sizes = [8, 32], strides = [1, 1]} : vector<16x32xbf16> to vector<8x32xbf16>
    %252 = vector.extract_strided_slice %236 {offsets = [8, 0], sizes = [8, 32], strides = [1, 1]} : vector<16x32xbf16> to vector<8x32xbf16>
    %253 = tpu.concatenate %237, %238, %239, %240, %241, %242, %243, %244, %245, %246, %247, %248, %249, %250, %251, %252 in 1 : vector<8x32xbf16>, vector<8x32xbf16>, vector<8x32xbf16>, vector<8x32xbf16>, vector<8x32xbf16>, vector<8x32xbf16>, vector<8x32xbf16>, vector<8x32xbf16>, vector<8x32xbf16>, vector<8x32xbf16>, vector<8x32xbf16>, vector<8x32xbf16>, vector<8x32xbf16>, vector<8x32xbf16>, vector<8x32xbf16>, vector<8x32xbf16> -> vector<8x512xbf16>
    %c0_65 = arith.constant 0 : index
    %c0_66 = arith.constant 0 : index
    %254 = vector.load %arg10[%c0_65, %c0_66] : memref<512x1536xbf16, #tpu.memory_space<vmem>>, vector<512x1536xbf16>
    %cst_67 = arith.constant dense<0.000000e+00> : vector<8x1536xf32>
    %255 = tpu.matmul %253, %254, %cst_67 {dimension_numbers = #tpu.dot_dimension_numbers<[1], [0], [0], [1], [0, 0, 1, 1], [], []>} : vector<8x512xbf16>, vector<512x1536xbf16>, vector<8x1536xf32> -> vector<8x1536xf32>
    %c0_68 = arith.constant 0 : index
    %c0_69 = arith.constant 0 : index
    %256 = vector.load %arg11[%c0_68, %c0_69] : memref<1x1536xf32, #tpu.memory_space<vmem>>, vector<1x1536xf32>
    %257 = vector.broadcast %256 : vector<1x1536xf32> to vector<8x1536xf32>
    %258 = arith.addf %255, %257 : vector<8x1536xf32>
    %259 = vector.extract_strided_slice %258 {offsets = [0, 0], sizes = [8, 256], strides = [1, 1]} : vector<8x1536xf32> to vector<8x256xf32>
    %260 = vector.extract_strided_slice %258 {offsets = [0, 256], sizes = [8, 256], strides = [1, 1]} : vector<8x1536xf32> to vector<8x256xf32>
    %261 = vector.extract_strided_slice %258 {offsets = [0, 512], sizes = [8, 256], strides = [1, 1]} : vector<8x1536xf32> to vector<8x256xf32>
    %262 = vector.extract_strided_slice %258 {offsets = [0, 768], sizes = [8, 256], strides = [1, 1]} : vector<8x1536xf32> to vector<8x256xf32>
    %263 = vector.extract_strided_slice %258 {offsets = [0, 1024], sizes = [8, 256], strides = [1, 1]} : vector<8x1536xf32> to vector<8x256xf32>
    %264 = vector.extract_strided_slice %258 {offsets = [0, 1280], sizes = [8, 256], strides = [1, 1]} : vector<8x1536xf32> to vector<8x256xf32>
    %265 = arith.subf %261, %262 : vector<8x256xf32>
    %266 = arith.mulf %259, %265 : vector<8x256xf32>
    %267 = arith.mulf %260, %265 : vector<8x256xf32>
    %268 = tpu.concatenate %266, %267 in 0 : vector<8x256xf32>, vector<8x256xf32> -> vector<16x256xf32>
    %269 = arith.truncf %268 : vector<16x256xf32> to vector<16x256xbf16>
    %c0_70 = arith.constant 0 : index
    %c0_71 = arith.constant 0 : index
    %270 = vector.load %arg12[%c0_70, %c0_71] : memref<256x64xbf16, #tpu.memory_space<vmem>>, vector<256x64xbf16>
    %cst_72 = arith.constant dense<0.000000e+00> : vector<16x64xf32>
    %271 = tpu.matmul %269, %270, %cst_72 {dimension_numbers = #tpu.dot_dimension_numbers<[1], [0], [0], [1], [0, 0, 1, 1], [], []>} : vector<16x256xbf16>, vector<256x64xbf16>, vector<16x64xf32> -> vector<16x64xf32>
    %cst_73 = arith.constant 0.000000e+00 : f32
    %272 = vector.broadcast %cst_73 : f32 to vector<16x64xf32>
    %273 = arith.subf %272, %271 : vector<16x64xf32>
    %274 = math.exp %273 : vector<16x64xf32>
    %cst_74 = arith.constant 1.000000e+00 : f32
    %275 = vector.broadcast %cst_74 : f32 to vector<16x64xf32>
    %276 = arith.addf %275, %274 : vector<16x64xf32>
    %277 = tpu.reciprocal %276 {approx = true} : vector<16x64xf32> -> vector<16x64xf32>
    %278 = arith.truncf %277 : vector<16x64xf32> to vector<16x64xbf16>
    %c0_75 = arith.constant 0 : index
    %c0_76 = arith.constant 0 : index
    %279 = vector.load %arg13[%c0_75, %c0_76] : memref<64x256xbf16, #tpu.memory_space<vmem>>, vector<64x256xbf16>
    %cst_77 = arith.constant dense<0.000000e+00> : vector<16x256xf32>
    %280 = tpu.matmul %278, %279, %cst_77 {dimension_numbers = #tpu.dot_dimension_numbers<[1], [0], [0], [1], [0, 0, 1, 1], [], []>} : vector<16x64xbf16>, vector<64x256xbf16>, vector<16x256xf32> -> vector<16x256xf32>
    %281 = arith.subf %263, %264 : vector<8x256xf32>
    %282 = vector.extract_strided_slice %280 {offsets = [0, 0], sizes = [8, 256], strides = [1, 1]} : vector<16x256xf32> to vector<8x256xf32>
    %283 = arith.mulf %282, %281 : vector<8x256xf32>
    %284 = arith.addf %283, %264 : vector<8x256xf32>
    %285 = vector.extract_strided_slice %280 {offsets = [8, 0], sizes = [8, 256], strides = [1, 1]} : vector<16x256xf32> to vector<8x256xf32>
    %286 = arith.mulf %285, %281 : vector<8x256xf32>
    %287 = arith.addf %286, %264 : vector<8x256xf32>
    %288 = tpu.concatenate %284, %287 in 0 : vector<8x256xf32>, vector<8x256xf32> -> vector<16x256xf32>
    %289 = arith.truncf %288 : vector<16x256xf32> to vector<16x256xbf16>
    %c0_78 = arith.constant 0 : index
    %c0_79 = arith.constant 0 : index
    %290 = vector.load %arg14[%c0_78, %c0_79] : memref<256x256xbf16, #tpu.memory_space<vmem>>, vector<256x256xbf16>
    %cst_80 = arith.constant dense<0.000000e+00> : vector<16x256xf32>
    %291 = tpu.matmul %289, %290, %cst_80 {dimension_numbers = #tpu.dot_dimension_numbers<[1], [0], [0], [1], [0, 0, 1, 1], [], []>} : vector<16x256xbf16>, vector<256x256xbf16>, vector<16x256xf32> -> vector<16x256xf32>
    %c0_81 = arith.constant 0 : index
    %c0_82 = arith.constant 0 : index
    %292 = vector.load %arg15[%c0_81, %c0_82] : memref<1x256xf32, #tpu.memory_space<vmem>>, vector<1x256xf32>
    %293 = vector.broadcast %292 : vector<1x256xf32> to vector<16x256xf32>
    %294 = arith.addf %291, %293 : vector<16x256xf32>
    %295 = vector.extract_strided_slice %294 {offsets = [0, 0], sizes = [8, 256], strides = [1, 1]} : vector<16x256xf32> to vector<8x256xf32>
    %296 = vector.extract_strided_slice %294 {offsets = [8, 0], sizes = [8, 256], strides = [1, 1]} : vector<16x256xf32> to vector<8x256xf32>
    %297 = tpu.concatenate %295, %296 in 1 : vector<8x256xf32>, vector<8x256xf32> -> vector<8x512xf32>
    %298 = arith.truncf %297 : vector<8x512xf32> to vector<8x512xbf16>
    %c0_83 = arith.constant 0 : index
    %c0_84 = arith.constant 0 : index
    %299 = vector.load %arg16[%c0_83, %c0_84] : memref<512x128xbf16, #tpu.memory_space<vmem>>, vector<512x128xbf16>
    %cst_85 = arith.constant dense<0.000000e+00> : vector<8x128xf32>
    %300 = tpu.matmul %298, %299, %cst_85 {dimension_numbers = #tpu.dot_dimension_numbers<[1], [0], [0], [1], [0, 0, 1, 1], [], []>} : vector<8x512xbf16>, vector<512x128xbf16>, vector<8x128xf32> -> vector<8x128xf32>
    %c0_86 = arith.constant 0 : index
    %c0_87 = arith.constant 0 : index
    %301 = vector.load %arg17[%c0_86, %c0_87] : memref<1x128xf32, #tpu.memory_space<vmem>>, vector<1x128xf32>
    %302 = vector.broadcast %301 : vector<1x128xf32> to vector<8x128xf32>
    %303 = arith.addf %300, %302 : vector<8x128xf32>
    %cst_88 = arith.constant 0.000000e+00 : f32
    %304 = vector.broadcast %cst_88 : f32 to vector<8x128xf32>
    %305 = arith.maximumf %303, %304 : vector<8x128xf32>
    %c0_89 = arith.constant 0 : index
    %c0_90 = arith.constant 0 : index
    %306 = vector.load %arg20[%c0_89, %c0_90] : memref<8x128xf32, #tpu.memory_space<vmem>>, vector<8x128xf32>
    tpu.vector_store %arg20[%c0_89, %c0_90], %305 {strides = array<i32>} : memref<8x128xf32, #tpu.memory_space<vmem>>, vector<8x128xf32>,
    %307 = arith.truncf %305 : vector<8x128xf32> to vector<8x128xbf16>
    %c0_91 = arith.constant 0 : index
    %c0_92 = arith.constant 0 : index
    %308 = vector.load %arg18[%c0_91, %c0_92] : memref<128x128xbf16, #tpu.memory_space<vmem>>, vector<128x128xbf16>
    %cst_93 = arith.constant dense<0.000000e+00> : vector<8x128xf32>
    %309 = tpu.matmul %307, %308, %cst_93 {dimension_numbers = #tpu.dot_dimension_numbers<[1], [0], [0], [1], [0, 0, 1, 1], [], []>} : vector<8x128xbf16>, vector<128x128xbf16>, vector<8x128xf32> -> vector<8x128xf32>
    %c0_94 = arith.constant 0 : index
    %c0_95 = arith.constant 0 : index
    %310 = vector.load %arg19[%c0_94, %c0_95] : memref<1x128xf32, #tpu.memory_space<vmem>>, vector<1x128xf32>
    %311 = vector.broadcast %310 : vector<1x128xf32> to vector<8x128xf32>
    %312 = arith.addf %309, %311 : vector<8x128xf32>
    %cst_96 = arith.constant dense<0xFF800000> : vector<8xf32>
    %313 = vector.multi_reduction <maximumf>, %312, %cst_96 [1] : vector<8x128xf32> to vector<8xf32>
    %314 = vector.shape_cast %313 : vector<8xf32> to vector<8x1xf32>
    %315 = vector.broadcast %314 : vector<8x1xf32> to vector<8x128xf32>
    %316 = arith.subf %312, %315 : vector<8x128xf32>
    %317 = math.exp %316 : vector<8x128xf32>
    %cst_97 = arith.constant dense<0.000000e+00> : vector<8xf32>
    %318 = vector.multi_reduction <add>, %317, %cst_97 [1] : vector<8x128xf32> to vector<8xf32>
    %319 = vector.shape_cast %318 : vector<8xf32> to vector<8x1xf32>
    %320 = tpu.reciprocal %319 {approx = true} : vector<8x1xf32> -> vector<8x1xf32>
    %321 = vector.broadcast %320 : vector<8x1xf32> to vector<8x128xf32>
    %322 = arith.mulf %317, %321 : vector<8x128xf32>
    %c0_98 = arith.constant 0 : index
    %c0_99 = arith.constant 0 : index
    %323 = vector.load %arg21[%c0_98, %c0_99] : memref<8x128xf32, #tpu.memory_space<vmem>>, vector<8x128xf32>
    tpu.vector_store %arg21[%c0_98, %c0_99], %322 {strides = array<i32>} : memref<8x128xf32, #tpu.memory_space<vmem>>, vector<8x128xf32>,
    return
  }
  func.func @transform_0(%arg0: i32) -> (i32, i32) {
    %c0_i32 = arith.constant 0 : i32
    %c0_i32_0 = arith.constant 0 : i32
    return %arg0, %c0_i32 : i32, i32
  }
  func.func @transform_1(%arg0: i32) -> (i32, i32) {
    %c0_i32 = arith.constant 0 : i32
    %c0_i32_0 = arith.constant 0 : i32
    %c0_i32_1 = arith.constant 0 : i32
    return %c0_i32, %c0_i32_0 : i32, i32
  }
  func.func @transform_2(%arg0: i32) -> (i32, i32) {
    %c0_i32 = arith.constant 0 : i32
    %c0_i32_0 = arith.constant 0 : i32
    %c0_i32_1 = arith.constant 0 : i32
    return %c0_i32, %c0_i32_0 : i32, i32
  }
  func.func @transform_3(%arg0: i32) -> (i32, i32) {
    %c0_i32 = arith.constant 0 : i32
    %c0_i32_0 = arith.constant 0 : i32
    %c0_i32_1 = arith.constant 0 : i32
    return %c0_i32, %c0_i32_0 : i32, i32
  }
  func.func @transform_4(%arg0: i32) -> (i32, i32) {
    %c0_i32 = arith.constant 0 : i32
    %c0_i32_0 = arith.constant 0 : i32
    %c0_i32_1 = arith.constant 0 : i32
    return %c0_i32, %c0_i32_0 : i32, i32
  }
  func.func @transform_5(%arg0: i32) -> (i32, i32) {
    %c0_i32 = arith.constant 0 : i32
    %c0_i32_0 = arith.constant 0 : i32
    %c0_i32_1 = arith.constant 0 : i32
    return %c0_i32, %c0_i32_0 : i32, i32
  }
  func.func @transform_6(%arg0: i32) -> (i32, i32) {
    %c0_i32 = arith.constant 0 : i32
    %c0_i32_0 = arith.constant 0 : i32
    %c0_i32_1 = arith.constant 0 : i32
    return %c0_i32, %c0_i32_0 : i32, i32
  }
  func.func @transform_7(%arg0: i32) -> (i32, i32) {
    %c0_i32 = arith.constant 0 : i32
    %c0_i32_0 = arith.constant 0 : i32
    %c0_i32_1 = arith.constant 0 : i32
    return %c0_i32, %c0_i32_0 : i32, i32
  }
  func.func @transform_8(%arg0: i32) -> (i32, i32) {
    %c0_i32 = arith.constant 0 : i32
    %c0_i32_0 = arith.constant 0 : i32
    %c0_i32_1 = arith.constant 0 : i32
    return %c0_i32, %c0_i32_0 : i32, i32
  }
  func.func @transform_9(%arg0: i32) -> (i32, i32) {
    %c0_i32 = arith.constant 0 : i32
    %c0_i32_0 = arith.constant 0 : i32
    %c0_i32_1 = arith.constant 0 : i32
    return %c0_i32, %c0_i32_0 : i32, i32
  }
  func.func @transform_10(%arg0: i32) -> (i32, i32) {
    %c0_i32 = arith.constant 0 : i32
    %c0_i32_0 = arith.constant 0 : i32
    %c0_i32_1 = arith.constant 0 : i32
    return %c0_i32, %c0_i32_0 : i32, i32
  }
  func.func @transform_11(%arg0: i32) -> (i32, i32) {
    %c0_i32 = arith.constant 0 : i32
    %c0_i32_0 = arith.constant 0 : i32
    %c0_i32_1 = arith.constant 0 : i32
    return %c0_i32, %c0_i32_0 : i32, i32
  }
  func.func @transform_12(%arg0: i32) -> (i32, i32) {
    %c0_i32 = arith.constant 0 : i32
    %c0_i32_0 = arith.constant 0 : i32
    %c0_i32_1 = arith.constant 0 : i32
    return %c0_i32, %c0_i32_0 : i32, i32
  }
  func.func @transform_13(%arg0: i32) -> (i32, i32) {
    %c0_i32 = arith.constant 0 : i32
    %c0_i32_0 = arith.constant 0 : i32
    %c0_i32_1 = arith.constant 0 : i32
    return %c0_i32, %c0_i32_0 : i32, i32
  }
  func.func @transform_14(%arg0: i32) -> (i32, i32) {
    %c0_i32 = arith.constant 0 : i32
    %c0_i32_0 = arith.constant 0 : i32
    %c0_i32_1 = arith.constant 0 : i32
    return %c0_i32, %c0_i32_0 : i32, i32
  }
  func.func @transform_15(%arg0: i32) -> (i32, i32) {
    %c0_i32 = arith.constant 0 : i32
    %c0_i32_0 = arith.constant 0 : i32
    %c0_i32_1 = arith.constant 0 : i32
    return %c0_i32, %c0_i32_0 : i32, i32
  }
  func.func @transform_16(%arg0: i32) -> (i32, i32) {
    %c0_i32 = arith.constant 0 : i32
    %c0_i32_0 = arith.constant 0 : i32
    %c0_i32_1 = arith.constant 0 : i32
    return %c0_i32, %c0_i32_0 : i32, i32
  }
  func.func @transform_17(%arg0: i32) -> (i32, i32) {
    %c0_i32 = arith.constant 0 : i32
    %c0_i32_0 = arith.constant 0 : i32
    %c0_i32_1 = arith.constant 0 : i32
    return %c0_i32, %c0_i32_0 : i32, i32
  }
  func.func @transform_18(%arg0: i32) -> (i32, i32) {
    %c0_i32 = arith.constant 0 : i32
    %c0_i32_0 = arith.constant 0 : i32
    %c0_i32_1 = arith.constant 0 : i32
    return %c0_i32, %c0_i32_0 : i32, i32
  }
  func.func @transform_19(%arg0: i32) -> (i32, i32) {
    %c0_i32 = arith.constant 0 : i32
    %c0_i32_0 = arith.constant 0 : i32
    return %arg0, %c0_i32 : i32, i32
  }
  func.func @transform_20(%arg0: i32) -> (i32, i32) {
    %c0_i32 = arith.constant 0 : i32
    %c0_i32_0 = arith.constant 0 : i32
    return %arg0, %c0_i32 : i32, i32
  }
}

</mosaic_0001>

<llo_original>
// kernel: mscnn3am_forward.1
$region0: #{mscnn3am_forward.1}
  #allocation0 [shape = 'u32[]', space=smem, size = 0x4, offset = 0x4, fixed_abs, tag = 'smem constant byte address 0x4 - core index']
  #allocation1 [shape = 'u32[72,128]{1,0:T(1,128)}', space=vmem, size = 0x9000, scoped, tag = 'internal scratch']
  %s0 = inlined_call_operand.vmem [shape: bf16[8,1024], index: 0, kind: input, shape index: {}]
  %s1 = inlined_call_operand.hbm [shape: bf16[128,3968], index: 1, kind: input, shape index: {}]
  %s2 = inlined_call_operand.hbm [shape: f32[1,3968], index: 2, kind: input, shape index: {}]
  %s3 = inlined_call_operand.hbm [shape: f32[1,3968], index: 3, kind: input, shape index: {}]
  %s4 = inlined_call_operand.hbm [shape: f32[1,3968], index: 4, kind: input, shape index: {}]
  %s5 = inlined_call_operand.hbm [shape: bf16[256,256], index: 5, kind: input, shape index: {}]
  %s6 = inlined_call_operand.hbm [shape: f32[1,256], index: 6, kind: input, shape index: {}]
  %s7 = inlined_call_operand.hbm [shape: f32[1,256], index: 7, kind: input, shape index: {}]
  %s8 = inlined_call_operand.hbm [shape: f32[1,256], index: 8, kind: input, shape index: {}]
  %s9 = inlined_call_operand.hbm [shape: bf16[512,1536], index: 9, kind: input, shape index: {}]
  %s10 = inlined_call_operand.hbm [shape: f32[1,1536], index: 10, kind: input, shape index: {}]
  %s11 = inlined_call_operand.vmem [shape: bf16[256,64], index: 11, kind: input, shape index: {}]
  %s12 = inlined_call_operand.hbm [shape: bf16[64,256], index: 12, kind: input, shape index: {}]
  %s13 = inlined_call_operand.hbm [shape: bf16[256,256], index: 13, kind: input, shape index: {}]
  %s14 = inlined_call_operand.hbm [shape: f32[1,256], index: 14, kind: input, shape index: {}]
  %s15 = inlined_call_operand.hbm [shape: bf16[512,128], index: 15, kind: input, shape index: {}]
  %s16 = inlined_call_operand.hbm [shape: f32[1,128], index: 16, kind: input, shape index: {}]
  %s17 = inlined_call_operand.hbm [shape: bf16[128,128], index: 17, kind: input, shape index: {}]
  %s18 = inlined_call_operand.hbm [shape: f32[1,128], index: 18, kind: input, shape index: {}]
  %s19 = inlined_call_operand.vmem [shape: f32[8,128], index: 19, kind: output, shape index: {0}]
  %s20 = inlined_call_operand.vmem [shape: f32[8,128], index: 20, kind: output, shape index: {1}]
  %21 = xla_tuple %s19, %s20
  %s22 = sld [smem:[#allocation0]]
  $region162: #{mscnn3am_forward.1} parent=0
    _
  %s24 = ssub.s32 1, %s22
  %s25 = scalar_select 0, %s24, %s22
  $region1: #{mscnn3am_forward.1} parent=0
    #allocation2 [shape = 'u8[1015808]{0}', space=vmem, size = 0xf8000, scoped, tag = 'input window, operand 1, single buffered']
    #allocation3 [shape = 's32[1]{0}', space=sflag, size = 0x4, scoped, tag = 'scoped memory for mscnn3am_forward.1']
    #allocation4 [shape = 'u8[15872]{0}', space=vmem, size = 0x4000, scoped, tag = 'input window, operand 2, single buffered']
    #allocation5 [shape = 's32[1]{0}', space=sflag, size = 0x4, scoped, tag = 'scoped memory for mscnn3am_forward.1']
    #allocation6 [shape = 'u8[15872]{0}', space=vmem, size = 0x4000, scoped, tag = 'input window, operand 3, single buffered']
    #allocation7 [shape = 'u8[15872]{0}', space=vmem, size = 0x4000, scoped, tag = 'input window, operand 4, single buffered']
    #allocation8 [shape = 's32[1]{0}', space=sflag, size = 0x4, scoped, tag = 'scoped memory for mscnn3am_forward.1']
    #allocation9 [shape = 'u8[131072]{0}', space=vmem, size = 0x20000, scoped, tag = 'input window, operand 5, single buffered']
    #allocation10 [shape = 'u8[1024]{0}', space=vmem, size = 0x400, scoped, tag = 'input window, operand 6, single buffered']
    #allocation11 [shape = 's32[1]{0}', space=sflag, size = 0x4, scoped, tag = 'scoped memory for mscnn3am_forward.1']
    #allocation12 [shape = 'u8[1024]{0}', space=vmem, size = 0x400, scoped, tag = 'input window, operand 7, single buffered']
    #allocation13 [shape = 'u8[1024]{0}', space=vmem, size = 0x400, scoped, tag = 'input window, operand 8, single buffered']
    #allocation14 [shape = 's32[1]{0}', space=sflag, size = 0x4, scoped, tag = 'scoped memory for mscnn3am_forward.1']
    #allocation15 [shape = 'u8[1572864]{0}', space=vmem, size = 0x180000, scoped, tag = 'input window, operand 9, single buffered']
    #allocation16 [shape = 'u8[6144]{0}', space=vmem, size = 0x1800, scoped, tag = 'input window, operand 10, single buffered']
    #allocation17 [shape = 's32[1]{0}', space=sflag, size = 0x4, scoped, tag = 'scoped memory for mscnn3am_forward.1']
    #allocation18 [shape = 'u8[32768]{0}', space=vmem, size = 0x8000, scoped, tag = 'input window, operand 12, single buffered']
    #allocation19 [shape = 'u8[131072]{0}', space=vmem, size = 0x20000, scoped, tag = 'input window, operand 13, single buffered']
    #allocation20 [shape = 's32[1]{0}', space=sflag, size = 0x4, scoped, tag = 'scoped memory for mscnn3am_forward.1']
    #allocation21 [shape = 'u8[1024]{0}', space=vmem, size = 0x400, scoped, tag = 'input window, operand 14, single buffered']
    #allocation22 [shape = 'u8[131072]{0}', space=vmem, size = 0x20000, scoped, tag = 'input window, operand 15, single buffered']
    #allocation23 [shape = 's32[1]{0}', space=sflag, size = 0x4, scoped, tag = 'scoped memory for mscnn3am_forward.1']
    #allocation24 [shape = 'u8[512]{0}', space=vmem, size = 0x400, scoped, tag = 'input window, operand 16, single buffered']
    #allocation25 [shape = 'u8[32768]{0}', space=vmem, size = 0x8000, scoped, tag = 'input window, operand 17, single buffered']
    #allocation26 [shape = 's32[1]{0}', space=sflag, size = 0x4, scoped, tag = 'scoped memory for mscnn3am_forward.1']
    #allocation27 [shape = 'u8[512]{0}', space=vmem, size = 0x400, scoped, tag = 'input window, operand 18, single buffered']
    %26 = vsyncpa [#allocation3], 0
    %27 = vsyncpa [#allocation5], 0
    %28 = vsyncpa [#allocation8], 0
    %29 = vsyncpa [#allocation11], 0
    %30 = vsyncpa [#allocation14], 0
    %31 = vsyncpa [#allocation17], 0
    %32 = vsyncpa [#allocation20], 0
    %33 = vsyncpa [#allocation23], 0
    %34 = vsyncpa [#allocation26], 0
    // Predicated region
    $region2: #{mscnn3am_forward.1} parent=1 // pred_check
      _
    $region3: #{mscnn3am_forward.1} parent=1 // pred_check_branch
      %36 = sbr.rel (0) target = $region5
    $region4: #{mscnn3am_forward.1} parent=1 // pred_region
      _
    $region5: #{mscnn3am_forward.1} parent=1 // pred_fallthru
      _
    // Predicated region
    $region6: #{mscnn3am_forward.1} parent=1 // pred_check
      _
    $region7: #{mscnn3am_forward.1} parent=1 // pred_check_branch
      %38 = sbr.rel (0) target = $region9
    $region8: #{mscnn3am_forward.1} parent=1 // pred_region
      %40 = vsyncadd [#allocation3], 0
      %s41 = sshll.u32 %s1, 4
      %s42 = int_to_ptr.hbm [resolvable:$true] %s41
      %s43 = sshll.u32 [#allocation2], 4
      %s44 = int_to_ptr.vmem [resolvable:$true] %s43
      %49 = dma.hbm_to_vmem [thread:$0]  %s42, 31744, %s44, [#allocation3], 1984, 1984, 124
    $region9: #{mscnn3am_forward.1} parent=1 // pred_fallthru
      _
    // Predicated region
    $region10: #{mscnn3am_forward.1} parent=1 // pred_check
      _
    $region11: #{mscnn3am_forward.1} parent=1 // pred_check_branch
      %51 = sbr.rel (0) target = $region13
    $region12: #{mscnn3am_forward.1} parent=1 // pred_region
      %53 = vsyncadd [#allocation5], 0
      %s55 = sshll.u32 %s2, 4
      %s56 = int_to_ptr.hbm [resolvable:$true] %s55
      %s57 = sshll.u32 [#allocation4], 4
      %s58 = int_to_ptr.vmem [resolvable:$true] %s57
      %60 = dma.hbm_to_vmem [thread:$0]  %s56, 496, %s58, [#allocation5]
    $region13: #{mscnn3am_forward.1} parent=1 // pred_fallthru
      _
    // Predicated region
    $region14: #{mscnn3am_forward.1} parent=1 // pred_check
      _
    $region15: #{mscnn3am_forward.1} parent=1 // pred_check_branch
      %62 = sbr.rel (0) target = $region17
    $region16: #{mscnn3am_forward.1} parent=1 // pred_region
      %64 = vsyncadd [#allocation5], 0
      %s66 = sshll.u32 %s3, 4
      %s67 = int_to_ptr.hbm [resolvable:$true] %s66
      %s68 = sshll.u32 [#allocation6], 4
      %s69 = int_to_ptr.vmem [resolvable:$true] %s68
      %71 = dma.hbm_to_vmem [thread:$0]  %s67, 496, %s69, [#allocation5]
    $region17: #{mscnn3am_forward.1} parent=1 // pred_fallthru
      _
    // Predicated region
    $region18: #{mscnn3am_forward.1} parent=1 // pred_check
      _
    $region19: #{mscnn3am_forward.1} parent=1 // pred_check_branch
      %73 = sbr.rel (0) target = $region21
    $region20: #{mscnn3am_forward.1} parent=1 // pred_region
      %75 = vsyncadd [#allocation8], 0
      %s77 = sshll.u32 %s4, 4
      %s78 = int_to_ptr.hbm [resolvable:$true] %s77
      %s79 = sshll.u32 [#allocation7], 4
      %s80 = int_to_ptr.vmem [resolvable:$true] %s79
      %82 = dma.hbm_to_vmem [thread:$0]  %s78, 496, %s80, [#allocation8]
    $region21: #{mscnn3am_forward.1} parent=1 // pred_fallthru
      _
    // Predicated region
    $region22: #{mscnn3am_forward.1} parent=1 // pred_check
      _
    $region23: #{mscnn3am_forward.1} parent=1 // pred_check_branch
      %84 = sbr.rel (0) target = $region25
    $region24: #{mscnn3am_forward.1} parent=1 // pred_region
      %86 = vsyncadd [#allocation8], 0
      %s87 = sshll.u32 %s5, 4
      %s88 = int_to_ptr.hbm [resolvable:$true] %s87
      %s89 = sshll.u32 [#allocation9], 4
      %s90 = int_to_ptr.vmem [resolvable:$true] %s89
      %95 = dma.hbm_to_vmem [thread:$0]  %s88, 4096, %s90, [#allocation8], 128, 128, 8
    $region25: #{mscnn3am_forward.1} parent=1 // pred_fallthru
      _
    // Predicated region
    $region26: #{mscnn3am_forward.1} parent=1 // pred_check
      _
    $region27: #{mscnn3am_forward.1} parent=1 // pred_check_branch
      %97 = sbr.rel (0) target = $region29
    $region28: #{mscnn3am_forward.1} parent=1 // pred_region
      %99 = vsyncadd [#allocation11], 0
      %s101 = sshll.u32 %s6, 4
      %s102 = int_to_ptr.hbm [resolvable:$true] %s101
      %s103 = sshll.u32 [#allocation10], 4
      %s104 = int_to_ptr.vmem [resolvable:$true] %s103
      %106 = dma.hbm_to_vmem [thread:$0]  %s102, 32, %s104, [#allocation11]
    $region29: #{mscnn3am_forward.1} parent=1 // pred_fallthru
      _
    // Predicated region
    $region30: #{mscnn3am_forward.1} parent=1 // pred_check
      _
    $region31: #{mscnn3am_forward.1} parent=1 // pred_check_branch
      %108 = sbr.rel (0) target = $region33
    $region32: #{mscnn3am_forward.1} parent=1 // pred_region
      %110 = vsyncadd [#allocation11], 0
      %s112 = sshll.u32 %s7, 4
      %s113 = int_to_ptr.hbm [resolvable:$true] %s112
      %s114 = sshll.u32 [#allocation12], 4
      %s115 = int_to_ptr.vmem [resolvable:$true] %s114
      %117 = dma.hbm_to_vmem [thread:$0]  %s113, 32, %s115, [#allocation11]
    $region33: #{mscnn3am_forward.1} parent=1 // pred_fallthru
      _
    // Predicated region
    $region34: #{mscnn3am_forward.1} parent=1 // pred_check
      _
    $region35: #{mscnn3am_forward.1} parent=1 // pred_check_branch
      %119 = sbr.rel (0) target = $region37
    $region36: #{mscnn3am_forward.1} parent=1 // pred_region
      %121 = vsyncadd [#allocation14], 0
      %s123 = sshll.u32 %s8, 4
      %s124 = int_to_ptr.hbm [resolvable:$true] %s123
      %s125 = sshll.u32 [#allocation13], 4
      %s126 = int_to_ptr.vmem [resolvable:$true] %s125
      %128 = dma.hbm_to_vmem [thread:$0]  %s124, 32, %s126, [#allocation14]
    $region37: #{mscnn3am_forward.1} parent=1 // pred_fallthru
      _
    // Predicated region
    $region38: #{mscnn3am_forward.1} parent=1 // pred_check
      _
    $region39: #{mscnn3am_forward.1} parent=1 // pred_check_branch
      %130 = sbr.rel (0) target = $region41
    $region40: #{mscnn3am_forward.1} parent=1 // pred_region
      %132 = vsyncadd [#allocation14], 0
      %s133 = sshll.u32 %s9, 4
      %s134 = int_to_ptr.hbm [resolvable:$true] %s133
      %s135 = sshll.u32 [#allocation15], 4
      %s136 = int_to_ptr.vmem [resolvable:$true] %s135
      %141 = dma.hbm_to_vmem [thread:$0]  %s134, 49152, %s136, [#allocation14], 768, 768, 48
    $region41: #{mscnn3am_forward.1} parent=1 // pred_fallthru
      _
    // Predicated region
    $region42: #{mscnn3am_forward.1} parent=1 // pred_check
      _
    $region43: #{mscnn3am_forward.1} parent=1 // pred_check_branch
      %143 = sbr.rel (0) target = $region45
    $region44: #{mscnn3am_forward.1} parent=1 // pred_region
      %145 = vsyncadd [#allocation17], 0
      %s147 = sshll.u32 %s10, 4
      %s148 = int_to_ptr.hbm [resolvable:$true] %s147
      %s149 = sshll.u32 [#allocation16], 4
      %s150 = int_to_ptr.vmem [resolvable:$true] %s149
      %152 = dma.hbm_to_vmem [thread:$0]  %s148, 192, %s150, [#allocation17]
    $region45: #{mscnn3am_forward.1} parent=1 // pred_fallthru
      _
    // Predicated region
    $region46: #{mscnn3am_forward.1} parent=1 // pred_check
      _
    $region47: #{mscnn3am_forward.1} parent=1 // pred_check_branch
      %154 = sbr.rel (0) target = $region49
    $region48: #{mscnn3am_forward.1} parent=1 // pred_region
      _
    $region49: #{mscnn3am_forward.1} parent=1 // pred_fallthru
      _
    // Predicated region
    $region50: #{mscnn3am_forward.1} parent=1 // pred_check
      _
    $region51: #{mscnn3am_forward.1} parent=1 // pred_check_branch
      %156 = sbr.rel (0) target = $region53
    $region52: #{mscnn3am_forward.1} parent=1 // pred_region
      %158 = vsyncadd [#allocation17], 0
      %s159 = sshll.u32 %s12, 4
      %s160 = int_to_ptr.hbm [resolvable:$true] %s159
      %s161 = sshll.u32 [#allocation18], 4
      %s162 = int_to_ptr.vmem [resolvable:$true] %s161
      %167 = dma.hbm_to_vmem [thread:$0]  %s160, 1024, %s162, [#allocation17], 128, 128, 8
    $region53: #{mscnn3am_forward.1} parent=1 // pred_fallthru
      _
    // Predicated region
    $region54: #{mscnn3am_forward.1} parent=1 // pred_check
      _
    $region55: #{mscnn3am_forward.1} parent=1 // pred_check_branch
      %169 = sbr.rel (0) target = $region57
    $region56: #{mscnn3am_forward.1} parent=1 // pred_region
      %171 = vsyncadd [#allocation20], 0
      %s172 = sshll.u32 %s13, 4
      %s173 = int_to_ptr.hbm [resolvable:$true] %s172
      %s174 = sshll.u32 [#allocation19], 4
      %s175 = int_to_ptr.vmem [resolvable:$true] %s174
      %180 = dma.hbm_to_vmem [thread:$0]  %s173, 4096, %s175, [#allocation20], 128, 128, 8
    $region57: #{mscnn3am_forward.1} parent=1 // pred_fallthru
      _
    // Predicated region
    $region58: #{mscnn3am_forward.1} parent=1 // pred_check
      _
    $region59: #{mscnn3am_forward.1} parent=1 // pred_check_branch
      %182 = sbr.rel (0) target = $region61
    $region60: #{mscnn3am_forward.1} parent=1 // pred_region
      %184 = vsyncadd [#allocation20], 0
      %s186 = sshll.u32 %s14, 4
      %s187 = int_to_ptr.hbm [resolvable:$true] %s186
      %s188 = sshll.u32 [#allocation21], 4
      %s189 = int_to_ptr.vmem [resolvable:$true] %s188
      %191 = dma.hbm_to_vmem [thread:$0]  %s187, 32, %s189, [#allocation20]
    $region61: #{mscnn3am_forward.1} parent=1 // pred_fallthru
      _
    // Predicated region
    $region62: #{mscnn3am_forward.1} parent=1 // pred_check
      _
    $region63: #{mscnn3am_forward.1} parent=1 // pred_check_branch
      %193 = sbr.rel (0) target = $region65
    $region64: #{mscnn3am_forward.1} parent=1 // pred_region
      %195 = vsyncadd [#allocation23], 0
      %s196 = sshll.u32 %s15, 4
      %s197 = int_to_ptr.hbm [resolvable:$true] %s196
      %s198 = sshll.u32 [#allocation22], 4
      %s199 = int_to_ptr.vmem [resolvable:$true] %s198
      %204 = dma.hbm_to_vmem [thread:$0]  %s197, 4096, %s199, [#allocation23], 64, 64, 4
    $region65: #{mscnn3am_forward.1} parent=1 // pred_fallthru
      _
    // Predicated region
    $region66: #{mscnn3am_forward.1} parent=1 // pred_check
      _
    $region67: #{mscnn3am_forward.1} parent=1 // pred_check_branch
      %206 = sbr.rel (0) target = $region69
    $region68: #{mscnn3am_forward.1} parent=1 // pred_region
      %208 = vsyncadd [#allocation23], 0
      %s210 = sshll.u32 %s16, 4
      %s211 = int_to_ptr.hbm [resolvable:$true] %s210
      %s212 = sshll.u32 [#allocation24], 4
      %s213 = int_to_ptr.vmem [resolvable:$true] %s212
      %215 = dma.hbm_to_vmem [thread:$0]  %s211, 16, %s213, [#allocation23]
    $region69: #{mscnn3am_forward.1} parent=1 // pred_fallthru
      _
    // Predicated region
    $region70: #{mscnn3am_forward.1} parent=1 // pred_check
      _
    $region71: #{mscnn3am_forward.1} parent=1 // pred_check_branch
      %217 = sbr.rel (0) target = $region73
    $region72: #{mscnn3am_forward.1} parent=1 // pred_region
      %219 = vsyncadd [#allocation26], 0
      %s220 = sshll.u32 %s17, 4
      %s221 = int_to_ptr.hbm [resolvable:$true] %s220
      %s222 = sshll.u32 [#allocation25], 4
      %s223 = int_to_ptr.vmem [resolvable:$true] %s222
      %228 = dma.hbm_to_vmem [thread:$0]  %s221, 1024, %s223, [#allocation26], 64, 64, 4
    $region73: #{mscnn3am_forward.1} parent=1 // pred_fallthru
      _
    // Predicated region
    $region74: #{mscnn3am_forward.1} parent=1 // pred_check
      _
    $region75: #{mscnn3am_forward.1} parent=1 // pred_check_branch
      %230 = sbr.rel (0) target = $region77
    $region76: #{mscnn3am_forward.1} parent=1 // pred_region
      %232 = vsyncadd [#allocation26], 0
      %s234 = sshll.u32 %s18, 4
      %s235 = int_to_ptr.hbm [resolvable:$true] %s234
      %s236 = sshll.u32 [#allocation27], 4
      %s237 = int_to_ptr.vmem [resolvable:$true] %s236
      %239 = dma.hbm_to_vmem [thread:$0]  %s235, 16, %s237, [#allocation26]
    $region77: #{mscnn3am_forward.1} parent=1 // pred_fallthru
      _
    // Predicated region
    $region78: #{mscnn3am_forward.1} parent=1 // pred_check
      _
    $region79: #{mscnn3am_forward.1} parent=1 // pred_check_branch
      %241 = sbr.rel (0) target = $region81
    $region80: #{mscnn3am_forward.1} parent=1 // pred_region
      %243 = dma.done [#allocation3], 31744
    $region81: #{mscnn3am_forward.1} parent=1 // pred_fallthru
      _
    // Predicated region
    $region82: #{mscnn3am_forward.1} parent=1 // pred_check
      _
    $region83: #{mscnn3am_forward.1} parent=1 // pred_check_branch
      %245 = sbr.rel (0) target = $region85
    $region84: #{mscnn3am_forward.1} parent=1 // pred_region
      %247 = dma.done [#allocation5], 496
    $region85: #{mscnn3am_forward.1} parent=1 // pred_fallthru
      _
    // Predicated region
    $region86: #{mscnn3am_forward.1} parent=1 // pred_check
      _
    $region87: #{mscnn3am_forward.1} parent=1 // pred_check_branch
      %249 = sbr.rel (0) target = $region89
    $region88: #{mscnn3am_forward.1} parent=1 // pred_region
      %251 = dma.done [#allocation5], 496
    $region89: #{mscnn3am_forward.1} parent=1 // pred_fallthru
      _
    // Predicated region
    $region90: #{mscnn3am_forward.1} parent=1 // pred_check
      _
    $region91: #{mscnn3am_forward.1} parent=1 // pred_check_branch
      %253 = sbr.rel (0) target = $region93
    $region92: #{mscnn3am_forward.1} parent=1 // pred_region
      %255 = dma.done [#allocation8], 496
    $region93: #{mscnn3am_forward.1} parent=1 // pred_fallthru
      _
    // Predicated region
    $region94: #{mscnn3am_forward.1} parent=1 // pred_check
      _
    $region95: #{mscnn3am_forward.1} parent=1 // pred_check_branch
      %257 = sbr.rel (0) target = $region97
    $region96: #{mscnn3am_forward.1} parent=1 // pred_region
      %259 = dma.done [#allocation8], 4096
    $region97: #{mscnn3am_forward.1} parent=1 // pred_fallthru
      _
    // Predicated region
    $region98: #{mscnn3am_forward.1} parent=1 // pred_check
      _
    $region99: #{mscnn3am_forward.1} parent=1 // pred_check_branch
      %261 = sbr.rel (0) target = $region101
    $region100: #{mscnn3am_forward.1} parent=1 // pred_region
      %263 = dma.done [#allocation11], 32
    $region101: #{mscnn3am_forward.1} parent=1 // pred_fallthru
      _
    // Predicated region
    $region102: #{mscnn3am_forward.1} parent=1 // pred_check
      _
    $region103: #{mscnn3am_forward.1} parent=1 // pred_check_branch
      %265 = sbr.rel (0) target = $region105
    $region104: #{mscnn3am_forward.1} parent=1 // pred_region
      %267 = dma.done [#allocation11], 32
    $region105: #{mscnn3am_forward.1} parent=1 // pred_fallthru
      _
    // Predicated region
    $region106: #{mscnn3am_forward.1} parent=1 // pred_check
      _
    $region107: #{mscnn3am_forward.1} parent=1 // pred_check_branch
      %269 = sbr.rel (0) target = $region109
    $region108: #{mscnn3am_forward.1} parent=1 // pred_region
      %271 = dma.done [#allocation14], 32
    $region109: #{mscnn3am_forward.1} parent=1 // pred_fallthru
      _
    // Predicated region
    $region110: #{mscnn3am_forward.1} parent=1 // pred_check
      _
    $region111: #{mscnn3am_forward.1} parent=1 // pred_check_branch
      %273 = sbr.rel (0) target = $region113
    $region112: #{mscnn3am_forward.1} parent=1 // pred_region
      %275 = dma.done [#allocation14], 49152
    $region113: #{mscnn3am_forward.1} parent=1 // pred_fallthru
      _
    // Predicated region
    $region114: #{mscnn3am_forward.1} parent=1 // pred_check
      _
    $region115: #{mscnn3am_forward.1} parent=1 // pred_check_branch
      %277 = sbr.rel (0) target = $region117
    $region116: #{mscnn3am_forward.1} parent=1 // pred_region
      %279 = dma.done [#allocation17], 192
    $region117: #{mscnn3am_forward.1} parent=1 // pred_fallthru
      _
    // Predicated region
    $region118: #{mscnn3am_forward.1} parent=1 // pred_check
      _
    $region119: #{mscnn3am_forward.1} parent=1 // pred_check_branch
      %281 = sbr.rel (0) target = $region121
    $region120: #{mscnn3am_forward.1} parent=1 // pred_region
      %283 = dma.done [#allocation17], 1024
    $region121: #{mscnn3am_forward.1} parent=1 // pred_fallthru
      _
    // Predicated region
    $region122: #{mscnn3am_forward.1} parent=1 // pred_check
      _
    $region123: #{mscnn3am_forward.1} parent=1 // pred_check_branch
      %285 = sbr.rel (0) target = $region125
    $region124: #{mscnn3am_forward.1} parent=1 // pred_region
      %287 = dma.done [#allocation20], 4096
    $region125: #{mscnn3am_forward.1} parent=1 // pred_fallthru
      _
    // Predicated region
    $region126: #{mscnn3am_forward.1} parent=1 // pred_check
      _
    $region127: #{mscnn3am_forward.1} parent=1 // pred_check_branch
      %289 = sbr.rel (0) target = $region129
    $region128: #{mscnn3am_forward.1} parent=1 // pred_region
      %291 = dma.done [#allocation20], 32
    $region129: #{mscnn3am_forward.1} parent=1 // pred_fallthru
      _
    // Predicated region
    $region130: #{mscnn3am_forward.1} parent=1 // pred_check
      _
    $region131: #{mscnn3am_forward.1} parent=1 // pred_check_branch
      %293 = sbr.rel (0) target = $region133
    $region132: #{mscnn3am_forward.1} parent=1 // pred_region
      %295 = dma.done [#allocation23], 4096
    $region133: #{mscnn3am_forward.1} parent=1 // pred_fallthru
      _
    // Predicated region
    $region134: #{mscnn3am_forward.1} parent=1 // pred_check
      _
    $region135: #{mscnn3am_forward.1} parent=1 // pred_check_branch
      %297 = sbr.rel (0) target = $region137
    $region136: #{mscnn3am_forward.1} parent=1 // pred_region
      %299 = dma.done [#allocation23], 16
    $region137: #{mscnn3am_forward.1} parent=1 // pred_fallthru
      _
    // Predicated region
    $region138: #{mscnn3am_forward.1} parent=1 // pred_check
      _
    $region139: #{mscnn3am_forward.1} parent=1 // pred_check_branch
      %301 = sbr.rel (0) target = $region141
    $region140: #{mscnn3am_forward.1} parent=1 // pred_region
      %303 = dma.done [#allocation26], 1024
    $region141: #{mscnn3am_forward.1} parent=1 // pred_fallthru
      _
    // Predicated region
    $region142: #{mscnn3am_forward.1} parent=1 // pred_check
      _
    $region143: #{mscnn3am_forward.1} parent=1 // pred_check_branch
      %305 = sbr.rel (0) target = $region145
    $region144: #{mscnn3am_forward.1} parent=1 // pred_region
      %307 = dma.done [#allocation26], 16
    $region145: #{mscnn3am_forward.1} parent=1 // pred_fallthru
      _
    %v309 = vld [vmem:[%s0] sm:$0xff]
    %v310 = vld [vmem:[%s0 + $0x8] sm:$0xff]
    %v311 = vld [vmem:[%s0 + $0x10] sm:$0xff]
    %v312 = vld [vmem:[%s0 + $0x18] sm:$0xff]
    %v314 = vunpack.c.l.b16 %v311
    %v315 = vpack.c.b16 %v314, %v314
    %v317 = vunpack.c.h.b16 %v309
    %v318 = vpack.c.b16 %v317, %v317
    %v319 = vunpack.c.h.b16 %v311
    %v320 = vpack.c.b16 %v319, %v319
    %v322 = vunpack.c.l.b16 %v312
    %v323 = vpack.c.b16 %v322, %v322
    %v325 = vunpack.c.h.b16 %v310
    %v326 = vpack.c.b16 %v325, %v325
    %v327 = vunpack.c.h.b16 %v312
    %v328 = vpack.c.b16 %v327, %v327
    %vm329 = vcmask 1043456
    %v332 = vsel %vm329, %v309, %v315
    %v336 = vsel %vm329, %v318, %v320
    %v340 = vsel %vm329, %v310, %v323
    %v344 = vsel %vm329, %v326, %v328
    %v346 = vunpack.c.l.b16 %v309
    %v347 = vpack.c.b16 %v346, %v346
    %v348 = vunpack.c.l.b16 %v310
    %v349 = vpack.c.b16 %v348, %v348
    %v351 = vsel %vm329, %v347, %v315
    %v354 = vsel %vm329, %v349, %v323
    %v356 = vld [vmem:[#allocation2] sm:$0xff]
    %v357 = vld [vmem:[#allocation2 + $0x8] sm:$0xff]
    %v358 = vld [vmem:[#allocation2 + $0x10] sm:$0xff]
    %v359 = vld [vmem:[#allocation2 + $0x18] sm:$0xff]
    %v360 = vld [vmem:[#allocation2 + $0x7c] sm:$0xff]
    %v361 = vld [vmem:[#allocation2 + $0x84] sm:$0xff]
    %v362 = vld [vmem:[#allocation2 + $0x8c] sm:$0xff]
    %v363 = vld [vmem:[#allocation2 + $0x94] sm:$0xff]
    %v364 = vld [vmem:[#allocation2 + $0xf8] sm:$0xff]
    %v365 = vld [vmem:[#allocation2 + $0x100] sm:$0xff]
    %v366 = vld [vmem:[#allocation2 + $0x108] sm:$0xff]
    %v367 = vld [vmem:[#allocation2 + $0x110] sm:$0xff]
    %v368 = vld [vmem:[#allocation2 + $0x174] sm:$0xff]
    %v369 = vld [vmem:[#allocation2 + $0x17c] sm:$0xff]
    %v370 = vld [vmem:[#allocation2 + $0x184] sm:$0xff]
    %v371 = vld [vmem:[#allocation2 + $0x18c] sm:$0xff]
    %v372 = vld [vmem:[#allocation2 + $0x1f0] sm:$0xff]
    %v373 = vld [vmem:[#allocation2 + $0x1f8] sm:$0xff]
    %v374 = vld [vmem:[#allocation2 + $0x200] sm:$0xff]
    %v375 = vld [vmem:[#allocation2 + $0x208] sm:$0xff]
    %v376 = vld [vmem:[#allocation2 + $0x26c] sm:$0xff]
    %v377 = vld [vmem:[#allocation2 + $0x274] sm:$0xff]
    %v378 = vld [vmem:[#allocation2 + $0x27c] sm:$0xff]
    %v379 = vld [vmem:[#allocation2 + $0x284] sm:$0xff]
    %v380 = vld [vmem:[#allocation2 + $0x2e8] sm:$0xff]
    %v381 = vld [vmem:[#allocation2 + $0x2f0] sm:$0xff]
    %v382 = vld [vmem:[#allocation2 + $0x2f8] sm:$0xff]
    %v383 = vld [vmem:[#allocation2 + $0x300] sm:$0xff]
    %v384 = vld [vmem:[#allocation2 + $0x364] sm:$0xff]
    %v385 = vld [vmem:[#allocation2 + $0x36c] sm:$0xff]
    %v386 = vld [vmem:[#allocation2 + $0x374] sm:$0xff]
    %v387 = vld [vmem:[#allocation2 + $0x37c] sm:$0xff]
    %v388 = vld [vmem:[#allocation2 + $0x3e0] sm:$0xff]
    %v389 = vld [vmem:[#allocation2 + $0x3e8] sm:$0xff]
    %v390 = vld [vmem:[#allocation2 + $0x3f0] sm:$0xff]
    %v391 = vld [vmem:[#allocation2 + $0x3f8] sm:$0xff]
    %v392 = vld [vmem:[#allocation2 + $0x45c] sm:$0xff]
    %v393 = vld [vmem:[#allocation2 + $0x464] sm:$0xff]
    %v394 = vld [vmem:[#allocation2 + $0x46c] sm:$0xff]
    %v395 = vld [vmem:[#allocation2 + $0x474] sm:$0xff]
    %v396 = vld [vmem:[#allocation2 + $0x4d8] sm:$0xff]
    %v397 = vld [vmem:[#allocation2 + $0x4e0] sm:$0xff]
    %v398 = vld [vmem:[#allocation2 + $0x4e8] sm:$0xff]
    %v399 = vld [vmem:[#allocation2 + $0x4f0] sm:$0xff]
    %v400 = vld [vmem:[#allocation2 + $0x554] sm:$0xff]
    %v401 = vld [vmem:[#allocation2 + $0x55c] sm:$0xff]
    %v402 = vld [vmem:[#allocation2 + $0x564] sm:$0xff]
    %v403 = vld [vmem:[#allocation2 + $0x56c] sm:$0xff]
    %v404 = vld [vmem:[#allocation2 + $0x5d0] sm:$0xff]
    %v405 = vld [vmem:[#allocation2 + $0x5d8] sm:$0xff]
    %v406 = vld [vmem:[#allocation2 + $0x5e0] sm:$0xff]
    %v407 = vld [vmem:[#allocation2 + $0x5e8] sm:$0xff]
    %v408 = vld [vmem:[#allocation2 + $0x64c] sm:$0xff]
    %v409 = vld [vmem:[#allocation2 + $0x654] sm:$0xff]
    %v410 = vld [vmem:[#allocation2 + $0x65c] sm:$0xff]
    %v411 = vld [vmem:[#allocation2 + $0x664] sm:$0xff]
    %v412 = vld [vmem:[#allocation2 + $0x6c8] sm:$0xff]
    %v413 = vld [vmem:[#allocation2 + $0x6d0] sm:$0xff]
    %v414 = vld [vmem:[#allocation2 + $0x6d8] sm:$0xff]
    %v415 = vld [vmem:[#allocation2 + $0x6e0] sm:$0xff]
    %v416 = vld [vmem:[#allocation2 + $0x744] sm:$0xff]
    %v417 = vld [vmem:[#allocation2 + $0x74c] sm:$0xff]
    %v418 = vld [vmem:[#allocation2 + $0x754] sm:$0xff]
    %v419 = vld [vmem:[#allocation2 + $0x75c] sm:$0xff]
    %v420 = vld [vmem:[#allocation4] sm:$0xff]
    %v422 = vperm.slane %v420, 0
    %v423 = vperm.slane %v420, 1
    %v424 = vperm.slane %v420, 2
    %v425 = vperm.slane %v420, 3
    %v426 = vperm.slane %v420, 4
    %v427 = vperm.slane %v420, 5
    %v428 = vperm.slane %v420, 6
    %v429 = vperm.slane %v420, 7
    %v502 = vunpack.c.l.b16 %v356
    %v503 = vunpack.c.h.b16 %v356
    %v504 = vunpack.c.l.b16 %v357
    %v505 = vunpack.c.h.b16 %v357
    %v506 = vunpack.c.l.b16 %v358
    %v507 = vunpack.c.h.b16 %v358
    %v508 = vunpack.c.l.b16 %v359
    %v509 = vunpack.c.h.b16 %v359
    %v510 = vunpack.c.l.b16 %v360
    %v511 = vunpack.c.h.b16 %v360
    %v512 = vunpack.c.l.b16 %v361
    %v513 = vunpack.c.h.b16 %v361
    %v514 = vunpack.c.l.b16 %v362
    %v515 = vunpack.c.h.b16 %v362
    %v516 = vunpack.c.l.b16 %v363
    %v517 = vunpack.c.h.b16 %v363
    %v518 = vunpack.c.l.b16 %v364
    %v519 = vunpack.c.h.b16 %v364
    %v520 = vunpack.c.l.b16 %v365
    %v521 = vunpack.c.h.b16 %v365
    %v522 = vunpack.c.l.b16 %v366
    %v523 = vunpack.c.h.b16 %v366
    %v524 = vunpack.c.l.b16 %v367
    %v525 = vunpack.c.h.b16 %v367
    %v526 = vunpack.c.l.b16 %v368
    %v527 = vunpack.c.h.b16 %v368
    %v528 = vunpack.c.l.b16 %v369
    %v529 = vunpack.c.h.b16 %v369
    %v530 = vunpack.c.l.b16 %v370
    %v531 = vunpack.c.h.b16 %v370
    %v532 = vunpack.c.l.b16 %v371
    %v533 = vunpack.c.h.b16 %v371
    %v534 = vunpack.c.l.b16 %v372
    %v535 = vunpack.c.h.b16 %v372
    %v536 = vunpack.c.l.b16 %v373
    %v537 = vunpack.c.h.b16 %v373
    %v538 = vunpack.c.l.b16 %v374
    %v539 = vunpack.c.h.b16 %v374
    %v540 = vunpack.c.l.b16 %v375
    %v541 = vunpack.c.h.b16 %v375
    %v542 = vunpack.c.l.b16 %v376
    %v543 = vunpack.c.h.b16 %v376
    %v544 = vunpack.c.l.b16 %v377
    %v545 = vunpack.c.h.b16 %v377
    %v546 = vunpack.c.l.b16 %v378
    %v547 = vunpack.c.h.b16 %v378
    %v548 = vunpack.c.l.b16 %v379
    %v549 = vunpack.c.h.b16 %v379
    %v550 = vunpack.c.l.b16 %v380
    %v551 = vunpack.c.h.b16 %v380
    %v552 = vunpack.c.l.b16 %v381
    %v553 = vunpack.c.h.b16 %v381
    %v554 = vunpack.c.l.b16 %v382
    %v555 = vunpack.c.h.b16 %v382
    %v556 = vunpack.c.l.b16 %v383
    %v557 = vunpack.c.h.b16 %v383
    %v558 = vunpack.c.l.b16 %v384
    %v559 = vunpack.c.h.b16 %v384
    %v560 = vunpack.c.l.b16 %v385
    %v561 = vunpack.c.h.b16 %v385
    %v562 = vunpack.c.l.b16 %v386
    %v563 = vunpack.c.h.b16 %v386
    %v564 = vunpack.c.l.b16 %v387
    %v565 = vunpack.c.h.b16 %v387
    %v566 = vunpack.c.l.b16 %v388
    %v567 = vunpack.c.h.b16 %v388
    %v568 = vunpack.c.l.b16 %v389
    %v569 = vunpack.c.h.b16 %v389
    %v570 = vunpack.c.l.b16 %v390
    %v571 = vunpack.c.h.b16 %v390
    %v572 = vunpack.c.l.b16 %v391
    %v573 = vunpack.c.h.b16 %v391
    %v574 = vunpack.c.l.b16 %v392
    %v575 = vunpack.c.h.b16 %v392
    %v576 = vunpack.c.l.b16 %v393
    %v577 = vunpack.c.h.b16 %v393
    %v578 = vunpack.c.l.b16 %v394
    %v579 = vunpack.c.h.b16 %v394
    %v580 = vunpack.c.l.b16 %v395
    %v581 = vunpack.c.h.b16 %v395
    %v582 = vunpack.c.l.b16 %v396
    %v583 = vunpack.c.h.b16 %v396
    %v584 = vunpack.c.l.b16 %v397
    %v585 = vunpack.c.h.b16 %v397
    %v586 = vunpack.c.l.b16 %v398
    %v587 = vunpack.c.h.b16 %v398
    %v588 = vunpack.c.l.b16 %v399
    %v589 = vunpack.c.h.b16 %v399
    %v590 = vunpack.c.l.b16 %v400
    %v591 = vunpack.c.h.b16 %v400
    %v592 = vunpack.c.l.b16 %v401
    %v593 = vunpack.c.h.b16 %v401
    %v594 = vunpack.c.l.b16 %v402
    %v595 = vunpack.c.h.b16 %v402
    %v596 = vunpack.c.l.b16 %v403
    %v597 = vunpack.c.h.b16 %v403
    %v598 = vunpack.c.l.b16 %v404
    %v599 = vunpack.c.h.b16 %v404
    %v600 = vunpack.c.l.b16 %v405
    %v601 = vunpack.c.h.b16 %v405
    %v602 = vunpack.c.l.b16 %v406
    %v603 = vunpack.c.h.b16 %v406
    %v604 = vunpack.c.l.b16 %v407
    %v605 = vunpack.c.h.b16 %v407
    %v606 = vunpack.c.l.b16 %v408
    %v607 = vunpack.c.h.b16 %v408
    %v608 = vunpack.c.l.b16 %v409
    %v609 = vunpack.c.h.b16 %v409
    %v610 = vunpack.c.l.b16 %v410
    %v611 = vunpack.c.h.b16 %v410
    %v612 = vunpack.c.l.b16 %v411
    %v613 = vunpack.c.h.b16 %v411
    %v614 = vunpack.c.l.b16 %v412
    %v615 = vunpack.c.h.b16 %v412
    %v616 = vunpack.c.l.b16 %v413
    %v617 = vunpack.c.h.b16 %v413
    %v618 = vunpack.c.l.b16 %v414
    %v619 = vunpack.c.h.b16 %v414
    %v620 = vunpack.c.l.b16 %v415
    %v621 = vunpack.c.h.b16 %v415
    %v622 = vunpack.c.l.b16 %v416
    %v623 = vunpack.c.h.b16 %v416
    %v624 = vunpack.c.l.b16 %v417
    %v625 = vunpack.c.h.b16 %v417
    %v626 = vunpack.c.l.b16 %v418
    %v627 = vunpack.c.h.b16 %v418
    %v628 = vunpack.c.l.b16 %v419
    %v629 = vunpack.c.h.b16 %v419
    %v630 = vpack.c.b16 %v510, %v502
    %v631 = vpack.c.b16 %v511, %v503
    %v632 = vpack.c.b16 %v512, %v504
    %v633 = vpack.c.b16 %v513, %v505
    %v634 = vpack.c.b16 %v514, %v506
    %v635 = vpack.c.b16 %v515, %v507
    %v636 = vpack.c.b16 %v516, %v508
    %v637 = vpack.c.b16 %v517, %v509
    %v638 = vpack.c.b16 %v526, %v518
    %v639 = vpack.c.b16 %v527, %v519
    %v640 = vpack.c.b16 %v528, %v520
    %v641 = vpack.c.b16 %v529, %v521
    %v642 = vpack.c.b16 %v530, %v522
    %v643 = vpack.c.b16 %v531, %v523
    %v644 = vpack.c.b16 %v532, %v524
    %v645 = vpack.c.b16 %v533, %v525
    %v646 = vpack.c.b16 %v542, %v534
    %v647 = vpack.c.b16 %v543, %v535
    %v648 = vpack.c.b16 %v544, %v536
    %v649 = vpack.c.b16 %v545, %v537
    %v650 = vpack.c.b16 %v546, %v538
    %v651 = vpack.c.b16 %v547, %v539
    %v652 = vpack.c.b16 %v548, %v540
    %v653 = vpack.c.b16 %v549, %v541
    %v654 = vpack.c.b16 %v558, %v550
    %v655 = vpack.c.b16 %v559, %v551
    %v656 = vpack.c.b16 %v560, %v552
    %v657 = vpack.c.b16 %v561, %v553
    %v658 = vpack.c.b16 %v562, %v554
    %v659 = vpack.c.b16 %v563, %v555
    %v660 = vpack.c.b16 %v564, %v556
    %v661 = vpack.c.b16 %v565, %v557
    %v662 = vpack.c.b16 %v574, %v566
    %v663 = vpack.c.b16 %v575, %v567
    %v664 = vpack.c.b16 %v576, %v568
    %v665 = vpack.c.b16 %v577, %v569
    %v666 = vpack.c.b16 %v578, %v570
    %v667 = vpack.c.b16 %v579, %v571
    %v668 = vpack.c.b16 %v580, %v572
    %v669 = vpack.c.b16 %v581, %v573
    %v670 = vpack.c.b16 %v590, %v582
    %v671 = vpack.c.b16 %v591, %v583
    %v672 = vpack.c.b16 %v592, %v584
    %v673 = vpack.c.b16 %v593, %v585
    %v674 = vpack.c.b16 %v594, %v586
    %v675 = vpack.c.b16 %v595, %v587
    %v676 = vpack.c.b16 %v596, %v588
    %v677 = vpack.c.b16 %v597, %v589
    %v678 = vpack.c.b16 %v606, %v598
    %v679 = vpack.c.b16 %v607, %v599
    %v680 = vpack.c.b16 %v608, %v600
    %v681 = vpack.c.b16 %v609, %v601
    %v682 = vpack.c.b16 %v610, %v602
    %v683 = vpack.c.b16 %v611, %v603
    %v684 = vpack.c.b16 %v612, %v604
    %v685 = vpack.c.b16 %v613, %v605
    %v686 = vpack.c.b16 %v622, %v614
    %v687 = vpack.c.b16 %v623, %v615
    %v688 = vpack.c.b16 %v624, %v616
    %v689 = vpack.c.b16 %v625, %v617
    %v690 = vpack.c.b16 %v626, %v618
    %v691 = vpack.c.b16 %v627, %v619
    %v692 = vpack.c.b16 %v628, %v620
    %v693 = vpack.c.b16 %v629, %v621
    %758 = vmatpush.bf16.msra.mxu0 %v686
    %759 = vmatpush.bf16.msra.mxu0 %v678
    %760 = vmatpush.bf16.msra.mxu0 %v670
    %761 = vmatpush.bf16.msra.mxu0 %v662
    %762 = vmatpush.bf16.msra.mxu0 %v654
    %763 = vmatpush.bf16.msra.mxu0 %v646
    %764 = vmatpush.bf16.msra.mxu0 %v638
    %765 = vmatpush.bf16.msra.mxu0 %v630
    %766 = vmatmul.bf16.gmra.mxu0 %v332
    %v767 = vpop.f32.mrf.mxu0
    %v768 = vadd.f32 %v422, %v767
    %v769 = vpop.f32.mrf.mxu0
    %v770 = vadd.f32 %v422, %v769
    %771 = vmatmul.bf16.gmra.mxu0 %v336
    %v772 = vpop.f32.mrf.mxu0
    %v773 = vadd.f32 %v422, %v772
    %v774 = vpop.f32.mrf.mxu0
    %v775 = vadd.f32 %v422, %v774
    %776 = vmatmul.bf16.gmra.mxu0 %v340
    %v777 = vpop.f32.mrf.mxu0
    %v778 = vadd.f32 %v422, %v777
    %v779 = vpop.f32.mrf.mxu0
    %v780 = vadd.f32 %v422, %v779
    %781 = vmatmul.bf16.gmra.mxu0 %v344
    %v782 = vpop.f32.mrf.mxu0
    %v783 = vadd.f32 %v422, %v782
    %v784 = vpop.f32.mrf.mxu0
    %v785 = vadd.f32 %v422, %v784
    %786 = vdwg.mxu0
    %787 = vmatpush.bf16.msra.mxu0 %v687
    %788 = vmatpush.bf16.msra.mxu0 %v679
    %789 = vmatpush.bf16.msra.mxu0 %v671
    %790 = vmatpush.bf16.msra.mxu0 %v663
    %791 = vmatpush.bf16.msra.mxu0 %v655
    %792 = vmatpush.bf16.msra.mxu0 %v647
    %793 = vmatpush.bf16.msra.mxu0 %v639
    %794 = vmatpush.bf16.msra.mxu0 %v631
    %795 = vmatmul.bf16.gmra.mxu0 %v332
    %v796 = vpop.f32.mrf.mxu0
    %v797 = vadd.f32 %v423, %v796
    %v798 = vpop.f32.mrf.mxu0
    %v799 = vadd.f32 %v423, %v798
    %800 = vmatmul.bf16.gmra.mxu0 %v336
    %v801 = vpop.f32.mrf.mxu0
    %v802 = vadd.f32 %v423, %v801
    %v803 = vpop.f32.mrf.mxu0
    %v804 = vadd.f32 %v423, %v803
    %805 = vmatmul.bf16.gmra.mxu0 %v340
    %v806 = vpop.f32.mrf.mxu0
    %v807 = vadd.f32 %v423, %v806
    %v808 = vpop.f32.mrf.mxu0
    %v809 = vadd.f32 %v423, %v808
    %810 = vmatmul.bf16.gmra.mxu0 %v344
    %v811 = vpop.f32.mrf.mxu0
    %v812 = vadd.f32 %v423, %v811
    %v813 = vpop.f32.mrf.mxu0
    %v814 = vadd.f32 %v423, %v813
    %815 = vdwg.mxu0
    %816 = vmatpush.bf16.msra.mxu0 %v688
    %817 = vmatpush.bf16.msra.mxu0 %v680
    %818 = vmatpush.bf16.msra.mxu0 %v672
    %819 = vmatpush.bf16.msra.mxu0 %v664
    %820 = vmatpush.bf16.msra.mxu0 %v656
    %821 = vmatpush.bf16.msra.mxu0 %v648
    %822 = vmatpush.bf16.msra.mxu0 %v640
    %823 = vmatpush.bf16.msra.mxu0 %v632
    %824 = vmatmul.bf16.gmra.mxu0 %v332
    %v825 = vpop.f32.mrf.mxu0
    %v826 = vadd.f32 %v424, %v825
    %v827 = vpop.f32.mrf.mxu0
    %v828 = vadd.f32 %v424, %v827
    %829 = vmatmul.bf16.gmra.mxu0 %v336
    %v830 = vpop.f32.mrf.mxu0
    %v831 = vadd.f32 %v424, %v830
    %v832 = vpop.f32.mrf.mxu0
    %v833 = vadd.f32 %v424, %v832
    %834 = vmatmul.bf16.gmra.mxu0 %v340
    %v835 = vpop.f32.mrf.mxu0
    %v836 = vadd.f32 %v424, %v835
    %v837 = vpop.f32.mrf.mxu0
    %v838 = vadd.f32 %v424, %v837
    %839 = vmatmul.bf16.gmra.mxu0 %v344
    %v840 = vpop.f32.mrf.mxu0
    %v841 = vadd.f32 %v424, %v840
    %v842 = vpop.f32.mrf.mxu0
    %v843 = vadd.f32 %v424, %v842
    %844 = vdwg.mxu0
    %845 = vmatpush.bf16.msra.mxu0 %v689
    %846 = vmatpush.bf16.msra.mxu0 %v681
    %847 = vmatpush.bf16.msra.mxu0 %v673
    %848 = vmatpush.bf16.msra.mxu0 %v665
    %849 = vmatpush.bf16.msra.mxu0 %v657
    %850 = vmatpush.bf16.msra.mxu0 %v649
    %851 = vmatpush.bf16.msra.mxu0 %v641
    %852 = vmatpush.bf16.msra.mxu0 %v633
    %853 = vmatmul.bf16.gmra.mxu0 %v332
    %v854 = vpop.f32.mrf.mxu0
    %v855 = vadd.f32 %v425, %v854
    %v856 = vpop.f32.mrf.mxu0
    %v857 = vadd.f32 %v425, %v856
    %858 = vmatmul.bf16.gmra.mxu0 %v336
    %v859 = vpop.f32.mrf.mxu0
    %v860 = vadd.f32 %v425, %v859
    %v861 = vpop.f32.mrf.mxu0
    %v862 = vadd.f32 %v425, %v861
    %863 = vmatmul.bf16.gmra.mxu0 %v340
    %v864 = vpop.f32.mrf.mxu0
    %v865 = vadd.f32 %v425, %v864
    %v866 = vpop.f32.mrf.mxu0
    %v867 = vadd.f32 %v425, %v866
    %868 = vmatmul.bf16.gmra.mxu0 %v344
    %v869 = vpop.f32.mrf.mxu0
    %v870 = vadd.f32 %v425, %v869
    %v871 = vpop.f32.mrf.mxu0
    %v872 = vadd.f32 %v425, %v871
    %873 = vdwg.mxu0
    %874 = vmatpush.bf16.msra.mxu0 %v690
    %875 = vmatpush.bf16.msra.mxu0 %v682
    %876 = vmatpush.bf16.msra.mxu0 %v674
    %877 = vmatpush.bf16.msra.mxu0 %v666
    %878 = vmatpush.bf16.msra.mxu0 %v658
    %879 = vmatpush.bf16.msra.mxu0 %v650
    %880 = vmatpush.bf16.msra.mxu0 %v642
    %881 = vmatpush.bf16.msra.mxu0 %v634
    %882 = vmatmul.bf16.gmra.mxu0 %v332
    %v883 = vpop.f32.mrf.mxu0
    %v884 = vadd.f32 %v426, %v883
    %v885 = vpop.f32.mrf.mxu0
    %v886 = vadd.f32 %v426, %v885
    %887 = vmatmul.bf16.gmra.mxu0 %v336
    %v888 = vpop.f32.mrf.mxu0
    %v889 = vadd.f32 %v426, %v888
    %v890 = vpop.f32.mrf.mxu0
    %v891 = vadd.f32 %v426, %v890
    %892 = vmatmul.bf16.gmra.mxu0 %v340
    %v893 = vpop.f32.mrf.mxu0
    %v894 = vadd.f32 %v426, %v893
    %v895 = vpop.f32.mrf.mxu0
    %v896 = vadd.f32 %v426, %v895
    %897 = vmatmul.bf16.gmra.mxu0 %v344
    %v898 = vpop.f32.mrf.mxu0
    %v899 = vadd.f32 %v426, %v898
    %v900 = vpop.f32.mrf.mxu0
    %v901 = vadd.f32 %v426, %v900
    %902 = vdwg.mxu0
    %903 = vmatpush.bf16.msra.mxu0 %v691
    %904 = vmatpush.bf16.msra.mxu0 %v683
    %905 = vmatpush.bf16.msra.mxu0 %v675
    %906 = vmatpush.bf16.msra.mxu0 %v667
    %907 = vmatpush.bf16.msra.mxu0 %v659
    %908 = vmatpush.bf16.msra.mxu0 %v651
    %909 = vmatpush.bf16.msra.mxu0 %v643
    %910 = vmatpush.bf16.msra.mxu0 %v635
    %911 = vmatmul.bf16.gmra.mxu0 %v332
    %v912 = vpop.f32.mrf.mxu0
    %v913 = vadd.f32 %v427, %v912
    %v914 = vpop.f32.mrf.mxu0
    %v915 = vadd.f32 %v427, %v914
    %916 = vmatmul.bf16.gmra.mxu0 %v336
    %v917 = vpop.f32.mrf.mxu0
    %v918 = vadd.f32 %v427, %v917
    %v919 = vpop.f32.mrf.mxu0
    %v920 = vadd.f32 %v427, %v919
    %921 = vmatmul.bf16.gmra.mxu0 %v340
    %v922 = vpop.f32.mrf.mxu0
    %v923 = vadd.f32 %v427, %v922
    %v924 = vpop.f32.mrf.mxu0
    %v925 = vadd.f32 %v427, %v924
    %926 = vmatmul.bf16.gmra.mxu0 %v344
    %v927 = vpop.f32.mrf.mxu0
    %v928 = vadd.f32 %v427, %v927
    %v929 = vpop.f32.mrf.mxu0
    %v930 = vadd.f32 %v427, %v929
    %931 = vdwg.mxu0
    %932 = vmatpush.bf16.msra.mxu0 %v692
    %933 = vmatpush.bf16.msra.mxu0 %v684
    %934 = vmatpush.bf16.msra.mxu0 %v676
    %935 = vmatpush.bf16.msra.mxu0 %v668
    %936 = vmatpush.bf16.msra.mxu0 %v660
    %937 = vmatpush.bf16.msra.mxu0 %v652
    %938 = vmatpush.bf16.msra.mxu0 %v644
    %939 = vmatpush.bf16.msra.mxu0 %v636
    %940 = vmatmul.bf16.gmra.mxu0 %v332
    %v941 = vpop.f32.mrf.mxu0
    %v942 = vadd.f32 %v428, %v941
    %v943 = vpop.f32.mrf.mxu0
    %v944 = vadd.f32 %v428, %v943
    %945 = vmatmul.bf16.gmra.mxu0 %v336
    %v946 = vpop.f32.mrf.mxu0
    %v947 = vadd.f32 %v428, %v946
    %v948 = vpop.f32.mrf.mxu0
    %v949 = vadd.f32 %v428, %v948
    %950 = vmatmul.bf16.gmra.mxu0 %v340
    %v951 = vpop.f32.mrf.mxu0
    %v952 = vadd.f32 %v428, %v951
    %v953 = vpop.f32.mrf.mxu0
    %v954 = vadd.f32 %v428, %v953
    %955 = vmatmul.bf16.gmra.mxu0 %v344
    %v956 = vpop.f32.mrf.mxu0
    %v957 = vadd.f32 %v428, %v956
    %v958 = vpop.f32.mrf.mxu0
    %v959 = vadd.f32 %v428, %v958
    %960 = vdwg.mxu0
    %961 = vmatpush.bf16.msra.mxu0 %v693
    %962 = vmatpush.bf16.msra.mxu0 %v685
    %963 = vmatpush.bf16.msra.mxu0 %v677
    %964 = vmatpush.bf16.msra.mxu0 %v669
    %965 = vmatpush.bf16.msra.mxu0 %v661
    %966 = vmatpush.bf16.msra.mxu0 %v653
    %967 = vmatpush.bf16.msra.mxu0 %v645
    %968 = vmatpush.bf16.msra.mxu0 %v637
    %969 = vmatmul.bf16.gmra.mxu0 %v332
    %v970 = vpop.f32.mrf.mxu0
    %v971 = vadd.f32 %v429, %v970
    %v972 = vpop.f32.mrf.mxu0
    %v973 = vadd.f32 %v429, %v972
    %974 = vmatmul.bf16.gmra.mxu0 %v336
    %v975 = vpop.f32.mrf.mxu0
    %v976 = vadd.f32 %v429, %v975
    %v977 = vpop.f32.mrf.mxu0
    %v978 = vadd.f32 %v429, %v977
    %979 = vmatmul.bf16.gmra.mxu0 %v340
    %v980 = vpop.f32.mrf.mxu0
    %v981 = vadd.f32 %v429, %v980
    %v982 = vpop.f32.mrf.mxu0
    %v983 = vadd.f32 %v429, %v982
    %984 = vmatmul.bf16.gmra.mxu0 %v344
    %v985 = vpop.f32.mrf.mxu0
    %v986 = vadd.f32 %v429, %v985
    %v987 = vpop.f32.mrf.mxu0
    %v988 = vadd.f32 %v429, %v987
    %989 = vdwg.mxu0
    %v990 = vmax.f32 %v768, 0.0
    %v991 = vmax.f32 %v797, 0.0
    %v992 = vmax.f32 %v826, 0.0
    %v993 = vmax.f32 %v855, 0.0
    %v994 = vmax.f32 %v884, 0.0
    %v995 = vmax.f32 %v913, 0.0
    %v996 = vmax.f32 %v942, 0.0
    %v997 = vmax.f32 %v971, 0.0
    %v998 = vmax.f32 %v770, 0.0
    %v999 = vmax.f32 %v799, 0.0
    %v1000 = vmax.f32 %v828, 0.0
    %v1001 = vmax.f32 %v857, 0.0
    %v1002 = vmax.f32 %v886, 0.0
    %v1003 = vmax.f32 %v915, 0.0
    %v1004 = vmax.f32 %v944, 0.0
    %v1005 = vmax.f32 %v973, 0.0
    %v1006 = vmax.f32 %v773, 0.0
    %v1007 = vmax.f32 %v802, 0.0
    %v1008 = vmax.f32 %v831, 0.0
    %v1009 = vmax.f32 %v860, 0.0
    %v1010 = vmax.f32 %v889, 0.0
    %v1011 = vmax.f32 %v918, 0.0
    %v1012 = vmax.f32 %v947, 0.0
    %v1013 = vmax.f32 %v976, 0.0
    %v1014 = vmax.f32 %v775, 0.0
    %v1015 = vmax.f32 %v804, 0.0
    %v1016 = vmax.f32 %v833, 0.0
    %v1017 = vmax.f32 %v862, 0.0
    %v1018 = vmax.f32 %v891, 0.0
    %v1019 = vmax.f32 %v920, 0.0
    %v1020 = vmax.f32 %v949, 0.0
    %v1021 = vmax.f32 %v978, 0.0
    %v1022 = vmax.f32 %v778, 0.0
    %v1023 = vmax.f32 %v807, 0.0
    %v1024 = vmax.f32 %v836, 0.0
    %v1025 = vmax.f32 %v865, 0.0
    %v1026 = vmax.f32 %v894, 0.0
    %v1027 = vmax.f32 %v923, 0.0
    %v1028 = vmax.f32 %v952, 0.0
    %v1029 = vmax.f32 %v981, 0.0
    %v1030 = vmax.f32 %v780, 0.0
    %v1031 = vmax.f32 %v809, 0.0
    %v1032 = vmax.f32 %v838, 0.0
    %v1033 = vmax.f32 %v867, 0.0
    %v1034 = vmax.f32 %v896, 0.0
    %v1035 = vmax.f32 %v925, 0.0
    %v1036 = vmax.f32 %v954, 0.0
    %v1037 = vmax.f32 %v983, 0.0
    %v1038 = vmax.f32 %v783, 0.0
    %v1039 = vmax.f32 %v812, 0.0
    %v1040 = vmax.f32 %v841, 0.0
    %v1041 = vmax.f32 %v870, 0.0
    %v1042 = vmax.f32 %v899, 0.0
    %v1043 = vmax.f32 %v928, 0.0
    %v1044 = vmax.f32 %v957, 0.0
    %v1045 = vmax.f32 %v986, 0.0
    %v1046 = vmax.f32 %v785, 0.0
    %v1047 = vmax.f32 %v814, 0.0
    %v1048 = vmax.f32 %v843, 0.0
    %v1049 = vmax.f32 %v872, 0.0
    %v1050 = vmax.f32 %v901, 0.0
    %v1051 = vmax.f32 %v930, 0.0
    %v1052 = vmax.f32 %v959, 0.0
    %v1053 = vmax.f32 %v988, 0.0
    %v1054 = vld [vmem:[#allocation6] sm:$0xff]
    %v1056 = vperm.slane %v1054, 0
    %v1057 = vperm.slane %v1054, 1
    %v1058 = vperm.slane %v1054, 2
    %v1059 = vperm.slane %v1054, 3
    %v1060 = vperm.slane %v1054, 4
    %v1061 = vperm.slane %v1054, 5
    %v1062 = vperm.slane %v1054, 6
    %v1063 = vperm.slane %v1054, 7
    %v1072 = vmul.f32 %v990, %v1056
    %v1073 = vmul.f32 %v991, %v1057
    %v1074 = vmul.f32 %v992, %v1058
    %v1075 = vmul.f32 %v993, %v1059
    %v1076 = vmul.f32 %v994, %v1060
    %v1077 = vmul.f32 %v995, %v1061
    %v1078 = vmul.f32 %v996, %v1062
    %v1079 = vmul.f32 %v997, %v1063
    %v1080 = vmul.f32 %v998, %v1056
    %v1081 = vmul.f32 %v999, %v1057
    %v1082 = vmul.f32 %v1000, %v1058
    %v1083 = vmul.f32 %v1001, %v1059
    %v1084 = vmul.f32 %v1002, %v1060
    %v1085 = vmul.f32 %v1003, %v1061
    %v1086 = vmul.f32 %v1004, %v1062
    %v1087 = vmul.f32 %v1005, %v1063
    %v1088 = vmul.f32 %v1006, %v1056
    %v1089 = vmul.f32 %v1007, %v1057
    %v1090 = vmul.f32 %v1008, %v1058
    %v1091 = vmul.f32 %v1009, %v1059
    %v1092 = vmul.f32 %v1010, %v1060
    %v1093 = vmul.f32 %v1011, %v1061
    %v1094 = vmul.f32 %v1012, %v1062
    %v1095 = vmul.f32 %v1013, %v1063
    %v1096 = vmul.f32 %v1014, %v1056
    %v1097 = vmul.f32 %v1015, %v1057
    %v1098 = vmul.f32 %v1016, %v1058
    %v1099 = vmul.f32 %v1017, %v1059
    %v1100 = vmul.f32 %v1018, %v1060
    %v1101 = vmul.f32 %v1019, %v1061
    %v1102 = vmul.f32 %v1020, %v1062
    %v1103 = vmul.f32 %v1021, %v1063
    %v1104 = vmul.f32 %v1022, %v1056
    %v1105 = vmul.f32 %v1023, %v1057
    %v1106 = vmul.f32 %v1024, %v1058
    %v1107 = vmul.f32 %v1025, %v1059
    %v1108 = vmul.f32 %v1026, %v1060
    %v1109 = vmul.f32 %v1027, %v1061
    %v1110 = vmul.f32 %v1028, %v1062
    %v1111 = vmul.f32 %v1029, %v1063
    %v1112 = vmul.f32 %v1030, %v1056
    %v1113 = vmul.f32 %v1031, %v1057
    %v1114 = vmul.f32 %v1032, %v1058
    %v1115 = vmul.f32 %v1033, %v1059
    %v1116 = vmul.f32 %v1034, %v1060
    %v1117 = vmul.f32 %v1035, %v1061
    %v1118 = vmul.f32 %v1036, %v1062
    %v1119 = vmul.f32 %v1037, %v1063
    %v1120 = vmul.f32 %v1038, %v1056
    %v1121 = vmul.f32 %v1039, %v1057
    %v1122 = vmul.f32 %v1040, %v1058
    %v1123 = vmul.f32 %v1041, %v1059
    %v1124 = vmul.f32 %v1042, %v1060
    %v1125 = vmul.f32 %v1043, %v1061
    %v1126 = vmul.f32 %v1044, %v1062
    %v1127 = vmul.f32 %v1045, %v1063
    %v1128 = vmul.f32 %v1046, %v1056
    %v1129 = vmul.f32 %v1047, %v1057
    %v1130 = vmul.f32 %v1048, %v1058
    %v1131 = vmul.f32 %v1049, %v1059
    %v1132 = vmul.f32 %v1050, %v1060
    %v1133 = vmul.f32 %v1051, %v1061
    %v1134 = vmul.f32 %v1052, %v1062
    %v1135 = vmul.f32 %v1053, %v1063
    %v1136 = vld [vmem:[#allocation7] sm:$0xff]
    %v1138 = vperm.slane %v1136, 0
    %v1139 = vperm.slane %v1136, 1
    %v1140 = vperm.slane %v1136, 2
    %v1141 = vperm.slane %v1136, 3
    %v1142 = vperm.slane %v1136, 4
    %v1143 = vperm.slane %v1136, 5
    %v1144 = vperm.slane %v1136, 6
    %v1145 = vperm.slane %v1136, 7
    %v1154 = vadd.f32 %v1072, %v1138
    %v1155 = vadd.f32 %v1073, %v1139
    %v1156 = vadd.f32 %v1074, %v1140
    %v1157 = vadd.f32 %v1075, %v1141
    %v1158 = vadd.f32 %v1076, %v1142
    %v1159 = vadd.f32 %v1077, %v1143
    %v1160 = vadd.f32 %v1078, %v1144
    %v1161 = vadd.f32 %v1079, %v1145
    %v1162 = vadd.f32 %v1080, %v1138
    %v1163 = vadd.f32 %v1081, %v1139
    %v1164 = vadd.f32 %v1082, %v1140
    %v1165 = vadd.f32 %v1083, %v1141
    %v1166 = vadd.f32 %v1084, %v1142
    %v1167 = vadd.f32 %v1085, %v1143
    %v1168 = vadd.f32 %v1086, %v1144
    %v1169 = vadd.f32 %v1087, %v1145
    %v1170 = vadd.f32 %v1088, %v1138
    %v1171 = vadd.f32 %v1089, %v1139
    %v1172 = vadd.f32 %v1090, %v1140
    %v1173 = vadd.f32 %v1091, %v1141
    %v1174 = vadd.f32 %v1092, %v1142
    %v1175 = vadd.f32 %v1093, %v1143
    %v1176 = vadd.f32 %v1094, %v1144
    %v1177 = vadd.f32 %v1095, %v1145
    %v1178 = vadd.f32 %v1096, %v1138
    %v1179 = vadd.f32 %v1097, %v1139
    %v1180 = vadd.f32 %v1098, %v1140
    %v1181 = vadd.f32 %v1099, %v1141
    %v1182 = vadd.f32 %v1100, %v1142
    %v1183 = vadd.f32 %v1101, %v1143
    %v1184 = vadd.f32 %v1102, %v1144
    %v1185 = vadd.f32 %v1103, %v1145
    %v1186 = vadd.f32 %v1104, %v1138
    %v1187 = vadd.f32 %v1105, %v1139
    %v1188 = vadd.f32 %v1106, %v1140
    %v1189 = vadd.f32 %v1107, %v1141
    %v1190 = vadd.f32 %v1108, %v1142
    %v1191 = vadd.f32 %v1109, %v1143
    %v1192 = vadd.f32 %v1110, %v1144
    %v1193 = vadd.f32 %v1111, %v1145
    %v1194 = vadd.f32 %v1112, %v1138
    %v1195 = vadd.f32 %v1113, %v1139
    %v1196 = vadd.f32 %v1114, %v1140
    %v1197 = vadd.f32 %v1115, %v1141
    %v1198 = vadd.f32 %v1116, %v1142
    %v1199 = vadd.f32 %v1117, %v1143
    %v1200 = vadd.f32 %v1118, %v1144
    %v1201 = vadd.f32 %v1119, %v1145
    %v1202 = vadd.f32 %v1120, %v1138
    %v1203 = vadd.f32 %v1121, %v1139
    %v1204 = vadd.f32 %v1122, %v1140
    %v1205 = vadd.f32 %v1123, %v1141
    %v1206 = vadd.f32 %v1124, %v1142
    %v1207 = vadd.f32 %v1125, %v1143
    %v1208 = vadd.f32 %v1126, %v1144
    %v1209 = vadd.f32 %v1127, %v1145
    %v1210 = vadd.f32 %v1128, %v1138
    %v1211 = vadd.f32 %v1129, %v1139
    %v1212 = vadd.f32 %v1130, %v1140
    %v1213 = vadd.f32 %v1131, %v1141
    %v1214 = vadd.f32 %v1132, %v1142
    %v1215 = vadd.f32 %v1133, %v1143
    %v1216 = vadd.f32 %v1134, %v1144
    %v1217 = vadd.f32 %v1135, %v1145
    %v1218 = vpack.c.bf16 %v1155, %v1154
    %v1219 = vpack.c.bf16 %v1157, %v1156
    %v1220 = vpack.c.bf16 %v1159, %v1158
    %v1221 = vpack.c.bf16 %v1161, %v1160
    %v1222 = vpack.c.bf16 %v1163, %v1162
    %v1223 = vpack.c.bf16 %v1165, %v1164
    %v1224 = vpack.c.bf16 %v1167, %v1166
    %v1225 = vpack.c.bf16 %v1169, %v1168
    %v1226 = vpack.c.bf16 %v1171, %v1170
    %v1227 = vpack.c.bf16 %v1173, %v1172
    %v1228 = vpack.c.bf16 %v1175, %v1174
    %v1229 = vpack.c.bf16 %v1177, %v1176
    %v1230 = vpack.c.bf16 %v1179, %v1178
    %v1231 = vpack.c.bf16 %v1181, %v1180
    %v1232 = vpack.c.bf16 %v1183, %v1182
    %v1233 = vpack.c.bf16 %v1185, %v1184
    %v1234 = vpack.c.bf16 %v1187, %v1186
    %v1235 = vpack.c.bf16 %v1189, %v1188
    %v1236 = vpack.c.bf16 %v1191, %v1190
    %v1237 = vpack.c.bf16 %v1193, %v1192
    %v1238 = vpack.c.bf16 %v1195, %v1194
    %v1239 = vpack.c.bf16 %v1197, %v1196
    %v1240 = vpack.c.bf16 %v1199, %v1198
    %v1241 = vpack.c.bf16 %v1201, %v1200
    %v1242 = vpack.c.bf16 %v1203, %v1202
    %v1243 = vpack.c.bf16 %v1205, %v1204
    %v1244 = vpack.c.bf16 %v1207, %v1206
    %v1245 = vpack.c.bf16 %v1209, %v1208
    %v1246 = vpack.c.bf16 %v1211, %v1210
    %v1247 = vpack.c.bf16 %v1213, %v1212
    %v1248 = vpack.c.bf16 %v1215, %v1214
    %v1249 = vpack.c.bf16 %v1217, %v1216
    %v1250 = vunpack.c.l.bf16 %v1218
    %v1251 = vunpack.c.h.bf16 %v1218
    %v1252 = vunpack.c.l.bf16 %v1219
    %v1253 = vunpack.c.h.bf16 %v1219
    %v1254 = vunpack.c.l.bf16 %v1222
    %v1255 = vunpack.c.h.bf16 %v1222
    %v1256 = vunpack.c.l.bf16 %v1223
    %v1257 = vunpack.c.h.bf16 %v1223
    %v1258 = vunpack.c.l.bf16 %v1226
    %v1259 = vunpack.c.h.bf16 %v1226
    %v1260 = vunpack.c.l.bf16 %v1227
    %v1261 = vunpack.c.h.bf16 %v1227
    %v1262 = vunpack.c.l.bf16 %v1230
    %v1263 = vunpack.c.h.bf16 %v1230
    %v1264 = vunpack.c.l.bf16 %v1231
    %v1265 = vunpack.c.h.bf16 %v1231
    %v1266 = vunpack.c.l.bf16 %v1234
    %v1267 = vunpack.c.h.bf16 %v1234
    %v1268 = vunpack.c.l.bf16 %v1235
    %v1269 = vunpack.c.h.bf16 %v1235
    %v1270 = vunpack.c.l.bf16 %v1238
    %v1271 = vunpack.c.h.bf16 %v1238
    %v1272 = vunpack.c.l.bf16 %v1239
    %v1273 = vunpack.c.h.bf16 %v1239
    %v1274 = vunpack.c.l.bf16 %v1242
    %v1275 = vunpack.c.h.bf16 %v1242
    %v1276 = vunpack.c.l.bf16 %v1243
    %v1277 = vunpack.c.h.bf16 %v1243
    %v1278 = vunpack.c.l.bf16 %v1246
    %v1279 = vunpack.c.h.bf16 %v1246
    %v1280 = vunpack.c.l.bf16 %v1247
    %v1281 = vunpack.c.h.bf16 %v1247
    %v1282 = vunpack.c.l.bf16 %v1220
    %v1283 = vunpack.c.h.bf16 %v1220
    %v1284 = vunpack.c.l.bf16 %v1221
    %v1285 = vunpack.c.h.bf16 %v1221
    %v1286 = vunpack.c.l.bf16 %v1224
    %v1287 = vunpack.c.h.bf16 %v1224
    %v1288 = vunpack.c.l.bf16 %v1225
    %v1289 = vunpack.c.h.bf16 %v1225
    %v1290 = vunpack.c.l.bf16 %v1228
    %v1291 = vunpack.c.h.bf16 %v1228
    %v1292 = vunpack.c.l.bf16 %v1229
    %v1293 = vunpack.c.h.bf16 %v1229
    %v1294 = vunpack.c.l.bf16 %v1232
    %v1295 = vunpack.c.h.bf16 %v1232
    %v1296 = vunpack.c.l.bf16 %v1233
    %v1297 = vunpack.c.h.bf16 %v1233
    %v1298 = vunpack.c.l.bf16 %v1236
    %v1299 = vunpack.c.h.bf16 %v1236
    %v1300 = vunpack.c.l.bf16 %v1237
    %v1301 = vunpack.c.h.bf16 %v1237
    %v1302 = vunpack.c.l.bf16 %v1240
    %v1303 = vunpack.c.h.bf16 %v1240
    %v1304 = vunpack.c.l.bf16 %v1241
    %v1305 = vunpack.c.h.bf16 %v1241
    %v1306 = vunpack.c.l.bf16 %v1244
    %v1307 = vunpack.c.h.bf16 %v1244
    %v1308 = vunpack.c.l.bf16 %v1245
    %v1309 = vunpack.c.h.bf16 %v1245
    %v1310 = vunpack.c.l.bf16 %v1248
    %v1311 = vunpack.c.h.bf16 %v1248
    %v1312 = vunpack.c.l.bf16 %v1249
    %v1313 = vunpack.c.h.bf16 %v1249
    %v1314 = vmax.f32 %v1250, %v1282
    %v1315 = vmax.f32 %v1251, %v1283
    %v1316 = vmax.f32 %v1252, %v1284
    %v1317 = vmax.f32 %v1253, %v1285
    %v1318 = vmax.f32 %v1254, %v1286
    %v1319 = vmax.f32 %v1255, %v1287
    %v1320 = vmax.f32 %v1256, %v1288
    %v1321 = vmax.f32 %v1257, %v1289
    %v1322 = vmax.f32 %v1258, %v1290
    %v1323 = vmax.f32 %v1259, %v1291
    %v1324 = vmax.f32 %v1260, %v1292
    %v1325 = vmax.f32 %v1261, %v1293
    %v1326 = vmax.f32 %v1262, %v1294
    %v1327 = vmax.f32 %v1263, %v1295
    %v1328 = vmax.f32 %v1264, %v1296
    %v1329 = vmax.f32 %v1265, %v1297
    %v1330 = vmax.f32 %v1266, %v1298
    %v1331 = vmax.f32 %v1267, %v1299
    %v1332 = vmax.f32 %v1268, %v1300
    %v1333 = vmax.f32 %v1269, %v1301
    %v1334 = vmax.f32 %v1270, %v1302
    %v1335 = vmax.f32 %v1271, %v1303
    %v1336 = vmax.f32 %v1272, %v1304
    %v1337 = vmax.f32 %v1273, %v1305
    %v1338 = vmax.f32 %v1274, %v1306
    %v1339 = vmax.f32 %v1275, %v1307
    %v1340 = vmax.f32 %v1276, %v1308
    %v1341 = vmax.f32 %v1277, %v1309
    %v1342 = vmax.f32 %v1278, %v1310
    %v1343 = vmax.f32 %v1279, %v1311
    %v1344 = vmax.f32 %v1280, %v1312
    %v1345 = vmax.f32 %v1281, %v1313
    %v1346 = vpack.c.bf16 %v1315, %v1314
    %v1347 = vpack.c.bf16 %v1317, %v1316
    %v1348 = vpack.c.bf16 %v1319, %v1318
    %v1349 = vpack.c.bf16 %v1321, %v1320
    %v1350 = vpack.c.bf16 %v1323, %v1322
    %v1351 = vpack.c.bf16 %v1325, %v1324
    %v1352 = vpack.c.bf16 %v1327, %v1326
    %v1353 = vpack.c.bf16 %v1329, %v1328
    %v1354 = vpack.c.bf16 %v1331, %v1330
    %v1355 = vpack.c.bf16 %v1333, %v1332
    %v1356 = vpack.c.bf16 %v1335, %v1334
    %v1357 = vpack.c.bf16 %v1337, %v1336
    %v1358 = vpack.c.bf16 %v1339, %v1338
    %v1359 = vpack.c.bf16 %v1341, %v1340
    %v1360 = vpack.c.bf16 %v1343, %v1342
    %v1361 = vpack.c.bf16 %v1345, %v1344
    %v1362 = vunpack.c.l.bf16 %v1346
    %v1363 = vunpack.c.h.bf16 %v1346
    %v1364 = vunpack.c.l.bf16 %v1348
    %v1365 = vunpack.c.h.bf16 %v1348
    %v1366 = vunpack.c.l.bf16 %v1350
    %v1367 = vunpack.c.h.bf16 %v1350
    %v1368 = vunpack.c.l.bf16 %v1352
    %v1369 = vunpack.c.h.bf16 %v1352
    %v1370 = vunpack.c.l.bf16 %v1354
    %v1371 = vunpack.c.h.bf16 %v1354
    %v1372 = vunpack.c.l.bf16 %v1356
    %v1373 = vunpack.c.h.bf16 %v1356
    %v1374 = vunpack.c.l.bf16 %v1358
    %v1375 = vunpack.c.h.bf16 %v1358
    %v1376 = vunpack.c.l.bf16 %v1360
    %v1377 = vunpack.c.h.bf16 %v1360
    %v1378 = vunpack.c.l.bf16 %v1347
    %v1379 = vunpack.c.h.bf16 %v1347
    %v1380 = vunpack.c.l.bf16 %v1349
    %v1381 = vunpack.c.h.bf16 %v1349
    %v1382 = vunpack.c.l.bf16 %v1351
    %v1383 = vunpack.c.h.bf16 %v1351
    %v1384 = vunpack.c.l.bf16 %v1353
    %v1385 = vunpack.c.h.bf16 %v1353
    %v1386 = vunpack.c.l.bf16 %v1355
    %v1387 = vunpack.c.h.bf16 %v1355
    %v1388 = vunpack.c.l.bf16 %v1357
    %v1389 = vunpack.c.h.bf16 %v1357
    %v1390 = vunpack.c.l.bf16 %v1359
    %v1391 = vunpack.c.h.bf16 %v1359
    %v1392 = vunpack.c.l.bf16 %v1361
    %v1393 = vunpack.c.h.bf16 %v1361
    %v1394 = vmax.f32 %v1362, %v1378
    %v1395 = vmax.f32 %v1363, %v1379
    %v1396 = vmax.f32 %v1364, %v1380
    %v1397 = vmax.f32 %v1365, %v1381
    %v1398 = vmax.f32 %v1366, %v1382
    %v1399 = vmax.f32 %v1367, %v1383
    %v1400 = vmax.f32 %v1368, %v1384
    %v1401 = vmax.f32 %v1369, %v1385
    %v1402 = vmax.f32 %v1370, %v1386
    %v1403 = vmax.f32 %v1371, %v1387
    %v1404 = vmax.f32 %v1372, %v1388
    %v1405 = vmax.f32 %v1373, %v1389
    %v1406 = vmax.f32 %v1374, %v1390
    %v1407 = vmax.f32 %v1375, %v1391
    %v1408 = vmax.f32 %v1376, %v1392
    %v1409 = vmax.f32 %v1377, %v1393
    %v1410 = vpack.c.bf16 %v1395, %v1394
    %v1411 = vpack.c.bf16 %v1397, %v1396
    %v1412 = vpack.c.bf16 %v1399, %v1398
    %v1413 = vpack.c.bf16 %v1401, %v1400
    %v1414 = vpack.c.bf16 %v1403, %v1402
    %v1415 = vpack.c.bf16 %v1405, %v1404
    %v1416 = vpack.c.bf16 %v1407, %v1406
    %v1417 = vpack.c.bf16 %v1409, %v1408
    %v1418 = vunpack.c.l.bf16 %v1410
    %v1419 = vunpack.c.l.bf16 %v1411
    %v1420 = vunpack.c.l.bf16 %v1412
    %v1421 = vunpack.c.l.bf16 %v1413
    %v1422 = vunpack.c.l.bf16 %v1414
    %v1423 = vunpack.c.l.bf16 %v1415
    %v1424 = vunpack.c.l.bf16 %v1416
    %v1425 = vunpack.c.l.bf16 %v1417
    %v1434 = vrot.slane %v1410, 4
    %v1435 = vrot.slane %v1411, 4
    %v1436 = vrot.slane %v1412, 4
    %v1437 = vrot.slane %v1413, 4
    %v1438 = vrot.slane %v1414, 4
    %v1439 = vrot.slane %v1415, 4
    %v1440 = vrot.slane %v1416, 4
    %v1441 = vrot.slane %v1417, 4
    %v1450 = vunpack.c.l.bf16 %v1434
    %v1451 = vunpack.c.l.bf16 %v1435
    %v1452 = vunpack.c.l.bf16 %v1436
    %v1453 = vunpack.c.l.bf16 %v1437
    %v1454 = vunpack.c.l.bf16 %v1438
    %v1455 = vunpack.c.l.bf16 %v1439
    %v1456 = vunpack.c.l.bf16 %v1440
    %v1457 = vunpack.c.l.bf16 %v1441
    %v1458 = vmax.f32 %v1418, %v1450
    %v1459 = vmax.f32 %v1419, %v1451
    %v1460 = vmax.f32 %v1420, %v1452
    %v1461 = vmax.f32 %v1421, %v1453
    %v1462 = vmax.f32 %v1422, %v1454
    %v1463 = vmax.f32 %v1423, %v1455
    %v1464 = vmax.f32 %v1424, %v1456
    %v1465 = vmax.f32 %v1425, %v1457
    %v1466 = vpack.c.bf16 %v1458, %v1458
    %v1467 = vpack.c.bf16 %v1459, %v1459
    %v1468 = vpack.c.bf16 %v1460, %v1460
    %v1469 = vpack.c.bf16 %v1461, %v1461
    %v1470 = vpack.c.bf16 %v1462, %v1462
    %v1471 = vpack.c.bf16 %v1463, %v1463
    %v1472 = vpack.c.bf16 %v1464, %v1464
    %v1473 = vpack.c.bf16 %v1465, %v1465
    %v1474 = vunpack.c.l.bf16 %v1466
    %v1475 = vunpack.c.l.bf16 %v1467
    %v1476 = vunpack.c.l.bf16 %v1468
    %v1477 = vunpack.c.l.bf16 %v1469
    %v1478 = vunpack.c.l.bf16 %v1470
    %v1479 = vunpack.c.l.bf16 %v1471
    %v1480 = vunpack.c.l.bf16 %v1472
    %v1481 = vunpack.c.l.bf16 %v1473
    %1490 = vrot.lane.b32.xlu0 %v1474, 64
    %v1491 = vpop.permute.xlu0 %1490
    %1492 = vrot.lane.b32.xlu0 %v1475, 64
    %v1493 = vpop.permute.xlu0 %1492
    %1494 = vrot.lane.b32.xlu0 %v1476, 64
    %v1495 = vpop.permute.xlu0 %1494
    %1496 = vrot.lane.b32.xlu0 %v1477, 64
    %v1497 = vpop.permute.xlu0 %1496
    %1498 = vrot.lane.b32.xlu0 %v1478, 64
    %v1499 = vpop.permute.xlu0 %1498
    %1500 = vrot.lane.b32.xlu0 %v1479, 64
    %v1501 = vpop.permute.xlu0 %1500
    %1502 = vrot.lane.b32.xlu0 %v1480, 64
    %v1503 = vpop.permute.xlu0 %1502
    %1504 = vrot.lane.b32.xlu0 %v1481, 64
    %v1505 = vpop.permute.xlu0 %1504
    %v1514 = vmax.f32 %v1474, %v1491
    %v1515 = vmax.f32 %v1475, %v1493
    %v1516 = vmax.f32 %v1476, %v1495
    %v1517 = vmax.f32 %v1477, %v1497
    %v1518 = vmax.f32 %v1478, %v1499
    %v1519 = vmax.f32 %v1479, %v1501
    %v1520 = vmax.f32 %v1480, %v1503
    %v1521 = vmax.f32 %v1481, %v1505
    %v1522 = vpack.c.bf16 %v1514, %v1514
    %v1523 = vpack.c.bf16 %v1515, %v1515
    %v1524 = vpack.c.bf16 %v1516, %v1516
    %v1525 = vpack.c.bf16 %v1517, %v1517
    %v1526 = vpack.c.bf16 %v1518, %v1518
    %v1527 = vpack.c.bf16 %v1519, %v1519
    %v1528 = vpack.c.bf16 %v1520, %v1520
    %v1529 = vpack.c.bf16 %v1521, %v1521
    %v1530 = vunpack.c.l.bf16 %v1522
    %v1531 = vunpack.c.l.bf16 %v1523
    %v1532 = vunpack.c.l.bf16 %v1524
    %v1533 = vunpack.c.l.bf16 %v1525
    %v1534 = vunpack.c.l.bf16 %v1526
    %v1535 = vunpack.c.l.bf16 %v1527
    %v1536 = vunpack.c.l.bf16 %v1528
    %v1537 = vunpack.c.l.bf16 %v1529
    %1546 = vrot.lane.b32.xlu0 %v1530, 96
    %v1547 = vpop.permute.xlu0 %1546
    %1548 = vrot.lane.b32.xlu0 %v1531, 96
    %v1549 = vpop.permute.xlu0 %1548
    %1550 = vrot.lane.b32.xlu0 %v1532, 96
    %v1551 = vpop.permute.xlu0 %1550
    %1552 = vrot.lane.b32.xlu0 %v1533, 96
    %v1553 = vpop.permute.xlu0 %1552
    %1554 = vrot.lane.b32.xlu0 %v1534, 96
    %v1555 = vpop.permute.xlu0 %1554
    %1556 = vrot.lane.b32.xlu0 %v1535, 96
    %v1557 = vpop.permute.xlu0 %1556
    %1558 = vrot.lane.b32.xlu0 %v1536, 96
    %v1559 = vpop.permute.xlu0 %1558
    %1560 = vrot.lane.b32.xlu0 %v1537, 96
    %v1561 = vpop.permute.xlu0 %1560
    %v1570 = vmax.f32 %v1530, %v1547
    %v1571 = vmax.f32 %v1531, %v1549
    %v1572 = vmax.f32 %v1532, %v1551
    %v1573 = vmax.f32 %v1533, %v1553
    %v1574 = vmax.f32 %v1534, %v1555
    %v1575 = vmax.f32 %v1535, %v1557
    %v1576 = vmax.f32 %v1536, %v1559
    %v1577 = vmax.f32 %v1537, %v1561
    %v1578 = vpack.c.bf16 %v1570, %v1570
    %v1579 = vpack.c.bf16 %v1571, %v1571
    %v1580 = vpack.c.bf16 %v1572, %v1572
    %v1581 = vpack.c.bf16 %v1573, %v1573
    %v1582 = vpack.c.bf16 %v1574, %v1574
    %v1583 = vpack.c.bf16 %v1575, %v1575
    %v1584 = vpack.c.bf16 %v1576, %v1576
    %v1585 = vpack.c.bf16 %v1577, %v1577
    %v1586 = vld [vmem:[#allocation2 + $0x20] sm:$0xff]
    %v1587 = vld [vmem:[#allocation2 + $0x28] sm:$0xff]
    %v1588 = vld [vmem:[#allocation2 + $0x30] sm:$0xff]
    %v1589 = vld [vmem:[#allocation2 + $0x38] sm:$0xff]
    %v1590 = vld [vmem:[#allocation2 + $0x9c] sm:$0xff]
    %v1591 = vld [vmem:[#allocation2 + $0xa4] sm:$0xff]
    %v1592 = vld [vmem:[#allocation2 + $0xac] sm:$0xff]
    %v1593 = vld [vmem:[#allocation2 + $0xb4] sm:$0xff]
    %v1594 = vld [vmem:[#allocation2 + $0x118] sm:$0xff]
    %v1595 = vld [vmem:[#allocation2 + $0x120] sm:$0xff]
    %v1596 = vld [vmem:[#allocation2 + $0x128] sm:$0xff]
    %v1597 = vld [vmem:[#allocation2 + $0x130] sm:$0xff]
    %v1598 = vld [vmem:[#allocation2 + $0x194] sm:$0xff]
    %v1599 = vld [vmem:[#allocation2 + $0x19c] sm:$0xff]
    %v1600 = vld [vmem:[#allocation2 + $0x1a4] sm:$0xff]
    %v1601 = vld [vmem:[#allocation2 + $0x1ac] sm:$0xff]
    %v1602 = vld [vmem:[#allocation2 + $0x210] sm:$0xff]
    %v1603 = vld [vmem:[#allocation2 + $0x218] sm:$0xff]
    %v1604 = vld [vmem:[#allocation2 + $0x220] sm:$0xff]
    %v1605 = vld [vmem:[#allocation2 + $0x228] sm:$0xff]
    %v1606 = vld [vmem:[#allocation2 + $0x28c] sm:$0xff]
    %v1607 = vld [vmem:[#allocation2 + $0x294] sm:$0xff]
    %v1608 = vld [vmem:[#allocation2 + $0x29c] sm:$0xff]
    %v1609 = vld [vmem:[#allocation2 + $0x2a4] sm:$0xff]
    %v1610 = vld [vmem:[#allocation2 + $0x308] sm:$0xff]
    %v1611 = vld [vmem:[#allocation2 + $0x310] sm:$0xff]
    %v1612 = vld [vmem:[#allocation2 + $0x318] sm:$0xff]
    %v1613 = vld [vmem:[#allocation2 + $0x320] sm:$0xff]
    %v1614 = vld [vmem:[#allocation2 + $0x384] sm:$0xff]
    %v1615 = vld [vmem:[#allocation2 + $0x38c] sm:$0xff]
    %v1616 = vld [vmem:[#allocation2 + $0x394] sm:$0xff]
    %v1617 = vld [vmem:[#allocation2 + $0x39c] sm:$0xff]
    %v1618 = vld [vmem:[#allocation2 + $0x400] sm:$0xff]
    %v1619 = vld [vmem:[#allocation2 + $0x408] sm:$0xff]
    %v1620 = vld [vmem:[#allocation2 + $0x410] sm:$0xff]
    %v1621 = vld [vmem:[#allocation2 + $0x418] sm:$0xff]
    %v1622 = vld [vmem:[#allocation2 + $0x47c] sm:$0xff]
    %v1623 = vld [vmem:[#allocation2 + $0x484] sm:$0xff]
    %v1624 = vld [vmem:[#allocation2 + $0x48c] sm:$0xff]
    %v1625 = vld [vmem:[#allocation2 + $0x494] sm:$0xff]
    %v1626 = vld [vmem:[#allocation2 + $0x4f8] sm:$0xff]
    %v1627 = vld [vmem:[#allocation2 + $0x500] sm:$0xff]
    %v1628 = vld [vmem:[#allocation2 + $0x508] sm:$0xff]
    %v1629 = vld [vmem:[#allocation2 + $0x510] sm:$0xff]
    %v1630 = vld [vmem:[#allocation2 + $0x574] sm:$0xff]
    %v1631 = vld [vmem:[#allocation2 + $0x57c] sm:$0xff]
    %v1632 = vld [vmem:[#allocation2 + $0x584] sm:$0xff]
    %v1633 = vld [vmem:[#allocation2 + $0x58c] sm:$0xff]
    %v1634 = vld [vmem:[#allocation2 + $0x5f0] sm:$0xff]
    %v1635 = vld [vmem:[#allocation2 + $0x5f8] sm:$0xff]
    %v1636 = vld [vmem:[#allocation2 + $0x600] sm:$0xff]
    %v1637 = vld [vmem:[#allocation2 + $0x608] sm:$0xff]
    %v1638 = vld [vmem:[#allocation2 + $0x66c] sm:$0xff]
    %v1639 = vld [vmem:[#allocation2 + $0x674] sm:$0xff]
    %v1640 = vld [vmem:[#allocation2 + $0x67c] sm:$0xff]
    %v1641 = vld [vmem:[#allocation2 + $0x684] sm:$0xff]
    %v1642 = vld [vmem:[#allocation2 + $0x6e8] sm:$0xff]
    %v1643 = vld [vmem:[#allocation2 + $0x6f0] sm:$0xff]
    %v1644 = vld [vmem:[#allocation2 + $0x6f8] sm:$0xff]
    %v1645 = vld [vmem:[#allocation2 + $0x700] sm:$0xff]
    %v1646 = vld [vmem:[#allocation2 + $0x764] sm:$0xff]
    %v1647 = vld [vmem:[#allocation2 + $0x76c] sm:$0xff]
    %v1648 = vld [vmem:[#allocation2 + $0x774] sm:$0xff]
    %v1649 = vld [vmem:[#allocation2 + $0x77c] sm:$0xff]
    %v1650 = vld [vmem:[#allocation4 + $0x8] sm:$0xff]
    %v1652 = vperm.slane %v1650, 0
    %v1653 = vperm.slane %v1650, 1
    %v1654 = vperm.slane %v1650, 2
    %v1655 = vperm.slane %v1650, 3
    %v1656 = vperm.slane %v1650, 4
    %v1657 = vperm.slane %v1650, 5
    %v1658 = vperm.slane %v1650, 6
    %v1659 = vperm.slane %v1650, 7
    %v1732 = vunpack.c.l.b16 %v1586
    %v1733 = vunpack.c.h.b16 %v1586
    %v1734 = vunpack.c.l.b16 %v1587
    %v1735 = vunpack.c.h.b16 %v1587
    %v1736 = vunpack.c.l.b16 %v1588
    %v1737 = vunpack.c.h.b16 %v1588
    %v1738 = vunpack.c.l.b16 %v1589
    %v1739 = vunpack.c.h.b16 %v1589
    %v1740 = vunpack.c.l.b16 %v1590
    %v1741 = vunpack.c.h.b16 %v1590
    %v1742 = vunpack.c.l.b16 %v1591
    %v1743 = vunpack.c.h.b16 %v1591
    %v1744 = vunpack.c.l.b16 %v1592
    %v1745 = vunpack.c.h.b16 %v1592
    %v1746 = vunpack.c.l.b16 %v1593
    %v1747 = vunpack.c.h.b16 %v1593
    %v1748 = vunpack.c.l.b16 %v1594
    %v1749 = vunpack.c.h.b16 %v1594
    %v1750 = vunpack.c.l.b16 %v1595
    %v1751 = vunpack.c.h.b16 %v1595
    %v1752 = vunpack.c.l.b16 %v1596
    %v1753 = vunpack.c.h.b16 %v1596
    %v1754 = vunpack.c.l.b16 %v1597
    %v1755 = vunpack.c.h.b16 %v1597
    %v1756 = vunpack.c.l.b16 %v1598
    %v1757 = vunpack.c.h.b16 %v1598
    %v1758 = vunpack.c.l.b16 %v1599
    %v1759 = vunpack.c.h.b16 %v1599
    %v1760 = vunpack.c.l.b16 %v1600
    %v1761 = vunpack.c.h.b16 %v1600
    %v1762 = vunpack.c.l.b16 %v1601
    %v1763 = vunpack.c.h.b16 %v1601
    %v1764 = vunpack.c.l.b16 %v1602
    %v1765 = vunpack.c.h.b16 %v1602
    %v1766 = vunpack.c.l.b16 %v1603
    %v1767 = vunpack.c.h.b16 %v1603
    %v1768 = vunpack.c.l.b16 %v1604
    %v1769 = vunpack.c.h.b16 %v1604
    %v1770 = vunpack.c.l.b16 %v1605
    %v1771 = vunpack.c.h.b16 %v1605
    %v1772 = vunpack.c.l.b16 %v1606
    %v1773 = vunpack.c.h.b16 %v1606
    %v1774 = vunpack.c.l.b16 %v1607
    %v1775 = vunpack.c.h.b16 %v1607
    %v1776 = vunpack.c.l.b16 %v1608
    %v1777 = vunpack.c.h.b16 %v1608
    %v1778 = vunpack.c.l.b16 %v1609
    %v1779 = vunpack.c.h.b16 %v1609
    %v1780 = vunpack.c.l.b16 %v1610
    %v1781 = vunpack.c.h.b16 %v1610
    %v1782 = vunpack.c.l.b16 %v1611
    %v1783 = vunpack.c.h.b16 %v1611
    %v1784 = vunpack.c.l.b16 %v1612
    %v1785 = vunpack.c.h.b16 %v1612
    %v1786 = vunpack.c.l.b16 %v1613
    %v1787 = vunpack.c.h.b16 %v1613
    %v1788 = vunpack.c.l.b16 %v1614
    %v1789 = vunpack.c.h.b16 %v1614
    %v1790 = vunpack.c.l.b16 %v1615
    %v1791 = vunpack.c.h.b16 %v1615
    %v1792 = vunpack.c.l.b16 %v1616
    %v1793 = vunpack.c.h.b16 %v1616
    %v1794 = vunpack.c.l.b16 %v1617
    %v1795 = vunpack.c.h.b16 %v1617
    %v1796 = vunpack.c.l.b16 %v1618
    %v1797 = vunpack.c.h.b16 %v1618
    %v1798 = vunpack.c.l.b16 %v1619
    %v1799 = vunpack.c.h.b16 %v1619
    %v1800 = vunpack.c.l.b16 %v1620
    %v1801 = vunpack.c.h.b16 %v1620
    %v1802 = vunpack.c.l.b16 %v1621
    %v1803 = vunpack.c.h.b16 %v1621
    %v1804 = vunpack.c.l.b16 %v1622
    %v1805 = vunpack.c.h.b16 %v1622
    %v1806 = vunpack.c.l.b16 %v1623
    %v1807 = vunpack.c.h.b16 %v1623
    %v1808 = vunpack.c.l.b16 %v1624
    %v1809 = vunpack.c.h.b16 %v1624
    %v1810 = vunpack.c.l.b16 %v1625
    %v1811 = vunpack.c.h.b16 %v1625
    %v1812 = vunpack.c.l.b16 %v1626
    %v1813 = vunpack.c.h.b16 %v1626
    %v1814 = vunpack.c.l.b16 %v1627
    %v1815 = vunpack.c.h.b16 %v1627
    %v1816 = vunpack.c.l.b16 %v1628
    %v1817 = vunpack.c.h.b16 %v1628
    %v1818 = vunpack.c.l.b16 %v1629
    %v1819 = vunpack.c.h.b16 %v1629
    %v1820 = vunpack.c.l.b16 %v1630
    %v1821 = vunpack.c.h.b16 %v1630
    %v1822 = vunpack.c.l.b16 %v1631
    %v1823 = vunpack.c.h.b16 %v1631
    %v1824 = vunpack.c.l.b16 %v1632
    %v1825 = vunpack.c.h.b16 %v1632
    %v1826 = vunpack.c.l.b16 %v1633
    %v1827 = vunpack.c.h.b16 %v1633
    %v1828 = vunpack.c.l.b16 %v1634
    %v1829 = vunpack.c.h.b16 %v1634
    %v1830 = vunpack.c.l.b16 %v1635
    %v1831 = vunpack.c.h.b16 %v1635
    %v1832 = vunpack.c.l.b16 %v1636
    %v1833 = vunpack.c.h.b16 %v1636
    %v1834 = vunpack.c.l.b16 %v1637
    %v1835 = vunpack.c.h.b16 %v1637
    %v1836 = vunpack.c.l.b16 %v1638
    %v1837 = vunpack.c.h.b16 %v1638
    %v1838 = vunpack.c.l.b16 %v1639
    %v1839 = vunpack.c.h.b16 %v1639
    %v1840 = vunpack.c.l.b16 %v1640
    %v1841 = vunpack.c.h.b16 %v1640
    %v1842 = vunpack.c.l.b16 %v1641
    %v1843 = vunpack.c.h.b16 %v1641
    %v1844 = vunpack.c.l.b16 %v1642
    %v1845 = vunpack.c.h.b16 %v1642
    %v1846 = vunpack.c.l.b16 %v1643
    %v1847 = vunpack.c.h.b16 %v1643
    %v1848 = vunpack.c.l.b16 %v1644
    %v1849 = vunpack.c.h.b16 %v1644
    %v1850 = vunpack.c.l.b16 %v1645
    %v1851 = vunpack.c.h.b16 %v1645
    %v1852 = vunpack.c.l.b16 %v1646
    %v1853 = vunpack.c.h.b16 %v1646
    %v1854 = vunpack.c.l.b16 %v1647
    %v1855 = vunpack.c.h.b16 %v1647
    %v1856 = vunpack.c.l.b16 %v1648
    %v1857 = vunpack.c.h.b16 %v1648
    %v1858 = vunpack.c.l.b16 %v1649
    %v1859 = vunpack.c.h.b16 %v1649
    %v1860 = vpack.c.b16 %v1740, %v1732
    %v1861 = vpack.c.b16 %v1741, %v1733
    %v1862 = vpack.c.b16 %v1742, %v1734
    %v1863 = vpack.c.b16 %v1743, %v1735
    %v1864 = vpack.c.b16 %v1744, %v1736
    %v1865 = vpack.c.b16 %v1745, %v1737
    %v1866 = vpack.c.b16 %v1746, %v1738
    %v1867 = vpack.c.b16 %v1747, %v1739
    %v1868 = vpack.c.b16 %v1756, %v1748
    %v1869 = vpack.c.b16 %v1757, %v1749
    %v1870 = vpack.c.b16 %v1758, %v1750
    %v1871 = vpack.c.b16 %v1759, %v1751
    %v1872 = vpack.c.b16 %v1760, %v1752
    %v1873 = vpack.c.b16 %v1761, %v1753
    %v1874 = vpack.c.b16 %v1762, %v1754
    %v1875 = vpack.c.b16 %v1763, %v1755
    %v1876 = vpack.c.b16 %v1772, %v1764
    %v1877 = vpack.c.b16 %v1773, %v1765
    %v1878 = vpack.c.b16 %v1774, %v1766
    %v1879 = vpack.c.b16 %v1775, %v1767
    %v1880 = vpack.c.b16 %v1776, %v1768
    %v1881 = vpack.c.b16 %v1777, %v1769
    %v1882 = vpack.c.b16 %v1778, %v1770
    %v1883 = vpack.c.b16 %v1779, %v1771
    %v1884 = vpack.c.b16 %v1788, %v1780
    %v1885 = vpack.c.b16 %v1789, %v1781
    %v1886 = vpack.c.b16 %v1790, %v1782
    %v1887 = vpack.c.b16 %v1791, %v1783
    %v1888 = vpack.c.b16 %v1792, %v1784
    %v1889 = vpack.c.b16 %v1793, %v1785
    %v1890 = vpack.c.b16 %v1794, %v1786
    %v1891 = vpack.c.b16 %v1795, %v1787
    %v1892 = vpack.c.b16 %v1804, %v1796
    %v1893 = vpack.c.b16 %v1805, %v1797
    %v1894 = vpack.c.b16 %v1806, %v1798
    %v1895 = vpack.c.b16 %v1807, %v1799
    %v1896 = vpack.c.b16 %v1808, %v1800
    %v1897 = vpack.c.b16 %v1809, %v1801
    %v1898 = vpack.c.b16 %v1810, %v1802
    %v1899 = vpack.c.b16 %v1811, %v1803
    %v1900 = vpack.c.b16 %v1820, %v1812
    %v1901 = vpack.c.b16 %v1821, %v1813
    %v1902 = vpack.c.b16 %v1822, %v1814
    %v1903 = vpack.c.b16 %v1823, %v1815
    %v1904 = vpack.c.b16 %v1824, %v1816
    %v1905 = vpack.c.b16 %v1825, %v1817
    %v1906 = vpack.c.b16 %v1826, %v1818
    %v1907 = vpack.c.b16 %v1827, %v1819
    %v1908 = vpack.c.b16 %v1836, %v1828
    %v1909 = vpack.c.b16 %v1837, %v1829
    %v1910 = vpack.c.b16 %v1838, %v1830
    %v1911 = vpack.c.b16 %v1839, %v1831
    %v1912 = vpack.c.b16 %v1840, %v1832
    %v1913 = vpack.c.b16 %v1841, %v1833
    %v1914 = vpack.c.b16 %v1842, %v1834
    %v1915 = vpack.c.b16 %v1843, %v1835
    %v1916 = vpack.c.b16 %v1852, %v1844
    %v1917 = vpack.c.b16 %v1853, %v1845
    %v1918 = vpack.c.b16 %v1854, %v1846
    %v1919 = vpack.c.b16 %v1855, %v1847
    %v1920 = vpack.c.b16 %v1856, %v1848
    %v1921 = vpack.c.b16 %v1857, %v1849
    %v1922 = vpack.c.b16 %v1858, %v1850
    %v1923 = vpack.c.b16 %v1859, %v1851
    %1988 = vmatpush.bf16.msra.mxu0 %v1916
    %1989 = vmatpush.bf16.msra.mxu0 %v1908
    %1990 = vmatpush.bf16.msra.mxu0 %v1900
    %1991 = vmatpush.bf16.msra.mxu0 %v1892
    %1992 = vmatpush.bf16.msra.mxu0 %v1884
    %1993 = vmatpush.bf16.msra.mxu0 %v1876
    %1994 = vmatpush.bf16.msra.mxu0 %v1868
    %1995 = vmatpush.bf16.msra.mxu0 %v1860
    %1996 = vmatmul.bf16.gmra.mxu0 %v332
    %v1997 = vpop.f32.mrf.mxu0
    %v1998 = vadd.f32 %v1652, %v1997
    %v1999 = vpop.f32.mrf.mxu0
    %v2000 = vadd.f32 %v1652, %v1999
    %2001 = vmatmul.bf16.gmra.mxu0 %v336
    %v2002 = vpop.f32.mrf.mxu0
    %v2003 = vadd.f32 %v1652, %v2002
    %v2004 = vpop.f32.mrf.mxu0
    %v2005 = vadd.f32 %v1652, %v2004
    %2006 = vmatmul.bf16.gmra.mxu0 %v340
    %v2007 = vpop.f32.mrf.mxu0
    %v2008 = vadd.f32 %v1652, %v2007
    %v2009 = vpop.f32.mrf.mxu0
    %v2010 = vadd.f32 %v1652, %v2009
    %2011 = vmatmul.bf16.gmra.mxu0 %v344
    %v2012 = vpop.f32.mrf.mxu0
    %v2013 = vadd.f32 %v1652, %v2012
    %v2014 = vpop.f32.mrf.mxu0
    %v2015 = vadd.f32 %v1652, %v2014
    %2016 = vdwg.mxu0
    %2017 = vmatpush.bf16.msra.mxu0 %v1917
    %2018 = vmatpush.bf16.msra.mxu0 %v1909
    %2019 = vmatpush.bf16.msra.mxu0 %v1901
    %2020 = vmatpush.bf16.msra.mxu0 %v1893
    %2021 = vmatpush.bf16.msra.mxu0 %v1885
    %2022 = vmatpush.bf16.msra.mxu0 %v1877
    %2023 = vmatpush.bf16.msra.mxu0 %v1869
    %2024 = vmatpush.bf16.msra.mxu0 %v1861
    %2025 = vmatmul.bf16.gmra.mxu0 %v332
    %v2026 = vpop.f32.mrf.mxu0
    %v2027 = vadd.f32 %v1653, %v2026
    %v2028 = vpop.f32.mrf.mxu0
    %v2029 = vadd.f32 %v1653, %v2028
    %2030 = vmatmul.bf16.gmra.mxu0 %v336
    %v2031 = vpop.f32.mrf.mxu0
    %v2032 = vadd.f32 %v1653, %v2031
    %v2033 = vpop.f32.mrf.mxu0
    %v2034 = vadd.f32 %v1653, %v2033
    %2035 = vmatmul.bf16.gmra.mxu0 %v340
    %v2036 = vpop.f32.mrf.mxu0
    %v2037 = vadd.f32 %v1653, %v2036
    %v2038 = vpop.f32.mrf.mxu0
    %v2039 = vadd.f32 %v1653, %v2038
    %2040 = vmatmul.bf16.gmra.mxu0 %v344
    %v2041 = vpop.f32.mrf.mxu0
    %v2042 = vadd.f32 %v1653, %v2041
    %v2043 = vpop.f32.mrf.mxu0
    %v2044 = vadd.f32 %v1653, %v2043
    %2045 = vdwg.mxu0
    %2046 = vmatpush.bf16.msra.mxu0 %v1918
    %2047 = vmatpush.bf16.msra.mxu0 %v1910
    %2048 = vmatpush.bf16.msra.mxu0 %v1902
    %2049 = vmatpush.bf16.msra.mxu0 %v1894
    %2050 = vmatpush.bf16.msra.mxu0 %v1886
    %2051 = vmatpush.bf16.msra.mxu0 %v1878
    %2052 = vmatpush.bf16.msra.mxu0 %v1870
    %2053 = vmatpush.bf16.msra.mxu0 %v1862
    %2054 = vmatmul.bf16.gmra.mxu0 %v332
    %v2055 = vpop.f32.mrf.mxu0
    %v2056 = vadd.f32 %v1654, %v2055
    %v2057 = vpop.f32.mrf.mxu0
    %v2058 = vadd.f32 %v1654, %v2057
    %2059 = vmatmul.bf16.gmra.mxu0 %v336
    %v2060 = vpop.f32.mrf.mxu0
    %v2061 = vadd.f32 %v1654, %v2060
    %v2062 = vpop.f32.mrf.mxu0
    %v2063 = vadd.f32 %v1654, %v2062
    %2064 = vmatmul.bf16.gmra.mxu0 %v340
    %v2065 = vpop.f32.mrf.mxu0
    %v2066 = vadd.f32 %v1654, %v2065
    %v2067 = vpop.f32.mrf.mxu0
    %v2068 = vadd.f32 %v1654, %v2067
    %2069 = vmatmul.bf16.gmra.mxu0 %v344
    %v2070 = vpop.f32.mrf.mxu0
    %v2071 = vadd.f32 %v1654, %v2070
    %v2072 = vpop.f32.mrf.mxu0
    %v2073 = vadd.f32 %v1654, %v2072
    %2074 = vdwg.mxu0
    %2075 = vmatpush.bf16.msra.mxu0 %v1919
    %2076 = vmatpush.bf16.msra.mxu0 %v1911
    %2077 = vmatpush.bf16.msra.mxu0 %v1903
    %2078 = vmatpush.bf16.msra.mxu0 %v1895
    %2079 = vmatpush.bf16.msra.mxu0 %v1887
    %2080 = vmatpush.bf16.msra.mxu0 %v1879
    %2081 = vmatpush.bf16.msra.mxu0 %v1871
    %2082 = vmatpush.bf16.msra.mxu0 %v1863
    %2083 = vmatmul.bf16.gmra.mxu0 %v332
    %v2084 = vpop.f32.mrf.mxu0
    %v2085 = vadd.f32 %v1655, %v2084
    %v2086 = vpop.f32.mrf.mxu0
    %v2087 = vadd.f32 %v1655, %v2086
    %2088 = vmatmul.bf16.gmra.mxu0 %v336
    %v2089 = vpop.f32.mrf.mxu0
    %v2090 = vadd.f32 %v1655, %v2089
    %v2091 = vpop.f32.mrf.mxu0
    %v2092 = vadd.f32 %v1655, %v2091
    %2093 = vmatmul.bf16.gmra.mxu0 %v340
    %v2094 = vpop.f32.mrf.mxu0
    %v2095 = vadd.f32 %v1655, %v2094
    %v2096 = vpop.f32.mrf.mxu0
    %v2097 = vadd.f32 %v1655, %v2096
    %2098 = vmatmul.bf16.gmra.mxu0 %v344
    %v2099 = vpop.f32.mrf.mxu0
    %v2100 = vadd.f32 %v1655, %v2099
    %v2101 = vpop.f32.mrf.mxu0
    %v2102 = vadd.f32 %v1655, %v2101
    %2103 = vdwg.mxu0
    %2104 = vmatpush.bf16.msra.mxu0 %v1920
    %2105 = vmatpush.bf16.msra.mxu0 %v1912
    %2106 = vmatpush.bf16.msra.mxu0 %v1904
    %2107 = vmatpush.bf16.msra.mxu0 %v1896
    %2108 = vmatpush.bf16.msra.mxu0 %v1888
    %2109 = vmatpush.bf16.msra.mxu0 %v1880
    %2110 = vmatpush.bf16.msra.mxu0 %v1872
    %2111 = vmatpush.bf16.msra.mxu0 %v1864
    %2112 = vmatmul.bf16.gmra.mxu0 %v332
    %v2113 = vpop.f32.mrf.mxu0
    %v2114 = vadd.f32 %v1656, %v2113
    %v2115 = vpop.f32.mrf.mxu0
    %v2116 = vadd.f32 %v1656, %v2115
    %2117 = vmatmul.bf16.gmra.mxu0 %v336
    %v2118 = vpop.f32.mrf.mxu0
    %v2119 = vadd.f32 %v1656, %v2118
    %v2120 = vpop.f32.mrf.mxu0
    %v2121 = vadd.f32 %v1656, %v2120
    %2122 = vmatmul.bf16.gmra.mxu0 %v340
    %v2123 = vpop.f32.mrf.mxu0
    %v2124 = vadd.f32 %v1656, %v2123
    %v2125 = vpop.f32.mrf.mxu0
    %v2126 = vadd.f32 %v1656, %v2125
    %2127 = vmatmul.bf16.gmra.mxu0 %v344
    %v2128 = vpop.f32.mrf.mxu0
    %v2129 = vadd.f32 %v1656, %v2128
    %v2130 = vpop.f32.mrf.mxu0
    %v2131 = vadd.f32 %v1656, %v2130
    %2132 = vdwg.mxu0
    %2133 = vmatpush.bf16.msra.mxu0 %v1921
    %2134 = vmatpush.bf16.msra.mxu0 %v1913
    %2135 = vmatpush.bf16.msra.mxu0 %v1905
    %2136 = vmatpush.bf16.msra.mxu0 %v1897
    %2137 = vmatpush.bf16.msra.mxu0 %v1889
    %2138 = vmatpush.bf16.msra.mxu0 %v1881
    %2139 = vmatpush.bf16.msra.mxu0 %v1873
    %2140 = vmatpush.bf16.msra.mxu0 %v1865
    %2141 = vmatmul.bf16.gmra.mxu0 %v332
    %v2142 = vpop.f32.mrf.mxu0
    %v2143 = vadd.f32 %v1657, %v2142
    %v2144 = vpop.f32.mrf.mxu0
    %v2145 = vadd.f32 %v1657, %v2144
    %2146 = vmatmul.bf16.gmra.mxu0 %v336
    %v2147 = vpop.f32.mrf.mxu0
    %v2148 = vadd.f32 %v1657, %v2147
    %v2149 = vpop.f32.mrf.mxu0
    %v2150 = vadd.f32 %v1657, %v2149
    %2151 = vmatmul.bf16.gmra.mxu0 %v340
    %v2152 = vpop.f32.mrf.mxu0
    %v2153 = vadd.f32 %v1657, %v2152
    %v2154 = vpop.f32.mrf.mxu0
    %v2155 = vadd.f32 %v1657, %v2154
    %2156 = vmatmul.bf16.gmra.mxu0 %v344
    %v2157 = vpop.f32.mrf.mxu0
    %v2158 = vadd.f32 %v1657, %v2157
    %v2159 = vpop.f32.mrf.mxu0
    %v2160 = vadd.f32 %v1657, %v2159
    %2161 = vdwg.mxu0
    %2162 = vmatpush.bf16.msra.mxu0 %v1922
    %2163 = vmatpush.bf16.msra.mxu0 %v1914
    %2164 = vmatpush.bf16.msra.mxu0 %v1906
    %2165 = vmatpush.bf16.msra.mxu0 %v1898
    %2166 = vmatpush.bf16.msra.mxu0 %v1890
    %2167 = vmatpush.bf16.msra.mxu0 %v1882
    %2168 = vmatpush.bf16.msra.mxu0 %v1874
    %2169 = vmatpush.bf16.msra.mxu0 %v1866
    %2170 = vmatmul.bf16.gmra.mxu0 %v332
    %v2171 = vpop.f32.mrf.mxu0
    %v2172 = vadd.f32 %v1658, %v2171
    %v2173 = vpop.f32.mrf.mxu0
    %v2174 = vadd.f32 %v1658, %v2173
    %2175 = vmatmul.bf16.gmra.mxu0 %v336
    %v2176 = vpop.f32.mrf.mxu0
    %v2177 = vadd.f32 %v1658, %v2176
    %v2178 = vpop.f32.mrf.mxu0
    %v2179 = vadd.f32 %v1658, %v2178
    %2180 = vmatmul.bf16.gmra.mxu0 %v340
    %v2181 = vpop.f32.mrf.mxu0
    %v2182 = vadd.f32 %v1658, %v2181
    %v2183 = vpop.f32.mrf.mxu0
    %v2184 = vadd.f32 %v1658, %v2183
    %2185 = vmatmul.bf16.gmra.mxu0 %v344
    %v2186 = vpop.f32.mrf.mxu0
    %v2187 = vadd.f32 %v1658, %v2186
    %v2188 = vpop.f32.mrf.mxu0
    %v2189 = vadd.f32 %v1658, %v2188
    %2190 = vdwg.mxu0
    %2191 = vmatpush.bf16.msra.mxu0 %v1923
    %2192 = vmatpush.bf16.msra.mxu0 %v1915
    %2193 = vmatpush.bf16.msra.mxu0 %v1907
    %2194 = vmatpush.bf16.msra.mxu0 %v1899
    %2195 = vmatpush.bf16.msra.mxu0 %v1891
    %2196 = vmatpush.bf16.msra.mxu0 %v1883
    %2197 = vmatpush.bf16.msra.mxu0 %v1875
    %2198 = vmatpush.bf16.msra.mxu0 %v1867
    %2199 = vmatmul.bf16.gmra.mxu0 %v332
    %v2200 = vpop.f32.mrf.mxu0
    %v2201 = vadd.f32 %v1659, %v2200
    %v2202 = vpop.f32.mrf.mxu0
    %v2203 = vadd.f32 %v1659, %v2202
    %2204 = vmatmul.bf16.gmra.mxu0 %v336
    %v2205 = vpop.f32.mrf.mxu0
    %v2206 = vadd.f32 %v1659, %v2205
    %v2207 = vpop.f32.mrf.mxu0
    %v2208 = vadd.f32 %v1659, %v2207
    %2209 = vmatmul.bf16.gmra.mxu0 %v340
    %v2210 = vpop.f32.mrf.mxu0
    %v2211 = vadd.f32 %v1659, %v2210
    %v2212 = vpop.f32.mrf.mxu0
    %v2213 = vadd.f32 %v1659, %v2212
    %2214 = vmatmul.bf16.gmra.mxu0 %v344
    %v2215 = vpop.f32.mrf.mxu0
    %v2216 = vadd.f32 %v1659, %v2215
    %v2217 = vpop.f32.mrf.mxu0
    %v2218 = vadd.f32 %v1659, %v2217
    %2219 = vdwg.mxu0
    %v2220 = vmax.f32 %v1998, 0.0
    %v2221 = vmax.f32 %v2027, 0.0
    %v2222 = vmax.f32 %v2056, 0.0
    %v2223 = vmax.f32 %v2085, 0.0
    %v2224 = vmax.f32 %v2114, 0.0
    %v2225 = vmax.f32 %v2143, 0.0
    %v2226 = vmax.f32 %v2172, 0.0
    %v2227 = vmax.f32 %v2201, 0.0
    %v2228 = vmax.f32 %v2000, 0.0
    %v2229 = vmax.f32 %v2029, 0.0
    %v2230 = vmax.f32 %v2058, 0.0
    %v2231 = vmax.f32 %v2087, 0.0
    %v2232 = vmax.f32 %v2116, 0.0
    %v2233 = vmax.f32 %v2145, 0.0
    %v2234 = vmax.f32 %v2174, 0.0
    %v2235 = vmax.f32 %v2203, 0.0
    %v2236 = vmax.f32 %v2003, 0.0
    %v2237 = vmax.f32 %v2032, 0.0
    %v2238 = vmax.f32 %v2061, 0.0
    %v2239 = vmax.f32 %v2090, 0.0
    %v2240 = vmax.f32 %v2119, 0.0
    %v2241 = vmax.f32 %v2148, 0.0
    %v2242 = vmax.f32 %v2177, 0.0
    %v2243 = vmax.f32 %v2206, 0.0
    %v2244 = vmax.f32 %v2005, 0.0
    %v2245 = vmax.f32 %v2034, 0.0
    %v2246 = vmax.f32 %v2063, 0.0
    %v2247 = vmax.f32 %v2092, 0.0
    %v2248 = vmax.f32 %v2121, 0.0
    %v2249 = vmax.f32 %v2150, 0.0
    %v2250 = vmax.f32 %v2179, 0.0
    %v2251 = vmax.f32 %v2208, 0.0
    %v2252 = vmax.f32 %v2008, 0.0
    %v2253 = vmax.f32 %v2037, 0.0
    %v2254 = vmax.f32 %v2066, 0.0
    %v2255 = vmax.f32 %v2095, 0.0
    %v2256 = vmax.f32 %v2124, 0.0
    %v2257 = vmax.f32 %v2153, 0.0
    %v2258 = vmax.f32 %v2182, 0.0
    %v2259 = vmax.f32 %v2211, 0.0
    %v2260 = vmax.f32 %v2010, 0.0
    %v2261 = vmax.f32 %v2039, 0.0
    %v2262 = vmax.f32 %v2068, 0.0
    %v2263 = vmax.f32 %v2097, 0.0
    %v2264 = vmax.f32 %v2126, 0.0
    %v2265 = vmax.f32 %v2155, 0.0
    %v2266 = vmax.f32 %v2184, 0.0
    %v2267 = vmax.f32 %v2213, 0.0
    %v2268 = vmax.f32 %v2013, 0.0
    %v2269 = vmax.f32 %v2042, 0.0
    %v2270 = vmax.f32 %v2071, 0.0
    %v2271 = vmax.f32 %v2100, 0.0
    %v2272 = vmax.f32 %v2129, 0.0
    %v2273 = vmax.f32 %v2158, 0.0
    %v2274 = vmax.f32 %v2187, 0.0
    %v2275 = vmax.f32 %v2216, 0.0
    %v2276 = vmax.f32 %v2015, 0.0
    %v2277 = vmax.f32 %v2044, 0.0
    %v2278 = vmax.f32 %v2073, 0.0
    %v2279 = vmax.f32 %v2102, 0.0
    %v2280 = vmax.f32 %v2131, 0.0
    %v2281 = vmax.f32 %v2160, 0.0
    %v2282 = vmax.f32 %v2189, 0.0
    %v2283 = vmax.f32 %v2218, 0.0
    %v2284 = vld [vmem:[#allocation6 + $0x8] sm:$0xff]
    %v2286 = vperm.slane %v2284, 0
    %v2287 = vperm.slane %v2284, 1
    %v2288 = vperm.slane %v2284, 2
    %v2289 = vperm.slane %v2284, 3
    %v2290 = vperm.slane %v2284, 4
    %v2291 = vperm.slane %v2284, 5
    %v2292 = vperm.slane %v2284, 6
    %v2293 = vperm.slane %v2284, 7
    %v2302 = vmul.f32 %v2220, %v2286
    %v2303 = vmul.f32 %v2221, %v2287
    %v2304 = vmul.f32 %v2222, %v2288
    %v2305 = vmul.f32 %v2223, %v2289
    %v2306 = vmul.f32 %v2224, %v2290
    %v2307 = vmul.f32 %v2225, %v2291
    %v2308 = vmul.f32 %v2226, %v2292
    %v2309 = vmul.f32 %v2227, %v2293
    %v2310 = vmul.f32 %v2228, %v2286
    %v2311 = vmul.f32 %v2229, %v2287
    %v2312 = vmul.f32 %v2230, %v2288
    %v2313 = vmul.f32 %v2231, %v2289
    %v2314 = vmul.f32 %v2232, %v2290
    %v2315 = vmul.f32 %v2233, %v2291
    %v2316 = vmul.f32 %v2234, %v2292
    %v2317 = vmul.f32 %v2235, %v2293
    %v2318 = vmul.f32 %v2236, %v2286
    %v2319 = vmul.f32 %v2237, %v2287
    %v2320 = vmul.f32 %v2238, %v2288
    %v2321 = vmul.f32 %v2239, %v2289
    %v2322 = vmul.f32 %v2240, %v2290
    %v2323 = vmul.f32 %v2241, %v2291
    %v2324 = vmul.f32 %v2242, %v2292
    %v2325 = vmul.f32 %v2243, %v2293
    %v2326 = vmul.f32 %v2244, %v2286
    %v2327 = vmul.f32 %v2245, %v2287
    %v2328 = vmul.f32 %v2246, %v2288
    %v2329 = vmul.f32 %v2247, %v2289
    %v2330 = vmul.f32 %v2248, %v2290
    %v2331 = vmul.f32 %v2249, %v2291
    %v2332 = vmul.f32 %v2250, %v2292
    %v2333 = vmul.f32 %v2251, %v2293
    %v2334 = vmul.f32 %v2252, %v2286
    %v2335 = vmul.f32 %v2253, %v2287
    %v2336 = vmul.f32 %v2254, %v2288
    %v2337 = vmul.f32 %v2255, %v2289
    %v2338 = vmul.f32 %v2256, %v2290
    %v2339 = vmul.f32 %v2257, %v2291
    %v2340 = vmul.f32 %v2258, %v2292
    %v2341 = vmul.f32 %v2259, %v2293
    %v2342 = vmul.f32 %v2260, %v2286
    %v2343 = vmul.f32 %v2261, %v2287
    %v2344 = vmul.f32 %v2262, %v2288
    %v2345 = vmul.f32 %v2263, %v2289
    %v2346 = vmul.f32 %v2264, %v2290
    %v2347 = vmul.f32 %v2265, %v2291
    %v2348 = vmul.f32 %v2266, %v2292
    %v2349 = vmul.f32 %v2267, %v2293
    %v2350 = vmul.f32 %v2268, %v2286
    %v2351 = vmul.f32 %v2269, %v2287
    %v2352 = vmul.f32 %v2270, %v2288
    %v2353 = vmul.f32 %v2271, %v2289
    %v2354 = vmul.f32 %v2272, %v2290
    %v2355 = vmul.f32 %v2273, %v2291
    %v2356 = vmul.f32 %v2274, %v2292
    %v2357 = vmul.f32 %v2275, %v2293
    %v2358 = vmul.f32 %v2276, %v2286
    %v2359 = vmul.f32 %v2277, %v2287
    %v2360 = vmul.f32 %v2278, %v2288
    %v2361 = vmul.f32 %v2279, %v2289
    %v2362 = vmul.f32 %v2280, %v2290
    %v2363 = vmul.f32 %v2281, %v2291
    %v2364 = vmul.f32 %v2282, %v2292
    %v2365 = vmul.f32 %v2283, %v2293
    %v2366 = vld [vmem:[#allocation7 + $0x8] sm:$0xff]
    %v2368 = vperm.slane %v2366, 0
    %v2369 = vperm.slane %v2366, 1
    %v2370 = vperm.slane %v2366, 2
    %v2371 = vperm.slane %v2366, 3
    %v2372 = vperm.slane %v2366, 4
    %v2373 = vperm.slane %v2366, 5
    %v2374 = vperm.slane %v2366, 6
    %v2375 = vperm.slane %v2366, 7
    %v2384 = vadd.f32 %v2302, %v2368
    %v2385 = vadd.f32 %v2303, %v2369
    %v2386 = vadd.f32 %v2304, %v2370
    %v2387 = vadd.f32 %v2305, %v2371
    %v2388 = vadd.f32 %v2306, %v2372
    %v2389 = vadd.f32 %v2307, %v2373
    %v2390 = vadd.f32 %v2308, %v2374
    %v2391 = vadd.f32 %v2309, %v2375
    %v2392 = vadd.f32 %v2310, %v2368
    %v2393 = vadd.f32 %v2311, %v2369
    %v2394 = vadd.f32 %v2312, %v2370
    %v2395 = vadd.f32 %v2313, %v2371
    %v2396 = vadd.f32 %v2314, %v2372
    %v2397 = vadd.f32 %v2315, %v2373
    %v2398 = vadd.f32 %v2316, %v2374
    %v2399 = vadd.f32 %v2317, %v2375
    %v2400 = vadd.f32 %v2318, %v2368
    %v2401 = vadd.f32 %v2319, %v2369
    %v2402 = vadd.f32 %v2320, %v2370
    %v2403 = vadd.f32 %v2321, %v2371
    %v2404 = vadd.f32 %v2322, %v2372
    %v2405 = vadd.f32 %v2323, %v2373
    %v2406 = vadd.f32 %v2324, %v2374
    %v2407 = vadd.f32 %v2325, %v2375
    %v2408 = vadd.f32 %v2326, %v2368
    %v2409 = vadd.f32 %v2327, %v2369
    %v2410 = vadd.f32 %v2328, %v2370
    %v2411 = vadd.f32 %v2329, %v2371
    %v2412 = vadd.f32 %v2330, %v2372
    %v2413 = vadd.f32 %v2331, %v2373
    %v2414 = vadd.f32 %v2332, %v2374
    %v2415 = vadd.f32 %v2333, %v2375
    %v2416 = vadd.f32 %v2334, %v2368
    %v2417 = vadd.f32 %v2335, %v2369
    %v2418 = vadd.f32 %v2336, %v2370
    %v2419 = vadd.f32 %v2337, %v2371
    %v2420 = vadd.f32 %v2338, %v2372
    %v2421 = vadd.f32 %v2339, %v2373
    %v2422 = vadd.f32 %v2340, %v2374
    %v2423 = vadd.f32 %v2341, %v2375
    %v2424 = vadd.f32 %v2342, %v2368
    %v2425 = vadd.f32 %v2343, %v2369
    %v2426 = vadd.f32 %v2344, %v2370
    %v2427 = vadd.f32 %v2345, %v2371
    %v2428 = vadd.f32 %v2346, %v2372
    %v2429 = vadd.f32 %v2347, %v2373
    %v2430 = vadd.f32 %v2348, %v2374
    %v2431 = vadd.f32 %v2349, %v2375
    %v2432 = vadd.f32 %v2350, %v2368
    %v2433 = vadd.f32 %v2351, %v2369
    %v2434 = vadd.f32 %v2352, %v2370
    %v2435 = vadd.f32 %v2353, %v2371
    %v2436 = vadd.f32 %v2354, %v2372
    %v2437 = vadd.f32 %v2355, %v2373
    %v2438 = vadd.f32 %v2356, %v2374
    %v2439 = vadd.f32 %v2357, %v2375
    %v2440 = vadd.f32 %v2358, %v2368
    %v2441 = vadd.f32 %v2359, %v2369
    %v2442 = vadd.f32 %v2360, %v2370
    %v2443 = vadd.f32 %v2361, %v2371
    %v2444 = vadd.f32 %v2362, %v2372
    %v2445 = vadd.f32 %v2363, %v2373
    %v2446 = vadd.f32 %v2364, %v2374
    %v2447 = vadd.f32 %v2365, %v2375
    %v2448 = vpack.c.bf16 %v2385, %v2384
    %v2449 = vpack.c.bf16 %v2387, %v2386
    %v2450 = vpack.c.bf16 %v2389, %v2388
    %v2451 = vpack.c.bf16 %v2391, %v2390
    %v2452 = vpack.c.bf16 %v2393, %v2392
    %v2453 = vpack.c.bf16 %v2395, %v2394
    %v2454 = vpack.c.bf16 %v2397, %v2396
    %v2455 = vpack.c.bf16 %v2399, %v2398
    %v2456 = vpack.c.bf16 %v2401, %v2400
    %v2457 = vpack.c.bf16 %v2403, %v2402
    %v2458 = vpack.c.bf16 %v2405, %v2404
    %v2459 = vpack.c.bf16 %v2407, %v2406
    %v2460 = vpack.c.bf16 %v2409, %v2408
    %v2461 = vpack.c.bf16 %v2411, %v2410
    %v2462 = vpack.c.bf16 %v2413, %v2412
    %v2463 = vpack.c.bf16 %v2415, %v2414
    %v2464 = vpack.c.bf16 %v2417, %v2416
    %v2465 = vpack.c.bf16 %v2419, %v2418
    %v2466 = vpack.c.bf16 %v2421, %v2420
    %v2467 = vpack.c.bf16 %v2423, %v2422
    %v2468 = vpack.c.bf16 %v2425, %v2424
    %v2469 = vpack.c.bf16 %v2427, %v2426
    %v2470 = vpack.c.bf16 %v2429, %v2428
    %v2471 = vpack.c.bf16 %v2431, %v2430
    %v2472 = vpack.c.bf16 %v2433, %v2432
    %v2473 = vpack.c.bf16 %v2435, %v2434
    %v2474 = vpack.c.bf16 %v2437, %v2436
    %v2475 = vpack.c.bf16 %v2439, %v2438
    %v2476 = vpack.c.bf16 %v2441, %v2440
    %v2477 = vpack.c.bf16 %v2443, %v2442
    %v2478 = vpack.c.bf16 %v2445, %v2444
    %v2479 = vpack.c.bf16 %v2447, %v2446
    %v2480 = vunpack.c.l.bf16 %v2448
    %v2481 = vunpack.c.h.bf16 %v2448
    %v2482 = vunpack.c.l.bf16 %v2449
    %v2483 = vunpack.c.h.bf16 %v2449
    %v2484 = vunpack.c.l.bf16 %v2452
    %v2485 = vunpack.c.h.bf16 %v2452
    %v2486 = vunpack.c.l.bf16 %v2453
    %v2487 = vunpack.c.h.bf16 %v2453
    %v2488 = vunpack.c.l.bf16 %v2456
    %v2489 = vunpack.c.h.bf16 %v2456
    %v2490 = vunpack.c.l.bf16 %v2457
    %v2491 = vunpack.c.h.bf16 %v2457
    %v2492 = vunpack.c.l.bf16 %v2460
    %v2493 = vunpack.c.h.bf16 %v2460
    %v2494 = vunpack.c.l.bf16 %v2461
    %v2495 = vunpack.c.h.bf16 %v2461
    %v2496 = vunpack.c.l.bf16 %v2464
    %v2497 = vunpack.c.h.bf16 %v2464
    %v2498 = vunpack.c.l.bf16 %v2465
    %v2499 = vunpack.c.h.bf16 %v2465
    %v2500 = vunpack.c.l.bf16 %v2468
    %v2501 = vunpack.c.h.bf16 %v2468
    %v2502 = vunpack.c.l.bf16 %v2469
    %v2503 = vunpack.c.h.bf16 %v2469
    %v2504 = vunpack.c.l.bf16 %v2472
    %v2505 = vunpack.c.h.bf16 %v2472
    %v2506 = vunpack.c.l.bf16 %v2473
    %v2507 = vunpack.c.h.bf16 %v2473
    %v2508 = vunpack.c.l.bf16 %v2476
    %v2509 = vunpack.c.h.bf16 %v2476
    %v2510 = vunpack.c.l.bf16 %v2477
    %v2511 = vunpack.c.h.bf16 %v2477
    %v2512 = vunpack.c.l.bf16 %v2450
    %v2513 = vunpack.c.h.bf16 %v2450
    %v2514 = vunpack.c.l.bf16 %v2451
    %v2515 = vunpack.c.h.bf16 %v2451
    %v2516 = vunpack.c.l.bf16 %v2454
    %v2517 = vunpack.c.h.bf16 %v2454
    %v2518 = vunpack.c.l.bf16 %v2455
    %v2519 = vunpack.c.h.bf16 %v2455
    %v2520 = vunpack.c.l.bf16 %v2458
    %v2521 = vunpack.c.h.bf16 %v2458
    %v2522 = vunpack.c.l.bf16 %v2459
    %v2523 = vunpack.c.h.bf16 %v2459
    %v2524 = vunpack.c.l.bf16 %v2462
    %v2525 = vunpack.c.h.bf16 %v2462
    %v2526 = vunpack.c.l.bf16 %v2463
    %v2527 = vunpack.c.h.bf16 %v2463
    %v2528 = vunpack.c.l.bf16 %v2466
    %v2529 = vunpack.c.h.bf16 %v2466
    %v2530 = vunpack.c.l.bf16 %v2467
    %v2531 = vunpack.c.h.bf16 %v2467
    %v2532 = vunpack.c.l.bf16 %v2470
    %v2533 = vunpack.c.h.bf16 %v2470
    %v2534 = vunpack.c.l.bf16 %v2471
    %v2535 = vunpack.c.h.bf16 %v2471
    %v2536 = vunpack.c.l.bf16 %v2474
    %v2537 = vunpack.c.h.bf16 %v2474
    %v2538 = vunpack.c.l.bf16 %v2475
    %v2539 = vunpack.c.h.bf16 %v2475
    %v2540 = vunpack.c.l.bf16 %v2478
    %v2541 = vunpack.c.h.bf16 %v2478
    %v2542 = vunpack.c.l.bf16 %v2479
    %v2543 = vunpack.c.h.bf16 %v2479
    %v2544 = vmax.f32 %v2480, %v2512
    %v2545 = vmax.f32 %v2481, %v2513
    %v2546 = vmax.f32 %v2482, %v2514
    %v2547 = vmax.f32 %v2483, %v2515
    %v2548 = vmax.f32 %v2484, %v2516
    %v2549 = vmax.f32 %v2485, %v2517
    %v2550 = vmax.f32 %v2486, %v2518
    %v2551 = vmax.f32 %v2487, %v2519
    %v2552 = vmax.f32 %v2488, %v2520
    %v2553 = vmax.f32 %v2489, %v2521
    %v2554 = vmax.f32 %v2490, %v2522
    %v2555 = vmax.f32 %v2491, %v2523
    %v2556 = vmax.f32 %v2492, %v2524
    %v2557 = vmax.f32 %v2493, %v2525
    %v2558 = vmax.f32 %v2494, %v2526
    %v2559 = vmax.f32 %v2495, %v2527
    %v2560 = vmax.f32 %v2496, %v2528
    %v2561 = vmax.f32 %v2497, %v2529
    %v2562 = vmax.f32 %v2498, %v2530
    %v2563 = vmax.f32 %v2499, %v2531
    %v2564 = vmax.f32 %v2500, %v2532
    %v2565 = vmax.f32 %v2501, %v2533
    %v2566 = vmax.f32 %v2502, %v2534
    %v2567 = vmax.f32 %v2503, %v2535
    %v2568 = vmax.f32 %v2504, %v2536
    %v2569 = vmax.f32 %v2505, %v2537
    %v2570 = vmax.f32 %v2506, %v2538
    %v2571 = vmax.f32 %v2507, %v2539
    %v2572 = vmax.f32 %v2508, %v2540
    %v2573 = vmax.f32 %v2509, %v2541
    %v2574 = vmax.f32 %v2510, %v2542
    %v2575 = vmax.f32 %v2511, %v2543
    %v2576 = vpack.c.bf16 %v2545, %v2544
    %v2577 = vpack.c.bf16 %v2547, %v2546
    %v2578 = vpack.c.bf16 %v2549, %v2548
    %v2579 = vpack.c.bf16 %v2551, %v2550
    %v2580 = vpack.c.bf16 %v2553, %v2552
    %v2581 = vpack.c.bf16 %v2555, %v2554
    %v2582 = vpack.c.bf16 %v2557, %v2556
    %v2583 = vpack.c.bf16 %v2559, %v2558
    %v2584 = vpack.c.bf16 %v2561, %v2560
    %v2585 = vpack.c.bf16 %v2563, %v2562
    %v2586 = vpack.c.bf16 %v2565, %v2564
    %v2587 = vpack.c.bf16 %v2567, %v2566
    %v2588 = vpack.c.bf16 %v2569, %v2568
    %v2589 = vpack.c.bf16 %v2571, %v2570
    %v2590 = vpack.c.bf16 %v2573, %v2572
    %v2591 = vpack.c.bf16 %v2575, %v2574
    %v2592 = vunpack.c.l.bf16 %v2576
    %v2593 = vunpack.c.h.bf16 %v2576
    %v2594 = vunpack.c.l.bf16 %v2578
    %v2595 = vunpack.c.h.bf16 %v2578
    %v2596 = vunpack.c.l.bf16 %v2580
    %v2597 = vunpack.c.h.bf16 %v2580
    %v2598 = vunpack.c.l.bf16 %v2582
    %v2599 = vunpack.c.h.bf16 %v2582
    %v2600 = vunpack.c.l.bf16 %v2584
    %v2601 = vunpack.c.h.bf16 %v2584
    %v2602 = vunpack.c.l.bf16 %v2586
    %v2603 = vunpack.c.h.bf16 %v2586
    %v2604 = vunpack.c.l.bf16 %v2588
    %v2605 = vunpack.c.h.bf16 %v2588
    %v2606 = vunpack.c.l.bf16 %v2590
    %v2607 = vunpack.c.h.bf16 %v2590
    %v2608 = vunpack.c.l.bf16 %v2577
    %v2609 = vunpack.c.h.bf16 %v2577
    %v2610 = vunpack.c.l.bf16 %v2579
    %v2611 = vunpack.c.h.bf16 %v2579
    %v2612 = vunpack.c.l.bf16 %v2581
    %v2613 = vunpack.c.h.bf16 %v2581
    %v2614 = vunpack.c.l.bf16 %v2583
    %v2615 = vunpack.c.h.bf16 %v2583
    %v2616 = vunpack.c.l.bf16 %v2585
    %v2617 = vunpack.c.h.bf16 %v2585
    %v2618 = vunpack.c.l.bf16 %v2587
    %v2619 = vunpack.c.h.bf16 %v2587
    %v2620 = vunpack.c.l.bf16 %v2589
    %v2621 = vunpack.c.h.bf16 %v2589
    %v2622 = vunpack.c.l.bf16 %v2591
    %v2623 = vunpack.c.h.bf16 %v2591
    %v2624 = vmax.f32 %v2592, %v2608
    %v2625 = vmax.f32 %v2593, %v2609
    %v2626 = vmax.f32 %v2594, %v2610
    %v2627 = vmax.f32 %v2595, %v2611
    %v2628 = vmax.f32 %v2596, %v2612
    %v2629 = vmax.f32 %v2597, %v2613
    %v2630 = vmax.f32 %v2598, %v2614
    %v2631 = vmax.f32 %v2599, %v2615
    %v2632 = vmax.f32 %v2600, %v2616
    %v2633 = vmax.f32 %v2601, %v2617
    %v2634 = vmax.f32 %v2602, %v2618
    %v2635 = vmax.f32 %v2603, %v2619
    %v2636 = vmax.f32 %v2604, %v2620
    %v2637 = vmax.f32 %v2605, %v2621
    %v2638 = vmax.f32 %v2606, %v2622
    %v2639 = vmax.f32 %v2607, %v2623
    %v2640 = vpack.c.bf16 %v2625, %v2624
    %v2641 = vpack.c.bf16 %v2627, %v2626
    %v2642 = vpack.c.bf16 %v2629, %v2628
    %v2643 = vpack.c.bf16 %v2631, %v2630
    %v2644 = vpack.c.bf16 %v2633, %v2632
    %v2645 = vpack.c.bf16 %v2635, %v2634
    %v2646 = vpack.c.bf16 %v2637, %v2636
    %v2647 = vpack.c.bf16 %v2639, %v2638
    %v2648 = vunpack.c.l.bf16 %v2640
    %v2649 = vunpack.c.l.bf16 %v2641
    %v2650 = vunpack.c.l.bf16 %v2642
    %v2651 = vunpack.c.l.bf16 %v2643
    %v2652 = vunpack.c.l.bf16 %v2644
    %v2653 = vunpack.c.l.bf16 %v2645
    %v2654 = vunpack.c.l.bf16 %v2646
    %v2655 = vunpack.c.l.bf16 %v2647
    %v2664 = vrot.slane %v2640, 4
    %v2665 = vrot.slane %v2641, 4
    %v2666 = vrot.slane %v2642, 4
    %v2667 = vrot.slane %v2643, 4
    %v2668 = vrot.slane %v2644, 4
    %v2669 = vrot.slane %v2645, 4
    %v2670 = vrot.slane %v2646, 4
    %v2671 = vrot.slane %v2647, 4
    %v2680 = vunpack.c.l.bf16 %v2664
    %v2681 = vunpack.c.l.bf16 %v2665
    %v2682 = vunpack.c.l.bf16 %v2666
    %v2683 = vunpack.c.l.bf16 %v2667
    %v2684 = vunpack.c.l.bf16 %v2668
    %v2685 = vunpack.c.l.bf16 %v2669
    %v2686 = vunpack.c.l.bf16 %v2670
    %v2687 = vunpack.c.l.bf16 %v2671
    %v2688 = vmax.f32 %v2648, %v2680
    %v2689 = vmax.f32 %v2649, %v2681
    %v2690 = vmax.f32 %v2650, %v2682
    %v2691 = vmax.f32 %v2651, %v2683
    %v2692 = vmax.f32 %v2652, %v2684
    %v2693 = vmax.f32 %v2653, %v2685
    %v2694 = vmax.f32 %v2654, %v2686
    %v2695 = vmax.f32 %v2655, %v2687
    %v2696 = vpack.c.bf16 %v2688, %v2688
    %v2697 = vpack.c.bf16 %v2689, %v2689
    %v2698 = vpack.c.bf16 %v2690, %v2690
    %v2699 = vpack.c.bf16 %v2691, %v2691
    %v2700 = vpack.c.bf16 %v2692, %v2692
    %v2701 = vpack.c.bf16 %v2693, %v2693
    %v2702 = vpack.c.bf16 %v2694, %v2694
    %v2703 = vpack.c.bf16 %v2695, %v2695
    %v2704 = vunpack.c.l.bf16 %v2696
    %v2705 = vunpack.c.l.bf16 %v2697
    %v2706 = vunpack.c.l.bf16 %v2698
    %v2707 = vunpack.c.l.bf16 %v2699
    %v2708 = vunpack.c.l.bf16 %v2700
    %v2709 = vunpack.c.l.bf16 %v2701
    %v2710 = vunpack.c.l.bf16 %v2702
    %v2711 = vunpack.c.l.bf16 %v2703
    %2720 = vrot.lane.b32.xlu0 %v2704, 64
    %v2721 = vpop.permute.xlu0 %2720
    %2722 = vrot.lane.b32.xlu0 %v2705, 64
    %v2723 = vpop.permute.xlu0 %2722
    %2724 = vrot.lane.b32.xlu0 %v2706, 64
    %v2725 = vpop.permute.xlu0 %2724
    %2726 = vrot.lane.b32.xlu0 %v2707, 64
    %v2727 = vpop.permute.xlu0 %2726
    %2728 = vrot.lane.b32.xlu0 %v2708, 64
    %v2729 = vpop.permute.xlu0 %2728
    %2730 = vrot.lane.b32.xlu0 %v2709, 64
    %v2731 = vpop.permute.xlu0 %2730
    %2732 = vrot.lane.b32.xlu0 %v2710, 64
    %v2733 = vpop.permute.xlu0 %2732
    %2734 = vrot.lane.b32.xlu0 %v2711, 64
    %v2735 = vpop.permute.xlu0 %2734
    %v2744 = vmax.f32 %v2704, %v2721
    %v2745 = vmax.f32 %v2705, %v2723
    %v2746 = vmax.f32 %v2706, %v2725
    %v2747 = vmax.f32 %v2707, %v2727
    %v2748 = vmax.f32 %v2708, %v2729
    %v2749 = vmax.f32 %v2709, %v2731
    %v2750 = vmax.f32 %v2710, %v2733
    %v2751 = vmax.f32 %v2711, %v2735
    %v2752 = vpack.c.bf16 %v2744, %v2744
    %v2753 = vpack.c.bf16 %v2745, %v2745
    %v2754 = vpack.c.bf16 %v2746, %v2746
    %v2755 = vpack.c.bf16 %v2747, %v2747
    %v2756 = vpack.c.bf16 %v2748, %v2748
    %v2757 = vpack.c.bf16 %v2749, %v2749
    %v2758 = vpack.c.bf16 %v2750, %v2750
    %v2759 = vpack.c.bf16 %v2751, %v2751
    %v2760 = vunpack.c.l.bf16 %v2752
    %v2761 = vunpack.c.l.bf16 %v2753
    %v2762 = vunpack.c.l.bf16 %v2754
    %v2763 = vunpack.c.l.bf16 %v2755
    %v2764 = vunpack.c.l.bf16 %v2756
    %v2765 = vunpack.c.l.bf16 %v2757
    %v2766 = vunpack.c.l.bf16 %v2758
    %v2767 = vunpack.c.l.bf16 %v2759
    %2776 = vrot.lane.b32.xlu0 %v2760, 96
    %v2777 = vpop.permute.xlu0 %2776
    %2778 = vrot.lane.b32.xlu0 %v2761, 96
    %v2779 = vpop.permute.xlu0 %2778
    %2780 = vrot.lane.b32.xlu0 %v2762, 96
    %v2781 = vpop.permute.xlu0 %2780
    %2782 = vrot.lane.b32.xlu0 %v2763, 96
    %v2783 = vpop.permute.xlu0 %2782
    %2784 = vrot.lane.b32.xlu0 %v2764, 96
    %v2785 = vpop.permute.xlu0 %2784
    %2786 = vrot.lane.b32.xlu0 %v2765, 96
    %v2787 = vpop.permute.xlu0 %2786
    %2788 = vrot.lane.b32.xlu0 %v2766, 96
    %v2789 = vpop.permute.xlu0 %2788
    %2790 = vrot.lane.b32.xlu0 %v2767, 96
    %v2791 = vpop.permute.xlu0 %2790
    %v2800 = vmax.f32 %v2760, %v2777
    %v2801 = vmax.f32 %v2761, %v2779
    %v2802 = vmax.f32 %v2762, %v2781
    %v2803 = vmax.f32 %v2763, %v2783
    %v2804 = vmax.f32 %v2764, %v2785
    %v2805 = vmax.f32 %v2765, %v2787
    %v2806 = vmax.f32 %v2766, %v2789
    %v2807 = vmax.f32 %v2767, %v2791
    %v2808 = vpack.c.bf16 %v2800, %v2800
    %v2809 = vpack.c.bf16 %v2801, %v2801
    %v2810 = vpack.c.bf16 %v2802, %v2802
    %v2811 = vpack.c.bf16 %v2803, %v2803
    %v2812 = vpack.c.bf16 %v2804, %v2804
    %v2813 = vpack.c.bf16 %v2805, %v2805
    %v2814 = vpack.c.bf16 %v2806, %v2806
    %v2815 = vpack.c.bf16 %v2807, %v2807
    %v2816 = vunpack.c.l.bf16 %v1578
    %v2817 = vunpack.c.l.bf16 %v1579
    %v2818 = vunpack.c.l.bf16 %v1580
    %v2819 = vunpack.c.l.bf16 %v1581
    %v2820 = vunpack.c.l.bf16 %v1582
    %v2821 = vunpack.c.l.bf16 %v1583
    %v2822 = vunpack.c.l.bf16 %v1584
    %v2823 = vunpack.c.l.bf16 %v1585
    %v2824 = vunpack.c.l.bf16 %v2808
    %v2825 = vunpack.c.l.bf16 %v2809
    %v2826 = vunpack.c.l.bf16 %v2810
    %v2827 = vunpack.c.l.bf16 %v2811
    %v2828 = vunpack.c.l.bf16 %v2812
    %v2829 = vunpack.c.l.bf16 %v2813
    %v2830 = vunpack.c.l.bf16 %v2814
    %v2831 = vunpack.c.l.bf16 %v2815
    %v2832 = vmax.f32 %v2816, %v2824
    %v2833 = vmax.f32 %v2817, %v2825
    %v2834 = vmax.f32 %v2818, %v2826
    %v2835 = vmax.f32 %v2819, %v2827
    %v2836 = vmax.f32 %v2820, %v2828
    %v2837 = vmax.f32 %v2821, %v2829
    %v2838 = vmax.f32 %v2822, %v2830
    %v2839 = vmax.f32 %v2823, %v2831
    %v2840 = vpack.c.bf16 %v2832, %v2832
    %v2841 = vpack.c.bf16 %v2833, %v2833
    %v2842 = vpack.c.bf16 %v2834, %v2834
    %v2843 = vpack.c.bf16 %v2835, %v2835
    %v2844 = vpack.c.bf16 %v2836, %v2836
    %v2845 = vpack.c.bf16 %v2837, %v2837
    %v2846 = vpack.c.bf16 %v2838, %v2838
    %v2847 = vpack.c.bf16 %v2839, %v2839
    %v2848 = vunpack.c.l.bf16 %v2840
    %v2849 = vunpack.c.l.bf16 %v2841
    %v2850 = vunpack.c.l.bf16 %v2842
    %v2851 = vunpack.c.l.bf16 %v2843
    %v2852 = vunpack.c.l.bf16 %v2844
    %v2853 = vunpack.c.l.bf16 %v2845
    %v2854 = vunpack.c.l.bf16 %v2846
    %v2855 = vunpack.c.l.bf16 %v2847
    %v2856 = vmax.f32 %v2848, %v2852
    %v2857 = vmax.f32 %v2849, %v2853
    %v2858 = vmax.f32 %v2850, %v2854
    %v2859 = vmax.f32 %v2851, %v2855
    %v2860 = vpack.c.bf16 %v2856, %v2856
    %v2861 = vpack.c.bf16 %v2857, %v2857
    %v2862 = vpack.c.bf16 %v2858, %v2858
    %v2863 = vpack.c.bf16 %v2859, %v2859
    %v2864 = vunpack.c.l.bf16 %v2860
    %v2865 = vunpack.c.l.bf16 %v2861
    %v2866 = vunpack.c.l.bf16 %v2862
    %v2867 = vunpack.c.l.bf16 %v2863
    %v2868 = vmax.f32 %v2864, %v2866
    %v2869 = vmax.f32 %v2865, %v2867
    %v2870 = vpack.c.bf16 %v2868, %v2868
    %v2871 = vpack.c.bf16 %v2869, %v2869
    %v2872 = vld [vmem:[#allocation2 + $0x40] sm:$0xff]
    %v2873 = vld [vmem:[#allocation2 + $0x48] sm:$0xff]
    %v2874 = vld [vmem:[#allocation2 + $0x50] sm:$0xff]
    %v2875 = vld [vmem:[#allocation2 + $0x58] sm:$0xff]
    %v2876 = vld [vmem:[#allocation2 + $0xbc] sm:$0xff]
    %v2877 = vld [vmem:[#allocation2 + $0xc4] sm:$0xff]
    %v2878 = vld [vmem:[#allocation2 + $0xcc] sm:$0xff]
    %v2879 = vld [vmem:[#allocation2 + $0xd4] sm:$0xff]
    %v2880 = vld [vmem:[#allocation2 + $0x138] sm:$0xff]
    %v2881 = vld [vmem:[#allocation2 + $0x140] sm:$0xff]
    %v2882 = vld [vmem:[#allocation2 + $0x148] sm:$0xff]
    %v2883 = vld [vmem:[#allocation2 + $0x150] sm:$0xff]
    %v2884 = vld [vmem:[#allocation2 + $0x1b4] sm:$0xff]
    %v2885 = vld [vmem:[#allocation2 + $0x1bc] sm:$0xff]
    %v2886 = vld [vmem:[#allocation2 + $0x1c4] sm:$0xff]
    %v2887 = vld [vmem:[#allocation2 + $0x1cc] sm:$0xff]
    %v2888 = vld [vmem:[#allocation2 + $0x230] sm:$0xff]
    %v2889 = vld [vmem:[#allocation2 + $0x238] sm:$0xff]
    %v2890 = vld [vmem:[#allocation2 + $0x240] sm:$0xff]
    %v2891 = vld [vmem:[#allocation2 + $0x248] sm:$0xff]
    %v2892 = vld [vmem:[#allocation2 + $0x2ac] sm:$0xff]
    %v2893 = vld [vmem:[#allocation2 + $0x2b4] sm:$0xff]
    %v2894 = vld [vmem:[#allocation2 + $0x2bc] sm:$0xff]
    %v2895 = vld [vmem:[#allocation2 + $0x2c4] sm:$0xff]
    %v2896 = vld [vmem:[#allocation2 + $0x328] sm:$0xff]
    %v2897 = vld [vmem:[#allocation2 + $0x330] sm:$0xff]
    %v2898 = vld [vmem:[#allocation2 + $0x338] sm:$0xff]
    %v2899 = vld [vmem:[#allocation2 + $0x340] sm:$0xff]
    %v2900 = vld [vmem:[#allocation2 + $0x3a4] sm:$0xff]
    %v2901 = vld [vmem:[#allocation2 + $0x3ac] sm:$0xff]
    %v2902 = vld [vmem:[#allocation2 + $0x3b4] sm:$0xff]
    %v2903 = vld [vmem:[#allocation2 + $0x3bc] sm:$0xff]
    %v2904 = vld [vmem:[#allocation2 + $0x420] sm:$0xff]
    %v2905 = vld [vmem:[#allocation2 + $0x428] sm:$0xff]
    %v2906 = vld [vmem:[#allocation2 + $0x430] sm:$0xff]
    %v2907 = vld [vmem:[#allocation2 + $0x438] sm:$0xff]
    %v2908 = vld [vmem:[#allocation2 + $0x49c] sm:$0xff]
    %v2909 = vld [vmem:[#allocation2 + $0x4a4] sm:$0xff]
    %v2910 = vld [vmem:[#allocation2 + $0x4ac] sm:$0xff]
    %v2911 = vld [vmem:[#allocation2 + $0x4b4] sm:$0xff]
    %v2912 = vld [vmem:[#allocation2 + $0x518] sm:$0xff]
    %v2913 = vld [vmem:[#allocation2 + $0x520] sm:$0xff]
    %v2914 = vld [vmem:[#allocation2 + $0x528] sm:$0xff]
    %v2915 = vld [vmem:[#allocation2 + $0x530] sm:$0xff]
    %v2916 = vld [vmem:[#allocation2 + $0x594] sm:$0xff]
    %v2917 = vld [vmem:[#allocation2 + $0x59c] sm:$0xff]
    %v2918 = vld [vmem:[#allocation2 + $0x5a4] sm:$0xff]
    %v2919 = vld [vmem:[#allocation2 + $0x5ac] sm:$0xff]
    %v2920 = vld [vmem:[#allocation2 + $0x610] sm:$0xff]
    %v2921 = vld [vmem:[#allocation2 + $0x618] sm:$0xff]
    %v2922 = vld [vmem:[#allocation2 + $0x620] sm:$0xff]
    %v2923 = vld [vmem:[#allocation2 + $0x628] sm:$0xff]
    %v2924 = vld [vmem:[#allocation2 + $0x68c] sm:$0xff]
    %v2925 = vld [vmem:[#allocation2 + $0x694] sm:$0xff]
    %v2926 = vld [vmem:[#allocation2 + $0x69c] sm:$0xff]
    %v2927 = vld [vmem:[#allocation2 + $0x6a4] sm:$0xff]
    %v2928 = vld [vmem:[#allocation2 + $0x708] sm:$0xff]
    %v2929 = vld [vmem:[#allocation2 + $0x710] sm:$0xff]
    %v2930 = vld [vmem:[#allocation2 + $0x718] sm:$0xff]
    %v2931 = vld [vmem:[#allocation2 + $0x720] sm:$0xff]
    %v2932 = vld [vmem:[#allocation2 + $0x784] sm:$0xff]
    %v2933 = vld [vmem:[#allocation2 + $0x78c] sm:$0xff]
    %v2934 = vld [vmem:[#allocation2 + $0x794] sm:$0xff]
    %v2935 = vld [vmem:[#allocation2 + $0x79c] sm:$0xff]
    %v2936 = vld [vmem:[#allocation4 + $0x10] sm:$0xff]
    %v2938 = vperm.slane %v2936, 0
    %v2939 = vperm.slane %v2936, 1
    %v2940 = vperm.slane %v2936, 2
    %v2941 = vperm.slane %v2936, 3
    %v2942 = vperm.slane %v2936, 4
    %v2943 = vperm.slane %v2936, 5
    %v2944 = vperm.slane %v2936, 6
    %v2945 = vperm.slane %v2936, 7
    %v3018 = vunpack.c.l.b16 %v2872
    %v3019 = vunpack.c.h.b16 %v2872
    %v3020 = vunpack.c.l.b16 %v2873
    %v3021 = vunpack.c.h.b16 %v2873
    %v3022 = vunpack.c.l.b16 %v2874
    %v3023 = vunpack.c.h.b16 %v2874
    %v3024 = vunpack.c.l.b16 %v2875
    %v3025 = vunpack.c.h.b16 %v2875
    %v3026 = vunpack.c.l.b16 %v2876
    %v3027 = vunpack.c.h.b16 %v2876
    %v3028 = vunpack.c.l.b16 %v2877
    %v3029 = vunpack.c.h.b16 %v2877
    %v3030 = vunpack.c.l.b16 %v2878
    %v3031 = vunpack.c.h.b16 %v2878
    %v3032 = vunpack.c.l.b16 %v2879
    %v3033 = vunpack.c.h.b16 %v2879
    %v3034 = vunpack.c.l.b16 %v2880
    %v3035 = vunpack.c.h.b16 %v2880
    %v3036 = vunpack.c.l.b16 %v2881
    %v3037 = vunpack.c.h.b16 %v2881
    %v3038 = vunpack.c.l.b16 %v2882
    %v3039 = vunpack.c.h.b16 %v2882
    %v3040 = vunpack.c.l.b16 %v2883
    %v3041 = vunpack.c.h.b16 %v2883
    %v3042 = vunpack.c.l.b16 %v2884
    %v3043 = vunpack.c.h.b16 %v2884
    %v3044 = vunpack.c.l.b16 %v2885
    %v3045 = vunpack.c.h.b16 %v2885
    %v3046 = vunpack.c.l.b16 %v2886
    %v3047 = vunpack.c.h.b16 %v2886
    %v3048 = vunpack.c.l.b16 %v2887
    %v3049 = vunpack.c.h.b16 %v2887
    %v3050 = vunpack.c.l.b16 %v2888
    %v3051 = vunpack.c.h.b16 %v2888
    %v3052 = vunpack.c.l.b16 %v2889
    %v3053 = vunpack.c.h.b16 %v2889
    %v3054 = vunpack.c.l.b16 %v2890
    %v3055 = vunpack.c.h.b16 %v2890
    %v3056 = vunpack.c.l.b16 %v2891
    %v3057 = vunpack.c.h.b16 %v2891
    %v3058 = vunpack.c.l.b16 %v2892
    %v3059 = vunpack.c.h.b16 %v2892
    %v3060 = vunpack.c.l.b16 %v2893
    %v3061 = vunpack.c.h.b16 %v2893
    %v3062 = vunpack.c.l.b16 %v2894
    %v3063 = vunpack.c.h.b16 %v2894
    %v3064 = vunpack.c.l.b16 %v2895
    %v3065 = vunpack.c.h.b16 %v2895
    %v3066 = vunpack.c.l.b16 %v2896
    %v3067 = vunpack.c.h.b16 %v2896
    %v3068 = vunpack.c.l.b16 %v2897
    %v3069 = vunpack.c.h.b16 %v2897
    %v3070 = vunpack.c.l.b16 %v2898
    %v3071 = vunpack.c.h.b16 %v2898
    %v3072 = vunpack.c.l.b16 %v2899
    %v3073 = vunpack.c.h.b16 %v2899
    %v3074 = vunpack.c.l.b16 %v2900
    %v3075 = vunpack.c.h.b16 %v2900
    %v3076 = vunpack.c.l.b16 %v2901
    %v3077 = vunpack.c.h.b16 %v2901
    %v3078 = vunpack.c.l.b16 %v2902
    %v3079 = vunpack.c.h.b16 %v2902
    %v3080 = vunpack.c.l.b16 %v2903
    %v3081 = vunpack.c.h.b16 %v2903
    %v3082 = vunpack.c.l.b16 %v2904
    %v3083 = vunpack.c.h.b16 %v2904
    %v3084 = vunpack.c.l.b16 %v2905
    %v3085 = vunpack.c.h.b16 %v2905
    %v3086 = vunpack.c.l.b16 %v2906
    %v3087 = vunpack.c.h.b16 %v2906
    %v3088 = vunpack.c.l.b16 %v2907
    %v3089 = vunpack.c.h.b16 %v2907
    %v3090 = vunpack.c.l.b16 %v2908
    %v3091 = vunpack.c.h.b16 %v2908
    %v3092 = vunpack.c.l.b16 %v2909
    %v3093 = vunpack.c.h.b16 %v2909
    %v3094 = vunpack.c.l.b16 %v2910
    %v3095 = vunpack.c.h.b16 %v2910
    %v3096 = vunpack.c.l.b16 %v2911
    %v3097 = vunpack.c.h.b16 %v2911
    %v3098 = vunpack.c.l.b16 %v2912
    %v3099 = vunpack.c.h.b16 %v2912
    %v3100 = vunpack.c.l.b16 %v2913
    %v3101 = vunpack.c.h.b16 %v2913
    %v3102 = vunpack.c.l.b16 %v2914
    %v3103 = vunpack.c.h.b16 %v2914
    %v3104 = vunpack.c.l.b16 %v2915
    %v3105 = vunpack.c.h.b16 %v2915
    %v3106 = vunpack.c.l.b16 %v2916
    %v3107 = vunpack.c.h.b16 %v2916
    %v3108 = vunpack.c.l.b16 %v2917
    %v3109 = vunpack.c.h.b16 %v2917
    %v3110 = vunpack.c.l.b16 %v2918
    %v3111 = vunpack.c.h.b16 %v2918
    %v3112 = vunpack.c.l.b16 %v2919
    %v3113 = vunpack.c.h.b16 %v2919
    %v3114 = vunpack.c.l.b16 %v2920
    %v3115 = vunpack.c.h.b16 %v2920
    %v3116 = vunpack.c.l.b16 %v2921
    %v3117 = vunpack.c.h.b16 %v2921
    %v3118 = vunpack.c.l.b16 %v2922
    %v3119 = vunpack.c.h.b16 %v2922
    %v3120 = vunpack.c.l.b16 %v2923
    %v3121 = vunpack.c.h.b16 %v2923
    %v3122 = vunpack.c.l.b16 %v2924
    %v3123 = vunpack.c.h.b16 %v2924
    %v3124 = vunpack.c.l.b16 %v2925
    %v3125 = vunpack.c.h.b16 %v2925
    %v3126 = vunpack.c.l.b16 %v2926
    %v3127 = vunpack.c.h.b16 %v2926
    %v3128 = vunpack.c.l.b16 %v2927
    %v3129 = vunpack.c.h.b16 %v2927
    %v3130 = vunpack.c.l.b16 %v2928
    %v3131 = vunpack.c.h.b16 %v2928
    %v3132 = vunpack.c.l.b16 %v2929
    %v3133 = vunpack.c.h.b16 %v2929
    %v3134 = vunpack.c.l.b16 %v2930
    %v3135 = vunpack.c.h.b16 %v2930
    %v3136 = vunpack.c.l.b16 %v2931
    %v3137 = vunpack.c.h.b16 %v2931
    %v3138 = vunpack.c.l.b16 %v2932
    %v3139 = vunpack.c.h.b16 %v2932
    %v3140 = vunpack.c.l.b16 %v2933
    %v3141 = vunpack.c.h.b16 %v2933
    %v3142 = vunpack.c.l.b16 %v2934
    %v3143 = vunpack.c.h.b16 %v2934
    %v3144 = vunpack.c.l.b16 %v2935
    %v3145 = vunpack.c.h.b16 %v2935
    %v3146 = vpack.c.b16 %v3026, %v3018
    %v3147 = vpack.c.b16 %v3027, %v3019
    %v3148 = vpack.c.b16 %v3028, %v3020
    %v3149 = vpack.c.b16 %v3029, %v3021
    %v3150 = vpack.c.b16 %v3030, %v3022
    %v3151 = vpack.c.b16 %v3031, %v3023
    %v3152 = vpack.c.b16 %v3032, %v3024
    %v3153 = vpack.c.b16 %v3033, %v3025
    %v3154 = vpack.c.b16 %v3042, %v3034
    %v3155 = vpack.c.b16 %v3043, %v3035
    %v3156 = vpack.c.b16 %v3044, %v3036
    %v3157 = vpack.c.b16 %v3045, %v3037
    %v3158 = vpack.c.b16 %v3046, %v3038
    %v3159 = vpack.c.b16 %v3047, %v3039
    %v3160 = vpack.c.b16 %v3048, %v3040
    %v3161 = vpack.c.b16 %v3049, %v3041
    %v3162 = vpack.c.b16 %v3058, %v3050
    %v3163 = vpack.c.b16 %v3059, %v3051
    %v3164 = vpack.c.b16 %v3060, %v3052
    %v3165 = vpack.c.b16 %v3061, %v3053
    %v3166 = vpack.c.b16 %v3062, %v3054
    %v3167 = vpack.c.b16 %v3063, %v3055
    %v3168 = vpack.c.b16 %v3064, %v3056
    %v3169 = vpack.c.b16 %v3065, %v3057
    %v3170 = vpack.c.b16 %v3074, %v3066
    %v3171 = vpack.c.b16 %v3075, %v3067
    %v3172 = vpack.c.b16 %v3076, %v3068
    %v3173 = vpack.c.b16 %v3077, %v3069
    %v3174 = vpack.c.b16 %v3078, %v3070
    %v3175 = vpack.c.b16 %v3079, %v3071
    %v3176 = vpack.c.b16 %v3080, %v3072
    %v3177 = vpack.c.b16 %v3081, %v3073
    %v3178 = vpack.c.b16 %v3090, %v3082
    %v3179 = vpack.c.b16 %v3091, %v3083
    %v3180 = vpack.c.b16 %v3092, %v3084
    %v3181 = vpack.c.b16 %v3093, %v3085
    %v3182 = vpack.c.b16 %v3094, %v3086
    %v3183 = vpack.c.b16 %v3095, %v3087
    %v3184 = vpack.c.b16 %v3096, %v3088
    %v3185 = vpack.c.b16 %v3097, %v3089
    %v3186 = vpack.c.b16 %v3106, %v3098
    %v3187 = vpack.c.b16 %v3107, %v3099
    %v3188 = vpack.c.b16 %v3108, %v3100
    %v3189 = vpack.c.b16 %v3109, %v3101
    %v3190 = vpack.c.b16 %v3110, %v3102
    %v3191 = vpack.c.b16 %v3111, %v3103
    %v3192 = vpack.c.b16 %v3112, %v3104
    %v3193 = vpack.c.b16 %v3113, %v3105
    %v3194 = vpack.c.b16 %v3122, %v3114
    %v3195 = vpack.c.b16 %v3123, %v3115
    %v3196 = vpack.c.b16 %v3124, %v3116
    %v3197 = vpack.c.b16 %v3125, %v3117
    %v3198 = vpack.c.b16 %v3126, %v3118
    %v3199 = vpack.c.b16 %v3127, %v3119
    %v3200 = vpack.c.b16 %v3128, %v3120
    %v3201 = vpack.c.b16 %v3129, %v3121
    %v3202 = vpack.c.b16 %v3138, %v3130
    %v3203 = vpack.c.b16 %v3139, %v3131
    %v3204 = vpack.c.b16 %v3140, %v3132
    %v3205 = vpack.c.b16 %v3141, %v3133
    %v3206 = vpack.c.b16 %v3142, %v3134
    %v3207 = vpack.c.b16 %v3143, %v3135
    %v3208 = vpack.c.b16 %v3144, %v3136
    %v3209 = vpack.c.b16 %v3145, %v3137
    %3274 = vmatpush.bf16.msra.mxu0 %v3202
    %3275 = vmatpush.bf16.msra.mxu0 %v3194
    %3276 = vmatpush.bf16.msra.mxu0 %v3186
    %3277 = vmatpush.bf16.msra.mxu0 %v3178
    %3278 = vmatpush.bf16.msra.mxu0 %v3170
    %3279 = vmatpush.bf16.msra.mxu0 %v3162
    %3280 = vmatpush.bf16.msra.mxu0 %v3154
    %3281 = vmatpush.bf16.msra.mxu0 %v3146
    %3282 = vmatmul.bf16.gmra.mxu0 %v332
    %v3283 = vpop.f32.mrf.mxu0
    %v3284 = vadd.f32 %v2938, %v3283
    %v3285 = vpop.f32.mrf.mxu0
    %v3286 = vadd.f32 %v2938, %v3285
    %3287 = vmatmul.bf16.gmra.mxu0 %v336
    %v3288 = vpop.f32.mrf.mxu0
    %v3289 = vadd.f32 %v2938, %v3288
    %v3290 = vpop.f32.mrf.mxu0
    %v3291 = vadd.f32 %v2938, %v3290
    %3292 = vmatmul.bf16.gmra.mxu0 %v340
    %v3293 = vpop.f32.mrf.mxu0
    %v3294 = vadd.f32 %v2938, %v3293
    %v3295 = vpop.f32.mrf.mxu0
    %v3296 = vadd.f32 %v2938, %v3295
    %3297 = vmatmul.bf16.gmra.mxu0 %v344
    %v3298 = vpop.f32.mrf.mxu0
    %v3299 = vadd.f32 %v2938, %v3298
    %v3300 = vpop.f32.mrf.mxu0
    %v3301 = vadd.f32 %v2938, %v3300
    %3302 = vdwg.mxu0
    %3303 = vmatpush.bf16.msra.mxu0 %v3203
    %3304 = vmatpush.bf16.msra.mxu0 %v3195
    %3305 = vmatpush.bf16.msra.mxu0 %v3187
    %3306 = vmatpush.bf16.msra.mxu0 %v3179
    %3307 = vmatpush.bf16.msra.mxu0 %v3171
    %3308 = vmatpush.bf16.msra.mxu0 %v3163
    %3309 = vmatpush.bf16.msra.mxu0 %v3155
    %3310 = vmatpush.bf16.msra.mxu0 %v3147
    %3311 = vmatmul.bf16.gmra.mxu0 %v332
    %v3312 = vpop.f32.mrf.mxu0
    %v3313 = vadd.f32 %v2939, %v3312
    %v3314 = vpop.f32.mrf.mxu0
    %v3315 = vadd.f32 %v2939, %v3314
    %3316 = vmatmul.bf16.gmra.mxu0 %v336
    %v3317 = vpop.f32.mrf.mxu0
    %v3318 = vadd.f32 %v2939, %v3317
    %v3319 = vpop.f32.mrf.mxu0
    %v3320 = vadd.f32 %v2939, %v3319
    %3321 = vmatmul.bf16.gmra.mxu0 %v340
    %v3322 = vpop.f32.mrf.mxu0
    %v3323 = vadd.f32 %v2939, %v3322
    %v3324 = vpop.f32.mrf.mxu0
    %v3325 = vadd.f32 %v2939, %v3324
    %3326 = vmatmul.bf16.gmra.mxu0 %v344
    %v3327 = vpop.f32.mrf.mxu0
    %v3328 = vadd.f32 %v2939, %v3327
    %v3329 = vpop.f32.mrf.mxu0
    %v3330 = vadd.f32 %v2939, %v3329
    %3331 = vdwg.mxu0
    %3332 = vmatpush.bf16.msra.mxu0 %v3204
    %3333 = vmatpush.bf16.msra.mxu0 %v3196
    %3334 = vmatpush.bf16.msra.mxu0 %v3188
    %3335 = vmatpush.bf16.msra.mxu0 %v3180
    %3336 = vmatpush.bf16.msra.mxu0 %v3172
    %3337 = vmatpush.bf16.msra.mxu0 %v3164
    %3338 = vmatpush.bf16.msra.mxu0 %v3156
    %3339 = vmatpush.bf16.msra.mxu0 %v3148
    %3340 = vmatmul.bf16.gmra.mxu0 %v332
    %v3341 = vpop.f32.mrf.mxu0
    %v3342 = vadd.f32 %v2940, %v3341
    %v3343 = vpop.f32.mrf.mxu0
    %v3344 = vadd.f32 %v2940, %v3343
    %3345 = vmatmul.bf16.gmra.mxu0 %v336
    %v3346 = vpop.f32.mrf.mxu0
    %v3347 = vadd.f32 %v2940, %v3346
    %v3348 = vpop.f32.mrf.mxu0
    %v3349 = vadd.f32 %v2940, %v3348
    %3350 = vmatmul.bf16.gmra.mxu0 %v340
    %v3351 = vpop.f32.mrf.mxu0
    %v3352 = vadd.f32 %v2940, %v3351
    %v3353 = vpop.f32.mrf.mxu0
    %v3354 = vadd.f32 %v2940, %v3353
    %3355 = vmatmul.bf16.gmra.mxu0 %v344
    %v3356 = vpop.f32.mrf.mxu0
    %v3357 = vadd.f32 %v2940, %v3356
    %v3358 = vpop.f32.mrf.mxu0
    %v3359 = vadd.f32 %v2940, %v3358
    %3360 = vdwg.mxu0
    %3361 = vmatpush.bf16.msra.mxu0 %v3205
    %3362 = vmatpush.bf16.msra.mxu0 %v3197
    %3363 = vmatpush.bf16.msra.mxu0 %v3189
    %3364 = vmatpush.bf16.msra.mxu0 %v3181
    %3365 = vmatpush.bf16.msra.mxu0 %v3173
    %3366 = vmatpush.bf16.msra.mxu0 %v3165
    %3367 = vmatpush.bf16.msra.mxu0 %v3157
    %3368 = vmatpush.bf16.msra.mxu0 %v3149
    %3369 = vmatmul.bf16.gmra.mxu0 %v332
    %v3370 = vpop.f32.mrf.mxu0
    %v3371 = vadd.f32 %v2941, %v3370
    %v3372 = vpop.f32.mrf.mxu0
    %v3373 = vadd.f32 %v2941, %v3372
    %3374 = vmatmul.bf16.gmra.mxu0 %v336
    %v3375 = vpop.f32.mrf.mxu0
    %v3376 = vadd.f32 %v2941, %v3375
    %v3377 = vpop.f32.mrf.mxu0
    %v3378 = vadd.f32 %v2941, %v3377
    %3379 = vmatmul.bf16.gmra.mxu0 %v340
    %v3380 = vpop.f32.mrf.mxu0
    %v3381 = vadd.f32 %v2941, %v3380
    %v3382 = vpop.f32.mrf.mxu0
    %v3383 = vadd.f32 %v2941, %v3382
    %3384 = vmatmul.bf16.gmra.mxu0 %v344
    %v3385 = vpop.f32.mrf.mxu0
    %v3386 = vadd.f32 %v2941, %v3385
    %v3387 = vpop.f32.mrf.mxu0
    %v3388 = vadd.f32 %v2941, %v3387
    %3389 = vdwg.mxu0
    %3390 = vmatpush.bf16.msra.mxu0 %v3206
    %3391 = vmatpush.bf16.msra.mxu0 %v3198
    %3392 = vmatpush.bf16.msra.mxu0 %v3190
    %3393 = vmatpush.bf16.msra.mxu0 %v3182
    %3394 = vmatpush.bf16.msra.mxu0 %v3174
    %3395 = vmatpush.bf16.msra.mxu0 %v3166
    %3396 = vmatpush.bf16.msra.mxu0 %v3158
    %3397 = vmatpush.bf16.msra.mxu0 %v3150
    %3398 = vmatmul.bf16.gmra.mxu0 %v332
    %v3399 = vpop.f32.mrf.mxu0
    %v3400 = vadd.f32 %v2942, %v3399
    %v3401 = vpop.f32.mrf.mxu0
    %v3402 = vadd.f32 %v2942, %v3401
    %3403 = vmatmul.bf16.gmra.mxu0 %v336
    %v3404 = vpop.f32.mrf.mxu0
    %v3405 = vadd.f32 %v2942, %v3404
    %v3406 = vpop.f32.mrf.mxu0
    %v3407 = vadd.f32 %v2942, %v3406
    %3408 = vmatmul.bf16.gmra.mxu0 %v340
    %v3409 = vpop.f32.mrf.mxu0
    %v3410 = vadd.f32 %v2942, %v3409
    %v3411 = vpop.f32.mrf.mxu0
    %v3412 = vadd.f32 %v2942, %v3411
    %3413 = vmatmul.bf16.gmra.mxu0 %v344
    %v3414 = vpop.f32.mrf.mxu0
    %v3415 = vadd.f32 %v2942, %v3414
    %v3416 = vpop.f32.mrf.mxu0
    %v3417 = vadd.f32 %v2942, %v3416
    %3418 = vdwg.mxu0
    %3419 = vmatpush.bf16.msra.mxu0 %v3207
    %3420 = vmatpush.bf16.msra.mxu0 %v3199
    %3421 = vmatpush.bf16.msra.mxu0 %v3191
    %3422 = vmatpush.bf16.msra.mxu0 %v3183
    %3423 = vmatpush.bf16.msra.mxu0 %v3175
    %3424 = vmatpush.bf16.msra.mxu0 %v3167
    %3425 = vmatpush.bf16.msra.mxu0 %v3159
    %3426 = vmatpush.bf16.msra.mxu0 %v3151
    %3427 = vmatmul.bf16.gmra.mxu0 %v332
    %v3428 = vpop.f32.mrf.mxu0
    %v3429 = vadd.f32 %v2943, %v3428
    %v3430 = vpop.f32.mrf.mxu0
    %v3431 = vadd.f32 %v2943, %v3430
    %3432 = vmatmul.bf16.gmra.mxu0 %v336
    %v3433 = vpop.f32.mrf.mxu0
    %v3434 = vadd.f32 %v2943, %v3433
    %v3435 = vpop.f32.mrf.mxu0
    %v3436 = vadd.f32 %v2943, %v3435
    %3437 = vmatmul.bf16.gmra.mxu0 %v340
    %v3438 = vpop.f32.mrf.mxu0
    %v3439 = vadd.f32 %v2943, %v3438
    %v3440 = vpop.f32.mrf.mxu0
    %v3441 = vadd.f32 %v2943, %v3440
    %3442 = vmatmul.bf16.gmra.mxu0 %v344
    %v3443 = vpop.f32.mrf.mxu0
    %v3444 = vadd.f32 %v2943, %v3443
    %v3445 = vpop.f32.mrf.mxu0
    %v3446 = vadd.f32 %v2943, %v3445
    %3447 = vdwg.mxu0
    %3448 = vmatpush.bf16.msra.mxu0 %v3208
    %3449 = vmatpush.bf16.msra.mxu0 %v3200
    %3450 = vmatpush.bf16.msra.mxu0 %v3192
    %3451 = vmatpush.bf16.msra.mxu0 %v3184
    %3452 = vmatpush.bf16.msra.mxu0 %v3176
    %3453 = vmatpush.bf16.msra.mxu0 %v3168
    %3454 = vmatpush.bf16.msra.mxu0 %v3160
    %3455 = vmatpush.bf16.msra.mxu0 %v3152
    %3456 = vmatmul.bf16.gmra.mxu0 %v332
    %v3457 = vpop.f32.mrf.mxu0
    %v3458 = vadd.f32 %v2944, %v3457
    %v3459 = vpop.f32.mrf.mxu0
    %v3460 = vadd.f32 %v2944, %v3459
    %3461 = vmatmul.bf16.gmra.mxu0 %v336
    %v3462 = vpop.f32.mrf.mxu0
    %v3463 = vadd.f32 %v2944, %v3462
    %v3464 = vpop.f32.mrf.mxu0
    %v3465 = vadd.f32 %v2944, %v3464
    %3466 = vmatmul.bf16.gmra.mxu0 %v340
    %v3467 = vpop.f32.mrf.mxu0
    %v3468 = vadd.f32 %v2944, %v3467
    %v3469 = vpop.f32.mrf.mxu0
    %v3470 = vadd.f32 %v2944, %v3469
    %3471 = vmatmul.bf16.gmra.mxu0 %v344
    %v3472 = vpop.f32.mrf.mxu0
    %v3473 = vadd.f32 %v2944, %v3472
    %v3474 = vpop.f32.mrf.mxu0
    %v3475 = vadd.f32 %v2944, %v3474
    %3476 = vdwg.mxu0
    %3477 = vmatpush.bf16.msra.mxu0 %v3209
    %3478 = vmatpush.bf16.msra.mxu0 %v3201
    %3479 = vmatpush.bf16.msra.mxu0 %v3193
    %3480 = vmatpush.bf16.msra.mxu0 %v3185
    %3481 = vmatpush.bf16.msra.mxu0 %v3177
    %3482 = vmatpush.bf16.msra.mxu0 %v3169
    %3483 = vmatpush.bf16.msra.mxu0 %v3161
    %3484 = vmatpush.bf16.msra.mxu0 %v3153
    %3485 = vmatmul.bf16.gmra.mxu0 %v332
    %v3486 = vpop.f32.mrf.mxu0
    %v3487 = vadd.f32 %v2945, %v3486
    %v3488 = vpop.f32.mrf.mxu0
    %v3489 = vadd.f32 %v2945, %v3488
    %3490 = vmatmul.bf16.gmra.mxu0 %v336
    %v3491 = vpop.f32.mrf.mxu0
    %v3492 = vadd.f32 %v2945, %v3491
    %v3493 = vpop.f32.mrf.mxu0
    %v3494 = vadd.f32 %v2945, %v3493
    %3495 = vmatmul.bf16.gmra.mxu0 %v340
    %v3496 = vpop.f32.mrf.mxu0
    %v3497 = vadd.f32 %v2945, %v3496
    %v3498 = vpop.f32.mrf.mxu0
    %v3499 = vadd.f32 %v2945, %v3498
    %3500 = vmatmul.bf16.gmra.mxu0 %v344
    %v3501 = vpop.f32.mrf.mxu0
    %v3502 = vadd.f32 %v2945, %v3501
    %v3503 = vpop.f32.mrf.mxu0
    %v3504 = vadd.f32 %v2945, %v3503
    %3505 = vdwg.mxu0
    %v3506 = vmax.f32 %v3284, 0.0
    %v3507 = vmax.f32 %v3313, 0.0
    %v3508 = vmax.f32 %v3342, 0.0
    %v3509 = vmax.f32 %v3371, 0.0
    %v3510 = vmax.f32 %v3400, 0.0
    %v3511 = vmax.f32 %v3429, 0.0
    %v3512 = vmax.f32 %v3458, 0.0
    %v3513 = vmax.f32 %v3487, 0.0
    %v3514 = vmax.f32 %v3286, 0.0
    %v3515 = vmax.f32 %v3315, 0.0
    %v3516 = vmax.f32 %v3344, 0.0
    %v3517 = vmax.f32 %v3373, 0.0
    %v3518 = vmax.f32 %v3402, 0.0
    %v3519 = vmax.f32 %v3431, 0.0
    %v3520 = vmax.f32 %v3460, 0.0
    %v3521 = vmax.f32 %v3489, 0.0
    %v3522 = vmax.f32 %v3289, 0.0
    %v3523 = vmax.f32 %v3318, 0.0
    %v3524 = vmax.f32 %v3347, 0.0
    %v3525 = vmax.f32 %v3376, 0.0
    %v3526 = vmax.f32 %v3405, 0.0
    %v3527 = vmax.f32 %v3434, 0.0
    %v3528 = vmax.f32 %v3463, 0.0
    %v3529 = vmax.f32 %v3492, 0.0
    %v3530 = vmax.f32 %v3291, 0.0
    %v3531 = vmax.f32 %v3320, 0.0
    %v3532 = vmax.f32 %v3349, 0.0
    %v3533 = vmax.f32 %v3378, 0.0
    %v3534 = vmax.f32 %v3407, 0.0
    %v3535 = vmax.f32 %v3436, 0.0
    %v3536 = vmax.f32 %v3465, 0.0
    %v3537 = vmax.f32 %v3494, 0.0
    %v3538 = vmax.f32 %v3294, 0.0
    %v3539 = vmax.f32 %v3323, 0.0
    %v3540 = vmax.f32 %v3352, 0.0
    %v3541 = vmax.f32 %v3381, 0.0
    %v3542 = vmax.f32 %v3410, 0.0
    %v3543 = vmax.f32 %v3439, 0.0
    %v3544 = vmax.f32 %v3468, 0.0
    %v3545 = vmax.f32 %v3497, 0.0
    %v3546 = vmax.f32 %v3296, 0.0
    %v3547 = vmax.f32 %v3325, 0.0
    %v3548 = vmax.f32 %v3354, 0.0
    %v3549 = vmax.f32 %v3383, 0.0
    %v3550 = vmax.f32 %v3412, 0.0
    %v3551 = vmax.f32 %v3441, 0.0
    %v3552 = vmax.f32 %v3470, 0.0
    %v3553 = vmax.f32 %v3499, 0.0
    %v3554 = vmax.f32 %v3299, 0.0
    %v3555 = vmax.f32 %v3328, 0.0
    %v3556 = vmax.f32 %v3357, 0.0
    %v3557 = vmax.f32 %v3386, 0.0
    %v3558 = vmax.f32 %v3415, 0.0
    %v3559 = vmax.f32 %v3444, 0.0
    %v3560 = vmax.f32 %v3473, 0.0
    %v3561 = vmax.f32 %v3502, 0.0
    %v3562 = vmax.f32 %v3301, 0.0
    %v3563 = vmax.f32 %v3330, 0.0
    %v3564 = vmax.f32 %v3359, 0.0
    %v3565 = vmax.f32 %v3388, 0.0
    %v3566 = vmax.f32 %v3417, 0.0
    %v3567 = vmax.f32 %v3446, 0.0
    %v3568 = vmax.f32 %v3475, 0.0
    %v3569 = vmax.f32 %v3504, 0.0
    %v3570 = vld [vmem:[#allocation6 + $0x10] sm:$0xff]
    %v3572 = vperm.slane %v3570, 0
    %v3573 = vperm.slane %v3570, 1
    %v3574 = vperm.slane %v3570, 2
    %v3575 = vperm.slane %v3570, 3
    %v3576 = vperm.slane %v3570, 4
    %v3577 = vperm.slane %v3570, 5
    %v3578 = vperm.slane %v3570, 6
    %v3579 = vperm.slane %v3570, 7
    %v3588 = vmul.f32 %v3506, %v3572
    %v3589 = vmul.f32 %v3507, %v3573
    %v3590 = vmul.f32 %v3508, %v3574
    %v3591 = vmul.f32 %v3509, %v3575
    %v3592 = vmul.f32 %v3510, %v3576
    %v3593 = vmul.f32 %v3511, %v3577
    %v3594 = vmul.f32 %v3512, %v3578
    %v3595 = vmul.f32 %v3513, %v3579
    %v3596 = vmul.f32 %v3514, %v3572
    %v3597 = vmul.f32 %v3515, %v3573
    %v3598 = vmul.f32 %v3516, %v3574
    %v3599 = vmul.f32 %v3517, %v3575
    %v3600 = vmul.f32 %v3518, %v3576
    %v3601 = vmul.f32 %v3519, %v3577
    %v3602 = vmul.f32 %v3520, %v3578
    %v3603 = vmul.f32 %v3521, %v3579
    %v3604 = vmul.f32 %v3522, %v3572
    %v3605 = vmul.f32 %v3523, %v3573
    %v3606 = vmul.f32 %v3524, %v3574
    %v3607 = vmul.f32 %v3525, %v3575
    %v3608 = vmul.f32 %v3526, %v3576
    %v3609 = vmul.f32 %v3527, %v3577
    %v3610 = vmul.f32 %v3528, %v3578
    %v3611 = vmul.f32 %v3529, %v3579
    %v3612 = vmul.f32 %v3530, %v3572
    %v3613 = vmul.f32 %v3531, %v3573
    %v3614 = vmul.f32 %v3532, %v3574
    %v3615 = vmul.f32 %v3533, %v3575
    %v3616 = vmul.f32 %v3534, %v3576
    %v3617 = vmul.f32 %v3535, %v3577
    %v3618 = vmul.f32 %v3536, %v3578
    %v3619 = vmul.f32 %v3537, %v3579
    %v3620 = vmul.f32 %v3538, %v3572
    %v3621 = vmul.f32 %v3539, %v3573
    %v3622 = vmul.f32 %v3540, %v3574
    %v3623 = vmul.f32 %v3541, %v3575
    %v3624 = vmul.f32 %v3542, %v3576
    %v3625 = vmul.f32 %v3543, %v3577
    %v3626 = vmul.f32 %v3544, %v3578
    %v3627 = vmul.f32 %v3545, %v3579
    %v3628 = vmul.f32 %v3546, %v3572
    %v3629 = vmul.f32 %v3547, %v3573
    %v3630 = vmul.f32 %v3548, %v3574
    %v3631 = vmul.f32 %v3549, %v3575
    %v3632 = vmul.f32 %v3550, %v3576
    %v3633 = vmul.f32 %v3551, %v3577
    %v3634 = vmul.f32 %v3552, %v3578
    %v3635 = vmul.f32 %v3553, %v3579
    %v3636 = vmul.f32 %v3554, %v3572
    %v3637 = vmul.f32 %v3555, %v3573
    %v3638 = vmul.f32 %v3556, %v3574
    %v3639 = vmul.f32 %v3557, %v3575
    %v3640 = vmul.f32 %v3558, %v3576
    %v3641 = vmul.f32 %v3559, %v3577
    %v3642 = vmul.f32 %v3560, %v3578
    %v3643 = vmul.f32 %v3561, %v3579
    %v3644 = vmul.f32 %v3562, %v3572
    %v3645 = vmul.f32 %v3563, %v3573
    %v3646 = vmul.f32 %v3564, %v3574
    %v3647 = vmul.f32 %v3565, %v3575
    %v3648 = vmul.f32 %v3566, %v3576
    %v3649 = vmul.f32 %v3567, %v3577
    %v3650 = vmul.f32 %v3568, %v3578
    %v3651 = vmul.f32 %v3569, %v3579
    %v3652 = vld [vmem:[#allocation7 + $0x10] sm:$0xff]
    %v3654 = vperm.slane %v3652, 0
    %v3655 = vperm.slane %v3652, 1
    %v3656 = vperm.slane %v3652, 2
    %v3657 = vperm.slane %v3652, 3
    %v3658 = vperm.slane %v3652, 4
    %v3659 = vperm.slane %v3652, 5
    %v3660 = vperm.slane %v3652, 6
    %v3661 = vperm.slane %v3652, 7
    %v3670 = vadd.f32 %v3588, %v3654
    %v3671 = vadd.f32 %v3589, %v3655
    %v3672 = vadd.f32 %v3590, %v3656
    %v3673 = vadd.f32 %v3591, %v3657
    %v3674 = vadd.f32 %v3592, %v3658
    %v3675 = vadd.f32 %v3593, %v3659
    %v3676 = vadd.f32 %v3594, %v3660
    %v3677 = vadd.f32 %v3595, %v3661
    %v3678 = vadd.f32 %v3596, %v3654
    %v3679 = vadd.f32 %v3597, %v3655
    %v3680 = vadd.f32 %v3598, %v3656
    %v3681 = vadd.f32 %v3599, %v3657
    %v3682 = vadd.f32 %v3600, %v3658
    %v3683 = vadd.f32 %v3601, %v3659
    %v3684 = vadd.f32 %v3602, %v3660
    %v3685 = vadd.f32 %v3603, %v3661
    %v3686 = vadd.f32 %v3604, %v3654
    %v3687 = vadd.f32 %v3605, %v3655
    %v3688 = vadd.f32 %v3606, %v3656
    %v3689 = vadd.f32 %v3607, %v3657
    %v3690 = vadd.f32 %v3608, %v3658
    %v3691 = vadd.f32 %v3609, %v3659
    %v3692 = vadd.f32 %v3610, %v3660
    %v3693 = vadd.f32 %v3611, %v3661
    %v3694 = vadd.f32 %v3612, %v3654
    %v3695 = vadd.f32 %v3613, %v3655
    %v3696 = vadd.f32 %v3614, %v3656
    %v3697 = vadd.f32 %v3615, %v3657
    %v3698 = vadd.f32 %v3616, %v3658
    %v3699 = vadd.f32 %v3617, %v3659
    %v3700 = vadd.f32 %v3618, %v3660
    %v3701 = vadd.f32 %v3619, %v3661
    %v3702 = vadd.f32 %v3620, %v3654
    %v3703 = vadd.f32 %v3621, %v3655
    %v3704 = vadd.f32 %v3622, %v3656
    %v3705 = vadd.f32 %v3623, %v3657
    %v3706 = vadd.f32 %v3624, %v3658
    %v3707 = vadd.f32 %v3625, %v3659
    %v3708 = vadd.f32 %v3626, %v3660
    %v3709 = vadd.f32 %v3627, %v3661
    %v3710 = vadd.f32 %v3628, %v3654
    %v3711 = vadd.f32 %v3629, %v3655
    %v3712 = vadd.f32 %v3630, %v3656
    %v3713 = vadd.f32 %v3631, %v3657
    %v3714 = vadd.f32 %v3632, %v3658
    %v3715 = vadd.f32 %v3633, %v3659
    %v3716 = vadd.f32 %v3634, %v3660
    %v3717 = vadd.f32 %v3635, %v3661
    %v3718 = vadd.f32 %v3636, %v3654
    %v3719 = vadd.f32 %v3637, %v3655
    %v3720 = vadd.f32 %v3638, %v3656
    %v3721 = vadd.f32 %v3639, %v3657
    %v3722 = vadd.f32 %v3640, %v3658
    %v3723 = vadd.f32 %v3641, %v3659
    %v3724 = vadd.f32 %v3642, %v3660
    %v3725 = vadd.f32 %v3643, %v3661
    %v3726 = vadd.f32 %v3644, %v3654
    %v3727 = vadd.f32 %v3645, %v3655
    %v3728 = vadd.f32 %v3646, %v3656
    %v3729 = vadd.f32 %v3647, %v3657
    %v3730 = vadd.f32 %v3648, %v3658
    %v3731 = vadd.f32 %v3649, %v3659
    %v3732 = vadd.f32 %v3650, %v3660
    %v3733 = vadd.f32 %v3651, %v3661
    %v3734 = vpack.c.bf16 %v3671, %v3670
    %v3735 = vpack.c.bf16 %v3673, %v3672
    %v3736 = vpack.c.bf16 %v3675, %v3674
    %v3737 = vpack.c.bf16 %v3677, %v3676
    %v3738 = vpack.c.bf16 %v3679, %v3678
    %v3739 = vpack.c.bf16 %v3681, %v3680
    %v3740 = vpack.c.bf16 %v3683, %v3682
    %v3741 = vpack.c.bf16 %v3685, %v3684
    %v3742 = vpack.c.bf16 %v3687, %v3686
    %v3743 = vpack.c.bf16 %v3689, %v3688
    %v3744 = vpack.c.bf16 %v3691, %v3690
    %v3745 = vpack.c.bf16 %v3693, %v3692
    %v3746 = vpack.c.bf16 %v3695, %v3694
    %v3747 = vpack.c.bf16 %v3697, %v3696
    %v3748 = vpack.c.bf16 %v3699, %v3698
    %v3749 = vpack.c.bf16 %v3701, %v3700
    %v3750 = vpack.c.bf16 %v3703, %v3702
    %v3751 = vpack.c.bf16 %v3705, %v3704
    %v3752 = vpack.c.bf16 %v3707, %v3706
    %v3753 = vpack.c.bf16 %v3709, %v3708
    %v3754 = vpack.c.bf16 %v3711, %v3710
    %v3755 = vpack.c.bf16 %v3713, %v3712
    %v3756 = vpack.c.bf16 %v3715, %v3714
    %v3757 = vpack.c.bf16 %v3717, %v3716
    %v3758 = vpack.c.bf16 %v3719, %v3718
    %v3759 = vpack.c.bf16 %v3721, %v3720
    %v3760 = vpack.c.bf16 %v3723, %v3722
    %v3761 = vpack.c.bf16 %v3725, %v3724
    %v3762 = vpack.c.bf16 %v3727, %v3726
    %v3763 = vpack.c.bf16 %v3729, %v3728
    %v3764 = vpack.c.bf16 %v3731, %v3730
    %v3765 = vpack.c.bf16 %v3733, %v3732
    %v3766 = vunpack.c.l.bf16 %v3734
    %v3767 = vunpack.c.h.bf16 %v3734
    %v3768 = vunpack.c.l.bf16 %v3735
    %v3769 = vunpack.c.h.bf16 %v3735
    %v3770 = vunpack.c.l.bf16 %v3738
    %v3771 = vunpack.c.h.bf16 %v3738
    %v3772 = vunpack.c.l.bf16 %v3739
    %v3773 = vunpack.c.h.bf16 %v3739
    %v3774 = vunpack.c.l.bf16 %v3742
    %v3775 = vunpack.c.h.bf16 %v3742
    %v3776 = vunpack.c.l.bf16 %v3743
    %v3777 = vunpack.c.h.bf16 %v3743
    %v3778 = vunpack.c.l.bf16 %v3746
    %v3779 = vunpack.c.h.bf16 %v3746
    %v3780 = vunpack.c.l.bf16 %v3747
    %v3781 = vunpack.c.h.bf16 %v3747
    %v3782 = vunpack.c.l.bf16 %v3750
    %v3783 = vunpack.c.h.bf16 %v3750
    %v3784 = vunpack.c.l.bf16 %v3751
    %v3785 = vunpack.c.h.bf16 %v3751
    %v3786 = vunpack.c.l.bf16 %v3754
    %v3787 = vunpack.c.h.bf16 %v3754
    %v3788 = vunpack.c.l.bf16 %v3755
    %v3789 = vunpack.c.h.bf16 %v3755
    %v3790 = vunpack.c.l.bf16 %v3758
    %v3791 = vunpack.c.h.bf16 %v3758
    %v3792 = vunpack.c.l.bf16 %v3759
    %v3793 = vunpack.c.h.bf16 %v3759
    %v3794 = vunpack.c.l.bf16 %v3762
    %v3795 = vunpack.c.h.bf16 %v3762
    %v3796 = vunpack.c.l.bf16 %v3763
    %v3797 = vunpack.c.h.bf16 %v3763
    %v3798 = vunpack.c.l.bf16 %v3736
    %v3799 = vunpack.c.h.bf16 %v3736
    %v3800 = vunpack.c.l.bf16 %v3737
    %v3801 = vunpack.c.h.bf16 %v3737
    %v3802 = vunpack.c.l.bf16 %v3740
    %v3803 = vunpack.c.h.bf16 %v3740
    %v3804 = vunpack.c.l.bf16 %v3741
    %v3805 = vunpack.c.h.bf16 %v3741
    %v3806 = vunpack.c.l.bf16 %v3744
    %v3807 = vunpack.c.h.bf16 %v3744
    %v3808 = vunpack.c.l.bf16 %v3745
    %v3809 = vunpack.c.h.bf16 %v3745
    %v3810 = vunpack.c.l.bf16 %v3748
    %v3811 = vunpack.c.h.bf16 %v3748
    %v3812 = vunpack.c.l.bf16 %v3749
    %v3813 = vunpack.c.h.bf16 %v3749
    %v3814 = vunpack.c.l.bf16 %v3752
    %v3815 = vunpack.c.h.bf16 %v3752
    %v3816 = vunpack.c.l.bf16 %v3753
    %v3817 = vunpack.c.h.bf16 %v3753
    %v3818 = vunpack.c.l.bf16 %v3756
    %v3819 = vunpack.c.h.bf16 %v3756
    %v3820 = vunpack.c.l.bf16 %v3757
    %v3821 = vunpack.c.h.bf16 %v3757
    %v3822 = vunpack.c.l.bf16 %v3760
    %v3823 = vunpack.c.h.bf16 %v3760
    %v3824 = vunpack.c.l.bf16 %v3761
    %v3825 = vunpack.c.h.bf16 %v3761
    %v3826 = vunpack.c.l.bf16 %v3764
    %v3827 = vunpack.c.h.bf16 %v3764
    %v3828 = vunpack.c.l.bf16 %v3765
    %v3829 = vunpack.c.h.bf16 %v3765
    %v3830 = vmax.f32 %v3766, %v3798
    %v3831 = vmax.f32 %v3767, %v3799
    %v3832 = vmax.f32 %v3768, %v3800
    %v3833 = vmax.f32 %v3769, %v3801
    %v3834 = vmax.f32 %v3770, %v3802
    %v3835 = vmax.f32 %v3771, %v3803
    %v3836 = vmax.f32 %v3772, %v3804
    %v3837 = vmax.f32 %v3773, %v3805
    %v3838 = vmax.f32 %v3774, %v3806
    %v3839 = vmax.f32 %v3775, %v3807
    %v3840 = vmax.f32 %v3776, %v3808
    %v3841 = vmax.f32 %v3777, %v3809
    %v3842 = vmax.f32 %v3778, %v3810
    %v3843 = vmax.f32 %v3779, %v3811
    %v3844 = vmax.f32 %v3780, %v3812
    %v3845 = vmax.f32 %v3781, %v3813
    %v3846 = vmax.f32 %v3782, %v3814
    %v3847 = vmax.f32 %v3783, %v3815
    %v3848 = vmax.f32 %v3784, %v3816
    %v3849 = vmax.f32 %v3785, %v3817
    %v3850 = vmax.f32 %v3786, %v3818
    %v3851 = vmax.f32 %v3787, %v3819
    %v3852 = vmax.f32 %v3788, %v3820
    %v3853 = vmax.f32 %v3789, %v3821
    %v3854 = vmax.f32 %v3790, %v3822
    %v3855 = vmax.f32 %v3791, %v3823
    %v3856 = vmax.f32 %v3792, %v3824
    %v3857 = vmax.f32 %v3793, %v3825
    %v3858 = vmax.f32 %v3794, %v3826
    %v3859 = vmax.f32 %v3795, %v3827
    %v3860 = vmax.f32 %v3796, %v3828
    %v3861 = vmax.f32 %v3797, %v3829
    %v3862 = vpack.c.bf16 %v3831, %v3830
    %v3863 = vpack.c.bf16 %v3833, %v3832
    %v3864 = vpack.c.bf16 %v3835, %v3834
    %v3865 = vpack.c.bf16 %v3837, %v3836
    %v3866 = vpack.c.bf16 %v3839, %v3838
    %v3867 = vpack.c.bf16 %v3841, %v3840
    %v3868 = vpack.c.bf16 %v3843, %v3842
    %v3869 = vpack.c.bf16 %v3845, %v3844
    %v3870 = vpack.c.bf16 %v3847, %v3846
    %v3871 = vpack.c.bf16 %v3849, %v3848
    %v3872 = vpack.c.bf16 %v3851, %v3850
    %v3873 = vpack.c.bf16 %v3853, %v3852
    %v3874 = vpack.c.bf16 %v3855, %v3854
    %v3875 = vpack.c.bf16 %v3857, %v3856
    %v3876 = vpack.c.bf16 %v3859, %v3858
    %v3877 = vpack.c.bf16 %v3861, %v3860
    %v3878 = vunpack.c.l.bf16 %v3862
    %v3879 = vunpack.c.h.bf16 %v3862
    %v3880 = vunpack.c.l.bf16 %v3864
    %v3881 = vunpack.c.h.bf16 %v3864
    %v3882 = vunpack.c.l.bf16 %v3866
    %v3883 = vunpack.c.h.bf16 %v3866
    %v3884 = vunpack.c.l.bf16 %v3868
    %v3885 = vunpack.c.h.bf16 %v3868
    %v3886 = vunpack.c.l.bf16 %v3870
    %v3887 = vunpack.c.h.bf16 %v3870
    %v3888 = vunpack.c.l.bf16 %v3872
    %v3889 = vunpack.c.h.bf16 %v3872
    %v3890 = vunpack.c.l.bf16 %v3874
    %v3891 = vunpack.c.h.bf16 %v3874
    %v3892 = vunpack.c.l.bf16 %v3876
    %v3893 = vunpack.c.h.bf16 %v3876
    %v3894 = vunpack.c.l.bf16 %v3863
    %v3895 = vunpack.c.h.bf16 %v3863
    %v3896 = vunpack.c.l.bf16 %v3865
    %v3897 = vunpack.c.h.bf16 %v3865
    %v3898 = vunpack.c.l.bf16 %v3867
    %v3899 = vunpack.c.h.bf16 %v3867
    %v3900 = vunpack.c.l.bf16 %v3869
    %v3901 = vunpack.c.h.bf16 %v3869
    %v3902 = vunpack.c.l.bf16 %v3871
    %v3903 = vunpack.c.h.bf16 %v3871
    %v3904 = vunpack.c.l.bf16 %v3873
    %v3905 = vunpack.c.h.bf16 %v3873
    %v3906 = vunpack.c.l.bf16 %v3875
    %v3907 = vunpack.c.h.bf16 %v3875
    %v3908 = vunpack.c.l.bf16 %v3877
    %v3909 = vunpack.c.h.bf16 %v3877
    %v3910 = vmax.f32 %v3878, %v3894
    %v3911 = vmax.f32 %v3879, %v3895
    %v3912 = vmax.f32 %v3880, %v3896
    %v3913 = vmax.f32 %v3881, %v3897
    %v3914 = vmax.f32 %v3882, %v3898
    %v3915 = vmax.f32 %v3883, %v3899
    %v3916 = vmax.f32 %v3884, %v3900
    %v3917 = vmax.f32 %v3885, %v3901
    %v3918 = vmax.f32 %v3886, %v3902
    %v3919 = vmax.f32 %v3887, %v3903
    %v3920 = vmax.f32 %v3888, %v3904
    %v3921 = vmax.f32 %v3889, %v3905
    %v3922 = vmax.f32 %v3890, %v3906
    %v3923 = vmax.f32 %v3891, %v3907
    %v3924 = vmax.f32 %v3892, %v3908
    %v3925 = vmax.f32 %v3893, %v3909
    %v3926 = vpack.c.bf16 %v3911, %v3910
    %v3927 = vpack.c.bf16 %v3913, %v3912
    %v3928 = vpack.c.bf16 %v3915, %v3914
    %v3929 = vpack.c.bf16 %v3917, %v3916
    %v3930 = vpack.c.bf16 %v3919, %v3918
    %v3931 = vpack.c.bf16 %v3921, %v3920
    %v3932 = vpack.c.bf16 %v3923, %v3922
    %v3933 = vpack.c.bf16 %v3925, %v3924
    %v3934 = vunpack.c.l.bf16 %v3926
    %v3935 = vunpack.c.l.bf16 %v3927
    %v3936 = vunpack.c.l.bf16 %v3928
    %v3937 = vunpack.c.l.bf16 %v3929
    %v3938 = vunpack.c.l.bf16 %v3930
    %v3939 = vunpack.c.l.bf16 %v3931
    %v3940 = vunpack.c.l.bf16 %v3932
    %v3941 = vunpack.c.l.bf16 %v3933
    %v3950 = vrot.slane %v3926, 4
    %v3951 = vrot.slane %v3927, 4
    %v3952 = vrot.slane %v3928, 4
    %v3953 = vrot.slane %v3929, 4
    %v3954 = vrot.slane %v3930, 4
    %v3955 = vrot.slane %v3931, 4
    %v3956 = vrot.slane %v3932, 4
    %v3957 = vrot.slane %v3933, 4
    %v3966 = vunpack.c.l.bf16 %v3950
    %v3967 = vunpack.c.l.bf16 %v3951
    %v3968 = vunpack.c.l.bf16 %v3952
    %v3969 = vunpack.c.l.bf16 %v3953
    %v3970 = vunpack.c.l.bf16 %v3954
    %v3971 = vunpack.c.l.bf16 %v3955
    %v3972 = vunpack.c.l.bf16 %v3956
    %v3973 = vunpack.c.l.bf16 %v3957
    %v3974 = vmax.f32 %v3934, %v3966
    %v3975 = vmax.f32 %v3935, %v3967
    %v3976 = vmax.f32 %v3936, %v3968
    %v3977 = vmax.f32 %v3937, %v3969
    %v3978 = vmax.f32 %v3938, %v3970
    %v3979 = vmax.f32 %v3939, %v3971
    %v3980 = vmax.f32 %v3940, %v3972
    %v3981 = vmax.f32 %v3941, %v3973
    %v3982 = vpack.c.bf16 %v3974, %v3974
    %v3983 = vpack.c.bf16 %v3975, %v3975
    %v3984 = vpack.c.bf16 %v3976, %v3976
    %v3985 = vpack.c.bf16 %v3977, %v3977
    %v3986 = vpack.c.bf16 %v3978, %v3978
    %v3987 = vpack.c.bf16 %v3979, %v3979
    %v3988 = vpack.c.bf16 %v3980, %v3980
    %v3989 = vpack.c.bf16 %v3981, %v3981
    %v3990 = vunpack.c.l.bf16 %v3982
    %v3991 = vunpack.c.l.bf16 %v3983
    %v3992 = vunpack.c.l.bf16 %v3984
    %v3993 = vunpack.c.l.bf16 %v3985
    %v3994 = vunpack.c.l.bf16 %v3986
    %v3995 = vunpack.c.l.bf16 %v3987
    %v3996 = vunpack.c.l.bf16 %v3988
    %v3997 = vunpack.c.l.bf16 %v3989
    %4006 = vrot.lane.b32.xlu0 %v3990, 64
    %v4007 = vpop.permute.xlu0 %4006
    %4008 = vrot.lane.b32.xlu0 %v3991, 64
    %v4009 = vpop.permute.xlu0 %4008
    %4010 = vrot.lane.b32.xlu0 %v3992, 64
    %v4011 = vpop.permute.xlu0 %4010
    %4012 = vrot.lane.b32.xlu0 %v3993, 64
    %v4013 = vpop.permute.xlu0 %4012
    %4014 = vrot.lane.b32.xlu0 %v3994, 64
    %v4015 = vpop.permute.xlu0 %4014
    %4016 = vrot.lane.b32.xlu0 %v3995, 64
    %v4017 = vpop.permute.xlu0 %4016
    %4018 = vrot.lane.b32.xlu0 %v3996, 64
    %v4019 = vpop.permute.xlu0 %4018
    %4020 = vrot.lane.b32.xlu0 %v3997, 64
    %v4021 = vpop.permute.xlu0 %4020
    %v4030 = vmax.f32 %v3990, %v4007
    %v4031 = vmax.f32 %v3991, %v4009
    %v4032 = vmax.f32 %v3992, %v4011
    %v4033 = vmax.f32 %v3993, %v4013
    %v4034 = vmax.f32 %v3994, %v4015
    %v4035 = vmax.f32 %v3995, %v4017
    %v4036 = vmax.f32 %v3996, %v4019
    %v4037 = vmax.f32 %v3997, %v4021
    %v4038 = vpack.c.bf16 %v4030, %v4030
    %v4039 = vpack.c.bf16 %v4031, %v4031
    %v4040 = vpack.c.bf16 %v4032, %v4032
    %v4041 = vpack.c.bf16 %v4033, %v4033
    %v4042 = vpack.c.bf16 %v4034, %v4034
    %v4043 = vpack.c.bf16 %v4035, %v4035
    %v4044 = vpack.c.bf16 %v4036, %v4036
    %v4045 = vpack.c.bf16 %v4037, %v4037
    %v4046 = vunpack.c.l.bf16 %v4038
    %v4047 = vunpack.c.l.bf16 %v4039
    %v4048 = vunpack.c.l.bf16 %v4040
    %v4049 = vunpack.c.l.bf16 %v4041
    %v4050 = vunpack.c.l.bf16 %v4042
    %v4051 = vunpack.c.l.bf16 %v4043
    %v4052 = vunpack.c.l.bf16 %v4044
    %v4053 = vunpack.c.l.bf16 %v4045
    %4062 = vrot.lane.b32.xlu0 %v4046, 96
    %v4063 = vpop.permute.xlu0 %4062
    %4064 = vrot.lane.b32.xlu0 %v4047, 96
    %v4065 = vpop.permute.xlu0 %4064
    %4066 = vrot.lane.b32.xlu0 %v4048, 96
    %v4067 = vpop.permute.xlu0 %4066
    %4068 = vrot.lane.b32.xlu0 %v4049, 96
    %v4069 = vpop.permute.xlu0 %4068
    %4070 = vrot.lane.b32.xlu0 %v4050, 96
    %v4071 = vpop.permute.xlu0 %4070
    %4072 = vrot.lane.b32.xlu0 %v4051, 96
    %v4073 = vpop.permute.xlu0 %4072
    %4074 = vrot.lane.b32.xlu0 %v4052, 96
    %v4075 = vpop.permute.xlu0 %4074
    %4076 = vrot.lane.b32.xlu0 %v4053, 96
    %v4077 = vpop.permute.xlu0 %4076
    %v4086 = vmax.f32 %v4046, %v4063
    %v4087 = vmax.f32 %v4047, %v4065
    %v4088 = vmax.f32 %v4048, %v4067
    %v4089 = vmax.f32 %v4049, %v4069
    %v4090 = vmax.f32 %v4050, %v4071
    %v4091 = vmax.f32 %v4051, %v4073
    %v4092 = vmax.f32 %v4052, %v4075
    %v4093 = vmax.f32 %v4053, %v4077
    %v4094 = vpack.c.bf16 %v4086, %v4086
    %v4095 = vpack.c.bf16 %v4087, %v4087
    %v4096 = vpack.c.bf16 %v4088, %v4088
    %v4097 = vpack.c.bf16 %v4089, %v4089
    %v4098 = vpack.c.bf16 %v4090, %v4090
    %v4099 = vpack.c.bf16 %v4091, %v4091
    %v4100 = vpack.c.bf16 %v4092, %v4092
    %v4101 = vpack.c.bf16 %v4093, %v4093
    %v4102 = vunpack.c.l.bf16 %v4094
    %v4103 = vunpack.c.l.bf16 %v4095
    %v4104 = vunpack.c.l.bf16 %v4096
    %v4105 = vunpack.c.l.bf16 %v4097
    %v4106 = vunpack.c.l.bf16 %v4098
    %v4107 = vunpack.c.l.bf16 %v4099
    %v4108 = vunpack.c.l.bf16 %v4100
    %v4109 = vunpack.c.l.bf16 %v4101
    %v4110 = vmax.f32 %v4102, %v4106
    %v4111 = vmax.f32 %v4103, %v4107
    %v4112 = vmax.f32 %v4104, %v4108
    %v4113 = vmax.f32 %v4105, %v4109
    %v4114 = vpack.c.bf16 %v4110, %v4110
    %v4115 = vpack.c.bf16 %v4111, %v4111
    %v4116 = vpack.c.bf16 %v4112, %v4112
    %v4117 = vpack.c.bf16 %v4113, %v4113
    %v4118 = vunpack.c.l.bf16 %v4114
    %v4119 = vunpack.c.l.bf16 %v4115
    %v4120 = vunpack.c.l.bf16 %v4116
    %v4121 = vunpack.c.l.bf16 %v4117
    %v4122 = vmax.f32 %v4118, %v4120
    %v4123 = vmax.f32 %v4119, %v4121
    %v4124 = vpack.c.bf16 %v4122, %v4122
    %v4125 = vpack.c.bf16 %v4123, %v4123
    %v4126 = vld [vmem:[#allocation2 + $0x60] sm:$0xff]
    %v4127 = vld [vmem:[#allocation2 + $0x68] sm:$0xff]
    %v4128 = vld [vmem:[#allocation2 + $0xdc] sm:$0xff]
    %v4129 = vld [vmem:[#allocation2 + $0xe4] sm:$0xff]
    %v4130 = vld [vmem:[#allocation2 + $0x158] sm:$0xff]
    %v4131 = vld [vmem:[#allocation2 + $0x160] sm:$0xff]
    %v4132 = vld [vmem:[#allocation2 + $0x1d4] sm:$0xff]
    %v4133 = vld [vmem:[#allocation2 + $0x1dc] sm:$0xff]
    %v4134 = vld [vmem:[#allocation2 + $0x250] sm:$0xff]
    %v4135 = vld [vmem:[#allocation2 + $0x258] sm:$0xff]
    %v4136 = vld [vmem:[#allocation2 + $0x2cc] sm:$0xff]
    %v4137 = vld [vmem:[#allocation2 + $0x2d4] sm:$0xff]
    %v4138 = vld [vmem:[#allocation2 + $0x348] sm:$0xff]
    %v4139 = vld [vmem:[#allocation2 + $0x350] sm:$0xff]
    %v4140 = vld [vmem:[#allocation2 + $0x3c4] sm:$0xff]
    %v4141 = vld [vmem:[#allocation2 + $0x3cc] sm:$0xff]
    %v4142 = vld [vmem:[#allocation2 + $0x440] sm:$0xff]
    %v4143 = vld [vmem:[#allocation2 + $0x448] sm:$0xff]
    %v4144 = vld [vmem:[#allocation2 + $0x4bc] sm:$0xff]
    %v4145 = vld [vmem:[#allocation2 + $0x4c4] sm:$0xff]
    %v4146 = vld [vmem:[#allocation2 + $0x538] sm:$0xff]
    %v4147 = vld [vmem:[#allocation2 + $0x540] sm:$0xff]
    %v4148 = vld [vmem:[#allocation2 + $0x5b4] sm:$0xff]
    %v4149 = vld [vmem:[#allocation2 + $0x5bc] sm:$0xff]
    %v4150 = vld [vmem:[#allocation2 + $0x630] sm:$0xff]
    %v4151 = vld [vmem:[#allocation2 + $0x638] sm:$0xff]
    %v4152 = vld [vmem:[#allocation2 + $0x6ac] sm:$0xff]
    %v4153 = vld [vmem:[#allocation2 + $0x6b4] sm:$0xff]
    %v4154 = vld [vmem:[#allocation2 + $0x728] sm:$0xff]
    %v4155 = vld [vmem:[#allocation2 + $0x730] sm:$0xff]
    %v4156 = vld [vmem:[#allocation2 + $0x7a4] sm:$0xff]
    %v4157 = vld [vmem:[#allocation2 + $0x7ac] sm:$0xff]
    %v4158 = vld [vmem:[#allocation4 + $0x18] sm:$0xf]
    %v4160 = vperm.slane %v4158, 0
    %v4161 = vperm.slane %v4158, 1
    %v4162 = vperm.slane %v4158, 2
    %v4163 = vperm.slane %v4158, 3
    %v4200 = vunpack.c.l.b16 %v4126
    %v4201 = vunpack.c.h.b16 %v4126
    %v4202 = vunpack.c.l.b16 %v4127
    %v4203 = vunpack.c.h.b16 %v4127
    %v4204 = vunpack.c.l.b16 %v4128
    %v4205 = vunpack.c.h.b16 %v4128
    %v4206 = vunpack.c.l.b16 %v4129
    %v4207 = vunpack.c.h.b16 %v4129
    %v4208 = vunpack.c.l.b16 %v4130
    %v4209 = vunpack.c.h.b16 %v4130
    %v4210 = vunpack.c.l.b16 %v4131
    %v4211 = vunpack.c.h.b16 %v4131
    %v4212 = vunpack.c.l.b16 %v4132
    %v4213 = vunpack.c.h.b16 %v4132
    %v4214 = vunpack.c.l.b16 %v4133
    %v4215 = vunpack.c.h.b16 %v4133
    %v4216 = vunpack.c.l.b16 %v4134
    %v4217 = vunpack.c.h.b16 %v4134
    %v4218 = vunpack.c.l.b16 %v4135
    %v4219 = vunpack.c.h.b16 %v4135
    %v4220 = vunpack.c.l.b16 %v4136
    %v4221 = vunpack.c.h.b16 %v4136
    %v4222 = vunpack.c.l.b16 %v4137
    %v4223 = vunpack.c.h.b16 %v4137
    %v4224 = vunpack.c.l.b16 %v4138
    %v4225 = vunpack.c.h.b16 %v4138
    %v4226 = vunpack.c.l.b16 %v4139
    %v4227 = vunpack.c.h.b16 %v4139
    %v4228 = vunpack.c.l.b16 %v4140
    %v4229 = vunpack.c.h.b16 %v4140
    %v4230 = vunpack.c.l.b16 %v4141
    %v4231 = vunpack.c.h.b16 %v4141
    %v4232 = vunpack.c.l.b16 %v4142
    %v4233 = vunpack.c.h.b16 %v4142
    %v4234 = vunpack.c.l.b16 %v4143
    %v4235 = vunpack.c.h.b16 %v4143
    %v4236 = vunpack.c.l.b16 %v4144
    %v4237 = vunpack.c.h.b16 %v4144
    %v4238 = vunpack.c.l.b16 %v4145
    %v4239 = vunpack.c.h.b16 %v4145
    %v4240 = vunpack.c.l.b16 %v4146
    %v4241 = vunpack.c.h.b16 %v4146
    %v4242 = vunpack.c.l.b16 %v4147
    %v4243 = vunpack.c.h.b16 %v4147
    %v4244 = vunpack.c.l.b16 %v4148
    %v4245 = vunpack.c.h.b16 %v4148
    %v4246 = vunpack.c.l.b16 %v4149
    %v4247 = vunpack.c.h.b16 %v4149
    %v4248 = vunpack.c.l.b16 %v4150
    %v4249 = vunpack.c.h.b16 %v4150
    %v4250 = vunpack.c.l.b16 %v4151
    %v4251 = vunpack.c.h.b16 %v4151
    %v4252 = vunpack.c.l.b16 %v4152
    %v4253 = vunpack.c.h.b16 %v4152
    %v4254 = vunpack.c.l.b16 %v4153
    %v4255 = vunpack.c.h.b16 %v4153
    %v4256 = vunpack.c.l.b16 %v4154
    %v4257 = vunpack.c.h.b16 %v4154
    %v4258 = vunpack.c.l.b16 %v4155
    %v4259 = vunpack.c.h.b16 %v4155
    %v4260 = vunpack.c.l.b16 %v4156
    %v4261 = vunpack.c.h.b16 %v4156
    %v4262 = vunpack.c.l.b16 %v4157
    %v4263 = vunpack.c.h.b16 %v4157
    %v4264 = vpack.c.b16 %v4204, %v4200
    %v4265 = vpack.c.b16 %v4205, %v4201
    %v4266 = vpack.c.b16 %v4206, %v4202
    %v4267 = vpack.c.b16 %v4207, %v4203
    %v4268 = vpack.c.b16 %v4212, %v4208
    %v4269 = vpack.c.b16 %v4213, %v4209
    %v4270 = vpack.c.b16 %v4214, %v4210
    %v4271 = vpack.c.b16 %v4215, %v4211
    %v4272 = vpack.c.b16 %v4220, %v4216
    %v4273 = vpack.c.b16 %v4221, %v4217
    %v4274 = vpack.c.b16 %v4222, %v4218
    %v4275 = vpack.c.b16 %v4223, %v4219
    %v4276 = vpack.c.b16 %v4228, %v4224
    %v4277 = vpack.c.b16 %v4229, %v4225
    %v4278 = vpack.c.b16 %v4230, %v4226
    %v4279 = vpack.c.b16 %v4231, %v4227
    %v4280 = vpack.c.b16 %v4236, %v4232
    %v4281 = vpack.c.b16 %v4237, %v4233
    %v4282 = vpack.c.b16 %v4238, %v4234
    %v4283 = vpack.c.b16 %v4239, %v4235
    %v4284 = vpack.c.b16 %v4244, %v4240
    %v4285 = vpack.c.b16 %v4245, %v4241
    %v4286 = vpack.c.b16 %v4246, %v4242
    %v4287 = vpack.c.b16 %v4247, %v4243
    %v4288 = vpack.c.b16 %v4252, %v4248
    %v4289 = vpack.c.b16 %v4253, %v4249
    %v4290 = vpack.c.b16 %v4254, %v4250
    %v4291 = vpack.c.b16 %v4255, %v4251
    %v4292 = vpack.c.b16 %v4260, %v4256
    %v4293 = vpack.c.b16 %v4261, %v4257
    %v4294 = vpack.c.b16 %v4262, %v4258
    %v4295 = vpack.c.b16 %v4263, %v4259
    %4328 = vmatpush.bf16.msra.mxu0 %v4292
    %4329 = vmatpush.bf16.msra.mxu0 %v4288
    %4330 = vmatpush.bf16.msra.mxu0 %v4284
    %4331 = vmatpush.bf16.msra.mxu0 %v4280
    %4332 = vmatpush.bf16.msra.mxu0 %v4276
    %4333 = vmatpush.bf16.msra.mxu0 %v4272
    %4334 = vmatpush.bf16.msra.mxu0 %v4268
    %4335 = vmatpush.bf16.msra.mxu0 %v4264
    %4336 = vmatmul.bf16.gmra.mxu0 %v332
    %v4337 = vpop.f32.mrf.mxu0
    %v4338 = vadd.f32 %v4160, %v4337
    %v4339 = vpop.f32.mrf.mxu0
    %v4340 = vadd.f32 %v4160, %v4339
    %4341 = vmatmul.bf16.gmra.mxu0 %v336
    %v4342 = vpop.f32.mrf.mxu0
    %v4343 = vadd.f32 %v4160, %v4342
    %v4344 = vpop.f32.mrf.mxu0
    %v4345 = vadd.f32 %v4160, %v4344
    %4346 = vmatmul.bf16.gmra.mxu0 %v340
    %v4347 = vpop.f32.mrf.mxu0
    %v4348 = vadd.f32 %v4160, %v4347
    %v4349 = vpop.f32.mrf.mxu0
    %v4350 = vadd.f32 %v4160, %v4349
    %4351 = vmatmul.bf16.gmra.mxu0 %v344
    %v4352 = vpop.f32.mrf.mxu0
    %v4353 = vadd.f32 %v4160, %v4352
    %v4354 = vpop.f32.mrf.mxu0
    %v4355 = vadd.f32 %v4160, %v4354
    %4356 = vdwg.mxu0
    %4357 = vmatpush.bf16.msra.mxu0 %v4293
    %4358 = vmatpush.bf16.msra.mxu0 %v4289
    %4359 = vmatpush.bf16.msra.mxu0 %v4285
    %4360 = vmatpush.bf16.msra.mxu0 %v4281
    %4361 = vmatpush.bf16.msra.mxu0 %v4277
    %4362 = vmatpush.bf16.msra.mxu0 %v4273
    %4363 = vmatpush.bf16.msra.mxu0 %v4269
    %4364 = vmatpush.bf16.msra.mxu0 %v4265
    %4365 = vmatmul.bf16.gmra.mxu0 %v332
    %v4366 = vpop.f32.mrf.mxu0
    %v4367 = vadd.f32 %v4161, %v4366
    %v4368 = vpop.f32.mrf.mxu0
    %v4369 = vadd.f32 %v4161, %v4368
    %4370 = vmatmul.bf16.gmra.mxu0 %v336
    %v4371 = vpop.f32.mrf.mxu0
    %v4372 = vadd.f32 %v4161, %v4371
    %v4373 = vpop.f32.mrf.mxu0
    %v4374 = vadd.f32 %v4161, %v4373
    %4375 = vmatmul.bf16.gmra.mxu0 %v340
    %v4376 = vpop.f32.mrf.mxu0
    %v4377 = vadd.f32 %v4161, %v4376
    %v4378 = vpop.f32.mrf.mxu0
    %v4379 = vadd.f32 %v4161, %v4378
    %4380 = vmatmul.bf16.gmra.mxu0 %v344
    %v4381 = vpop.f32.mrf.mxu0
    %v4382 = vadd.f32 %v4161, %v4381
    %v4383 = vpop.f32.mrf.mxu0
    %v4384 = vadd.f32 %v4161, %v4383
    %4385 = vdwg.mxu0
    %4386 = vmatpush.bf16.msra.mxu0 %v4294
    %4387 = vmatpush.bf16.msra.mxu0 %v4290
    %4388 = vmatpush.bf16.msra.mxu0 %v4286
    %4389 = vmatpush.bf16.msra.mxu0 %v4282
    %4390 = vmatpush.bf16.msra.mxu0 %v4278
    %4391 = vmatpush.bf16.msra.mxu0 %v4274
    %4392 = vmatpush.bf16.msra.mxu0 %v4270
    %4393 = vmatpush.bf16.msra.mxu0 %v4266
    %4394 = vmatmul.bf16.gmra.mxu0 %v332
    %v4395 = vpop.f32.mrf.mxu0
    %v4396 = vadd.f32 %v4162, %v4395
    %v4397 = vpop.f32.mrf.mxu0
    %v4398 = vadd.f32 %v4162, %v4397
    %4399 = vmatmul.bf16.gmra.mxu0 %v336
    %v4400 = vpop.f32.mrf.mxu0
    %v4401 = vadd.f32 %v4162, %v4400
    %v4402 = vpop.f32.mrf.mxu0
    %v4403 = vadd.f32 %v4162, %v4402
    %4404 = vmatmul.bf16.gmra.mxu0 %v340
    %v4405 = vpop.f32.mrf.mxu0
    %v4406 = vadd.f32 %v4162, %v4405
    %v4407 = vpop.f32.mrf.mxu0
    %v4408 = vadd.f32 %v4162, %v4407
    %4409 = vmatmul.bf16.gmra.mxu0 %v344
    %v4410 = vpop.f32.mrf.mxu0
    %v4411 = vadd.f32 %v4162, %v4410
    %v4412 = vpop.f32.mrf.mxu0
    %v4413 = vadd.f32 %v4162, %v4412
    %4414 = vdwg.mxu0
    %4415 = vmatpush.bf16.msra.mxu0 %v4295
    %4416 = vmatpush.bf16.msra.mxu0 %v4291
    %4417 = vmatpush.bf16.msra.mxu0 %v4287
    %4418 = vmatpush.bf16.msra.mxu0 %v4283
    %4419 = vmatpush.bf16.msra.mxu0 %v4279
    %4420 = vmatpush.bf16.msra.mxu0 %v4275
    %4421 = vmatpush.bf16.msra.mxu0 %v4271
    %4422 = vmatpush.bf16.msra.mxu0 %v4267
    %4423 = vmatmul.bf16.gmra.mxu0 %v332
    %v4424 = vpop.f32.mrf.mxu0
    %v4425 = vadd.f32 %v4163, %v4424
    %v4426 = vpop.f32.mrf.mxu0
    %v4427 = vadd.f32 %v4163, %v4426
    %4428 = vmatmul.bf16.gmra.mxu0 %v336
    %v4429 = vpop.f32.mrf.mxu0
    %v4430 = vadd.f32 %v4163, %v4429
    %v4431 = vpop.f32.mrf.mxu0
    %v4432 = vadd.f32 %v4163, %v4431
    %4433 = vmatmul.bf16.gmra.mxu0 %v340
    %v4434 = vpop.f32.mrf.mxu0
    %v4435 = vadd.f32 %v4163, %v4434
    %v4436 = vpop.f32.mrf.mxu0
    %v4437 = vadd.f32 %v4163, %v4436
    %4438 = vmatmul.bf16.gmra.mxu0 %v344
    %v4439 = vpop.f32.mrf.mxu0
    %v4440 = vadd.f32 %v4163, %v4439
    %v4441 = vpop.f32.mrf.mxu0
    %v4442 = vadd.f32 %v4163, %v4441
    %4443 = vdwg.mxu0
    %v4444 = vmax.f32 %v4338, 0.0
    %v4445 = vmax.f32 %v4367, 0.0
    %v4446 = vmax.f32 %v4396, 0.0
    %v4447 = vmax.f32 %v4425, 0.0
    %v4448 = vmax.f32 %v4340, 0.0
    %v4449 = vmax.f32 %v4369, 0.0
    %v4450 = vmax.f32 %v4398, 0.0
    %v4451 = vmax.f32 %v4427, 0.0
    %v4452 = vmax.f32 %v4343, 0.0
    %v4453 = vmax.f32 %v4372, 0.0
    %v4454 = vmax.f32 %v4401, 0.0
    %v4455 = vmax.f32 %v4430, 0.0
    %v4456 = vmax.f32 %v4345, 0.0
    %v4457 = vmax.f32 %v4374, 0.0
    %v4458 = vmax.f32 %v4403, 0.0
    %v4459 = vmax.f32 %v4432, 0.0
    %v4460 = vmax.f32 %v4348, 0.0
    %v4461 = vmax.f32 %v4377, 0.0
    %v4462 = vmax.f32 %v4406, 0.0
    %v4463 = vmax.f32 %v4435, 0.0
    %v4464 = vmax.f32 %v4350, 0.0
    %v4465 = vmax.f32 %v4379, 0.0
    %v4466 = vmax.f32 %v4408, 0.0
    %v4467 = vmax.f32 %v4437, 0.0
    %v4468 = vmax.f32 %v4353, 0.0
    %v4469 = vmax.f32 %v4382, 0.0
    %v4470 = vmax.f32 %v4411, 0.0
    %v4471 = vmax.f32 %v4440, 0.0
    %v4472 = vmax.f32 %v4355, 0.0
    %v4473 = vmax.f32 %v4384, 0.0
    %v4474 = vmax.f32 %v4413, 0.0
    %v4475 = vmax.f32 %v4442, 0.0
    %v4476 = vld [vmem:[#allocation6 + $0x18] sm:$0xf]
    %v4478 = vperm.slane %v4476, 0
    %v4479 = vperm.slane %v4476, 1
    %v4480 = vperm.slane %v4476, 2
    %v4481 = vperm.slane %v4476, 3
    %v4486 = vmul.f32 %v4444, %v4478
    %v4487 = vmul.f32 %v4445, %v4479
    %v4488 = vmul.f32 %v4446, %v4480
    %v4489 = vmul.f32 %v4447, %v4481
    %v4490 = vmul.f32 %v4448, %v4478
    %v4491 = vmul.f32 %v4449, %v4479
    %v4492 = vmul.f32 %v4450, %v4480
    %v4493 = vmul.f32 %v4451, %v4481
    %v4494 = vmul.f32 %v4452, %v4478
    %v4495 = vmul.f32 %v4453, %v4479
    %v4496 = vmul.f32 %v4454, %v4480
    %v4497 = vmul.f32 %v4455, %v4481
    %v4498 = vmul.f32 %v4456, %v4478
    %v4499 = vmul.f32 %v4457, %v4479
    %v4500 = vmul.f32 %v4458, %v4480
    %v4501 = vmul.f32 %v4459, %v4481
    %v4502 = vmul.f32 %v4460, %v4478
    %v4503 = vmul.f32 %v4461, %v4479
    %v4504 = vmul.f32 %v4462, %v4480
    %v4505 = vmul.f32 %v4463, %v4481
    %v4506 = vmul.f32 %v4464, %v4478
    %v4507 = vmul.f32 %v4465, %v4479
    %v4508 = vmul.f32 %v4466, %v4480
    %v4509 = vmul.f32 %v4467, %v4481
    %v4510 = vmul.f32 %v4468, %v4478
    %v4511 = vmul.f32 %v4469, %v4479
    %v4512 = vmul.f32 %v4470, %v4480
    %v4513 = vmul.f32 %v4471, %v4481
    %v4514 = vmul.f32 %v4472, %v4478
    %v4515 = vmul.f32 %v4473, %v4479
    %v4516 = vmul.f32 %v4474, %v4480
    %v4517 = vmul.f32 %v4475, %v4481
    %v4518 = vld [vmem:[#allocation7 + $0x18] sm:$0xf]
    %v4520 = vperm.slane %v4518, 0
    %v4521 = vperm.slane %v4518, 1
    %v4522 = vperm.slane %v4518, 2
    %v4523 = vperm.slane %v4518, 3
    %v4528 = vadd.f32 %v4486, %v4520
    %v4529 = vadd.f32 %v4487, %v4521
    %v4530 = vadd.f32 %v4488, %v4522
    %v4531 = vadd.f32 %v4489, %v4523
    %v4532 = vadd.f32 %v4490, %v4520
    %v4533 = vadd.f32 %v4491, %v4521
    %v4534 = vadd.f32 %v4492, %v4522
    %v4535 = vadd.f32 %v4493, %v4523
    %v4536 = vadd.f32 %v4494, %v4520
    %v4537 = vadd.f32 %v4495, %v4521
    %v4538 = vadd.f32 %v4496, %v4522
    %v4539 = vadd.f32 %v4497, %v4523
    %v4540 = vadd.f32 %v4498, %v4520
    %v4541 = vadd.f32 %v4499, %v4521
    %v4542 = vadd.f32 %v4500, %v4522
    %v4543 = vadd.f32 %v4501, %v4523
    %v4544 = vadd.f32 %v4502, %v4520
    %v4545 = vadd.f32 %v4503, %v4521
    %v4546 = vadd.f32 %v4504, %v4522
    %v4547 = vadd.f32 %v4505, %v4523
    %v4548 = vadd.f32 %v4506, %v4520
    %v4549 = vadd.f32 %v4507, %v4521
    %v4550 = vadd.f32 %v4508, %v4522
    %v4551 = vadd.f32 %v4509, %v4523
    %v4552 = vadd.f32 %v4510, %v4520
    %v4553 = vadd.f32 %v4511, %v4521
    %v4554 = vadd.f32 %v4512, %v4522
    %v4555 = vadd.f32 %v4513, %v4523
    %v4556 = vadd.f32 %v4514, %v4520
    %v4557 = vadd.f32 %v4515, %v4521
    %v4558 = vadd.f32 %v4516, %v4522
    %v4559 = vadd.f32 %v4517, %v4523
    %v4560 = vpack.c.bf16 %v4529, %v4528
    %v4561 = vpack.c.bf16 %v4531, %v4530
    %v4562 = vpack.c.bf16 %v4533, %v4532
    %v4563 = vpack.c.bf16 %v4535, %v4534
    %v4564 = vpack.c.bf16 %v4537, %v4536
    %v4565 = vpack.c.bf16 %v4539, %v4538
    %v4566 = vpack.c.bf16 %v4541, %v4540
    %v4567 = vpack.c.bf16 %v4543, %v4542
    %v4568 = vpack.c.bf16 %v4545, %v4544
    %v4569 = vpack.c.bf16 %v4547, %v4546
    %v4570 = vpack.c.bf16 %v4549, %v4548
    %v4571 = vpack.c.bf16 %v4551, %v4550
    %v4572 = vpack.c.bf16 %v4553, %v4552
    %v4573 = vpack.c.bf16 %v4555, %v4554
    %v4574 = vpack.c.bf16 %v4557, %v4556
    %v4575 = vpack.c.bf16 %v4559, %v4558
    %v4576 = vunpack.c.l.bf16 %v4560
    %v4577 = vunpack.c.h.bf16 %v4560
    %v4578 = vunpack.c.l.bf16 %v4562
    %v4579 = vunpack.c.h.bf16 %v4562
    %v4580 = vunpack.c.l.bf16 %v4564
    %v4581 = vunpack.c.h.bf16 %v4564
    %v4582 = vunpack.c.l.bf16 %v4566
    %v4583 = vunpack.c.h.bf16 %v4566
    %v4584 = vunpack.c.l.bf16 %v4568
    %v4585 = vunpack.c.h.bf16 %v4568
    %v4586 = vunpack.c.l.bf16 %v4570
    %v4587 = vunpack.c.h.bf16 %v4570
    %v4588 = vunpack.c.l.bf16 %v4572
    %v4589 = vunpack.c.h.bf16 %v4572
    %v4590 = vunpack.c.l.bf16 %v4574
    %v4591 = vunpack.c.h.bf16 %v4574
    %v4592 = vunpack.c.l.bf16 %v4561
    %v4593 = vunpack.c.h.bf16 %v4561
    %v4594 = vunpack.c.l.bf16 %v4563
    %v4595 = vunpack.c.h.bf16 %v4563
    %v4596 = vunpack.c.l.bf16 %v4565
    %v4597 = vunpack.c.h.bf16 %v4565
    %v4598 = vunpack.c.l.bf16 %v4567
    %v4599 = vunpack.c.h.bf16 %v4567
    %v4600 = vunpack.c.l.bf16 %v4569
    %v4601 = vunpack.c.h.bf16 %v4569
    %v4602 = vunpack.c.l.bf16 %v4571
    %v4603 = vunpack.c.h.bf16 %v4571
    %v4604 = vunpack.c.l.bf16 %v4573
    %v4605 = vunpack.c.h.bf16 %v4573
    %v4606 = vunpack.c.l.bf16 %v4575
    %v4607 = vunpack.c.h.bf16 %v4575
    %v4608 = vmax.f32 %v4576, %v4592
    %v4609 = vmax.f32 %v4577, %v4593
    %v4610 = vmax.f32 %v4578, %v4594
    %v4611 = vmax.f32 %v4579, %v4595
    %v4612 = vmax.f32 %v4580, %v4596
    %v4613 = vmax.f32 %v4581, %v4597
    %v4614 = vmax.f32 %v4582, %v4598
    %v4615 = vmax.f32 %v4583, %v4599
    %v4616 = vmax.f32 %v4584, %v4600
    %v4617 = vmax.f32 %v4585, %v4601
    %v4618 = vmax.f32 %v4586, %v4602
    %v4619 = vmax.f32 %v4587, %v4603
    %v4620 = vmax.f32 %v4588, %v4604
    %v4621 = vmax.f32 %v4589, %v4605
    %v4622 = vmax.f32 %v4590, %v4606
    %v4623 = vmax.f32 %v4591, %v4607
    %v4624 = vpack.c.bf16 %v4609, %v4608
    %v4625 = vpack.c.bf16 %v4611, %v4610
    %v4626 = vpack.c.bf16 %v4613, %v4612
    %v4627 = vpack.c.bf16 %v4615, %v4614
    %v4628 = vpack.c.bf16 %v4617, %v4616
    %v4629 = vpack.c.bf16 %v4619, %v4618
    %v4630 = vpack.c.bf16 %v4621, %v4620
    %v4631 = vpack.c.bf16 %v4623, %v4622
    %v4632 = vunpack.c.l.bf16 %v4624
    %v4633 = vunpack.c.l.bf16 %v4625
    %v4634 = vunpack.c.l.bf16 %v4626
    %v4635 = vunpack.c.l.bf16 %v4627
    %v4636 = vunpack.c.l.bf16 %v4628
    %v4637 = vunpack.c.l.bf16 %v4629
    %v4638 = vunpack.c.l.bf16 %v4630
    %v4639 = vunpack.c.l.bf16 %v4631
    %v4648 = vrot.slane %v4624, 4
    %v4649 = vrot.slane %v4625, 4
    %v4650 = vrot.slane %v4626, 4
    %v4651 = vrot.slane %v4627, 4
    %v4652 = vrot.slane %v4628, 4
    %v4653 = vrot.slane %v4629, 4
    %v4654 = vrot.slane %v4630, 4
    %v4655 = vrot.slane %v4631, 4
    %v4664 = vunpack.c.l.bf16 %v4648
    %v4665 = vunpack.c.l.bf16 %v4649
    %v4666 = vunpack.c.l.bf16 %v4650
    %v4667 = vunpack.c.l.bf16 %v4651
    %v4668 = vunpack.c.l.bf16 %v4652
    %v4669 = vunpack.c.l.bf16 %v4653
    %v4670 = vunpack.c.l.bf16 %v4654
    %v4671 = vunpack.c.l.bf16 %v4655
    %v4672 = vmax.f32 %v4632, %v4664
    %v4673 = vmax.f32 %v4633, %v4665
    %v4674 = vmax.f32 %v4634, %v4666
    %v4675 = vmax.f32 %v4635, %v4667
    %v4676 = vmax.f32 %v4636, %v4668
    %v4677 = vmax.f32 %v4637, %v4669
    %v4678 = vmax.f32 %v4638, %v4670
    %v4679 = vmax.f32 %v4639, %v4671
    %v4680 = vpack.c.bf16 %v4672, %v4672
    %v4681 = vpack.c.bf16 %v4673, %v4673
    %v4682 = vpack.c.bf16 %v4674, %v4674
    %v4683 = vpack.c.bf16 %v4675, %v4675
    %v4684 = vpack.c.bf16 %v4676, %v4676
    %v4685 = vpack.c.bf16 %v4677, %v4677
    %v4686 = vpack.c.bf16 %v4678, %v4678
    %v4687 = vpack.c.bf16 %v4679, %v4679
    %v4688 = vunpack.c.l.bf16 %v4680
    %v4689 = vunpack.c.l.bf16 %v4681
    %v4690 = vunpack.c.l.bf16 %v4682
    %v4691 = vunpack.c.l.bf16 %v4683
    %v4692 = vunpack.c.l.bf16 %v4684
    %v4693 = vunpack.c.l.bf16 %v4685
    %v4694 = vunpack.c.l.bf16 %v4686
    %v4695 = vunpack.c.l.bf16 %v4687
    %4704 = vrot.lane.b32.xlu0 %v4688, 64
    %v4705 = vpop.permute.xlu0 %4704
    %4706 = vrot.lane.b32.xlu0 %v4689, 64
    %v4707 = vpop.permute.xlu0 %4706
    %4708 = vrot.lane.b32.xlu0 %v4690, 64
    %v4709 = vpop.permute.xlu0 %4708
    %4710 = vrot.lane.b32.xlu0 %v4691, 64
    %v4711 = vpop.permute.xlu0 %4710
    %4712 = vrot.lane.b32.xlu0 %v4692, 64
    %v4713 = vpop.permute.xlu0 %4712
    %4714 = vrot.lane.b32.xlu0 %v4693, 64
    %v4715 = vpop.permute.xlu0 %4714
    %4716 = vrot.lane.b32.xlu0 %v4694, 64
    %v4717 = vpop.permute.xlu0 %4716
    %4718 = vrot.lane.b32.xlu0 %v4695, 64
    %v4719 = vpop.permute.xlu0 %4718
    %v4728 = vmax.f32 %v4688, %v4705
    %v4729 = vmax.f32 %v4689, %v4707
    %v4730 = vmax.f32 %v4690, %v4709
    %v4731 = vmax.f32 %v4691, %v4711
    %v4732 = vmax.f32 %v4692, %v4713
    %v4733 = vmax.f32 %v4693, %v4715
    %v4734 = vmax.f32 %v4694, %v4717
    %v4735 = vmax.f32 %v4695, %v4719
    %v4736 = vpack.c.bf16 %v4728, %v4728
    %v4737 = vpack.c.bf16 %v4729, %v4729
    %v4738 = vpack.c.bf16 %v4730, %v4730
    %v4739 = vpack.c.bf16 %v4731, %v4731
    %v4740 = vpack.c.bf16 %v4732, %v4732
    %v4741 = vpack.c.bf16 %v4733, %v4733
    %v4742 = vpack.c.bf16 %v4734, %v4734
    %v4743 = vpack.c.bf16 %v4735, %v4735
    %v4744 = vunpack.c.l.bf16 %v4736
    %v4745 = vunpack.c.l.bf16 %v4737
    %v4746 = vunpack.c.l.bf16 %v4738
    %v4747 = vunpack.c.l.bf16 %v4739
    %v4748 = vunpack.c.l.bf16 %v4740
    %v4749 = vunpack.c.l.bf16 %v4741
    %v4750 = vunpack.c.l.bf16 %v4742
    %v4751 = vunpack.c.l.bf16 %v4743
    %4760 = vrot.lane.b32.xlu0 %v4744, 96
    %v4761 = vpop.permute.xlu0 %4760
    %4762 = vrot.lane.b32.xlu0 %v4745, 96
    %v4763 = vpop.permute.xlu0 %4762
    %4764 = vrot.lane.b32.xlu0 %v4746, 96
    %v4765 = vpop.permute.xlu0 %4764
    %4766 = vrot.lane.b32.xlu0 %v4747, 96
    %v4767 = vpop.permute.xlu0 %4766
    %4768 = vrot.lane.b32.xlu0 %v4748, 96
    %v4769 = vpop.permute.xlu0 %4768
    %4770 = vrot.lane.b32.xlu0 %v4749, 96
    %v4771 = vpop.permute.xlu0 %4770
    %4772 = vrot.lane.b32.xlu0 %v4750, 96
    %v4773 = vpop.permute.xlu0 %4772
    %4774 = vrot.lane.b32.xlu0 %v4751, 96
    %v4775 = vpop.permute.xlu0 %4774
    %v4784 = vmax.f32 %v4744, %v4761
    %v4785 = vmax.f32 %v4745, %v4763
    %v4786 = vmax.f32 %v4746, %v4765
    %v4787 = vmax.f32 %v4747, %v4767
    %v4788 = vmax.f32 %v4748, %v4769
    %v4789 = vmax.f32 %v4749, %v4771
    %v4790 = vmax.f32 %v4750, %v4773
    %v4791 = vmax.f32 %v4751, %v4775
    %v4792 = vpack.c.bf16 %v4784, %v4784
    %v4793 = vpack.c.bf16 %v4785, %v4785
    %v4794 = vpack.c.bf16 %v4786, %v4786
    %v4795 = vpack.c.bf16 %v4787, %v4787
    %v4796 = vpack.c.bf16 %v4788, %v4788
    %v4797 = vpack.c.bf16 %v4789, %v4789
    %v4798 = vpack.c.bf16 %v4790, %v4790
    %v4799 = vpack.c.bf16 %v4791, %v4791
    %v4800 = vunpack.c.l.bf16 %v4792
    %v4801 = vunpack.c.l.bf16 %v4793
    %v4802 = vunpack.c.l.bf16 %v4794
    %v4803 = vunpack.c.l.bf16 %v4795
    %v4804 = vunpack.c.l.bf16 %v4796
    %v4805 = vunpack.c.l.bf16 %v4797
    %v4806 = vunpack.c.l.bf16 %v4798
    %v4807 = vunpack.c.l.bf16 %v4799
    %v4808 = vmax.f32 %v4800, %v4804
    %v4809 = vmax.f32 %v4801, %v4805
    %v4810 = vmax.f32 %v4802, %v4806
    %v4811 = vmax.f32 %v4803, %v4807
    %v4812 = vpack.c.bf16 %v4808, %v4808
    %v4813 = vpack.c.bf16 %v4809, %v4809
    %v4814 = vpack.c.bf16 %v4810, %v4810
    %v4815 = vpack.c.bf16 %v4811, %v4811
    %v4816 = vunpack.c.l.bf16 %v4812
    %v4817 = vunpack.c.l.bf16 %v4813
    %v4818 = vunpack.c.l.bf16 %v4814
    %v4819 = vunpack.c.l.bf16 %v4815
    %v4820 = vmax.f32 %v4816, %v4818
    %v4821 = vmax.f32 %v4817, %v4819
    %v4822 = vpack.c.bf16 %v4820, %v4820
    %v4823 = vpack.c.bf16 %v4821, %v4821
    %v4824 = vld [vmem:[#allocation2 + $0x70] sm:$0xff]
    %v4825 = vld [vmem:[#allocation2 + $0xec] sm:$0xff]
    %v4826 = vld [vmem:[#allocation2 + $0x168] sm:$0xff]
    %v4827 = vld [vmem:[#allocation2 + $0x1e4] sm:$0xff]
    %v4828 = vld [vmem:[#allocation2 + $0x260] sm:$0xff]
    %v4829 = vld [vmem:[#allocation2 + $0x2dc] sm:$0xff]
    %v4830 = vld [vmem:[#allocation2 + $0x358] sm:$0xff]
    %v4831 = vld [vmem:[#allocation2 + $0x3d4] sm:$0xff]
    %v4832 = vld [vmem:[#allocation2 + $0x450] sm:$0xff]
    %v4833 = vld [vmem:[#allocation2 + $0x4cc] sm:$0xff]
    %v4834 = vld [vmem:[#allocation2 + $0x548] sm:$0xff]
    %v4835 = vld [vmem:[#allocation2 + $0x5c4] sm:$0xff]
    %v4836 = vld [vmem:[#allocation2 + $0x640] sm:$0xff]
    %v4837 = vld [vmem:[#allocation2 + $0x6bc] sm:$0xff]
    %v4838 = vld [vmem:[#allocation2 + $0x738] sm:$0xff]
    %v4839 = vld [vmem:[#allocation2 + $0x7b4] sm:$0xff]
    %v4840 = vld [vmem:[#allocation4 + $0x1c] sm:$0x3]
    %v4842 = vperm.slane %v4840, 0
    %v4843 = vperm.slane %v4840, 1
    %v4862 = vunpack.c.l.b16 %v4824
    %v4863 = vunpack.c.h.b16 %v4824
    %v4864 = vunpack.c.l.b16 %v4825
    %v4865 = vunpack.c.h.b16 %v4825
    %v4866 = vunpack.c.l.b16 %v4826
    %v4867 = vunpack.c.h.b16 %v4826
    %v4868 = vunpack.c.l.b16 %v4827
    %v4869 = vunpack.c.h.b16 %v4827
    %v4870 = vunpack.c.l.b16 %v4828
    %v4871 = vunpack.c.h.b16 %v4828
    %v4872 = vunpack.c.l.b16 %v4829
    %v4873 = vunpack.c.h.b16 %v4829
    %v4874 = vunpack.c.l.b16 %v4830
    %v4875 = vunpack.c.h.b16 %v4830
    %v4876 = vunpack.c.l.b16 %v4831
    %v4877 = vunpack.c.h.b16 %v4831
    %v4878 = vunpack.c.l.b16 %v4832
    %v4879 = vunpack.c.h.b16 %v4832
    %v4880 = vunpack.c.l.b16 %v4833
    %v4881 = vunpack.c.h.b16 %v4833
    %v4882 = vunpack.c.l.b16 %v4834
    %v4883 = vunpack.c.h.b16 %v4834
    %v4884 = vunpack.c.l.b16 %v4835
    %v4885 = vunpack.c.h.b16 %v4835
    %v4886 = vunpack.c.l.b16 %v4836
    %v4887 = vunpack.c.h.b16 %v4836
    %v4888 = vunpack.c.l.b16 %v4837
    %v4889 = vunpack.c.h.b16 %v4837
    %v4890 = vunpack.c.l.b16 %v4838
    %v4891 = vunpack.c.h.b16 %v4838
    %v4892 = vunpack.c.l.b16 %v4839
    %v4893 = vunpack.c.h.b16 %v4839
    %v4894 = vpack.c.b16 %v4864, %v4862
    %v4895 = vpack.c.b16 %v4865, %v4863
    %v4896 = vpack.c.b16 %v4868, %v4866
    %v4897 = vpack.c.b16 %v4869, %v4867
    %v4898 = vpack.c.b16 %v4872, %v4870
    %v4899 = vpack.c.b16 %v4873, %v4871
    %v4900 = vpack.c.b16 %v4876, %v4874
    %v4901 = vpack.c.b16 %v4877, %v4875
    %v4902 = vpack.c.b16 %v4880, %v4878
    %v4903 = vpack.c.b16 %v4881, %v4879
    %v4904 = vpack.c.b16 %v4884, %v4882
    %v4905 = vpack.c.b16 %v4885, %v4883
    %v4906 = vpack.c.b16 %v4888, %v4886
    %v4907 = vpack.c.b16 %v4889, %v4887
    %v4908 = vpack.c.b16 %v4892, %v4890
    %v4909 = vpack.c.b16 %v4893, %v4891
    %4926 = vmatpush.bf16.msra.mxu0 %v4908
    %4927 = vmatpush.bf16.msra.mxu0 %v4906
    %4928 = vmatpush.bf16.msra.mxu0 %v4904
    %4929 = vmatpush.bf16.msra.mxu0 %v4902
    %4930 = vmatpush.bf16.msra.mxu0 %v4900
    %4931 = vmatpush.bf16.msra.mxu0 %v4898
    %4932 = vmatpush.bf16.msra.mxu0 %v4896
    %4933 = vmatpush.bf16.msra.mxu0 %v4894
    %4934 = vmatmul.bf16.gmra.mxu0 %v332
    %v4935 = vpop.f32.mrf.mxu0
    %v4936 = vadd.f32 %v4842, %v4935
    %v4937 = vpop.f32.mrf.mxu0
    %v4938 = vadd.f32 %v4842, %v4937
    %4939 = vmatmul.bf16.gmra.mxu0 %v336
    %v4940 = vpop.f32.mrf.mxu0
    %v4941 = vadd.f32 %v4842, %v4940
    %v4942 = vpop.f32.mrf.mxu0
    %v4943 = vadd.f32 %v4842, %v4942
    %4944 = vmatmul.bf16.gmra.mxu0 %v340
    %v4945 = vpop.f32.mrf.mxu0
    %v4946 = vadd.f32 %v4842, %v4945
    %v4947 = vpop.f32.mrf.mxu0
    %v4948 = vadd.f32 %v4842, %v4947
    %4949 = vmatmul.bf16.gmra.mxu0 %v344
    %v4950 = vpop.f32.mrf.mxu0
    %v4951 = vadd.f32 %v4842, %v4950
    %v4952 = vpop.f32.mrf.mxu0
    %v4953 = vadd.f32 %v4842, %v4952
    %4954 = vdwg.mxu0
    %4955 = vmatpush.bf16.msra.mxu0 %v4909
    %4956 = vmatpush.bf16.msra.mxu0 %v4907
    %4957 = vmatpush.bf16.msra.mxu0 %v4905
    %4958 = vmatpush.bf16.msra.mxu0 %v4903
    %4959 = vmatpush.bf16.msra.mxu0 %v4901
    %4960 = vmatpush.bf16.msra.mxu0 %v4899
    %4961 = vmatpush.bf16.msra.mxu0 %v4897
    %4962 = vmatpush.bf16.msra.mxu0 %v4895
    %4963 = vmatmul.bf16.gmra.mxu0 %v332
    %v4964 = vpop.f32.mrf.mxu0
    %v4965 = vadd.f32 %v4843, %v4964
    %v4966 = vpop.f32.mrf.mxu0
    %v4967 = vadd.f32 %v4843, %v4966
    %4968 = vmatmul.bf16.gmra.mxu0 %v336
    %v4969 = vpop.f32.mrf.mxu0
    %v4970 = vadd.f32 %v4843, %v4969
    %v4971 = vpop.f32.mrf.mxu0
    %v4972 = vadd.f32 %v4843, %v4971
    %4973 = vmatmul.bf16.gmra.mxu0 %v340
    %v4974 = vpop.f32.mrf.mxu0
    %v4975 = vadd.f32 %v4843, %v4974
    %v4976 = vpop.f32.mrf.mxu0
    %v4977 = vadd.f32 %v4843, %v4976
    %4978 = vmatmul.bf16.gmra.mxu0 %v344
    %v4979 = vpop.f32.mrf.mxu0
    %v4980 = vadd.f32 %v4843, %v4979
    %v4981 = vpop.f32.mrf.mxu0
    %v4982 = vadd.f32 %v4843, %v4981
    %4983 = vdwg.mxu0
    %v4984 = vmax.f32 %v4936, 0.0
    %v4985 = vmax.f32 %v4965, 0.0
    %v4986 = vmax.f32 %v4938, 0.0
    %v4987 = vmax.f32 %v4967, 0.0
    %v4988 = vmax.f32 %v4941, 0.0
    %v4989 = vmax.f32 %v4970, 0.0
    %v4990 = vmax.f32 %v4943, 0.0
    %v4991 = vmax.f32 %v4972, 0.0
    %v4992 = vmax.f32 %v4946, 0.0
    %v4993 = vmax.f32 %v4975, 0.0
    %v4994 = vmax.f32 %v4948, 0.0
    %v4995 = vmax.f32 %v4977, 0.0
    %v4996 = vmax.f32 %v4951, 0.0
    %v4997 = vmax.f32 %v4980, 0.0
    %v4998 = vmax.f32 %v4953, 0.0
    %v4999 = vmax.f32 %v4982, 0.0
    %v5000 = vld [vmem:[#allocation6 + $0x1c] sm:$0x3]
    %v5002 = vperm.slane %v5000, 0
    %v5003 = vperm.slane %v5000, 1
    %v5006 = vmul.f32 %v4984, %v5002
    %v5007 = vmul.f32 %v4985, %v5003
    %v5008 = vmul.f32 %v4986, %v5002
    %v5009 = vmul.f32 %v4987, %v5003
    %v5010 = vmul.f32 %v4988, %v5002
    %v5011 = vmul.f32 %v4989, %v5003
    %v5012 = vmul.f32 %v4990, %v5002
    %v5013 = vmul.f32 %v4991, %v5003
    %v5014 = vmul.f32 %v4992, %v5002
    %v5015 = vmul.f32 %v4993, %v5003
    %v5016 = vmul.f32 %v4994, %v5002
    %v5017 = vmul.f32 %v4995, %v5003
    %v5018 = vmul.f32 %v4996, %v5002
    %v5019 = vmul.f32 %v4997, %v5003
    %v5020 = vmul.f32 %v4998, %v5002
    %v5021 = vmul.f32 %v4999, %v5003
    %v5022 = vld [vmem:[#allocation7 + $0x1c] sm:$0x3]
    %v5024 = vperm.slane %v5022, 0
    %v5025 = vperm.slane %v5022, 1
    %v5028 = vadd.f32 %v5006, %v5024
    %v5029 = vadd.f32 %v5007, %v5025
    %v5030 = vadd.f32 %v5008, %v5024
    %v5031 = vadd.f32 %v5009, %v5025
    %v5032 = vadd.f32 %v5010, %v5024
    %v5033 = vadd.f32 %v5011, %v5025
    %v5034 = vadd.f32 %v5012, %v5024
    %v5035 = vadd.f32 %v5013, %v5025
    %v5036 = vadd.f32 %v5014, %v5024
    %v5037 = vadd.f32 %v5015, %v5025
    %v5038 = vadd.f32 %v5016, %v5024
    %v5039 = vadd.f32 %v5017, %v5025
    %v5040 = vadd.f32 %v5018, %v5024
    %v5041 = vadd.f32 %v5019, %v5025
    %v5042 = vadd.f32 %v5020, %v5024
    %v5043 = vadd.f32 %v5021, %v5025
    %v5044 = vpack.c.bf16 %v5029, %v5028
    %v5045 = vpack.c.bf16 %v5031, %v5030
    %v5046 = vpack.c.bf16 %v5033, %v5032
    %v5047 = vpack.c.bf16 %v5035, %v5034
    %v5048 = vpack.c.bf16 %v5037, %v5036
    %v5049 = vpack.c.bf16 %v5039, %v5038
    %v5050 = vpack.c.bf16 %v5041, %v5040
    %v5051 = vpack.c.bf16 %v5043, %v5042
    %v5052 = vunpack.c.l.bf16 %v5044
    %v5053 = vunpack.c.l.bf16 %v5045
    %v5054 = vunpack.c.l.bf16 %v5046
    %v5055 = vunpack.c.l.bf16 %v5047
    %v5056 = vunpack.c.l.bf16 %v5048
    %v5057 = vunpack.c.l.bf16 %v5049
    %v5058 = vunpack.c.l.bf16 %v5050
    %v5059 = vunpack.c.l.bf16 %v5051
    %v5068 = vrot.slane %v5044, 4
    %v5069 = vrot.slane %v5045, 4
    %v5070 = vrot.slane %v5046, 4
    %v5071 = vrot.slane %v5047, 4
    %v5072 = vrot.slane %v5048, 4
    %v5073 = vrot.slane %v5049, 4
    %v5074 = vrot.slane %v5050, 4
    %v5075 = vrot.slane %v5051, 4
    %v5084 = vunpack.c.l.bf16 %v5068
    %v5085 = vunpack.c.l.bf16 %v5069
    %v5086 = vunpack.c.l.bf16 %v5070
    %v5087 = vunpack.c.l.bf16 %v5071
    %v5088 = vunpack.c.l.bf16 %v5072
    %v5089 = vunpack.c.l.bf16 %v5073
    %v5090 = vunpack.c.l.bf16 %v5074
    %v5091 = vunpack.c.l.bf16 %v5075
    %v5092 = vmax.f32 %v5052, %v5084
    %v5093 = vmax.f32 %v5053, %v5085
    %v5094 = vmax.f32 %v5054, %v5086
    %v5095 = vmax.f32 %v5055, %v5087
    %v5096 = vmax.f32 %v5056, %v5088
    %v5097 = vmax.f32 %v5057, %v5089
    %v5098 = vmax.f32 %v5058, %v5090
    %v5099 = vmax.f32 %v5059, %v5091
    %v5100 = vpack.c.bf16 %v5092, %v5092
    %v5101 = vpack.c.bf16 %v5093, %v5093
    %v5102 = vpack.c.bf16 %v5094, %v5094
    %v5103 = vpack.c.bf16 %v5095, %v5095
    %v5104 = vpack.c.bf16 %v5096, %v5096
    %v5105 = vpack.c.bf16 %v5097, %v5097
    %v5106 = vpack.c.bf16 %v5098, %v5098
    %v5107 = vpack.c.bf16 %v5099, %v5099
    %v5108 = vunpack.c.l.bf16 %v5100
    %v5109 = vunpack.c.l.bf16 %v5101
    %v5110 = vunpack.c.l.bf16 %v5102
    %v5111 = vunpack.c.l.bf16 %v5103
    %v5112 = vunpack.c.l.bf16 %v5104
    %v5113 = vunpack.c.l.bf16 %v5105
    %v5114 = vunpack.c.l.bf16 %v5106
    %v5115 = vunpack.c.l.bf16 %v5107
    %5124 = vrot.lane.b32.xlu0 %v5108, 64
    %v5125 = vpop.permute.xlu0 %5124
    %5126 = vrot.lane.b32.xlu0 %v5109, 64
    %v5127 = vpop.permute.xlu0 %5126
    %5128 = vrot.lane.b32.xlu0 %v5110, 64
    %v5129 = vpop.permute.xlu0 %5128
    %5130 = vrot.lane.b32.xlu0 %v5111, 64
    %v5131 = vpop.permute.xlu0 %5130
    %5132 = vrot.lane.b32.xlu0 %v5112, 64
    %v5133 = vpop.permute.xlu0 %5132
    %5134 = vrot.lane.b32.xlu0 %v5113, 64
    %v5135 = vpop.permute.xlu0 %5134
    %5136 = vrot.lane.b32.xlu0 %v5114, 64
    %v5137 = vpop.permute.xlu0 %5136
    %5138 = vrot.lane.b32.xlu0 %v5115, 64
    %v5139 = vpop.permute.xlu0 %5138
    %v5148 = vmax.f32 %v5108, %v5125
    %v5149 = vmax.f32 %v5109, %v5127
    %v5150 = vmax.f32 %v5110, %v5129
    %v5151 = vmax.f32 %v5111, %v5131
    %v5152 = vmax.f32 %v5112, %v5133
    %v5153 = vmax.f32 %v5113, %v5135
    %v5154 = vmax.f32 %v5114, %v5137
    %v5155 = vmax.f32 %v5115, %v5139
    %v5156 = vpack.c.bf16 %v5148, %v5148
    %v5157 = vpack.c.bf16 %v5149, %v5149
    %v5158 = vpack.c.bf16 %v5150, %v5150
    %v5159 = vpack.c.bf16 %v5151, %v5151
    %v5160 = vpack.c.bf16 %v5152, %v5152
    %v5161 = vpack.c.bf16 %v5153, %v5153
    %v5162 = vpack.c.bf16 %v5154, %v5154
    %v5163 = vpack.c.bf16 %v5155, %v5155
    %v5164 = vunpack.c.l.bf16 %v5156
    %v5165 = vunpack.c.l.bf16 %v5157
    %v5166 = vunpack.c.l.bf16 %v5158
    %v5167 = vunpack.c.l.bf16 %v5159
    %v5168 = vunpack.c.l.bf16 %v5160
    %v5169 = vunpack.c.l.bf16 %v5161
    %v5170 = vunpack.c.l.bf16 %v5162
    %v5171 = vunpack.c.l.bf16 %v5163
    %5180 = vrot.lane.b32.xlu0 %v5164, 96
    %v5181 = vpop.permute.xlu0 %5180
    %5182 = vrot.lane.b32.xlu0 %v5165, 96
    %v5183 = vpop.permute.xlu0 %5182
    %5184 = vrot.lane.b32.xlu0 %v5166, 96
    %v5185 = vpop.permute.xlu0 %5184
    %5186 = vrot.lane.b32.xlu0 %v5167, 96
    %v5187 = vpop.permute.xlu0 %5186
    %5188 = vrot.lane.b32.xlu0 %v5168, 96
    %v5189 = vpop.permute.xlu0 %5188
    %5190 = vrot.lane.b32.xlu0 %v5169, 96
    %v5191 = vpop.permute.xlu0 %5190
    %5192 = vrot.lane.b32.xlu0 %v5170, 96
    %v5193 = vpop.permute.xlu0 %5192
    %5194 = vrot.lane.b32.xlu0 %v5171, 96
    %v5195 = vpop.permute.xlu0 %5194
    %v5204 = vmax.f32 %v5164, %v5181
    %v5205 = vmax.f32 %v5165, %v5183
    %v5206 = vmax.f32 %v5166, %v5185
    %v5207 = vmax.f32 %v5167, %v5187
    %v5208 = vmax.f32 %v5168, %v5189
    %v5209 = vmax.f32 %v5169, %v5191
    %v5210 = vmax.f32 %v5170, %v5193
    %v5211 = vmax.f32 %v5171, %v5195
    %v5212 = vpack.c.bf16 %v5204, %v5204
    %v5213 = vpack.c.bf16 %v5205, %v5205
    %v5214 = vpack.c.bf16 %v5206, %v5206
    %v5215 = vpack.c.bf16 %v5207, %v5207
    %v5216 = vpack.c.bf16 %v5208, %v5208
    %v5217 = vpack.c.bf16 %v5209, %v5209
    %v5218 = vpack.c.bf16 %v5210, %v5210
    %v5219 = vpack.c.bf16 %v5211, %v5211
    %v5220 = vunpack.c.l.bf16 %v5212
    %v5221 = vunpack.c.l.bf16 %v5213
    %v5222 = vunpack.c.l.bf16 %v5214
    %v5223 = vunpack.c.l.bf16 %v5215
    %v5224 = vunpack.c.l.bf16 %v5216
    %v5225 = vunpack.c.l.bf16 %v5217
    %v5226 = vunpack.c.l.bf16 %v5218
    %v5227 = vunpack.c.l.bf16 %v5219
    %v5228 = vmax.f32 %v5220, %v5224
    %v5229 = vmax.f32 %v5221, %v5225
    %v5230 = vmax.f32 %v5222, %v5226
    %v5231 = vmax.f32 %v5223, %v5227
    %v5232 = vpack.c.bf16 %v5228, %v5228
    %v5233 = vpack.c.bf16 %v5229, %v5229
    %v5234 = vpack.c.bf16 %v5230, %v5230
    %v5235 = vpack.c.bf16 %v5231, %v5231
    %v5236 = vunpack.c.l.bf16 %v5232
    %v5237 = vunpack.c.l.bf16 %v5233
    %v5238 = vunpack.c.l.bf16 %v5234
    %v5239 = vunpack.c.l.bf16 %v5235
    %v5240 = vmax.f32 %v5236, %v5238
    %v5241 = vmax.f32 %v5237, %v5239
    %v5242 = vpack.c.bf16 %v5240, %v5240
    %v5243 = vpack.c.bf16 %v5241, %v5241
    %v5244 = vld [vmem:[#allocation2 + $0x78] sm:$0xf]
    %v5245 = vld [vmem:[#allocation2 + $0xf4] sm:$0xf]
    %v5246 = vld [vmem:[#allocation2 + $0x170] sm:$0xf]
    %v5247 = vld [vmem:[#allocation2 + $0x1ec] sm:$0xf]
    %v5248 = vld [vmem:[#allocation2 + $0x268] sm:$0xf]
    %v5249 = vld [vmem:[#allocation2 + $0x2e4] sm:$0xf]
    %v5250 = vld [vmem:[#allocation2 + $0x360] sm:$0xf]
    %v5251 = vld [vmem:[#allocation2 + $0x3dc] sm:$0xf]
    %v5252 = vld [vmem:[#allocation2 + $0x458] sm:$0xf]
    %v5253 = vld [vmem:[#allocation2 + $0x4d4] sm:$0xf]
    %v5254 = vld [vmem:[#allocation2 + $0x550] sm:$0xf]
    %v5255 = vld [vmem:[#allocation2 + $0x5cc] sm:$0xf]
    %v5256 = vld [vmem:[#allocation2 + $0x648] sm:$0xf]
    %v5257 = vld [vmem:[#allocation2 + $0x6c4] sm:$0xf]
    %v5258 = vld [vmem:[#allocation2 + $0x740] sm:$0xf]
    %v5259 = vld [vmem:[#allocation2 + $0x7bc] sm:$0xf]
    %v5260 = vld [vmem:[#allocation4 + $0x1e] sm:$0x1]
    %v5262 = vperm.slane %v5260, 0
    %v5280 = vunpack.c.l.b16 %v5244
    %v5281 = vunpack.c.l.b16 %v5245
    %v5282 = vunpack.c.l.b16 %v5246
    %v5283 = vunpack.c.l.b16 %v5247
    %v5284 = vunpack.c.l.b16 %v5248
    %v5285 = vunpack.c.l.b16 %v5249
    %v5286 = vunpack.c.l.b16 %v5250
    %v5287 = vunpack.c.l.b16 %v5251
    %v5288 = vunpack.c.l.b16 %v5252
    %v5289 = vunpack.c.l.b16 %v5253
    %v5290 = vunpack.c.l.b16 %v5254
    %v5291 = vunpack.c.l.b16 %v5255
    %v5292 = vunpack.c.l.b16 %v5256
    %v5293 = vunpack.c.l.b16 %v5257
    %v5294 = vunpack.c.l.b16 %v5258
    %v5295 = vunpack.c.l.b16 %v5259
    %v5296 = vpack.c.b16 %v5281, %v5280
    %v5297 = vpack.c.b16 %v5283, %v5282
    %v5298 = vpack.c.b16 %v5285, %v5284
    %v5299 = vpack.c.b16 %v5287, %v5286
    %v5300 = vpack.c.b16 %v5289, %v5288
    %v5301 = vpack.c.b16 %v5291, %v5290
    %v5302 = vpack.c.b16 %v5293, %v5292
    %v5303 = vpack.c.b16 %v5295, %v5294
    %5312 = vmatpush.bf16.msra.mxu0 %v5303
    %5313 = vmatpush.bf16.msra.mxu0 %v5302
    %5314 = vmatpush.bf16.msra.mxu0 %v5301
    %5315 = vmatpush.bf16.msra.mxu0 %v5300
    %5316 = vmatpush.bf16.msra.mxu0 %v5299
    %5317 = vmatpush.bf16.msra.mxu0 %v5298
    %5318 = vmatpush.bf16.msra.mxu0 %v5297
    %5319 = vmatpush.bf16.msra.mxu0 %v5296
    %5320 = vmatmul.bf16.gmra.mxu0 %v332
    %v5321 = vpop.f32.mrf.mxu0
    %v5322 = vadd.f32 %v5262, %v5321
    %v5323 = vpop.f32.mrf.mxu0
    %v5324 = vadd.f32 %v5262, %v5323
    %5325 = vmatmul.bf16.gmra.mxu0 %v336
    %v5326 = vpop.f32.mrf.mxu0
    %v5327 = vadd.f32 %v5262, %v5326
    %v5328 = vpop.f32.mrf.mxu0
    %v5329 = vadd.f32 %v5262, %v5328
    %5330 = vmatmul.bf16.gmra.mxu0 %v340
    %v5331 = vpop.f32.mrf.mxu0
    %v5332 = vadd.f32 %v5262, %v5331
    %v5333 = vpop.f32.mrf.mxu0
    %v5334 = vadd.f32 %v5262, %v5333
    %5335 = vmatmul.bf16.gmra.mxu0 %v344
    %v5336 = vpop.f32.mrf.mxu0
    %v5337 = vadd.f32 %v5262, %v5336
    %v5338 = vpop.f32.mrf.mxu0
    %v5339 = vadd.f32 %v5262, %v5338
    %5340 = vdwg.mxu0
    %v5341 = vmax.f32 %v5322, 0.0
    %v5342 = vmax.f32 %v5324, 0.0
    %v5343 = vmax.f32 %v5327, 0.0
    %v5344 = vmax.f32 %v5329, 0.0
    %v5345 = vmax.f32 %v5332, 0.0
    %v5346 = vmax.f32 %v5334, 0.0
    %v5347 = vmax.f32 %v5337, 0.0
    %v5348 = vmax.f32 %v5339, 0.0
    %v5349 = vld [vmem:[#allocation6 + $0x1e] sm:$0x1]
    %v5351 = vperm.slane %v5349, 0
    %v5353 = vmul.f32 %v5341, %v5351
    %v5354 = vmul.f32 %v5342, %v5351
    %v5355 = vmul.f32 %v5343, %v5351
    %v5356 = vmul.f32 %v5344, %v5351
    %v5357 = vmul.f32 %v5345, %v5351
    %v5358 = vmul.f32 %v5346, %v5351
    %v5359 = vmul.f32 %v5347, %v5351
    %v5360 = vmul.f32 %v5348, %v5351
    %v5361 = vld [vmem:[#allocation7 + $0x1e] sm:$0x1]
    %v5363 = vperm.slane %v5361, 0
    %v5365 = vadd.f32 %v5353, %v5363
    %v5366 = vadd.f32 %v5354, %v5363
    %v5367 = vadd.f32 %v5355, %v5363
    %v5368 = vadd.f32 %v5356, %v5363
    %v5369 = vadd.f32 %v5357, %v5363
    %v5370 = vadd.f32 %v5358, %v5363
    %v5371 = vadd.f32 %v5359, %v5363
    %v5372 = vadd.f32 %v5360, %v5363
    %v5373 = vpack.c.bf16 %v5365, %v5365
    %v5374 = vpack.c.bf16 %v5366, %v5366
    %v5375 = vpack.c.bf16 %v5367, %v5367
    %v5376 = vpack.c.bf16 %v5368, %v5368
    %v5377 = vpack.c.bf16 %v5369, %v5369
    %v5378 = vpack.c.bf16 %v5370, %v5370
    %v5379 = vpack.c.bf16 %v5371, %v5371
    %v5380 = vpack.c.bf16 %v5372, %v5372
    %v5381 = vunpack.c.l.bf16 %v5373
    %v5382 = vunpack.c.l.bf16 %v5374
    %v5383 = vunpack.c.l.bf16 %v5375
    %v5384 = vunpack.c.l.bf16 %v5376
    %v5385 = vunpack.c.l.bf16 %v5377
    %v5386 = vunpack.c.l.bf16 %v5378
    %v5387 = vunpack.c.l.bf16 %v5379
    %v5388 = vunpack.c.l.bf16 %v5380
    %5397 = vrot.lane.b32.xlu0 %v5381, 64
    %v5398 = vpop.permute.xlu0 %5397
    %5399 = vrot.lane.b32.xlu0 %v5382, 64
    %v5400 = vpop.permute.xlu0 %5399
    %5401 = vrot.lane.b32.xlu0 %v5383, 64
    %v5402 = vpop.permute.xlu0 %5401
    %5403 = vrot.lane.b32.xlu0 %v5384, 64
    %v5404 = vpop.permute.xlu0 %5403
    %5405 = vrot.lane.b32.xlu0 %v5385, 64
    %v5406 = vpop.permute.xlu0 %5405
    %5407 = vrot.lane.b32.xlu0 %v5386, 64
    %v5408 = vpop.permute.xlu0 %5407
    %5409 = vrot.lane.b32.xlu0 %v5387, 64
    %v5410 = vpop.permute.xlu0 %5409
    %5411 = vrot.lane.b32.xlu0 %v5388, 64
    %v5412 = vpop.permute.xlu0 %5411
    %v5421 = vmax.f32 %v5381, %v5398
    %v5422 = vmax.f32 %v5382, %v5400
    %v5423 = vmax.f32 %v5383, %v5402
    %v5424 = vmax.f32 %v5384, %v5404
    %v5425 = vmax.f32 %v5385, %v5406
    %v5426 = vmax.f32 %v5386, %v5408
    %v5427 = vmax.f32 %v5387, %v5410
    %v5428 = vmax.f32 %v5388, %v5412
    %v5429 = vpack.c.bf16 %v5421, %v5421
    %v5430 = vpack.c.bf16 %v5422, %v5422
    %v5431 = vpack.c.bf16 %v5423, %v5423
    %v5432 = vpack.c.bf16 %v5424, %v5424
    %v5433 = vpack.c.bf16 %v5425, %v5425
    %v5434 = vpack.c.bf16 %v5426, %v5426
    %v5435 = vpack.c.bf16 %v5427, %v5427
    %v5436 = vpack.c.bf16 %v5428, %v5428
    %v5437 = vunpack.c.l.bf16 %v5429
    %v5438 = vunpack.c.l.bf16 %v5430
    %v5439 = vunpack.c.l.bf16 %v5431
    %v5440 = vunpack.c.l.bf16 %v5432
    %v5441 = vunpack.c.l.bf16 %v5433
    %v5442 = vunpack.c.l.bf16 %v5434
    %v5443 = vunpack.c.l.bf16 %v5435
    %v5444 = vunpack.c.l.bf16 %v5436
    %5453 = vrot.lane.b32.xlu0 %v5437, 96
    %v5454 = vpop.permute.xlu0 %5453
    %5455 = vrot.lane.b32.xlu0 %v5438, 96
    %v5456 = vpop.permute.xlu0 %5455
    %5457 = vrot.lane.b32.xlu0 %v5439, 96
    %v5458 = vpop.permute.xlu0 %5457
    %5459 = vrot.lane.b32.xlu0 %v5440, 96
    %v5460 = vpop.permute.xlu0 %5459
    %5461 = vrot.lane.b32.xlu0 %v5441, 96
    %v5462 = vpop.permute.xlu0 %5461
    %5463 = vrot.lane.b32.xlu0 %v5442, 96
    %v5464 = vpop.permute.xlu0 %5463
    %5465 = vrot.lane.b32.xlu0 %v5443, 96
    %v5466 = vpop.permute.xlu0 %5465
    %5467 = vrot.lane.b32.xlu0 %v5444, 96
    %v5468 = vpop.permute.xlu0 %5467
    %v5477 = vmax.f32 %v5437, %v5454
    %v5478 = vmax.f32 %v5438, %v5456
    %v5479 = vmax.f32 %v5439, %v5458
    %v5480 = vmax.f32 %v5440, %v5460
    %v5481 = vmax.f32 %v5441, %v5462
    %v5482 = vmax.f32 %v5442, %v5464
    %v5483 = vmax.f32 %v5443, %v5466
    %v5484 = vmax.f32 %v5444, %v5468
    %v5485 = vpack.c.bf16 %v5477, %v5477
    %v5486 = vpack.c.bf16 %v5478, %v5478
    %v5487 = vpack.c.bf16 %v5479, %v5479
    %v5488 = vpack.c.bf16 %v5480, %v5480
    %v5489 = vpack.c.bf16 %v5481, %v5481
    %v5490 = vpack.c.bf16 %v5482, %v5482
    %v5491 = vpack.c.bf16 %v5483, %v5483
    %v5492 = vpack.c.bf16 %v5484, %v5484
    %v5493 = vunpack.c.l.bf16 %v5485
    %v5494 = vunpack.c.l.bf16 %v5486
    %v5495 = vunpack.c.l.bf16 %v5487
    %v5496 = vunpack.c.l.bf16 %v5488
    %v5497 = vunpack.c.l.bf16 %v5489
    %v5498 = vunpack.c.l.bf16 %v5490
    %v5499 = vunpack.c.l.bf16 %v5491
    %v5500 = vunpack.c.l.bf16 %v5492
    %v5501 = vmax.f32 %v5493, %v5497
    %v5502 = vmax.f32 %v5494, %v5498
    %v5503 = vmax.f32 %v5495, %v5499
    %v5504 = vmax.f32 %v5496, %v5500
    %v5505 = vpack.c.bf16 %v5501, %v5501
    %v5506 = vpack.c.bf16 %v5502, %v5502
    %v5507 = vpack.c.bf16 %v5503, %v5503
    %v5508 = vpack.c.bf16 %v5504, %v5504
    %v5509 = vunpack.c.l.bf16 %v5505
    %v5510 = vunpack.c.l.bf16 %v5506
    %v5511 = vunpack.c.l.bf16 %v5507
    %v5512 = vunpack.c.l.bf16 %v5508
    %v5513 = vmax.f32 %v5509, %v5511
    %v5514 = vmax.f32 %v5510, %v5512
    %v5515 = vpack.c.bf16 %v5513, %v5513
    %v5516 = vpack.c.bf16 %v5514, %v5514
    %v5517 = vld [vmem:[#allocation9] sm:$0xff]
    %v5518 = vld [vmem:[#allocation9 + $0x8] sm:$0xff]
    %v5519 = vld [vmem:[#allocation9 + $0x10] sm:$0xff]
    %v5520 = vld [vmem:[#allocation9 + $0x18] sm:$0xff]
    %v5521 = vld [vmem:[#allocation9 + $0x20] sm:$0xff]
    %v5522 = vld [vmem:[#allocation9 + $0x28] sm:$0xff]
    %v5523 = vld [vmem:[#allocation9 + $0x30] sm:$0xff]
    %v5524 = vld [vmem:[#allocation9 + $0x38] sm:$0xff]
    %v5525 = vld [vmem:[#allocation9 + $0x40] sm:$0xff]
    %v5526 = vld [vmem:[#allocation9 + $0x48] sm:$0xff]
    %v5527 = vld [vmem:[#allocation9 + $0x50] sm:$0xff]
    %v5528 = vld [vmem:[#allocation9 + $0x58] sm:$0xff]
    %v5529 = vld [vmem:[#allocation9 + $0x60] sm:$0xff]
    %v5530 = vld [vmem:[#allocation9 + $0x68] sm:$0xff]
    %v5531 = vld [vmem:[#allocation9 + $0x70] sm:$0xff]
    %v5532 = vld [vmem:[#allocation9 + $0x78] sm:$0xff]
    %v5533 = vld [vmem:[#allocation9 + $0x80] sm:$0xff]
    %v5534 = vld [vmem:[#allocation9 + $0x88] sm:$0xff]
    %v5535 = vld [vmem:[#allocation9 + $0x90] sm:$0xff]
    %v5536 = vld [vmem:[#allocation9 + $0x98] sm:$0xff]
    %v5537 = vld [vmem:[#allocation9 + $0xa0] sm:$0xff]
    %v5538 = vld [vmem:[#allocation9 + $0xa8] sm:$0xff]
    %v5539 = vld [vmem:[#allocation9 + $0xb0] sm:$0xff]
    %v5540 = vld [vmem:[#allocation9 + $0xb8] sm:$0xff]
    %v5541 = vld [vmem:[#allocation9 + $0xc0] sm:$0xff]
    %v5542 = vld [vmem:[#allocation9 + $0xc8] sm:$0xff]
    %v5543 = vld [vmem:[#allocation9 + $0xd0] sm:$0xff]
    %v5544 = vld [vmem:[#allocation9 + $0xd8] sm:$0xff]
    %v5545 = vld [vmem:[#allocation9 + $0xe0] sm:$0xff]
    %v5546 = vld [vmem:[#allocation9 + $0xe8] sm:$0xff]
    %v5547 = vld [vmem:[#allocation9 + $0xf0] sm:$0xff]
    %v5548 = vld [vmem:[#allocation9 + $0xf8] sm:$0xff]
    %v5549 = vld [vmem:[#allocation10] sm:$0x3]
    %v5551 = vperm.slane %v5549, 0
    %v5552 = vperm.slane %v5549, 1
    %v5587 = vunpack.c.l.b16 %v5517
    %v5588 = vunpack.c.h.b16 %v5517
    %v5589 = vunpack.c.l.b16 %v5518
    %v5590 = vunpack.c.h.b16 %v5518
    %v5591 = vunpack.c.l.b16 %v5519
    %v5592 = vunpack.c.h.b16 %v5519
    %v5593 = vunpack.c.l.b16 %v5520
    %v5594 = vunpack.c.h.b16 %v5520
    %v5595 = vunpack.c.l.b16 %v5521
    %v5596 = vunpack.c.h.b16 %v5521
    %v5597 = vunpack.c.l.b16 %v5522
    %v5598 = vunpack.c.h.b16 %v5522
    %v5599 = vunpack.c.l.b16 %v5523
    %v5600 = vunpack.c.h.b16 %v5523
    %v5601 = vunpack.c.l.b16 %v5524
    %v5602 = vunpack.c.h.b16 %v5524
    %v5603 = vunpack.c.l.b16 %v5525
    %v5604 = vunpack.c.h.b16 %v5525
    %v5605 = vunpack.c.l.b16 %v5526
    %v5606 = vunpack.c.h.b16 %v5526
    %v5607 = vunpack.c.l.b16 %v5527
    %v5608 = vunpack.c.h.b16 %v5527
    %v5609 = vunpack.c.l.b16 %v5528
    %v5610 = vunpack.c.h.b16 %v5528
    %v5611 = vunpack.c.l.b16 %v5529
    %v5612 = vunpack.c.h.b16 %v5529
    %v5613 = vunpack.c.l.b16 %v5530
    %v5614 = vunpack.c.h.b16 %v5530
    %v5615 = vunpack.c.l.b16 %v5531
    %v5616 = vunpack.c.h.b16 %v5531
    %v5617 = vunpack.c.l.b16 %v5532
    %v5618 = vunpack.c.h.b16 %v5532
    %v5619 = vunpack.c.l.b16 %v5533
    %v5620 = vunpack.c.h.b16 %v5533
    %v5621 = vunpack.c.l.b16 %v5534
    %v5622 = vunpack.c.h.b16 %v5534
    %v5623 = vunpack.c.l.b16 %v5535
    %v5624 = vunpack.c.h.b16 %v5535
    %v5625 = vunpack.c.l.b16 %v5536
    %v5626 = vunpack.c.h.b16 %v5536
    %v5627 = vunpack.c.l.b16 %v5537
    %v5628 = vunpack.c.h.b16 %v5537
    %v5629 = vunpack.c.l.b16 %v5538
    %v5630 = vunpack.c.h.b16 %v5538
    %v5631 = vunpack.c.l.b16 %v5539
    %v5632 = vunpack.c.h.b16 %v5539
    %v5633 = vunpack.c.l.b16 %v5540
    %v5634 = vunpack.c.h.b16 %v5540
    %v5635 = vunpack.c.l.b16 %v5541
    %v5636 = vunpack.c.h.b16 %v5541
    %v5637 = vunpack.c.l.b16 %v5542
    %v5638 = vunpack.c.h.b16 %v5542
    %v5639 = vunpack.c.l.b16 %v5543
    %v5640 = vunpack.c.h.b16 %v5543
    %v5641 = vunpack.c.l.b16 %v5544
    %v5642 = vunpack.c.h.b16 %v5544
    %v5643 = vunpack.c.l.b16 %v5545
    %v5644 = vunpack.c.h.b16 %v5545
    %v5645 = vunpack.c.l.b16 %v5546
    %v5646 = vunpack.c.h.b16 %v5546
    %v5647 = vunpack.c.l.b16 %v5547
    %v5648 = vunpack.c.h.b16 %v5547
    %v5649 = vunpack.c.l.b16 %v5548
    %v5650 = vunpack.c.h.b16 %v5548
    %v5651 = vpack.c.b16 %v5589, %v5587
    %v5652 = vpack.c.b16 %v5590, %v5588
    %v5653 = vpack.c.b16 %v5593, %v5591
    %v5654 = vpack.c.b16 %v5594, %v5592
    %v5655 = vpack.c.b16 %v5597, %v5595
    %v5656 = vpack.c.b16 %v5598, %v5596
    %v5657 = vpack.c.b16 %v5601, %v5599
    %v5658 = vpack.c.b16 %v5602, %v5600
    %v5659 = vpack.c.b16 %v5605, %v5603
    %v5660 = vpack.c.b16 %v5606, %v5604
    %v5661 = vpack.c.b16 %v5609, %v5607
    %v5662 = vpack.c.b16 %v5610, %v5608
    %v5663 = vpack.c.b16 %v5613, %v5611
    %v5664 = vpack.c.b16 %v5614, %v5612
    %v5665 = vpack.c.b16 %v5617, %v5615
    %v5666 = vpack.c.b16 %v5618, %v5616
    %v5667 = vpack.c.b16 %v5621, %v5619
    %v5668 = vpack.c.b16 %v5622, %v5620
    %v5669 = vpack.c.b16 %v5625, %v5623
    %v5670 = vpack.c.b16 %v5626, %v5624
    %v5671 = vpack.c.b16 %v5629, %v5627
    %v5672 = vpack.c.b16 %v5630, %v5628
    %v5673 = vpack.c.b16 %v5633, %v5631
    %v5674 = vpack.c.b16 %v5634, %v5632
    %v5675 = vpack.c.b16 %v5637, %v5635
    %v5676 = vpack.c.b16 %v5638, %v5636
    %v5677 = vpack.c.b16 %v5641, %v5639
    %v5678 = vpack.c.b16 %v5642, %v5640
    %v5679 = vpack.c.b16 %v5645, %v5643
    %v5680 = vpack.c.b16 %v5646, %v5644
    %v5681 = vpack.c.b16 %v5649, %v5647
    %v5682 = vpack.c.b16 %v5650, %v5648
    %5715 = vmatpush.bf16.msra.mxu0 %v5665
    %5716 = vmatpush.bf16.msra.mxu0 %v5663
    %5717 = vmatpush.bf16.msra.mxu0 %v5661
    %5718 = vmatpush.bf16.msra.mxu0 %v5659
    %5719 = vmatpush.bf16.msra.mxu0 %v5657
    %5720 = vmatpush.bf16.msra.mxu0 %v5655
    %5721 = vmatpush.bf16.msra.mxu0 %v5653
    %5722 = vmatpush.bf16.msra.mxu0 %v5651
    %5723 = vmatmul.bf16.gmra.mxu0 %v351
    %v5724 = vpop.f32.mrf.mxu0
    %v5725 = vadd.f32 %v5551, %v5724
    %v5726 = vpop.f32.mrf.mxu0
    %v5727 = vadd.f32 %v5551, %v5726
    %5728 = vmatmul.bf16.gmra.mxu0 %v354
    %v5729 = vpop.f32.mrf.mxu0
    %v5730 = vadd.f32 %v5551, %v5729
    %v5731 = vpop.f32.mrf.mxu0
    %v5732 = vadd.f32 %v5551, %v5731
    %5733 = vdwg.mxu0
    %5734 = vmatpush.bf16.msra.mxu0 %v5681
    %5735 = vmatpush.bf16.msra.mxu0 %v5679
    %5736 = vmatpush.bf16.msra.mxu0 %v5677
    %5737 = vmatpush.bf16.msra.mxu0 %v5675
    %5738 = vmatpush.bf16.msra.mxu0 %v5673
    %5739 = vmatpush.bf16.msra.mxu0 %v5671
    %5740 = vmatpush.bf16.msra.mxu0 %v5669
    %5741 = vmatpush.bf16.msra.mxu0 %v5667
    %5742 = vmatmul.bf16.gmra.mxu0 %v336
    %v5743 = vpop.f32.mrf.mxu0
    %v5744 = vadd.f32 %v5725, %v5743
    %v5745 = vpop.f32.mrf.mxu0
    %v5746 = vadd.f32 %v5727, %v5745
    %5747 = vmatmul.bf16.gmra.mxu0 %v344
    %v5748 = vpop.f32.mrf.mxu0
    %v5749 = vadd.f32 %v5730, %v5748
    %v5750 = vpop.f32.mrf.mxu0
    %v5751 = vadd.f32 %v5732, %v5750
    %5752 = vdwg.mxu0
    %5753 = vmatpush.bf16.msra.mxu0 %v5666
    %5754 = vmatpush.bf16.msra.mxu0 %v5664
    %5755 = vmatpush.bf16.msra.mxu0 %v5662
    %5756 = vmatpush.bf16.msra.mxu0 %v5660
    %5757 = vmatpush.bf16.msra.mxu0 %v5658
    %5758 = vmatpush.bf16.msra.mxu0 %v5656
    %5759 = vmatpush.bf16.msra.mxu0 %v5654
    %5760 = vmatpush.bf16.msra.mxu0 %v5652
    %5761 = vmatmul.bf16.gmra.mxu0 %v351
    %v5762 = vpop.f32.mrf.mxu0
    %v5763 = vadd.f32 %v5552, %v5762
    %v5764 = vpop.f32.mrf.mxu0
    %v5765 = vadd.f32 %v5552, %v5764
    %5766 = vmatmul.bf16.gmra.mxu0 %v354
    %v5767 = vpop.f32.mrf.mxu0
    %v5768 = vadd.f32 %v5552, %v5767
    %v5769 = vpop.f32.mrf.mxu0
    %v5770 = vadd.f32 %v5552, %v5769
    %5771 = vdwg.mxu0
    %5772 = vmatpush.bf16.msra.mxu0 %v5682
    %5773 = vmatpush.bf16.msra.mxu0 %v5680
    %5774 = vmatpush.bf16.msra.mxu0 %v5678
    %5775 = vmatpush.bf16.msra.mxu0 %v5676
    %5776 = vmatpush.bf16.msra.mxu0 %v5674
    %5777 = vmatpush.bf16.msra.mxu0 %v5672
    %5778 = vmatpush.bf16.msra.mxu0 %v5670
    %5779 = vmatpush.bf16.msra.mxu0 %v5668
    %5780 = vmatmul.bf16.gmra.mxu0 %v336
    %v5781 = vpop.f32.mrf.mxu0
    %v5782 = vadd.f32 %v5763, %v5781
    %v5783 = vpop.f32.mrf.mxu0
    %v5784 = vadd.f32 %v5765, %v5783
    %5785 = vmatmul.bf16.gmra.mxu0 %v344
    %v5786 = vpop.f32.mrf.mxu0
    %v5787 = vadd.f32 %v5768, %v5786
    %v5788 = vpop.f32.mrf.mxu0
    %v5789 = vadd.f32 %v5770, %v5788
    %5790 = vdwg.mxu0
    %v5791 = vmax.f32 %v5744, 0.0
    %v5792 = vmax.f32 %v5782, 0.0
    %v5793 = vmax.f32 %v5746, 0.0
    %v5794 = vmax.f32 %v5784, 0.0
    %v5795 = vmax.f32 %v5749, 0.0
    %v5796 = vmax.f32 %v5787, 0.0
    %v5797 = vmax.f32 %v5751, 0.0
    %v5798 = vmax.f32 %v5789, 0.0
    %v5799 = vld [vmem:[#allocation12] sm:$0x3]
    %v5801 = vperm.slane %v5799, 0
    %v5802 = vperm.slane %v5799, 1
    %v5805 = vmul.f32 %v5791, %v5801
    %v5806 = vmul.f32 %v5792, %v5802
    %v5807 = vmul.f32 %v5793, %v5801
    %v5808 = vmul.f32 %v5794, %v5802
    %v5809 = vmul.f32 %v5795, %v5801
    %v5810 = vmul.f32 %v5796, %v5802
    %v5811 = vmul.f32 %v5797, %v5801
    %v5812 = vmul.f32 %v5798, %v5802
    %v5813 = vld [vmem:[#allocation13] sm:$0x3]
    %v5815 = vperm.slane %v5813, 0
    %v5816 = vperm.slane %v5813, 1
    %v5819 = vadd.f32 %v5805, %v5815
    %v5820 = vadd.f32 %v5806, %v5816
    %v5821 = vadd.f32 %v5807, %v5815
    %v5822 = vadd.f32 %v5808, %v5816
    %v5823 = vadd.f32 %v5809, %v5815
    %v5824 = vadd.f32 %v5810, %v5816
    %v5825 = vadd.f32 %v5811, %v5815
    %v5826 = vadd.f32 %v5812, %v5816
    %v5827 = vpack.c.bf16 %v5820, %v5819
    %v5828 = vpack.c.bf16 %v5822, %v5821
    %v5829 = vpack.c.bf16 %v5824, %v5823
    %v5830 = vpack.c.bf16 %v5826, %v5825
    %v5831 = vunpack.c.l.bf16 %v5827
    %v5832 = vunpack.c.l.bf16 %v5828
    %v5833 = vunpack.c.l.bf16 %v5829
    %v5834 = vunpack.c.l.bf16 %v5830
    %5839 = vrot.lane.b32.xlu0 %v5831, 64
    %v5840 = vpop.permute.xlu0 %5839
    %5841 = vrot.lane.b32.xlu0 %v5832, 64
    %v5842 = vpop.permute.xlu0 %5841
    %5843 = vrot.lane.b32.xlu0 %v5833, 64
    %v5844 = vpop.permute.xlu0 %5843
    %5845 = vrot.lane.b32.xlu0 %v5834, 64
    %v5846 = vpop.permute.xlu0 %5845
    %v5851 = vmax.f32 %v5831, %v5840
    %v5852 = vmax.f32 %v5832, %v5842
    %v5853 = vmax.f32 %v5833, %v5844
    %v5854 = vmax.f32 %v5834, %v5846
    %v5855 = vpack.c.bf16 %v5851, %v5851
    %v5856 = vpack.c.bf16 %v5852, %v5852
    %v5857 = vpack.c.bf16 %v5853, %v5853
    %v5858 = vpack.c.bf16 %v5854, %v5854
    %v5859 = vunpack.c.l.bf16 %v5855
    %v5860 = vunpack.c.l.bf16 %v5856
    %v5861 = vunpack.c.l.bf16 %v5857
    %v5862 = vunpack.c.l.bf16 %v5858
    %5867 = vrot.lane.b32.xlu0 %v5859, 96
    %v5868 = vpop.permute.xlu0 %5867
    %5869 = vrot.lane.b32.xlu0 %v5860, 96
    %v5870 = vpop.permute.xlu0 %5869
    %5871 = vrot.lane.b32.xlu0 %v5861, 96
    %v5872 = vpop.permute.xlu0 %5871
    %5873 = vrot.lane.b32.xlu0 %v5862, 96
    %v5874 = vpop.permute.xlu0 %5873
    %v5879 = vmax.f32 %v5859, %v5868
    %v5880 = vmax.f32 %v5860, %v5870
    %v5881 = vmax.f32 %v5861, %v5872
    %v5882 = vmax.f32 %v5862, %v5874
    %v5883 = vpack.c.bf16 %v5879, %v5879
    %v5884 = vpack.c.bf16 %v5880, %v5880
    %v5885 = vpack.c.bf16 %v5881, %v5881
    %v5886 = vpack.c.bf16 %v5882, %v5882
    %v5887 = vunpack.c.l.bf16 %v5883
    %v5888 = vunpack.c.l.bf16 %v5884
    %v5889 = vunpack.c.l.bf16 %v5885
    %v5890 = vunpack.c.l.bf16 %v5886
    %v5891 = vmax.f32 %v5887, %v5889
    %v5892 = vmax.f32 %v5888, %v5890
    %v5893 = vpack.c.bf16 %v5891, %v5891
    %v5894 = vpack.c.bf16 %v5892, %v5892
    %v5899 = vrot.slane %v5827, 4
    %v5900 = vrot.slane %v5828, 4
    %v5901 = vrot.slane %v5829, 4
    %v5902 = vrot.slane %v5830, 4
    %v5907 = vunpack.c.l.bf16 %v5899
    %v5908 = vunpack.c.l.bf16 %v5900
    %v5909 = vunpack.c.l.bf16 %v5901
    %v5910 = vunpack.c.l.bf16 %v5902
    %5911 = vrot.lane.b32.xlu0 %v5827, 96
    %v5912 = vpop.permute.xlu0 %5911
    %5913 = vrot.lane.b32.xlu0 %v5828, 96
    %v5914 = vpop.permute.xlu0 %5913
    %5915 = vrot.lane.b32.xlu0 %v5829, 96
    %v5916 = vpop.permute.xlu0 %5915
    %5917 = vrot.lane.b32.xlu0 %v5830, 96
    %v5918 = vpop.permute.xlu0 %5917
    %v5919 = vrot.slane %v5912, 4
    %v5920 = vrot.slane %v5914, 4
    %v5921 = vrot.slane %v5916, 4
    %v5922 = vrot.slane %v5918, 4
    %v5927 = vunpack.c.l.bf16 %v5919
    %v5928 = vunpack.c.l.bf16 %v5920
    %v5929 = vunpack.c.l.bf16 %v5921
    %v5930 = vunpack.c.l.bf16 %v5922
    %v5931 = vmax.f32 %v5907, %v5927
    %v5932 = vmax.f32 %v5908, %v5928
    %v5933 = vmax.f32 %v5909, %v5929
    %v5934 = vmax.f32 %v5910, %v5930
    %v5935 = vpack.c.bf16 %v5931, %v5931
    %v5936 = vpack.c.bf16 %v5932, %v5932
    %v5937 = vpack.c.bf16 %v5933, %v5933
    %v5938 = vpack.c.bf16 %v5934, %v5934
    %v5939 = vunpack.c.l.bf16 %v5935
    %v5940 = vunpack.c.l.bf16 %v5936
    %v5941 = vunpack.c.l.bf16 %v5937
    %v5942 = vunpack.c.l.bf16 %v5938
    %v5943 = vmax.f32 %v5939, %v5941
    %v5944 = vmax.f32 %v5940, %v5942
    %v5945 = vpack.c.bf16 %v5943, %v5943
    %v5946 = vpack.c.bf16 %v5944, %v5944
    %5947 = vrot.lane.b32.xlu0 %v5827, 64
    %v5948 = vpop.permute.xlu0 %5947
    %5949 = vrot.lane.b32.xlu0 %v5828, 64
    %v5950 = vpop.permute.xlu0 %5949
    %v5951 = vrot.slane %v5948, 4
    %v5952 = vrot.slane %v5950, 4
    %v5955 = vunpack.c.l.bf16 %v5951
    %v5956 = vunpack.c.l.bf16 %v5952
    %5957 = vrot.lane.b32.xlu0 %v5829, 64
    %v5958 = vpop.permute.xlu0 %5957
    %5959 = vrot.lane.b32.xlu0 %v5830, 64
    %v5960 = vpop.permute.xlu0 %5959
    %v5961 = vrot.slane %v5958, 4
    %v5962 = vrot.slane %v5960, 4
    %v5965 = vunpack.c.l.bf16 %v5961
    %v5966 = vunpack.c.l.bf16 %v5962
    %v5967 = vmax.f32 %v5955, %v5965
    %v5968 = vmax.f32 %v5956, %v5966
    %v5969 = vpack.c.bf16 %v5967, %v5967
    %v5970 = vpack.c.bf16 %v5968, %v5968
    %v5972 = vunpack.c.l.b16 %v2871
    %v5973 = vpack.c.b16 %v5972, %v5972
    %5974 = vrot.lane.b32.xlu0 %v5973, 32
    %v5975 = vpop.permute.xlu0 %5974
    %v5977 = vunpack.c.l.b16 %v4124
    %v5978 = vpack.c.b16 %v5977, %v5977
    %5979 = vrot.lane.b32.xlu0 %v5978, 64
    %v5980 = vpop.permute.xlu0 %5979
    %v5982 = vunpack.c.l.b16 %v4125
    %v5983 = vpack.c.b16 %v5982, %v5982
    %5984 = vrot.lane.b32.xlu0 %v5983, 96
    %v5985 = vpop.permute.xlu0 %5984
    %v5987 = vunpack.c.l.b16 %v4823
    %v5988 = vpack.c.b16 %v5987, %v5987
    %5989 = vrot.lane.b32.xlu0 %v5988, 32
    %v5990 = vpop.permute.xlu0 %5989
    %v5992 = vunpack.c.l.b16 %v5242
    %v5993 = vpack.c.b16 %v5992, %v5992
    %5994 = vrot.lane.b32.xlu0 %v5993, 64
    %v5995 = vpop.permute.xlu0 %5994
    %v5997 = vunpack.c.l.b16 %v5243
    %v5998 = vpack.c.b16 %v5997, %v5997
    %5999 = vrot.lane.b32.xlu0 %v5998, 96
    %v6000 = vpop.permute.xlu0 %5999
    %v6002 = vunpack.c.l.b16 %v5516
    %v6003 = vpack.c.b16 %v6002, %v6002
    %6004 = vrot.lane.b32.xlu0 %v6003, 32
    %v6005 = vpop.permute.xlu0 %6004
    %v6007 = vunpack.c.l.b16 %v5893
    %v6008 = vpack.c.b16 %v6007, %v6007
    %6009 = vrot.lane.b32.xlu0 %v6008, 64
    %v6010 = vpop.permute.xlu0 %6009
    %v6012 = vunpack.c.l.b16 %v5894
    %v6013 = vpack.c.b16 %v6012, %v6012
    %6014 = vrot.lane.b32.xlu0 %v6013, 96
    %v6015 = vpop.permute.xlu0 %6014
    %v6017 = vunpack.c.l.b16 %v5946
    %v6018 = vpack.c.b16 %v6017, %v6017
    %6019 = vrot.lane.b32.xlu0 %v6018, 32
    %v6020 = vpop.permute.xlu0 %6019
    %v6022 = vunpack.c.l.b16 %v5969
    %v6023 = vpack.c.b16 %v6022, %v6022
    %6024 = vrot.lane.b32.xlu0 %v6023, 64
    %v6025 = vpop.permute.xlu0 %6024
    %v6027 = vunpack.c.l.b16 %v5970
    %v6028 = vpack.c.b16 %v6027, %v6027
    %6029 = vrot.lane.b32.xlu0 %v6028, 96
    %v6030 = vpop.permute.xlu0 %6029
    %vm6031 = vcmask 261120
    %v6034 = vsel %vm6031, %v2870, %v5975
    %vm6035 = vcmask 523264
    %v6037 = vsel %vm6035, %v6034, %v5980
    %vm6038 = vcmask 785408
    %v6040 = vsel %vm6038, %v6037, %v5985
    %v6044 = vsel %vm6031, %v4822, %v5990
    %v6046 = vsel %vm6035, %v6044, %v5995
    %v6048 = vsel %vm6038, %v6046, %v6000
    %v6052 = vsel %vm6031, %v5515, %v6005
    %v6054 = vsel %vm6035, %v6052, %v6010
    %v6056 = vsel %vm6038, %v6054, %v6015
    %v6060 = vsel %vm6031, %v5945, %v6020
    %v6062 = vsel %vm6035, %v6060, %v6025
    %v6064 = vsel %vm6038, %v6062, %v6030
    %v6066 = vld [vmem:[#allocation15] sm:$0xff]
    %v6067 = vld [vmem:[#allocation15 + $0x8] sm:$0xff]
    %v6068 = vld [vmem:[#allocation15 + $0x10] sm:$0xff]
    %v6069 = vld [vmem:[#allocation15 + $0x18] sm:$0xff]
    %v6070 = vld [vmem:[#allocation15 + $0x20] sm:$0xff]
    %v6071 = vld [vmem:[#allocation15 + $0x28] sm:$0xff]
    %v6072 = vld [vmem:[#allocation15 + $0x30] sm:$0xff]
    %v6073 = vld [vmem:[#allocation15 + $0x38] sm:$0xff]
    %v6074 = vld [vmem:[#allocation15 + $0x40] sm:$0xff]
    %v6075 = vld [vmem:[#allocation15 + $0x48] sm:$0xff]
    %v6076 = vld [vmem:[#allocation15 + $0x50] sm:$0xff]
    %v6077 = vld [vmem:[#allocation15 + $0x58] sm:$0xff]
    %v6078 = vld [vmem:[#allocation15 + $0x60] sm:$0xff]
    %v6079 = vld [vmem:[#allocation15 + $0x68] sm:$0xff]
    %v6080 = vld [vmem:[#allocation15 + $0x70] sm:$0xff]
    %v6081 = vld [vmem:[#allocation15 + $0x78] sm:$0xff]
    %v6082 = vld [vmem:[#allocation15 + $0x80] sm:$0xff]
    %v6083 = vld [vmem:[#allocation15 + $0x88] sm:$0xff]
    %v6084 = vld [vmem:[#allocation15 + $0x90] sm:$0xff]
    %v6085 = vld [vmem:[#allocation15 + $0x98] sm:$0xff]
    %v6086 = vld [vmem:[#allocation15 + $0xa0] sm:$0xff]
    %v6087 = vld [vmem:[#allocation15 + $0xa8] sm:$0xff]
    %v6088 = vld [vmem:[#allocation15 + $0xb0] sm:$0xff]
    %v6089 = vld [vmem:[#allocation15 + $0xb8] sm:$0xff]
    %v6090 = vld [vmem:[#allocation15 + $0xc0] sm:$0xff]
    %v6091 = vld [vmem:[#allocation15 + $0xc8] sm:$0xff]
    %v6092 = vld [vmem:[#allocation15 + $0xd0] sm:$0xff]
    %v6093 = vld [vmem:[#allocation15 + $0xd8] sm:$0xff]
    %v6094 = vld [vmem:[#allocation15 + $0xe0] sm:$0xff]
    %v6095 = vld [vmem:[#allocation15 + $0xe8] sm:$0xff]
    %v6096 = vld [vmem:[#allocation15 + $0xf0] sm:$0xff]
    %v6097 = vld [vmem:[#allocation15 + $0xf8] sm:$0xff]
    %v6098 = vld [vmem:[#allocation15 + $0x100] sm:$0xff]
    %v6099 = vld [vmem:[#allocation15 + $0x108] sm:$0xff]
    %v6100 = vld [vmem:[#allocation15 + $0x110] sm:$0xff]
    %v6101 = vld [vmem:[#allocation15 + $0x118] sm:$0xff]
    %v6102 = vld [vmem:[#allocation15 + $0x120] sm:$0xff]
    %v6103 = vld [vmem:[#allocation15 + $0x128] sm:$0xff]
    %v6104 = vld [vmem:[#allocation15 + $0x130] sm:$0xff]
    %v6105 = vld [vmem:[#allocation15 + $0x138] sm:$0xff]
    %v6106 = vld [vmem:[#allocation15 + $0x140] sm:$0xff]
    %v6107 = vld [vmem:[#allocation15 + $0x148] sm:$0xff]
    %v6108 = vld [vmem:[#allocation15 + $0x150] sm:$0xff]
    %v6109 = vld [vmem:[#allocation15 + $0x158] sm:$0xff]
    %v6110 = vld [vmem:[#allocation15 + $0x160] sm:$0xff]
    %v6111 = vld [vmem:[#allocation15 + $0x168] sm:$0xff]
    %v6112 = vld [vmem:[#allocation15 + $0x170] sm:$0xff]
    %v6113 = vld [vmem:[#allocation15 + $0x178] sm:$0xff]
    %v6114 = vld [vmem:[#allocation15 + $0x180] sm:$0xff]
    %v6115 = vld [vmem:[#allocation15 + $0x188] sm:$0xff]
    %v6116 = vld [vmem:[#allocation15 + $0x190] sm:$0xff]
    %v6117 = vld [vmem:[#allocation15 + $0x198] sm:$0xff]
    %v6118 = vld [vmem:[#allocation15 + $0x1a0] sm:$0xff]
    %v6119 = vld [vmem:[#allocation15 + $0x1a8] sm:$0xff]
    %v6120 = vld [vmem:[#allocation15 + $0x1b0] sm:$0xff]
    %v6121 = vld [vmem:[#allocation15 + $0x1b8] sm:$0xff]
    %v6122 = vld [vmem:[#allocation15 + $0x1c0] sm:$0xff]
    %v6123 = vld [vmem:[#allocation15 + $0x1c8] sm:$0xff]
    %v6124 = vld [vmem:[#allocation15 + $0x1d0] sm:$0xff]
    %v6125 = vld [vmem:[#allocation15 + $0x1d8] sm:$0xff]
    %v6126 = vld [vmem:[#allocation15 + $0x1e0] sm:$0xff]
    %v6127 = vld [vmem:[#allocation15 + $0x1e8] sm:$0xff]
    %v6128 = vld [vmem:[#allocation15 + $0x1f0] sm:$0xff]
    %v6129 = vld [vmem:[#allocation15 + $0x1f8] sm:$0xff]
    %v6130 = vld [vmem:[#allocation15 + $0x200] sm:$0xff]
    %v6131 = vld [vmem:[#allocation15 + $0x208] sm:$0xff]
    %v6132 = vld [vmem:[#allocation15 + $0x210] sm:$0xff]
    %v6133 = vld [vmem:[#allocation15 + $0x218] sm:$0xff]
    %v6134 = vld [vmem:[#allocation15 + $0x220] sm:$0xff]
    %v6135 = vld [vmem:[#allocation15 + $0x228] sm:$0xff]
    %v6136 = vld [vmem:[#allocation15 + $0x230] sm:$0xff]
    %v6137 = vld [vmem:[#allocation15 + $0x238] sm:$0xff]
    %v6138 = vld [vmem:[#allocation15 + $0x240] sm:$0xff]
    %v6139 = vld [vmem:[#allocation15 + $0x248] sm:$0xff]
    %v6140 = vld [vmem:[#allocation15 + $0x250] sm:$0xff]
    %v6141 = vld [vmem:[#allocation15 + $0x258] sm:$0xff]
    %v6142 = vld [vmem:[#allocation15 + $0x260] sm:$0xff]
    %v6143 = vld [vmem:[#allocation15 + $0x268] sm:$0xff]
    %v6144 = vld [vmem:[#allocation15 + $0x270] sm:$0xff]
    %v6145 = vld [vmem:[#allocation15 + $0x278] sm:$0xff]
    %v6146 = vld [vmem:[#allocation15 + $0x280] sm:$0xff]
    %v6147 = vld [vmem:[#allocation15 + $0x288] sm:$0xff]
    %v6148 = vld [vmem:[#allocation15 + $0x290] sm:$0xff]
    %v6149 = vld [vmem:[#allocation15 + $0x298] sm:$0xff]
    %v6150 = vld [vmem:[#allocation15 + $0x2a0] sm:$0xff]
    %v6151 = vld [vmem:[#allocation15 + $0x2a8] sm:$0xff]
    %v6152 = vld [vmem:[#allocation15 + $0x2b0] sm:$0xff]
    %v6153 = vld [vmem:[#allocation15 + $0x2b8] sm:$0xff]
    %v6154 = vld [vmem:[#allocation15 + $0x2c0] sm:$0xff]
    %v6155 = vld [vmem:[#allocation15 + $0x2c8] sm:$0xff]
    %v6156 = vld [vmem:[#allocation15 + $0x2d0] sm:$0xff]
    %v6157 = vld [vmem:[#allocation15 + $0x2d8] sm:$0xff]
    %v6158 = vld [vmem:[#allocation15 + $0x2e0] sm:$0xff]
    %v6159 = vld [vmem:[#allocation15 + $0x2e8] sm:$0xff]
    %v6160 = vld [vmem:[#allocation15 + $0x2f0] sm:$0xff]
    %v6161 = vld [vmem:[#allocation15 + $0x2f8] sm:$0xff]
    %v6162 = vld [vmem:[#allocation15 + $0x300] sm:$0xff]
    %v6163 = vld [vmem:[#allocation15 + $0x308] sm:$0xff]
    %v6164 = vld [vmem:[#allocation15 + $0x310] sm:$0xff]
    %v6165 = vld [vmem:[#allocation15 + $0x318] sm:$0xff]
    %v6166 = vld [vmem:[#allocation15 + $0x320] sm:$0xff]
    %v6167 = vld [vmem:[#allocation15 + $0x328] sm:$0xff]
    %v6168 = vld [vmem:[#allocation15 + $0x330] sm:$0xff]
    %v6169 = vld [vmem:[#allocation15 + $0x338] sm:$0xff]
    %v6170 = vld [vmem:[#allocation15 + $0x340] sm:$0xff]
    %v6171 = vld [vmem:[#allocation15 + $0x348] sm:$0xff]
    %v6172 = vld [vmem:[#allocation15 + $0x350] sm:$0xff]
    %v6173 = vld [vmem:[#allocation15 + $0x358] sm:$0xff]
    %v6174 = vld [vmem:[#allocation15 + $0x360] sm:$0xff]
    %v6175 = vld [vmem:[#allocation15 + $0x368] sm:$0xff]
    %v6176 = vld [vmem:[#allocation15 + $0x370] sm:$0xff]
    %v6177 = vld [vmem:[#allocation15 + $0x378] sm:$0xff]
    %v6178 = vld [vmem:[#allocation15 + $0x380] sm:$0xff]
    %v6179 = vld [vmem:[#allocation15 + $0x388] sm:$0xff]
    %v6180 = vld [vmem:[#allocation15 + $0x390] sm:$0xff]
    %v6181 = vld [vmem:[#allocation15 + $0x398] sm:$0xff]
    %v6182 = vld [vmem:[#allocation15 + $0x3a0] sm:$0xff]
    %v6183 = vld [vmem:[#allocation15 + $0x3a8] sm:$0xff]
    %v6184 = vld [vmem:[#allocation15 + $0x3b0] sm:$0xff]
    %v6185 = vld [vmem:[#allocation15 + $0x3b8] sm:$0xff]
    %v6186 = vld [vmem:[#allocation15 + $0x3c0] sm:$0xff]
    %v6187 = vld [vmem:[#allocation15 + $0x3c8] sm:$0xff]
    %v6188 = vld [vmem:[#allocation15 + $0x3d0] sm:$0xff]
    %v6189 = vld [vmem:[#allocation15 + $0x3d8] sm:$0xff]
    %v6190 = vld [vmem:[#allocation15 + $0x3e0] sm:$0xff]
    %v6191 = vld [vmem:[#allocation15 + $0x3e8] sm:$0xff]
    %v6192 = vld [vmem:[#allocation15 + $0x3f0] sm:$0xff]
    %v6193 = vld [vmem:[#allocation15 + $0x3f8] sm:$0xff]
    %v6194 = vld [vmem:[#allocation15 + $0x400] sm:$0xff]
    %v6195 = vld [vmem:[#allocation15 + $0x408] sm:$0xff]
    %v6196 = vld [vmem:[#allocation15 + $0x410] sm:$0xff]
    %v6197 = vld [vmem:[#allocation15 + $0x418] sm:$0xff]
    %v6198 = vld [vmem:[#allocation15 + $0x420] sm:$0xff]
    %v6199 = vld [vmem:[#allocation15 + $0x428] sm:$0xff]
    %v6200 = vld [vmem:[#allocation15 + $0x430] sm:$0xff]
    %v6201 = vld [vmem:[#allocation15 + $0x438] sm:$0xff]
    %v6202 = vld [vmem:[#allocation15 + $0x440] sm:$0xff]
    %v6203 = vld [vmem:[#allocation15 + $0x448] sm:$0xff]
    %v6204 = vld [vmem:[#allocation15 + $0x450] sm:$0xff]
    %v6205 = vld [vmem:[#allocation15 + $0x458] sm:$0xff]
    %v6206 = vld [vmem:[#allocation15 + $0x460] sm:$0xff]
    %v6207 = vld [vmem:[#allocation15 + $0x468] sm:$0xff]
    %v6208 = vld [vmem:[#allocation15 + $0x470] sm:$0xff]
    %v6209 = vld [vmem:[#allocation15 + $0x478] sm:$0xff]
    %v6210 = vld [vmem:[#allocation15 + $0x480] sm:$0xff]
    %v6211 = vld [vmem:[#allocation15 + $0x488] sm:$0xff]
    %v6212 = vld [vmem:[#allocation15 + $0x490] sm:$0xff]
    %v6213 = vld [vmem:[#allocation15 + $0x498] sm:$0xff]
    %v6214 = vld [vmem:[#allocation15 + $0x4a0] sm:$0xff]
    %v6215 = vld [vmem:[#allocation15 + $0x4a8] sm:$0xff]
    %v6216 = vld [vmem:[#allocation15 + $0x4b0] sm:$0xff]
    %v6217 = vld [vmem:[#allocation15 + $0x4b8] sm:$0xff]
    %v6218 = vld [vmem:[#allocation15 + $0x4c0] sm:$0xff]
    %v6219 = vld [vmem:[#allocation15 + $0x4c8] sm:$0xff]
    %v6220 = vld [vmem:[#allocation15 + $0x4d0] sm:$0xff]
    %v6221 = vld [vmem:[#allocation15 + $0x4d8] sm:$0xff]
    %v6222 = vld [vmem:[#allocation15 + $0x4e0] sm:$0xff]
    %v6223 = vld [vmem:[#allocation15 + $0x4e8] sm:$0xff]
    %v6224 = vld [vmem:[#allocation15 + $0x4f0] sm:$0xff]
    %v6225 = vld [vmem:[#allocation15 + $0x4f8] sm:$0xff]
    %v6226 = vld [vmem:[#allocation15 + $0x500] sm:$0xff]
    %v6227 = vld [vmem:[#allocation15 + $0x508] sm:$0xff]
    %v6228 = vld [vmem:[#allocation15 + $0x510] sm:$0xff]
    %v6229 = vld [vmem:[#allocation15 + $0x518] sm:$0xff]
    %v6230 = vld [vmem:[#allocation15 + $0x520] sm:$0xff]
    %v6231 = vld [vmem:[#allocation15 + $0x528] sm:$0xff]
    %v6232 = vld [vmem:[#allocation15 + $0x530] sm:$0xff]
    %v6233 = vld [vmem:[#allocation15 + $0x538] sm:$0xff]
    %v6234 = vld [vmem:[#allocation15 + $0x540] sm:$0xff]
    %v6235 = vld [vmem:[#allocation15 + $0x548] sm:$0xff]
    %v6236 = vld [vmem:[#allocation15 + $0x550] sm:$0xff]
    %v6237 = vld [vmem:[#allocation15 + $0x558] sm:$0xff]
    %v6238 = vld [vmem:[#allocation15 + $0x560] sm:$0xff]
    %v6239 = vld [vmem:[#allocation15 + $0x568] sm:$0xff]
    %v6240 = vld [vmem:[#allocation15 + $0x570] sm:$0xff]
    %v6241 = vld [vmem:[#allocation15 + $0x578] sm:$0xff]
    %v6242 = vld [vmem:[#allocation15 + $0x580] sm:$0xff]
    %v6243 = vld [vmem:[#allocation15 + $0x588] sm:$0xff]
    %v6244 = vld [vmem:[#allocation15 + $0x590] sm:$0xff]
    %v6245 = vld [vmem:[#allocation15 + $0x598] sm:$0xff]
    %v6246 = vld [vmem:[#allocation15 + $0x5a0] sm:$0xff]
    %v6247 = vld [vmem:[#allocation15 + $0x5a8] sm:$0xff]
    %v6248 = vld [vmem:[#allocation15 + $0x5b0] sm:$0xff]
    %v6249 = vld [vmem:[#allocation15 + $0x5b8] sm:$0xff]
    %v6250 = vld [vmem:[#allocation15 + $0x5c0] sm:$0xff]
    %v6251 = vld [vmem:[#allocation15 + $0x5c8] sm:$0xff]
    %v6252 = vld [vmem:[#allocation15 + $0x5d0] sm:$0xff]
    %v6253 = vld [vmem:[#allocation15 + $0x5d8] sm:$0xff]
    %v6254 = vld [vmem:[#allocation15 + $0x5e0] sm:$0xff]
    %v6255 = vld [vmem:[#allocation15 + $0x5e8] sm:$0xff]
    %v6256 = vld [vmem:[#allocation15 + $0x5f0] sm:$0xff]
    %v6257 = vld [vmem:[#allocation15 + $0x5f8] sm:$0xff]
    %v6258 = vld [vmem:[#allocation15 + $0x600] sm:$0xff]
    %v6259 = vld [vmem:[#allocation15 + $0x608] sm:$0xff]
    %v6260 = vld [vmem:[#allocation15 + $0x610] sm:$0xff]
    %v6261 = vld [vmem:[#allocation15 + $0x618] sm:$0xff]
    %v6262 = vld [vmem:[#allocation15 + $0x620] sm:$0xff]
    %v6263 = vld [vmem:[#allocation15 + $0x628] sm:$0xff]
    %v6264 = vld [vmem:[#allocation15 + $0x630] sm:$0xff]
    %v6265 = vld [vmem:[#allocation15 + $0x638] sm:$0xff]
    %v6266 = vld [vmem:[#allocation15 + $0x640] sm:$0xff]
    %v6267 = vld [vmem:[#allocation15 + $0x648] sm:$0xff]
    %v6268 = vld [vmem:[#allocation15 + $0x650] sm:$0xff]
    %v6269 = vld [vmem:[#allocation15 + $0x658] sm:$0xff]
    %v6270 = vld [vmem:[#allocation15 + $0x660] sm:$0xff]
    %v6271 = vld [vmem:[#allocation15 + $0x668] sm:$0xff]
    %v6272 = vld [vmem:[#allocation15 + $0x670] sm:$0xff]
    %v6273 = vld [vmem:[#allocation15 + $0x678] sm:$0xff]
    %v6274 = vld [vmem:[#allocation15 + $0x680] sm:$0xff]
    %v6275 = vld [vmem:[#allocation15 + $0x688] sm:$0xff]
    %v6276 = vld [vmem:[#allocation15 + $0x690] sm:$0xff]
    %v6277 = vld [vmem:[#allocation15 + $0x698] sm:$0xff]
    %v6278 = vld [vmem:[#allocation15 + $0x6a0] sm:$0xff]
    %v6279 = vld [vmem:[#allocation15 + $0x6a8] sm:$0xff]
    %v6280 = vld [vmem:[#allocation15 + $0x6b0] sm:$0xff]
    %v6281 = vld [vmem:[#allocation15 + $0x6b8] sm:$0xff]
    %v6282 = vld [vmem:[#allocation15 + $0x6c0] sm:$0xff]
    %v6283 = vld [vmem:[#allocation15 + $0x6c8] sm:$0xff]
    %v6284 = vld [vmem:[#allocation15 + $0x6d0] sm:$0xff]
    %v6285 = vld [vmem:[#allocation15 + $0x6d8] sm:$0xff]
    %v6286 = vld [vmem:[#allocation15 + $0x6e0] sm:$0xff]
    %v6287 = vld [vmem:[#allocation15 + $0x6e8] sm:$0xff]
    %v6288 = vld [vmem:[#allocation15 + $0x6f0] sm:$0xff]
    %v6289 = vld [vmem:[#allocation15 + $0x6f8] sm:$0xff]
    %v6290 = vld [vmem:[#allocation15 + $0x700] sm:$0xff]
    %v6291 = vld [vmem:[#allocation15 + $0x708] sm:$0xff]
    %v6292 = vld [vmem:[#allocation15 + $0x710] sm:$0xff]
    %v6293 = vld [vmem:[#allocation15 + $0x718] sm:$0xff]
    %v6294 = vld [vmem:[#allocation15 + $0x720] sm:$0xff]
    %v6295 = vld [vmem:[#allocation15 + $0x728] sm:$0xff]
    %v6296 = vld [vmem:[#allocation15 + $0x730] sm:$0xff]
    %v6297 = vld [vmem:[#allocation15 + $0x738] sm:$0xff]
    %v6298 = vld [vmem:[#allocation15 + $0x740] sm:$0xff]
    %v6299 = vld [vmem:[#allocation15 + $0x748] sm:$0xff]
    %v6300 = vld [vmem:[#allocation15 + $0x750] sm:$0xff]
    %v6301 = vld [vmem:[#allocation15 + $0x758] sm:$0xff]
    %v6302 = vld [vmem:[#allocation15 + $0x760] sm:$0xff]
    %v6303 = vld [vmem:[#allocation15 + $0x768] sm:$0xff]
    %v6304 = vld [vmem:[#allocation15 + $0x770] sm:$0xff]
    %v6305 = vld [vmem:[#allocation15 + $0x778] sm:$0xff]
    %v6306 = vld [vmem:[#allocation15 + $0x780] sm:$0xff]
    %v6307 = vld [vmem:[#allocation15 + $0x788] sm:$0xff]
    %v6308 = vld [vmem:[#allocation15 + $0x790] sm:$0xff]
    %v6309 = vld [vmem:[#allocation15 + $0x798] sm:$0xff]
    %v6310 = vld [vmem:[#allocation15 + $0x7a0] sm:$0xff]
    %v6311 = vld [vmem:[#allocation15 + $0x7a8] sm:$0xff]
    %v6312 = vld [vmem:[#allocation15 + $0x7b0] sm:$0xff]
    %v6313 = vld [vmem:[#allocation15 + $0x7b8] sm:$0xff]
    %v6314 = vld [vmem:[#allocation15 + $0x7c0] sm:$0xff]
    %v6315 = vld [vmem:[#allocation15 + $0x7c8] sm:$0xff]
    %v6316 = vld [vmem:[#allocation15 + $0x7d0] sm:$0xff]
    %v6317 = vld [vmem:[#allocation15 + $0x7d8] sm:$0xff]
    %v6318 = vld [vmem:[#allocation15 + $0x7e0] sm:$0xff]
    %v6319 = vld [vmem:[#allocation15 + $0x7e8] sm:$0xff]
    %v6320 = vld [vmem:[#allocation15 + $0x7f0] sm:$0xff]
    %v6321 = vld [vmem:[#allocation15 + $0x7f8] sm:$0xff]
    %v6322 = vld [vmem:[#allocation15 + $0x800] sm:$0xff]
    %v6323 = vld [vmem:[#allocation15 + $0x808] sm:$0xff]
    %v6324 = vld [vmem:[#allocation15 + $0x810] sm:$0xff]
    %v6325 = vld [vmem:[#allocation15 + $0x818] sm:$0xff]
    %v6326 = vld [vmem:[#allocation15 + $0x820] sm:$0xff]
    %v6327 = vld [vmem:[#allocation15 + $0x828] sm:$0xff]
    %v6328 = vld [vmem:[#allocation15 + $0x830] sm:$0xff]
    %v6329 = vld [vmem:[#allocation15 + $0x838] sm:$0xff]
    %v6330 = vld [vmem:[#allocation15 + $0x840] sm:$0xff]
    %v6331 = vld [vmem:[#allocation15 + $0x848] sm:$0xff]
    %v6332 = vld [vmem:[#allocation15 + $0x850] sm:$0xff]
    %v6333 = vld [vmem:[#allocation15 + $0x858] sm:$0xff]
    %v6334 = vld [vmem:[#allocation15 + $0x860] sm:$0xff]
    %v6335 = vld [vmem:[#allocation15 + $0x868] sm:$0xff]
    %v6336 = vld [vmem:[#allocation15 + $0x870] sm:$0xff]
    %v6337 = vld [vmem:[#allocation15 + $0x878] sm:$0xff]
    %v6338 = vld [vmem:[#allocation15 + $0x880] sm:$0xff]
    %v6339 = vld [vmem:[#allocation15 + $0x888] sm:$0xff]
    %v6340 = vld [vmem:[#allocation15 + $0x890] sm:$0xff]
    %v6341 = vld [vmem:[#allocation15 + $0x898] sm:$0xff]
    %v6342 = vld [vmem:[#allocation15 + $0x8a0] sm:$0xff]
    %v6343 = vld [vmem:[#allocation15 + $0x8a8] sm:$0xff]
    %v6344 = vld [vmem:[#allocation15 + $0x8b0] sm:$0xff]
    %v6345 = vld [vmem:[#allocation15 + $0x8b8] sm:$0xff]
    %v6346 = vld [vmem:[#allocation15 + $0x8c0] sm:$0xff]
    %v6347 = vld [vmem:[#allocation15 + $0x8c8] sm:$0xff]
    %v6348 = vld [vmem:[#allocation15 + $0x8d0] sm:$0xff]
    %v6349 = vld [vmem:[#allocation15 + $0x8d8] sm:$0xff]
    %v6350 = vld [vmem:[#allocation15 + $0x8e0] sm:$0xff]
    %v6351 = vld [vmem:[#allocation15 + $0x8e8] sm:$0xff]
    %v6352 = vld [vmem:[#allocation15 + $0x8f0] sm:$0xff]
    %v6353 = vld [vmem:[#allocation15 + $0x8f8] sm:$0xff]
    %v6354 = vld [vmem:[#allocation15 + $0x900] sm:$0xff]
    %v6355 = vld [vmem:[#allocation15 + $0x908] sm:$0xff]
    %v6356 = vld [vmem:[#allocation15 + $0x910] sm:$0xff]
    %v6357 = vld [vmem:[#allocation15 + $0x918] sm:$0xff]
    %v6358 = vld [vmem:[#allocation15 + $0x920] sm:$0xff]
    %v6359 = vld [vmem:[#allocation15 + $0x928] sm:$0xff]
    %v6360 = vld [vmem:[#allocation15 + $0x930] sm:$0xff]
    %v6361 = vld [vmem:[#allocation15 + $0x938] sm:$0xff]
    %v6362 = vld [vmem:[#allocation15 + $0x940] sm:$0xff]
    %v6363 = vld [vmem:[#allocation15 + $0x948] sm:$0xff]
    %v6364 = vld [vmem:[#allocation15 + $0x950] sm:$0xff]
    %v6365 = vld [vmem:[#allocation15 + $0x958] sm:$0xff]
    %v6366 = vld [vmem:[#allocation15 + $0x960] sm:$0xff]
    %v6367 = vld [vmem:[#allocation15 + $0x968] sm:$0xff]
    %v6368 = vld [vmem:[#allocation15 + $0x970] sm:$0xff]
    %v6369 = vld [vmem:[#allocation15 + $0x978] sm:$0xff]
    %v6370 = vld [vmem:[#allocation15 + $0x980] sm:$0xff]
    %v6371 = vld [vmem:[#allocation15 + $0x988] sm:$0xff]
    %v6372 = vld [vmem:[#allocation15 + $0x990] sm:$0xff]
    %v6373 = vld [vmem:[#allocation15 + $0x998] sm:$0xff]
    %v6374 = vld [vmem:[#allocation15 + $0x9a0] sm:$0xff]
    %v6375 = vld [vmem:[#allocation15 + $0x9a8] sm:$0xff]
    %v6376 = vld [vmem:[#allocation15 + $0x9b0] sm:$0xff]
    %v6377 = vld [vmem:[#allocation15 + $0x9b8] sm:$0xff]
    %v6378 = vld [vmem:[#allocation15 + $0x9c0] sm:$0xff]
    %v6379 = vld [vmem:[#allocation15 + $0x9c8] sm:$0xff]
    %v6380 = vld [vmem:[#allocation15 + $0x9d0] sm:$0xff]
    %v6381 = vld [vmem:[#allocation15 + $0x9d8] sm:$0xff]
    %v6382 = vld [vmem:[#allocation15 + $0x9e0] sm:$0xff]
    %v6383 = vld [vmem:[#allocation15 + $0x9e8] sm:$0xff]
    %v6384 = vld [vmem:[#allocation15 + $0x9f0] sm:$0xff]
    %v6385 = vld [vmem:[#allocation15 + $0x9f8] sm:$0xff]
    %v6386 = vld [vmem:[#allocation15 + $0xa00] sm:$0xff]
    %v6387 = vld [vmem:[#allocation15 + $0xa08] sm:$0xff]
    %v6388 = vld [vmem:[#allocation15 + $0xa10] sm:$0xff]
    %v6389 = vld [vmem:[#allocation15 + $0xa18] sm:$0xff]
    %v6390 = vld [vmem:[#allocation15 + $0xa20] sm:$0xff]
    %v6391 = vld [vmem:[#allocation15 + $0xa28] sm:$0xff]
    %v6392 = vld [vmem:[#allocation15 + $0xa30] sm:$0xff]
    %v6393 = vld [vmem:[#allocation15 + $0xa38] sm:$0xff]
    %v6394 = vld [vmem:[#allocation15 + $0xa40] sm:$0xff]
    %v6395 = vld [vmem:[#allocation15 + $0xa48] sm:$0xff]
    %v6396 = vld [vmem:[#allocation15 + $0xa50] sm:$0xff]
    %v6397 = vld [vmem:[#allocation15 + $0xa58] sm:$0xff]
    %v6398 = vld [vmem:[#allocation15 + $0xa60] sm:$0xff]
    %v6399 = vld [vmem:[#allocation15 + $0xa68] sm:$0xff]
    %v6400 = vld [vmem:[#allocation15 + $0xa70] sm:$0xff]
    %v6401 = vld [vmem:[#allocation15 + $0xa78] sm:$0xff]
    %v6402 = vld [vmem:[#allocation15 + $0xa80] sm:$0xff]
    %v6403 = vld [vmem:[#allocation15 + $0xa88] sm:$0xff]
    %v6404 = vld [vmem:[#allocation15 + $0xa90] sm:$0xff]
    %v6405 = vld [vmem:[#allocation15 + $0xa98] sm:$0xff]
    %v6406 = vld [vmem:[#allocation15 + $0xaa0] sm:$0xff]
    %v6407 = vld [vmem:[#allocation15 + $0xaa8] sm:$0xff]
    %v6408 = vld [vmem:[#allocation15 + $0xab0] sm:$0xff]
    %v6409 = vld [vmem:[#allocation15 + $0xab8] sm:$0xff]
    %v6410 = vld [vmem:[#allocation15 + $0xac0] sm:$0xff]
    %v6411 = vld [vmem:[#allocation15 + $0xac8] sm:$0xff]
    %v6412 = vld [vmem:[#allocation15 + $0xad0] sm:$0xff]
    %v6413 = vld [vmem:[#allocation15 + $0xad8] sm:$0xff]
    %v6414 = vld [vmem:[#allocation15 + $0xae0] sm:$0xff]
    %v6415 = vld [vmem:[#allocation15 + $0xae8] sm:$0xff]
    %v6416 = vld [vmem:[#allocation15 + $0xaf0] sm:$0xff]
    %v6417 = vld [vmem:[#allocation15 + $0xaf8] sm:$0xff]
    %v6418 = vld [vmem:[#allocation15 + $0xb00] sm:$0xff]
    %v6419 = vld [vmem:[#allocation15 + $0xb08] sm:$0xff]
    %v6420 = vld [vmem:[#allocation15 + $0xb10] sm:$0xff]
    %v6421 = vld [vmem:[#allocation15 + $0xb18] sm:$0xff]
    %v6422 = vld [vmem:[#allocation15 + $0xb20] sm:$0xff]
    %v6423 = vld [vmem:[#allocation15 + $0xb28] sm:$0xff]
    %v6424 = vld [vmem:[#allocation15 + $0xb30] sm:$0xff]
    %v6425 = vld [vmem:[#allocation15 + $0xb38] sm:$0xff]
    %v6426 = vld [vmem:[#allocation15 + $0xb40] sm:$0xff]
    %v6427 = vld [vmem:[#allocation15 + $0xb48] sm:$0xff]
    %v6428 = vld [vmem:[#allocation15 + $0xb50] sm:$0xff]
    %v6429 = vld [vmem:[#allocation15 + $0xb58] sm:$0xff]
    %v6430 = vld [vmem:[#allocation15 + $0xb60] sm:$0xff]
    %v6431 = vld [vmem:[#allocation15 + $0xb68] sm:$0xff]
    %v6432 = vld [vmem:[#allocation15 + $0xb70] sm:$0xff]
    %v6433 = vld [vmem:[#allocation15 + $0xb78] sm:$0xff]
    %v6434 = vld [vmem:[#allocation15 + $0xb80] sm:$0xff]
    %v6435 = vld [vmem:[#allocation15 + $0xb88] sm:$0xff]
    %v6436 = vld [vmem:[#allocation15 + $0xb90] sm:$0xff]
    %v6437 = vld [vmem:[#allocation15 + $0xb98] sm:$0xff]
    %v6438 = vld [vmem:[#allocation15 + $0xba0] sm:$0xff]
    %v6439 = vld [vmem:[#allocation15 + $0xba8] sm:$0xff]
    %v6440 = vld [vmem:[#allocation15 + $0xbb0] sm:$0xff]
    %v6441 = vld [vmem:[#allocation15 + $0xbb8] sm:$0xff]
    %v6442 = vld [vmem:[#allocation15 + $0xbc0] sm:$0xff]
    %v6443 = vld [vmem:[#allocation15 + $0xbc8] sm:$0xff]
    %v6444 = vld [vmem:[#allocation15 + $0xbd0] sm:$0xff]
    %v6445 = vld [vmem:[#allocation15 + $0xbd8] sm:$0xff]
    %v6446 = vld [vmem:[#allocation15 + $0xbe0] sm:$0xff]
    %v6447 = vld [vmem:[#allocation15 + $0xbe8] sm:$0xff]
    %v6448 = vld [vmem:[#allocation15 + $0xbf0] sm:$0xff]
    %v6449 = vld [vmem:[#allocation15 + $0xbf8] sm:$0xff]
    %v6450 = vld [vmem:[#allocation16] sm:$0xff]
    %v6451 = vld [vmem:[#allocation16 + $0x8] sm:$0xf]
    %v6454 = vperm.slane %v6450, 0
    %v6455 = vperm.slane %v6450, 1
    %v6456 = vperm.slane %v6450, 2
    %v6457 = vperm.slane %v6450, 3
    %v6458 = vperm.slane %v6450, 4
    %v6459 = vperm.slane %v6450, 5
    %v6460 = vperm.slane %v6450, 6
    %v6461 = vperm.slane %v6450, 7
    %v6462 = vperm.slane %v6451, 0
    %v6463 = vperm.slane %v6451, 1
    %v6464 = vperm.slane %v6451, 2
    %v6465 = vperm.slane %v6451, 3
    %v6862 = vunpack.c.l.b16 %v6066
    %v6863 = vunpack.c.h.b16 %v6066
    %v6864 = vunpack.c.l.b16 %v6067
    %v6865 = vunpack.c.h.b16 %v6067
    %v6866 = vunpack.c.l.b16 %v6068
    %v6867 = vunpack.c.h.b16 %v6068
    %v6868 = vunpack.c.l.b16 %v6069
    %v6869 = vunpack.c.h.b16 %v6069
    %v6870 = vunpack.c.l.b16 %v6070
    %v6871 = vunpack.c.h.b16 %v6070
    %v6872 = vunpack.c.l.b16 %v6071
    %v6873 = vunpack.c.h.b16 %v6071
    %v6874 = vunpack.c.l.b16 %v6072
    %v6875 = vunpack.c.h.b16 %v6072
    %v6876 = vunpack.c.l.b16 %v6073
    %v6877 = vunpack.c.h.b16 %v6073
    %v6878 = vunpack.c.l.b16 %v6074
    %v6879 = vunpack.c.h.b16 %v6074
    %v6880 = vunpack.c.l.b16 %v6075
    %v6881 = vunpack.c.h.b16 %v6075
    %v6882 = vunpack.c.l.b16 %v6076
    %v6883 = vunpack.c.h.b16 %v6076
    %v6884 = vunpack.c.l.b16 %v6077
    %v6885 = vunpack.c.h.b16 %v6077
    %v6886 = vunpack.c.l.b16 %v6078
    %v6887 = vunpack.c.h.b16 %v6078
    %v6888 = vunpack.c.l.b16 %v6079
    %v6889 = vunpack.c.h.b16 %v6079
    %v6890 = vunpack.c.l.b16 %v6080
    %v6891 = vunpack.c.h.b16 %v6080
    %v6892 = vunpack.c.l.b16 %v6081
    %v6893 = vunpack.c.h.b16 %v6081
    %v6894 = vunpack.c.l.b16 %v6082
    %v6895 = vunpack.c.h.b16 %v6082
    %v6896 = vunpack.c.l.b16 %v6083
    %v6897 = vunpack.c.h.b16 %v6083
    %v6898 = vunpack.c.l.b16 %v6084
    %v6899 = vunpack.c.h.b16 %v6084
    %v6900 = vunpack.c.l.b16 %v6085
    %v6901 = vunpack.c.h.b16 %v6085
    %v6902 = vunpack.c.l.b16 %v6086
    %v6903 = vunpack.c.h.b16 %v6086
    %v6904 = vunpack.c.l.b16 %v6087
    %v6905 = vunpack.c.h.b16 %v6087
    %v6906 = vunpack.c.l.b16 %v6088
    %v6907 = vunpack.c.h.b16 %v6088
    %v6908 = vunpack.c.l.b16 %v6089
    %v6909 = vunpack.c.h.b16 %v6089
    %v6910 = vunpack.c.l.b16 %v6090
    %v6911 = vunpack.c.h.b16 %v6090
    %v6912 = vunpack.c.l.b16 %v6091
    %v6913 = vunpack.c.h.b16 %v6091
    %v6914 = vunpack.c.l.b16 %v6092
    %v6915 = vunpack.c.h.b16 %v6092
    %v6916 = vunpack.c.l.b16 %v6093
    %v6917 = vunpack.c.h.b16 %v6093
    %v6918 = vunpack.c.l.b16 %v6094
    %v6919 = vunpack.c.h.b16 %v6094
    %v6920 = vunpack.c.l.b16 %v6095
    %v6921 = vunpack.c.h.b16 %v6095
    %v6922 = vunpack.c.l.b16 %v6096
    %v6923 = vunpack.c.h.b16 %v6096
    %v6924 = vunpack.c.l.b16 %v6097
    %v6925 = vunpack.c.h.b16 %v6097
    %v6926 = vunpack.c.l.b16 %v6098
    %v6927 = vunpack.c.h.b16 %v6098
    %v6928 = vunpack.c.l.b16 %v6099
    %v6929 = vunpack.c.h.b16 %v6099
    %v6930 = vunpack.c.l.b16 %v6100
    %v6931 = vunpack.c.h.b16 %v6100
    %v6932 = vunpack.c.l.b16 %v6101
    %v6933 = vunpack.c.h.b16 %v6101
    %v6934 = vunpack.c.l.b16 %v6102
    %v6935 = vunpack.c.h.b16 %v6102
    %v6936 = vunpack.c.l.b16 %v6103
    %v6937 = vunpack.c.h.b16 %v6103
    %v6938 = vunpack.c.l.b16 %v6104
    %v6939 = vunpack.c.h.b16 %v6104
    %v6940 = vunpack.c.l.b16 %v6105
    %v6941 = vunpack.c.h.b16 %v6105
    %v6942 = vunpack.c.l.b16 %v6106
    %v6943 = vunpack.c.h.b16 %v6106
    %v6944 = vunpack.c.l.b16 %v6107
    %v6945 = vunpack.c.h.b16 %v6107
    %v6946 = vunpack.c.l.b16 %v6108
    %v6947 = vunpack.c.h.b16 %v6108
    %v6948 = vunpack.c.l.b16 %v6109
    %v6949 = vunpack.c.h.b16 %v6109
    %v6950 = vunpack.c.l.b16 %v6110
    %v6951 = vunpack.c.h.b16 %v6110
    %v6952 = vunpack.c.l.b16 %v6111
    %v6953 = vunpack.c.h.b16 %v6111
    %v6954 = vunpack.c.l.b16 %v6112
    %v6955 = vunpack.c.h.b16 %v6112
    %v6956 = vunpack.c.l.b16 %v6113
    %v6957 = vunpack.c.h.b16 %v6113
    %v6958 = vunpack.c.l.b16 %v6114
    %v6959 = vunpack.c.h.b16 %v6114
    %v6960 = vunpack.c.l.b16 %v6115
    %v6961 = vunpack.c.h.b16 %v6115
    %v6962 = vunpack.c.l.b16 %v6116
    %v6963 = vunpack.c.h.b16 %v6116
    %v6964 = vunpack.c.l.b16 %v6117
    %v6965 = vunpack.c.h.b16 %v6117
    %v6966 = vunpack.c.l.b16 %v6118
    %v6967 = vunpack.c.h.b16 %v6118
    %v6968 = vunpack.c.l.b16 %v6119
    %v6969 = vunpack.c.h.b16 %v6119
    %v6970 = vunpack.c.l.b16 %v6120
    %v6971 = vunpack.c.h.b16 %v6120
    %v6972 = vunpack.c.l.b16 %v6121
    %v6973 = vunpack.c.h.b16 %v6121
    %v6974 = vunpack.c.l.b16 %v6122
    %v6975 = vunpack.c.h.b16 %v6122
    %v6976 = vunpack.c.l.b16 %v6123
    %v6977 = vunpack.c.h.b16 %v6123
    %v6978 = vunpack.c.l.b16 %v6124
    %v6979 = vunpack.c.h.b16 %v6124
    %v6980 = vunpack.c.l.b16 %v6125
    %v6981 = vunpack.c.h.b16 %v6125
    %v6982 = vunpack.c.l.b16 %v6126
    %v6983 = vunpack.c.h.b16 %v6126
    %v6984 = vunpack.c.l.b16 %v6127
    %v6985 = vunpack.c.h.b16 %v6127
    %v6986 = vunpack.c.l.b16 %v6128
    %v6987 = vunpack.c.h.b16 %v6128
    %v6988 = vunpack.c.l.b16 %v6129
    %v6989 = vunpack.c.h.b16 %v6129
    %v6990 = vunpack.c.l.b16 %v6130
    %v6991 = vunpack.c.h.b16 %v6130
    %v6992 = vunpack.c.l.b16 %v6131
    %v6993 = vunpack.c.h.b16 %v6131
    %v6994 = vunpack.c.l.b16 %v6132
    %v6995 = vunpack.c.h.b16 %v6132
    %v6996 = vunpack.c.l.b16 %v6133
    %v6997 = vunpack.c.h.b16 %v6133
    %v6998 = vunpack.c.l.b16 %v6134
    %v6999 = vunpack.c.h.b16 %v6134
    %v7000 = vunpack.c.l.b16 %v6135
    %v7001 = vunpack.c.h.b16 %v6135
    %v7002 = vunpack.c.l.b16 %v6136
    %v7003 = vunpack.c.h.b16 %v6136
    %v7004 = vunpack.c.l.b16 %v6137
    %v7005 = vunpack.c.h.b16 %v6137
    %v7006 = vunpack.c.l.b16 %v6138
    %v7007 = vunpack.c.h.b16 %v6138
    %v7008 = vunpack.c.l.b16 %v6139
    %v7009 = vunpack.c.h.b16 %v6139
    %v7010 = vunpack.c.l.b16 %v6140
    %v7011 = vunpack.c.h.b16 %v6140
    %v7012 = vunpack.c.l.b16 %v6141
    %v7013 = vunpack.c.h.b16 %v6141
    %v7014 = vunpack.c.l.b16 %v6142
    %v7015 = vunpack.c.h.b16 %v6142
    %v7016 = vunpack.c.l.b16 %v6143
    %v7017 = vunpack.c.h.b16 %v6143
    %v7018 = vunpack.c.l.b16 %v6144
    %v7019 = vunpack.c.h.b16 %v6144
    %v7020 = vunpack.c.l.b16 %v6145
    %v7021 = vunpack.c.h.b16 %v6145
    %v7022 = vunpack.c.l.b16 %v6146
    %v7023 = vunpack.c.h.b16 %v6146
    %v7024 = vunpack.c.l.b16 %v6147
    %v7025 = vunpack.c.h.b16 %v6147
    %v7026 = vunpack.c.l.b16 %v6148
    %v7027 = vunpack.c.h.b16 %v6148
    %v7028 = vunpack.c.l.b16 %v6149
    %v7029 = vunpack.c.h.b16 %v6149
    %v7030 = vunpack.c.l.b16 %v6150
    %v7031 = vunpack.c.h.b16 %v6150
    %v7032 = vunpack.c.l.b16 %v6151
    %v7033 = vunpack.c.h.b16 %v6151
    %v7034 = vunpack.c.l.b16 %v6152
    %v7035 = vunpack.c.h.b16 %v6152
    %v7036 = vunpack.c.l.b16 %v6153
    %v7037 = vunpack.c.h.b16 %v6153
    %v7038 = vunpack.c.l.b16 %v6154
    %v7039 = vunpack.c.h.b16 %v6154
    %v7040 = vunpack.c.l.b16 %v6155
    %v7041 = vunpack.c.h.b16 %v6155
    %v7042 = vunpack.c.l.b16 %v6156
    %v7043 = vunpack.c.h.b16 %v6156
    %v7044 = vunpack.c.l.b16 %v6157
    %v7045 = vunpack.c.h.b16 %v6157
    %v7046 = vunpack.c.l.b16 %v6158
    %v7047 = vunpack.c.h.b16 %v6158
    %v7048 = vunpack.c.l.b16 %v6159
    %v7049 = vunpack.c.h.b16 %v6159
    %v7050 = vunpack.c.l.b16 %v6160
    %v7051 = vunpack.c.h.b16 %v6160
    %v7052 = vunpack.c.l.b16 %v6161
    %v7053 = vunpack.c.h.b16 %v6161
    %v7054 = vunpack.c.l.b16 %v6162
    %v7055 = vunpack.c.h.b16 %v6162
    %v7056 = vunpack.c.l.b16 %v6163
    %v7057 = vunpack.c.h.b16 %v6163
    %v7058 = vunpack.c.l.b16 %v6164
    %v7059 = vunpack.c.h.b16 %v6164
    %v7060 = vunpack.c.l.b16 %v6165
    %v7061 = vunpack.c.h.b16 %v6165
    %v7062 = vunpack.c.l.b16 %v6166
    %v7063 = vunpack.c.h.b16 %v6166
    %v7064 = vunpack.c.l.b16 %v6167
    %v7065 = vunpack.c.h.b16 %v6167
    %v7066 = vunpack.c.l.b16 %v6168
    %v7067 = vunpack.c.h.b16 %v6168
    %v7068 = vunpack.c.l.b16 %v6169
    %v7069 = vunpack.c.h.b16 %v6169
    %v7070 = vunpack.c.l.b16 %v6170
    %v7071 = vunpack.c.h.b16 %v6170
    %v7072 = vunpack.c.l.b16 %v6171
    %v7073 = vunpack.c.h.b16 %v6171
    %v7074 = vunpack.c.l.b16 %v6172
    %v7075 = vunpack.c.h.b16 %v6172
    %v7076 = vunpack.c.l.b16 %v6173
    %v7077 = vunpack.c.h.b16 %v6173
    %v7078 = vunpack.c.l.b16 %v6174
    %v7079 = vunpack.c.h.b16 %v6174
    %v7080 = vunpack.c.l.b16 %v6175
    %v7081 = vunpack.c.h.b16 %v6175
    %v7082 = vunpack.c.l.b16 %v6176
    %v7083 = vunpack.c.h.b16 %v6176
    %v7084 = vunpack.c.l.b16 %v6177
    %v7085 = vunpack.c.h.b16 %v6177
    %v7086 = vunpack.c.l.b16 %v6178
    %v7087 = vunpack.c.h.b16 %v6178
    %v7088 = vunpack.c.l.b16 %v6179
    %v7089 = vunpack.c.h.b16 %v6179
    %v7090 = vunpack.c.l.b16 %v6180
    %v7091 = vunpack.c.h.b16 %v6180
    %v7092 = vunpack.c.l.b16 %v6181
    %v7093 = vunpack.c.h.b16 %v6181
    %v7094 = vunpack.c.l.b16 %v6182
    %v7095 = vunpack.c.h.b16 %v6182
    %v7096 = vunpack.c.l.b16 %v6183
    %v7097 = vunpack.c.h.b16 %v6183
    %v7098 = vunpack.c.l.b16 %v6184
    %v7099 = vunpack.c.h.b16 %v6184
    %v7100 = vunpack.c.l.b16 %v6185
    %v7101 = vunpack.c.h.b16 %v6185
    %v7102 = vunpack.c.l.b16 %v6186
    %v7103 = vunpack.c.h.b16 %v6186
    %v7104 = vunpack.c.l.b16 %v6187
    %v7105 = vunpack.c.h.b16 %v6187
    %v7106 = vunpack.c.l.b16 %v6188
    %v7107 = vunpack.c.h.b16 %v6188
    %v7108 = vunpack.c.l.b16 %v6189
    %v7109 = vunpack.c.h.b16 %v6189
    %v7110 = vunpack.c.l.b16 %v6190
    %v7111 = vunpack.c.h.b16 %v6190
    %v7112 = vunpack.c.l.b16 %v6191
    %v7113 = vunpack.c.h.b16 %v6191
    %v7114 = vunpack.c.l.b16 %v6192
    %v7115 = vunpack.c.h.b16 %v6192
    %v7116 = vunpack.c.l.b16 %v6193
    %v7117 = vunpack.c.h.b16 %v6193
    %v7118 = vunpack.c.l.b16 %v6194
    %v7119 = vunpack.c.h.b16 %v6194
    %v7120 = vunpack.c.l.b16 %v6195
    %v7121 = vunpack.c.h.b16 %v6195
    %v7122 = vunpack.c.l.b16 %v6196
    %v7123 = vunpack.c.h.b16 %v6196
    %v7124 = vunpack.c.l.b16 %v6197
    %v7125 = vunpack.c.h.b16 %v6197
    %v7126 = vunpack.c.l.b16 %v6198
    %v7127 = vunpack.c.h.b16 %v6198
    %v7128 = vunpack.c.l.b16 %v6199
    %v7129 = vunpack.c.h.b16 %v6199
    %v7130 = vunpack.c.l.b16 %v6200
    %v7131 = vunpack.c.h.b16 %v6200
    %v7132 = vunpack.c.l.b16 %v6201
    %v7133 = vunpack.c.h.b16 %v6201
    %v7134 = vunpack.c.l.b16 %v6202
    %v7135 = vunpack.c.h.b16 %v6202
    %v7136 = vunpack.c.l.b16 %v6203
    %v7137 = vunpack.c.h.b16 %v6203
    %v7138 = vunpack.c.l.b16 %v6204
    %v7139 = vunpack.c.h.b16 %v6204
    %v7140 = vunpack.c.l.b16 %v6205
    %v7141 = vunpack.c.h.b16 %v6205
    %v7142 = vunpack.c.l.b16 %v6206
    %v7143 = vunpack.c.h.b16 %v6206
    %v7144 = vunpack.c.l.b16 %v6207
    %v7145 = vunpack.c.h.b16 %v6207
    %v7146 = vunpack.c.l.b16 %v6208
    %v7147 = vunpack.c.h.b16 %v6208
    %v7148 = vunpack.c.l.b16 %v6209
    %v7149 = vunpack.c.h.b16 %v6209
    %v7150 = vunpack.c.l.b16 %v6210
    %v7151 = vunpack.c.h.b16 %v6210
    %v7152 = vunpack.c.l.b16 %v6211
    %v7153 = vunpack.c.h.b16 %v6211
    %v7154 = vunpack.c.l.b16 %v6212
    %v7155 = vunpack.c.h.b16 %v6212
    %v7156 = vunpack.c.l.b16 %v6213
    %v7157 = vunpack.c.h.b16 %v6213
    %v7158 = vunpack.c.l.b16 %v6214
    %v7159 = vunpack.c.h.b16 %v6214
    %v7160 = vunpack.c.l.b16 %v6215
    %v7161 = vunpack.c.h.b16 %v6215
    %v7162 = vunpack.c.l.b16 %v6216
    %v7163 = vunpack.c.h.b16 %v6216
    %v7164 = vunpack.c.l.b16 %v6217
    %v7165 = vunpack.c.h.b16 %v6217
    %v7166 = vunpack.c.l.b16 %v6218
    %v7167 = vunpack.c.h.b16 %v6218
    %v7168 = vunpack.c.l.b16 %v6219
    %v7169 = vunpack.c.h.b16 %v6219
    %v7170 = vunpack.c.l.b16 %v6220
    %v7171 = vunpack.c.h.b16 %v6220
    %v7172 = vunpack.c.l.b16 %v6221
    %v7173 = vunpack.c.h.b16 %v6221
    %v7174 = vunpack.c.l.b16 %v6222
    %v7175 = vunpack.c.h.b16 %v6222
    %v7176 = vunpack.c.l.b16 %v6223
    %v7177 = vunpack.c.h.b16 %v6223
    %v7178 = vunpack.c.l.b16 %v6224
    %v7179 = vunpack.c.h.b16 %v6224
    %v7180 = vunpack.c.l.b16 %v6225
    %v7181 = vunpack.c.h.b16 %v6225
    %v7182 = vunpack.c.l.b16 %v6226
    %v7183 = vunpack.c.h.b16 %v6226
    %v7184 = vunpack.c.l.b16 %v6227
    %v7185 = vunpack.c.h.b16 %v6227
    %v7186 = vunpack.c.l.b16 %v6228
    %v7187 = vunpack.c.h.b16 %v6228
    %v7188 = vunpack.c.l.b16 %v6229
    %v7189 = vunpack.c.h.b16 %v6229
    %v7190 = vunpack.c.l.b16 %v6230
    %v7191 = vunpack.c.h.b16 %v6230
    %v7192 = vunpack.c.l.b16 %v6231
    %v7193 = vunpack.c.h.b16 %v6231
    %v7194 = vunpack.c.l.b16 %v6232
    %v7195 = vunpack.c.h.b16 %v6232
    %v7196 = vunpack.c.l.b16 %v6233
    %v7197 = vunpack.c.h.b16 %v6233
    %v7198 = vunpack.c.l.b16 %v6234
    %v7199 = vunpack.c.h.b16 %v6234
    %v7200 = vunpack.c.l.b16 %v6235
    %v7201 = vunpack.c.h.b16 %v6235
    %v7202 = vunpack.c.l.b16 %v6236
    %v7203 = vunpack.c.h.b16 %v6236
    %v7204 = vunpack.c.l.b16 %v6237
    %v7205 = vunpack.c.h.b16 %v6237
    %v7206 = vunpack.c.l.b16 %v6238
    %v7207 = vunpack.c.h.b16 %v6238
    %v7208 = vunpack.c.l.b16 %v6239
    %v7209 = vunpack.c.h.b16 %v6239
    %v7210 = vunpack.c.l.b16 %v6240
    %v7211 = vunpack.c.h.b16 %v6240
    %v7212 = vunpack.c.l.b16 %v6241
    %v7213 = vunpack.c.h.b16 %v6241
    %v7214 = vunpack.c.l.b16 %v6242
    %v7215 = vunpack.c.h.b16 %v6242
    %v7216 = vunpack.c.l.b16 %v6243
    %v7217 = vunpack.c.h.b16 %v6243
    %v7218 = vunpack.c.l.b16 %v6244
    %v7219 = vunpack.c.h.b16 %v6244
    %v7220 = vunpack.c.l.b16 %v6245
    %v7221 = vunpack.c.h.b16 %v6245
    %v7222 = vunpack.c.l.b16 %v6246
    %v7223 = vunpack.c.h.b16 %v6246
    %v7224 = vunpack.c.l.b16 %v6247
    %v7225 = vunpack.c.h.b16 %v6247
    %v7226 = vunpack.c.l.b16 %v6248
    %v7227 = vunpack.c.h.b16 %v6248
    %v7228 = vunpack.c.l.b16 %v6249
    %v7229 = vunpack.c.h.b16 %v6249
    %v7230 = vunpack.c.l.b16 %v6250
    %v7231 = vunpack.c.h.b16 %v6250
    %v7232 = vunpack.c.l.b16 %v6251
    %v7233 = vunpack.c.h.b16 %v6251
    %v7234 = vunpack.c.l.b16 %v6252
    %v7235 = vunpack.c.h.b16 %v6252
    %v7236 = vunpack.c.l.b16 %v6253
    %v7237 = vunpack.c.h.b16 %v6253
    %v7238 = vunpack.c.l.b16 %v6254
    %v7239 = vunpack.c.h.b16 %v6254
    %v7240 = vunpack.c.l.b16 %v6255
    %v7241 = vunpack.c.h.b16 %v6255
    %v7242 = vunpack.c.l.b16 %v6256
    %v7243 = vunpack.c.h.b16 %v6256
    %v7244 = vunpack.c.l.b16 %v6257
    %v7245 = vunpack.c.h.b16 %v6257
    %v7246 = vunpack.c.l.b16 %v6258
    %v7247 = vunpack.c.h.b16 %v6258
    %v7248 = vunpack.c.l.b16 %v6259
    %v7249 = vunpack.c.h.b16 %v6259
    %v7250 = vunpack.c.l.b16 %v6260
    %v7251 = vunpack.c.h.b16 %v6260
    %v7252 = vunpack.c.l.b16 %v6261
    %v7253 = vunpack.c.h.b16 %v6261
    %v7254 = vunpack.c.l.b16 %v6262
    %v7255 = vunpack.c.h.b16 %v6262
    %v7256 = vunpack.c.l.b16 %v6263
    %v7257 = vunpack.c.h.b16 %v6263
    %v7258 = vunpack.c.l.b16 %v6264
    %v7259 = vunpack.c.h.b16 %v6264
    %v7260 = vunpack.c.l.b16 %v6265
    %v7261 = vunpack.c.h.b16 %v6265
    %v7262 = vunpack.c.l.b16 %v6266
    %v7263 = vunpack.c.h.b16 %v6266
    %v7264 = vunpack.c.l.b16 %v6267
    %v7265 = vunpack.c.h.b16 %v6267
    %v7266 = vunpack.c.l.b16 %v6268
    %v7267 = vunpack.c.h.b16 %v6268
    %v7268 = vunpack.c.l.b16 %v6269
    %v7269 = vunpack.c.h.b16 %v6269
    %v7270 = vunpack.c.l.b16 %v6270
    %v7271 = vunpack.c.h.b16 %v6270
    %v7272 = vunpack.c.l.b16 %v6271
    %v7273 = vunpack.c.h.b16 %v6271
    %v7274 = vunpack.c.l.b16 %v6272
    %v7275 = vunpack.c.h.b16 %v6272
    %v7276 = vunpack.c.l.b16 %v6273
    %v7277 = vunpack.c.h.b16 %v6273
    %v7278 = vunpack.c.l.b16 %v6274
    %v7279 = vunpack.c.h.b16 %v6274
    %v7280 = vunpack.c.l.b16 %v6275
    %v7281 = vunpack.c.h.b16 %v6275
    %v7282 = vunpack.c.l.b16 %v6276
    %v7283 = vunpack.c.h.b16 %v6276
    %v7284 = vunpack.c.l.b16 %v6277
    %v7285 = vunpack.c.h.b16 %v6277
    %v7286 = vunpack.c.l.b16 %v6278
    %v7287 = vunpack.c.h.b16 %v6278
    %v7288 = vunpack.c.l.b16 %v6279
    %v7289 = vunpack.c.h.b16 %v6279
    %v7290 = vunpack.c.l.b16 %v6280
    %v7291 = vunpack.c.h.b16 %v6280
    %v7292 = vunpack.c.l.b16 %v6281
    %v7293 = vunpack.c.h.b16 %v6281
    %v7294 = vunpack.c.l.b16 %v6282
    %v7295 = vunpack.c.h.b16 %v6282
    %v7296 = vunpack.c.l.b16 %v6283
    %v7297 = vunpack.c.h.b16 %v6283
    %v7298 = vunpack.c.l.b16 %v6284
    %v7299 = vunpack.c.h.b16 %v6284
    %v7300 = vunpack.c.l.b16 %v6285
    %v7301 = vunpack.c.h.b16 %v6285
    %v7302 = vunpack.c.l.b16 %v6286
    %v7303 = vunpack.c.h.b16 %v6286
    %v7304 = vunpack.c.l.b16 %v6287
    %v7305 = vunpack.c.h.b16 %v6287
    %v7306 = vunpack.c.l.b16 %v6288
    %v7307 = vunpack.c.h.b16 %v6288
    %v7308 = vunpack.c.l.b16 %v6289
    %v7309 = vunpack.c.h.b16 %v6289
    %v7310 = vunpack.c.l.b16 %v6290
    %v7311 = vunpack.c.h.b16 %v6290
    %v7312 = vunpack.c.l.b16 %v6291
    %v7313 = vunpack.c.h.b16 %v6291
    %v7314 = vunpack.c.l.b16 %v6292
    %v7315 = vunpack.c.h.b16 %v6292
    %v7316 = vunpack.c.l.b16 %v6293
    %v7317 = vunpack.c.h.b16 %v6293
    %v7318 = vunpack.c.l.b16 %v6294
    %v7319 = vunpack.c.h.b16 %v6294
    %v7320 = vunpack.c.l.b16 %v6295
    %v7321 = vunpack.c.h.b16 %v6295
    %v7322 = vunpack.c.l.b16 %v6296
    %v7323 = vunpack.c.h.b16 %v6296
    %v7324 = vunpack.c.l.b16 %v6297
    %v7325 = vunpack.c.h.b16 %v6297
    %v7326 = vunpack.c.l.b16 %v6298
    %v7327 = vunpack.c.h.b16 %v6298
    %v7328 = vunpack.c.l.b16 %v6299
    %v7329 = vunpack.c.h.b16 %v6299
    %v7330 = vunpack.c.l.b16 %v6300
    %v7331 = vunpack.c.h.b16 %v6300
    %v7332 = vunpack.c.l.b16 %v6301
    %v7333 = vunpack.c.h.b16 %v6301
    %v7334 = vunpack.c.l.b16 %v6302
    %v7335 = vunpack.c.h.b16 %v6302
    %v7336 = vunpack.c.l.b16 %v6303
    %v7337 = vunpack.c.h.b16 %v6303
    %v7338 = vunpack.c.l.b16 %v6304
    %v7339 = vunpack.c.h.b16 %v6304
    %v7340 = vunpack.c.l.b16 %v6305
    %v7341 = vunpack.c.h.b16 %v6305
    %v7342 = vunpack.c.l.b16 %v6306
    %v7343 = vunpack.c.h.b16 %v6306
    %v7344 = vunpack.c.l.b16 %v6307
    %v7345 = vunpack.c.h.b16 %v6307
    %v7346 = vunpack.c.l.b16 %v6308
    %v7347 = vunpack.c.h.b16 %v6308
    %v7348 = vunpack.c.l.b16 %v6309
    %v7349 = vunpack.c.h.b16 %v6309
    %v7350 = vunpack.c.l.b16 %v6310
    %v7351 = vunpack.c.h.b16 %v6310
    %v7352 = vunpack.c.l.b16 %v6311
    %v7353 = vunpack.c.h.b16 %v6311
    %v7354 = vunpack.c.l.b16 %v6312
    %v7355 = vunpack.c.h.b16 %v6312
    %v7356 = vunpack.c.l.b16 %v6313
    %v7357 = vunpack.c.h.b16 %v6313
    %v7358 = vunpack.c.l.b16 %v6314
    %v7359 = vunpack.c.h.b16 %v6314
    %v7360 = vunpack.c.l.b16 %v6315
    %v7361 = vunpack.c.h.b16 %v6315
    %v7362 = vunpack.c.l.b16 %v6316
    %v7363 = vunpack.c.h.b16 %v6316
    %v7364 = vunpack.c.l.b16 %v6317
    %v7365 = vunpack.c.h.b16 %v6317
    %v7366 = vunpack.c.l.b16 %v6318
    %v7367 = vunpack.c.h.b16 %v6318
    %v7368 = vunpack.c.l.b16 %v6319
    %v7369 = vunpack.c.h.b16 %v6319
    %v7370 = vunpack.c.l.b16 %v6320
    %v7371 = vunpack.c.h.b16 %v6320
    %v7372 = vunpack.c.l.b16 %v6321
    %v7373 = vunpack.c.h.b16 %v6321
    %v7374 = vunpack.c.l.b16 %v6322
    %v7375 = vunpack.c.h.b16 %v6322
    %v7376 = vunpack.c.l.b16 %v6323
    %v7377 = vunpack.c.h.b16 %v6323
    %v7378 = vunpack.c.l.b16 %v6324
    %v7379 = vunpack.c.h.b16 %v6324
    %v7380 = vunpack.c.l.b16 %v6325
    %v7381 = vunpack.c.h.b16 %v6325
    %v7382 = vunpack.c.l.b16 %v6326
    %v7383 = vunpack.c.h.b16 %v6326
    %v7384 = vunpack.c.l.b16 %v6327
    %v7385 = vunpack.c.h.b16 %v6327
    %v7386 = vunpack.c.l.b16 %v6328
    %v7387 = vunpack.c.h.b16 %v6328
    %v7388 = vunpack.c.l.b16 %v6329
    %v7389 = vunpack.c.h.b16 %v6329
    %v7390 = vunpack.c.l.b16 %v6330
    %v7391 = vunpack.c.h.b16 %v6330
    %v7392 = vunpack.c.l.b16 %v6331
    %v7393 = vunpack.c.h.b16 %v6331
    %v7394 = vunpack.c.l.b16 %v6332
    %v7395 = vunpack.c.h.b16 %v6332
    %v7396 = vunpack.c.l.b16 %v6333
    %v7397 = vunpack.c.h.b16 %v6333
    %v7398 = vunpack.c.l.b16 %v6334
    %v7399 = vunpack.c.h.b16 %v6334
    %v7400 = vunpack.c.l.b16 %v6335
    %v7401 = vunpack.c.h.b16 %v6335
    %v7402 = vunpack.c.l.b16 %v6336
    %v7403 = vunpack.c.h.b16 %v6336
    %v7404 = vunpack.c.l.b16 %v6337
    %v7405 = vunpack.c.h.b16 %v6337
    %v7406 = vunpack.c.l.b16 %v6338
    %v7407 = vunpack.c.h.b16 %v6338
    %v7408 = vunpack.c.l.b16 %v6339
    %v7409 = vunpack.c.h.b16 %v6339
    %v7410 = vunpack.c.l.b16 %v6340
    %v7411 = vunpack.c.h.b16 %v6340
    %v7412 = vunpack.c.l.b16 %v6341
    %v7413 = vunpack.c.h.b16 %v6341
    %v7414 = vunpack.c.l.b16 %v6342
    %v7415 = vunpack.c.h.b16 %v6342
    %v7416 = vunpack.c.l.b16 %v6343
    %v7417 = vunpack.c.h.b16 %v6343
    %v7418 = vunpack.c.l.b16 %v6344
    %v7419 = vunpack.c.h.b16 %v6344
    %v7420 = vunpack.c.l.b16 %v6345
    %v7421 = vunpack.c.h.b16 %v6345
    %v7422 = vunpack.c.l.b16 %v6346
    %v7423 = vunpack.c.h.b16 %v6346
    %v7424 = vunpack.c.l.b16 %v6347
    %v7425 = vunpack.c.h.b16 %v6347
    %v7426 = vunpack.c.l.b16 %v6348
    %v7427 = vunpack.c.h.b16 %v6348
    %v7428 = vunpack.c.l.b16 %v6349
    %v7429 = vunpack.c.h.b16 %v6349
    %v7430 = vunpack.c.l.b16 %v6350
    %v7431 = vunpack.c.h.b16 %v6350
    %v7432 = vunpack.c.l.b16 %v6351
    %v7433 = vunpack.c.h.b16 %v6351
    %v7434 = vunpack.c.l.b16 %v6352
    %v7435 = vunpack.c.h.b16 %v6352
    %v7436 = vunpack.c.l.b16 %v6353
    %v7437 = vunpack.c.h.b16 %v6353
    %v7438 = vunpack.c.l.b16 %v6354
    %v7439 = vunpack.c.h.b16 %v6354
    %v7440 = vunpack.c.l.b16 %v6355
    %v7441 = vunpack.c.h.b16 %v6355
    %v7442 = vunpack.c.l.b16 %v6356
    %v7443 = vunpack.c.h.b16 %v6356
    %v7444 = vunpack.c.l.b16 %v6357
    %v7445 = vunpack.c.h.b16 %v6357
    %v7446 = vunpack.c.l.b16 %v6358
    %v7447 = vunpack.c.h.b16 %v6358
    %v7448 = vunpack.c.l.b16 %v6359
    %v7449 = vunpack.c.h.b16 %v6359
    %v7450 = vunpack.c.l.b16 %v6360
    %v7451 = vunpack.c.h.b16 %v6360
    %v7452 = vunpack.c.l.b16 %v6361
    %v7453 = vunpack.c.h.b16 %v6361
    %v7454 = vunpack.c.l.b16 %v6362
    %v7455 = vunpack.c.h.b16 %v6362
    %v7456 = vunpack.c.l.b16 %v6363
    %v7457 = vunpack.c.h.b16 %v6363
    %v7458 = vunpack.c.l.b16 %v6364
    %v7459 = vunpack.c.h.b16 %v6364
    %v7460 = vunpack.c.l.b16 %v6365
    %v7461 = vunpack.c.h.b16 %v6365
    %v7462 = vunpack.c.l.b16 %v6366
    %v7463 = vunpack.c.h.b16 %v6366
    %v7464 = vunpack.c.l.b16 %v6367
    %v7465 = vunpack.c.h.b16 %v6367
    %v7466 = vunpack.c.l.b16 %v6368
    %v7467 = vunpack.c.h.b16 %v6368
    %v7468 = vunpack.c.l.b16 %v6369
    %v7469 = vunpack.c.h.b16 %v6369
    %v7470 = vunpack.c.l.b16 %v6370
    %v7471 = vunpack.c.h.b16 %v6370
    %v7472 = vunpack.c.l.b16 %v6371
    %v7473 = vunpack.c.h.b16 %v6371
    %v7474 = vunpack.c.l.b16 %v6372
    %v7475 = vunpack.c.h.b16 %v6372
    %v7476 = vunpack.c.l.b16 %v6373
    %v7477 = vunpack.c.h.b16 %v6373
    %v7478 = vunpack.c.l.b16 %v6374
    %v7479 = vunpack.c.h.b16 %v6374
    %v7480 = vunpack.c.l.b16 %v6375
    %v7481 = vunpack.c.h.b16 %v6375
    %v7482 = vunpack.c.l.b16 %v6376
    %v7483 = vunpack.c.h.b16 %v6376
    %v7484 = vunpack.c.l.b16 %v6377
    %v7485 = vunpack.c.h.b16 %v6377
    %v7486 = vunpack.c.l.b16 %v6378
    %v7487 = vunpack.c.h.b16 %v6378
    %v7488 = vunpack.c.l.b16 %v6379
    %v7489 = vunpack.c.h.b16 %v6379
    %v7490 = vunpack.c.l.b16 %v6380
    %v7491 = vunpack.c.h.b16 %v6380
    %v7492 = vunpack.c.l.b16 %v6381
    %v7493 = vunpack.c.h.b16 %v6381
    %v7494 = vunpack.c.l.b16 %v6382
    %v7495 = vunpack.c.h.b16 %v6382
    %v7496 = vunpack.c.l.b16 %v6383
    %v7497 = vunpack.c.h.b16 %v6383
    %v7498 = vunpack.c.l.b16 %v6384
    %v7499 = vunpack.c.h.b16 %v6384
    %v7500 = vunpack.c.l.b16 %v6385
    %v7501 = vunpack.c.h.b16 %v6385
    %v7502 = vunpack.c.l.b16 %v6386
    %v7503 = vunpack.c.h.b16 %v6386
    %v7504 = vunpack.c.l.b16 %v6387
    %v7505 = vunpack.c.h.b16 %v6387
    %v7506 = vunpack.c.l.b16 %v6388
    %v7507 = vunpack.c.h.b16 %v6388
    %v7508 = vunpack.c.l.b16 %v6389
    %v7509 = vunpack.c.h.b16 %v6389
    %v7510 = vunpack.c.l.b16 %v6390
    %v7511 = vunpack.c.h.b16 %v6390
    %v7512 = vunpack.c.l.b16 %v6391
    %v7513 = vunpack.c.h.b16 %v6391
    %v7514 = vunpack.c.l.b16 %v6392
    %v7515 = vunpack.c.h.b16 %v6392
    %v7516 = vunpack.c.l.b16 %v6393
    %v7517 = vunpack.c.h.b16 %v6393
    %v7518 = vunpack.c.l.b16 %v6394
    %v7519 = vunpack.c.h.b16 %v6394
    %v7520 = vunpack.c.l.b16 %v6395
    %v7521 = vunpack.c.h.b16 %v6395
    %v7522 = vunpack.c.l.b16 %v6396
    %v7523 = vunpack.c.h.b16 %v6396
    %v7524 = vunpack.c.l.b16 %v6397
    %v7525 = vunpack.c.h.b16 %v6397
    %v7526 = vunpack.c.l.b16 %v6398
    %v7527 = vunpack.c.h.b16 %v6398
    %v7528 = vunpack.c.l.b16 %v6399
    %v7529 = vunpack.c.h.b16 %v6399
    %v7530 = vunpack.c.l.b16 %v6400
    %v7531 = vunpack.c.h.b16 %v6400
    %v7532 = vunpack.c.l.b16 %v6401
    %v7533 = vunpack.c.h.b16 %v6401
    %v7534 = vunpack.c.l.b16 %v6402
    %v7535 = vunpack.c.h.b16 %v6402
    %v7536 = vunpack.c.l.b16 %v6403
    %v7537 = vunpack.c.h.b16 %v6403
    %v7538 = vunpack.c.l.b16 %v6404
    %v7539 = vunpack.c.h.b16 %v6404
    %v7540 = vunpack.c.l.b16 %v6405
    %v7541 = vunpack.c.h.b16 %v6405
    %v7542 = vunpack.c.l.b16 %v6406
    %v7543 = vunpack.c.h.b16 %v6406
    %v7544 = vunpack.c.l.b16 %v6407
    %v7545 = vunpack.c.h.b16 %v6407
    %v7546 = vunpack.c.l.b16 %v6408
    %v7547 = vunpack.c.h.b16 %v6408
    %v7548 = vunpack.c.l.b16 %v6409
    %v7549 = vunpack.c.h.b16 %v6409
    %v7550 = vunpack.c.l.b16 %v6410
    %v7551 = vunpack.c.h.b16 %v6410
    %v7552 = vunpack.c.l.b16 %v6411
    %v7553 = vunpack.c.h.b16 %v6411
    %v7554 = vunpack.c.l.b16 %v6412
    %v7555 = vunpack.c.h.b16 %v6412
    %v7556 = vunpack.c.l.b16 %v6413
    %v7557 = vunpack.c.h.b16 %v6413
    %v7558 = vunpack.c.l.b16 %v6414
    %v7559 = vunpack.c.h.b16 %v6414
    %v7560 = vunpack.c.l.b16 %v6415
    %v7561 = vunpack.c.h.b16 %v6415
    %v7562 = vunpack.c.l.b16 %v6416
    %v7563 = vunpack.c.h.b16 %v6416
    %v7564 = vunpack.c.l.b16 %v6417
    %v7565 = vunpack.c.h.b16 %v6417
    %v7566 = vunpack.c.l.b16 %v6418
    %v7567 = vunpack.c.h.b16 %v6418
    %v7568 = vunpack.c.l.b16 %v6419
    %v7569 = vunpack.c.h.b16 %v6419
    %v7570 = vunpack.c.l.b16 %v6420
    %v7571 = vunpack.c.h.b16 %v6420
    %v7572 = vunpack.c.l.b16 %v6421
    %v7573 = vunpack.c.h.b16 %v6421
    %v7574 = vunpack.c.l.b16 %v6422
    %v7575 = vunpack.c.h.b16 %v6422
    %v7576 = vunpack.c.l.b16 %v6423
    %v7577 = vunpack.c.h.b16 %v6423
    %v7578 = vunpack.c.l.b16 %v6424
    %v7579 = vunpack.c.h.b16 %v6424
    %v7580 = vunpack.c.l.b16 %v6425
    %v7581 = vunpack.c.h.b16 %v6425
    %v7582 = vunpack.c.l.b16 %v6426
    %v7583 = vunpack.c.h.b16 %v6426
    %v7584 = vunpack.c.l.b16 %v6427
    %v7585 = vunpack.c.h.b16 %v6427
    %v7586 = vunpack.c.l.b16 %v6428
    %v7587 = vunpack.c.h.b16 %v6428
    %v7588 = vunpack.c.l.b16 %v6429
    %v7589 = vunpack.c.h.b16 %v6429
    %v7590 = vunpack.c.l.b16 %v6430
    %v7591 = vunpack.c.h.b16 %v6430
    %v7592 = vunpack.c.l.b16 %v6431
    %v7593 = vunpack.c.h.b16 %v6431
    %v7594 = vunpack.c.l.b16 %v6432
    %v7595 = vunpack.c.h.b16 %v6432
    %v7596 = vunpack.c.l.b16 %v6433
    %v7597 = vunpack.c.h.b16 %v6433
    %v7598 = vunpack.c.l.b16 %v6434
    %v7599 = vunpack.c.h.b16 %v6434
    %v7600 = vunpack.c.l.b16 %v6435
    %v7601 = vunpack.c.h.b16 %v6435
    %v7602 = vunpack.c.l.b16 %v6436
    %v7603 = vunpack.c.h.b16 %v6436
    %v7604 = vunpack.c.l.b16 %v6437
    %v7605 = vunpack.c.h.b16 %v6437
    %v7606 = vunpack.c.l.b16 %v6438
    %v7607 = vunpack.c.h.b16 %v6438
    %v7608 = vunpack.c.l.b16 %v6439
    %v7609 = vunpack.c.h.b16 %v6439
    %v7610 = vunpack.c.l.b16 %v6440
    %v7611 = vunpack.c.h.b16 %v6440
    %v7612 = vunpack.c.l.b16 %v6441
    %v7613 = vunpack.c.h.b16 %v6441
    %v7614 = vunpack.c.l.b16 %v6442
    %v7615 = vunpack.c.h.b16 %v6442
    %v7616 = vunpack.c.l.b16 %v6443
    %v7617 = vunpack.c.h.b16 %v6443
    %v7618 = vunpack.c.l.b16 %v6444
    %v7619 = vunpack.c.h.b16 %v6444
    %v7620 = vunpack.c.l.b16 %v6445
    %v7621 = vunpack.c.h.b16 %v6445
    %v7622 = vunpack.c.l.b16 %v6446
    %v7623 = vunpack.c.h.b16 %v6446
    %v7624 = vunpack.c.l.b16 %v6447
    %v7625 = vunpack.c.h.b16 %v6447
    %v7626 = vunpack.c.l.b16 %v6448
    %v7627 = vunpack.c.h.b16 %v6448
    %v7628 = vunpack.c.l.b16 %v6449
    %v7629 = vunpack.c.h.b16 %v6449
    %v7630 = vpack.c.b16 %v6874, %v6862
    %v7631 = vpack.c.b16 %v6875, %v6863
    %v7632 = vpack.c.b16 %v6876, %v6864
    %v7633 = vpack.c.b16 %v6877, %v6865
    %v7634 = vpack.c.b16 %v6878, %v6866
    %v7635 = vpack.c.b16 %v6879, %v6867
    %v7636 = vpack.c.b16 %v6880, %v6868
    %v7637 = vpack.c.b16 %v6881, %v6869
    %v7638 = vpack.c.b16 %v6882, %v6870
    %v7639 = vpack.c.b16 %v6883, %v6871
    %v7640 = vpack.c.b16 %v6884, %v6872
    %v7641 = vpack.c.b16 %v6885, %v6873
    %v7642 = vpack.c.b16 %v6898, %v6886
    %v7643 = vpack.c.b16 %v6899, %v6887
    %v7644 = vpack.c.b16 %v6900, %v6888
    %v7645 = vpack.c.b16 %v6901, %v6889
    %v7646 = vpack.c.b16 %v6902, %v6890
    %v7647 = vpack.c.b16 %v6903, %v6891
    %v7648 = vpack.c.b16 %v6904, %v6892
    %v7649 = vpack.c.b16 %v6905, %v6893
    %v7650 = vpack.c.b16 %v6906, %v6894
    %v7651 = vpack.c.b16 %v6907, %v6895
    %v7652 = vpack.c.b16 %v6908, %v6896
    %v7653 = vpack.c.b16 %v6909, %v6897
    %v7654 = vpack.c.b16 %v6922, %v6910
    %v7655 = vpack.c.b16 %v6923, %v6911
    %v7656 = vpack.c.b16 %v6924, %v6912
    %v7657 = vpack.c.b16 %v6925, %v6913
    %v7658 = vpack.c.b16 %v6926, %v6914
    %v7659 = vpack.c.b16 %v6927, %v6915
    %v7660 = vpack.c.b16 %v6928, %v6916
    %v7661 = vpack.c.b16 %v6929, %v6917
    %v7662 = vpack.c.b16 %v6930, %v6918
    %v7663 = vpack.c.b16 %v6931, %v6919
    %v7664 = vpack.c.b16 %v6932, %v6920
    %v7665 = vpack.c.b16 %v6933, %v6921
    %v7666 = vpack.c.b16 %v6946, %v6934
    %v7667 = vpack.c.b16 %v6947, %v6935
    %v7668 = vpack.c.b16 %v6948, %v6936
    %v7669 = vpack.c.b16 %v6949, %v6937
    %v7670 = vpack.c.b16 %v6950, %v6938
    %v7671 = vpack.c.b16 %v6951, %v6939
    %v7672 = vpack.c.b16 %v6952, %v6940
    %v7673 = vpack.c.b16 %v6953, %v6941
    %v7674 = vpack.c.b16 %v6954, %v6942
    %v7675 = vpack.c.b16 %v6955, %v6943
    %v7676 = vpack.c.b16 %v6956, %v6944
    %v7677 = vpack.c.b16 %v6957, %v6945
    %v7678 = vpack.c.b16 %v6970, %v6958
    %v7679 = vpack.c.b16 %v6971, %v6959
    %v7680 = vpack.c.b16 %v6972, %v6960
    %v7681 = vpack.c.b16 %v6973, %v6961
    %v7682 = vpack.c.b16 %v6974, %v6962
    %v7683 = vpack.c.b16 %v6975, %v6963
    %v7684 = vpack.c.b16 %v6976, %v6964
    %v7685 = vpack.c.b16 %v6977, %v6965
    %v7686 = vpack.c.b16 %v6978, %v6966
    %v7687 = vpack.c.b16 %v6979, %v6967
    %v7688 = vpack.c.b16 %v6980, %v6968
    %v7689 = vpack.c.b16 %v6981, %v6969
    %v7690 = vpack.c.b16 %v6994, %v6982
    %v7691 = vpack.c.b16 %v6995, %v6983
    %v7692 = vpack.c.b16 %v6996, %v6984
    %v7693 = vpack.c.b16 %v6997, %v6985
    %v7694 = vpack.c.b16 %v6998, %v6986
    %v7695 = vpack.c.b16 %v6999, %v6987
    %v7696 = vpack.c.b16 %v7000, %v6988
    %v7697 = vpack.c.b16 %v7001, %v6989
    %v7698 = vpack.c.b16 %v7002, %v6990
    %v7699 = vpack.c.b16 %v7003, %v6991
    %v7700 = vpack.c.b16 %v7004, %v6992
    %v7701 = vpack.c.b16 %v7005, %v6993
    %v7702 = vpack.c.b16 %v7018, %v7006
    %v7703 = vpack.c.b16 %v7019, %v7007
    %v7704 = vpack.c.b16 %v7020, %v7008
    %v7705 = vpack.c.b16 %v7021, %v7009
    %v7706 = vpack.c.b16 %v7022, %v7010
    %v7707 = vpack.c.b16 %v7023, %v7011
    %v7708 = vpack.c.b16 %v7024, %v7012
    %v7709 = vpack.c.b16 %v7025, %v7013
    %v7710 = vpack.c.b16 %v7026, %v7014
    %v7711 = vpack.c.b16 %v7027, %v7015
    %v7712 = vpack.c.b16 %v7028, %v7016
    %v7713 = vpack.c.b16 %v7029, %v7017
    %v7714 = vpack.c.b16 %v7042, %v7030
    %v7715 = vpack.c.b16 %v7043, %v7031
    %v7716 = vpack.c.b16 %v7044, %v7032
    %v7717 = vpack.c.b16 %v7045, %v7033
    %v7718 = vpack.c.b16 %v7046, %v7034
    %v7719 = vpack.c.b16 %v7047, %v7035
    %v7720 = vpack.c.b16 %v7048, %v7036
    %v7721 = vpack.c.b16 %v7049, %v7037
    %v7722 = vpack.c.b16 %v7050, %v7038
    %v7723 = vpack.c.b16 %v7051, %v7039
    %v7724 = vpack.c.b16 %v7052, %v7040
    %v7725 = vpack.c.b16 %v7053, %v7041
    %v7726 = vpack.c.b16 %v7066, %v7054
    %v7727 = vpack.c.b16 %v7067, %v7055
    %v7728 = vpack.c.b16 %v7068, %v7056
    %v7729 = vpack.c.b16 %v7069, %v7057
    %v7730 = vpack.c.b16 %v7070, %v7058
    %v7731 = vpack.c.b16 %v7071, %v7059
    %v7732 = vpack.c.b16 %v7072, %v7060
    %v7733 = vpack.c.b16 %v7073, %v7061
    %v7734 = vpack.c.b16 %v7074, %v7062
    %v7735 = vpack.c.b16 %v7075, %v7063
    %v7736 = vpack.c.b16 %v7076, %v7064
    %v7737 = vpack.c.b16 %v7077, %v7065
    %v7738 = vpack.c.b16 %v7090, %v7078
    %v7739 = vpack.c.b16 %v7091, %v7079
    %v7740 = vpack.c.b16 %v7092, %v7080
    %v7741 = vpack.c.b16 %v7093, %v7081
    %v7742 = vpack.c.b16 %v7094, %v7082
    %v7743 = vpack.c.b16 %v7095, %v7083
    %v7744 = vpack.c.b16 %v7096, %v7084
    %v7745 = vpack.c.b16 %v7097, %v7085
    %v7746 = vpack.c.b16 %v7098, %v7086
    %v7747 = vpack.c.b16 %v7099, %v7087
    %v7748 = vpack.c.b16 %v7100, %v7088
    %v7749 = vpack.c.b16 %v7101, %v7089
    %v7750 = vpack.c.b16 %v7114, %v7102
    %v7751 = vpack.c.b16 %v7115, %v7103
    %v7752 = vpack.c.b16 %v7116, %v7104
    %v7753 = vpack.c.b16 %v7117, %v7105
    %v7754 = vpack.c.b16 %v7118, %v7106
    %v7755 = vpack.c.b16 %v7119, %v7107
    %v7756 = vpack.c.b16 %v7120, %v7108
    %v7757 = vpack.c.b16 %v7121, %v7109
    %v7758 = vpack.c.b16 %v7122, %v7110
    %v7759 = vpack.c.b16 %v7123, %v7111
    %v7760 = vpack.c.b16 %v7124, %v7112
    %v7761 = vpack.c.b16 %v7125, %v7113
    %v7762 = vpack.c.b16 %v7138, %v7126
    %v7763 = vpack.c.b16 %v7139, %v7127
    %v7764 = vpack.c.b16 %v7140, %v7128
    %v7765 = vpack.c.b16 %v7141, %v7129
    %v7766 = vpack.c.b16 %v7142, %v7130
    %v7767 = vpack.c.b16 %v7143, %v7131
    %v7768 = vpack.c.b16 %v7144, %v7132
    %v7769 = vpack.c.b16 %v7145, %v7133
    %v7770 = vpack.c.b16 %v7146, %v7134
    %v7771 = vpack.c.b16 %v7147, %v7135
    %v7772 = vpack.c.b16 %v7148, %v7136
    %v7773 = vpack.c.b16 %v7149, %v7137
    %v7774 = vpack.c.b16 %v7162, %v7150
    %v7775 = vpack.c.b16 %v7163, %v7151
    %v7776 = vpack.c.b16 %v7164, %v7152
    %v7777 = vpack.c.b16 %v7165, %v7153
    %v7778 = vpack.c.b16 %v7166, %v7154
    %v7779 = vpack.c.b16 %v7167, %v7155
    %v7780 = vpack.c.b16 %v7168, %v7156
    %v7781 = vpack.c.b16 %v7169, %v7157
    %v7782 = vpack.c.b16 %v7170, %v7158
    %v7783 = vpack.c.b16 %v7171, %v7159
    %v7784 = vpack.c.b16 %v7172, %v7160
    %v7785 = vpack.c.b16 %v7173, %v7161
    %v7786 = vpack.c.b16 %v7186, %v7174
    %v7787 = vpack.c.b16 %v7187, %v7175
    %v7788 = vpack.c.b16 %v7188, %v7176
    %v7789 = vpack.c.b16 %v7189, %v7177
    %v7790 = vpack.c.b16 %v7190, %v7178
    %v7791 = vpack.c.b16 %v7191, %v7179
    %v7792 = vpack.c.b16 %v7192, %v7180
    %v7793 = vpack.c.b16 %v7193, %v7181
    %v7794 = vpack.c.b16 %v7194, %v7182
    %v7795 = vpack.c.b16 %v7195, %v7183
    %v7796 = vpack.c.b16 %v7196, %v7184
    %v7797 = vpack.c.b16 %v7197, %v7185
    %v7798 = vpack.c.b16 %v7210, %v7198
    %v7799 = vpack.c.b16 %v7211, %v7199
    %v7800 = vpack.c.b16 %v7212, %v7200
    %v7801 = vpack.c.b16 %v7213, %v7201
    %v7802 = vpack.c.b16 %v7214, %v7202
    %v7803 = vpack.c.b16 %v7215, %v7203
    %v7804 = vpack.c.b16 %v7216, %v7204
    %v7805 = vpack.c.b16 %v7217, %v7205
    %v7806 = vpack.c.b16 %v7218, %v7206
    %v7807 = vpack.c.b16 %v7219, %v7207
    %v7808 = vpack.c.b16 %v7220, %v7208
    %v7809 = vpack.c.b16 %v7221, %v7209
    %v7810 = vpack.c.b16 %v7234, %v7222
    %v7811 = vpack.c.b16 %v7235, %v7223
    %v7812 = vpack.c.b16 %v7236, %v7224
    %v7813 = vpack.c.b16 %v7237, %v7225
    %v7814 = vpack.c.b16 %v7238, %v7226
    %v7815 = vpack.c.b16 %v7239, %v7227
    %v7816 = vpack.c.b16 %v7240, %v7228
    %v7817 = vpack.c.b16 %v7241, %v7229
    %v7818 = vpack.c.b16 %v7242, %v7230
    %v7819 = vpack.c.b16 %v7243, %v7231
    %v7820 = vpack.c.b16 %v7244, %v7232
    %v7821 = vpack.c.b16 %v7245, %v7233
    %v7822 = vpack.c.b16 %v7258, %v7246
    %v7823 = vpack.c.b16 %v7259, %v7247
    %v7824 = vpack.c.b16 %v7260, %v7248
    %v7825 = vpack.c.b16 %v7261, %v7249
    %v7826 = vpack.c.b16 %v7262, %v7250
    %v7827 = vpack.c.b16 %v7263, %v7251
    %v7828 = vpack.c.b16 %v7264, %v7252
    %v7829 = vpack.c.b16 %v7265, %v7253
    %v7830 = vpack.c.b16 %v7266, %v7254
    %v7831 = vpack.c.b16 %v7267, %v7255
    %v7832 = vpack.c.b16 %v7268, %v7256
    %v7833 = vpack.c.b16 %v7269, %v7257
    %v7834 = vpack.c.b16 %v7282, %v7270
    %v7835 = vpack.c.b16 %v7283, %v7271
    %v7836 = vpack.c.b16 %v7284, %v7272
    %v7837 = vpack.c.b16 %v7285, %v7273
    %v7838 = vpack.c.b16 %v7286, %v7274
    %v7839 = vpack.c.b16 %v7287, %v7275
    %v7840 = vpack.c.b16 %v7288, %v7276
    %v7841 = vpack.c.b16 %v7289, %v7277
    %v7842 = vpack.c.b16 %v7290, %v7278
    %v7843 = vpack.c.b16 %v7291, %v7279
    %v7844 = vpack.c.b16 %v7292, %v7280
    %v7845 = vpack.c.b16 %v7293, %v7281
    %v7846 = vpack.c.b16 %v7306, %v7294
    %v7847 = vpack.c.b16 %v7307, %v7295
    %v7848 = vpack.c.b16 %v7308, %v7296
    %v7849 = vpack.c.b16 %v7309, %v7297
    %v7850 = vpack.c.b16 %v7310, %v7298
    %v7851 = vpack.c.b16 %v7311, %v7299
    %v7852 = vpack.c.b16 %v7312, %v7300
    %v7853 = vpack.c.b16 %v7313, %v7301
    %v7854 = vpack.c.b16 %v7314, %v7302
    %v7855 = vpack.c.b16 %v7315, %v7303
    %v7856 = vpack.c.b16 %v7316, %v7304
    %v7857 = vpack.c.b16 %v7317, %v7305
    %v7858 = vpack.c.b16 %v7330, %v7318
    %v7859 = vpack.c.b16 %v7331, %v7319
    %v7860 = vpack.c.b16 %v7332, %v7320
    %v7861 = vpack.c.b16 %v7333, %v7321
    %v7862 = vpack.c.b16 %v7334, %v7322
    %v7863 = vpack.c.b16 %v7335, %v7323
    %v7864 = vpack.c.b16 %v7336, %v7324
    %v7865 = vpack.c.b16 %v7337, %v7325
    %v7866 = vpack.c.b16 %v7338, %v7326
    %v7867 = vpack.c.b16 %v7339, %v7327
    %v7868 = vpack.c.b16 %v7340, %v7328
    %v7869 = vpack.c.b16 %v7341, %v7329
    %v7870 = vpack.c.b16 %v7354, %v7342
    %v7871 = vpack.c.b16 %v7355, %v7343
    %v7872 = vpack.c.b16 %v7356, %v7344
    %v7873 = vpack.c.b16 %v7357, %v7345
    %v7874 = vpack.c.b16 %v7358, %v7346
    %v7875 = vpack.c.b16 %v7359, %v7347
    %v7876 = vpack.c.b16 %v7360, %v7348
    %v7877 = vpack.c.b16 %v7361, %v7349
    %v7878 = vpack.c.b16 %v7362, %v7350
    %v7879 = vpack.c.b16 %v7363, %v7351
    %v7880 = vpack.c.b16 %v7364, %v7352
    %v7881 = vpack.c.b16 %v7365, %v7353
    %v7882 = vpack.c.b16 %v7378, %v7366
    %v7883 = vpack.c.b16 %v7379, %v7367
    %v7884 = vpack.c.b16 %v7380, %v7368
    %v7885 = vpack.c.b16 %v7381, %v7369
    %v7886 = vpack.c.b16 %v7382, %v7370
    %v7887 = vpack.c.b16 %v7383, %v7371
    %v7888 = vpack.c.b16 %v7384, %v7372
    %v7889 = vpack.c.b16 %v7385, %v7373
    %v7890 = vpack.c.b16 %v7386, %v7374
    %v7891 = vpack.c.b16 %v7387, %v7375
    %v7892 = vpack.c.b16 %v7388, %v7376
    %v7893 = vpack.c.b16 %v7389, %v7377
    %v7894 = vpack.c.b16 %v7402, %v7390
    %v7895 = vpack.c.b16 %v7403, %v7391
    %v7896 = vpack.c.b16 %v7404, %v7392
    %v7897 = vpack.c.b16 %v7405, %v7393
    %v7898 = vpack.c.b16 %v7406, %v7394
    %v7899 = vpack.c.b16 %v7407, %v7395
    %v7900 = vpack.c.b16 %v7408, %v7396
    %v7901 = vpack.c.b16 %v7409, %v7397
    %v7902 = vpack.c.b16 %v7410, %v7398
    %v7903 = vpack.c.b16 %v7411, %v7399
    %v7904 = vpack.c.b16 %v7412, %v7400
    %v7905 = vpack.c.b16 %v7413, %v7401
    %v7906 = vpack.c.b16 %v7426, %v7414
    %v7907 = vpack.c.b16 %v7427, %v7415
    %v7908 = vpack.c.b16 %v7428, %v7416
    %v7909 = vpack.c.b16 %v7429, %v7417
    %v7910 = vpack.c.b16 %v7430, %v7418
    %v7911 = vpack.c.b16 %v7431, %v7419
    %v7912 = vpack.c.b16 %v7432, %v7420
    %v7913 = vpack.c.b16 %v7433, %v7421
    %v7914 = vpack.c.b16 %v7434, %v7422
    %v7915 = vpack.c.b16 %v7435, %v7423
    %v7916 = vpack.c.b16 %v7436, %v7424
    %v7917 = vpack.c.b16 %v7437, %v7425
    %v7918 = vpack.c.b16 %v7450, %v7438
    %v7919 = vpack.c.b16 %v7451, %v7439
    %v7920 = vpack.c.b16 %v7452, %v7440
    %v7921 = vpack.c.b16 %v7453, %v7441
    %v7922 = vpack.c.b16 %v7454, %v7442
    %v7923 = vpack.c.b16 %v7455, %v7443
    %v7924 = vpack.c.b16 %v7456, %v7444
    %v7925 = vpack.c.b16 %v7457, %v7445
    %v7926 = vpack.c.b16 %v7458, %v7446
    %v7927 = vpack.c.b16 %v7459, %v7447
    %v7928 = vpack.c.b16 %v7460, %v7448
    %v7929 = vpack.c.b16 %v7461, %v7449
    %v7930 = vpack.c.b16 %v7474, %v7462
    %v7931 = vpack.c.b16 %v7475, %v7463
    %v7932 = vpack.c.b16 %v7476, %v7464
    %v7933 = vpack.c.b16 %v7477, %v7465
    %v7934 = vpack.c.b16 %v7478, %v7466
    %v7935 = vpack.c.b16 %v7479, %v7467
    %v7936 = vpack.c.b16 %v7480, %v7468
    %v7937 = vpack.c.b16 %v7481, %v7469
    %v7938 = vpack.c.b16 %v7482, %v7470
    %v7939 = vpack.c.b16 %v7483, %v7471
    %v7940 = vpack.c.b16 %v7484, %v7472
    %v7941 = vpack.c.b16 %v7485, %v7473
    %v7942 = vpack.c.b16 %v7498, %v7486
    %v7943 = vpack.c.b16 %v7499, %v7487
    %v7944 = vpack.c.b16 %v7500, %v7488
    %v7945 = vpack.c.b16 %v7501, %v7489
    %v7946 = vpack.c.b16 %v7502, %v7490
    %v7947 = vpack.c.b16 %v7503, %v7491
    %v7948 = vpack.c.b16 %v7504, %v7492
    %v7949 = vpack.c.b16 %v7505, %v7493
    %v7950 = vpack.c.b16 %v7506, %v7494
    %v7951 = vpack.c.b16 %v7507, %v7495
    %v7952 = vpack.c.b16 %v7508, %v7496
    %v7953 = vpack.c.b16 %v7509, %v7497
    %v7954 = vpack.c.b16 %v7522, %v7510
    %v7955 = vpack.c.b16 %v7523, %v7511
    %v7956 = vpack.c.b16 %v7524, %v7512
    %v7957 = vpack.c.b16 %v7525, %v7513
    %v7958 = vpack.c.b16 %v7526, %v7514
    %v7959 = vpack.c.b16 %v7527, %v7515
    %v7960 = vpack.c.b16 %v7528, %v7516
    %v7961 = vpack.c.b16 %v7529, %v7517
    %v7962 = vpack.c.b16 %v7530, %v7518
    %v7963 = vpack.c.b16 %v7531, %v7519
    %v7964 = vpack.c.b16 %v7532, %v7520
    %v7965 = vpack.c.b16 %v7533, %v7521
    %v7966 = vpack.c.b16 %v7546, %v7534
    %v7967 = vpack.c.b16 %v7547, %v7535
    %v7968 = vpack.c.b16 %v7548, %v7536
    %v7969 = vpack.c.b16 %v7549, %v7537
    %v7970 = vpack.c.b16 %v7550, %v7538
    %v7971 = vpack.c.b16 %v7551, %v7539
    %v7972 = vpack.c.b16 %v7552, %v7540
    %v7973 = vpack.c.b16 %v7553, %v7541
    %v7974 = vpack.c.b16 %v7554, %v7542
    %v7975 = vpack.c.b16 %v7555, %v7543
    %v7976 = vpack.c.b16 %v7556, %v7544
    %v7977 = vpack.c.b16 %v7557, %v7545
    %v7978 = vpack.c.b16 %v7570, %v7558
    %v7979 = vpack.c.b16 %v7571, %v7559
    %v7980 = vpack.c.b16 %v7572, %v7560
    %v7981 = vpack.c.b16 %v7573, %v7561
    %v7982 = vpack.c.b16 %v7574, %v7562
    %v7983 = vpack.c.b16 %v7575, %v7563
    %v7984 = vpack.c.b16 %v7576, %v7564
    %v7985 = vpack.c.b16 %v7577, %v7565
    %v7986 = vpack.c.b16 %v7578, %v7566
    %v7987 = vpack.c.b16 %v7579, %v7567
    %v7988 = vpack.c.b16 %v7580, %v7568
    %v7989 = vpack.c.b16 %v7581, %v7569
    %v7990 = vpack.c.b16 %v7594, %v7582
    %v7991 = vpack.c.b16 %v7595, %v7583
    %v7992 = vpack.c.b16 %v7596, %v7584
    %v7993 = vpack.c.b16 %v7597, %v7585
    %v7994 = vpack.c.b16 %v7598, %v7586
    %v7995 = vpack.c.b16 %v7599, %v7587
    %v7996 = vpack.c.b16 %v7600, %v7588
    %v7997 = vpack.c.b16 %v7601, %v7589
    %v7998 = vpack.c.b16 %v7602, %v7590
    %v7999 = vpack.c.b16 %v7603, %v7591
    %v8000 = vpack.c.b16 %v7604, %v7592
    %v8001 = vpack.c.b16 %v7605, %v7593
    %v8002 = vpack.c.b16 %v7618, %v7606
    %v8003 = vpack.c.b16 %v7619, %v7607
    %v8004 = vpack.c.b16 %v7620, %v7608
    %v8005 = vpack.c.b16 %v7621, %v7609
    %v8006 = vpack.c.b16 %v7622, %v7610
    %v8007 = vpack.c.b16 %v7623, %v7611
    %v8008 = vpack.c.b16 %v7624, %v7612
    %v8009 = vpack.c.b16 %v7625, %v7613
    %v8010 = vpack.c.b16 %v7626, %v7614
    %v8011 = vpack.c.b16 %v7627, %v7615
    %v8012 = vpack.c.b16 %v7628, %v7616
    %v8013 = vpack.c.b16 %v7629, %v7617
    %8398 = vmatpush.bf16.msra.mxu0 %v7714
    %8399 = vmatpush.bf16.msra.mxu0 %v7702
    %8400 = vmatpush.bf16.msra.mxu0 %v7690
    %8401 = vmatpush.bf16.msra.mxu0 %v7678
    %8402 = vmatpush.bf16.msra.mxu0 %v7666
    %8403 = vmatpush.bf16.msra.mxu0 %v7654
    %8404 = vmatpush.bf16.msra.mxu0 %v7642
    %8405 = vmatpush.bf16.msra.mxu0 %v7630
    %8406 = vmatmul.bf16.gmra.mxu0 %v6040
    %v8407 = vpop.f32.mrf.mxu0
    %v8408 = vadd.f32 %v6454, %v8407
    %v8409 = vpop.f32.mrf.mxu0
    %8410 = vdwg.mxu0
    %8411 = vmatpush.bf16.msra.mxu0 %v7810
    %8412 = vmatpush.bf16.msra.mxu0 %v7798
    %8413 = vmatpush.bf16.msra.mxu0 %v7786
    %8414 = vmatpush.bf16.msra.mxu0 %v7774
    %8415 = vmatpush.bf16.msra.mxu0 %v7762
    %8416 = vmatpush.bf16.msra.mxu0 %v7750
    %8417 = vmatpush.bf16.msra.mxu0 %v7738
    %8418 = vmatpush.bf16.msra.mxu0 %v7726
    %8419 = vmatmul.bf16.gmra.mxu0 %v6048
    %v8420 = vpop.f32.mrf.mxu0
    %v8421 = vadd.f32 %v8408, %v8420
    %v8422 = vpop.f32.mrf.mxu0
    %8423 = vdwg.mxu0
    %8424 = vmatpush.bf16.msra.mxu0 %v7906
    %8425 = vmatpush.bf16.msra.mxu0 %v7894
    %8426 = vmatpush.bf16.msra.mxu0 %v7882
    %8427 = vmatpush.bf16.msra.mxu0 %v7870
    %8428 = vmatpush.bf16.msra.mxu0 %v7858
    %8429 = vmatpush.bf16.msra.mxu0 %v7846
    %8430 = vmatpush.bf16.msra.mxu0 %v7834
    %8431 = vmatpush.bf16.msra.mxu0 %v7822
    %8432 = vmatmul.bf16.gmra.mxu0 %v6056
    %v8433 = vpop.f32.mrf.mxu0
    %v8434 = vadd.f32 %v8421, %v8433
    %v8435 = vpop.f32.mrf.mxu0
    %8436 = vdwg.mxu0
    %8437 = vmatpush.bf16.msra.mxu0 %v8002
    %8438 = vmatpush.bf16.msra.mxu0 %v7990
    %8439 = vmatpush.bf16.msra.mxu0 %v7978
    %8440 = vmatpush.bf16.msra.mxu0 %v7966
    %8441 = vmatpush.bf16.msra.mxu0 %v7954
    %8442 = vmatpush.bf16.msra.mxu0 %v7942
    %8443 = vmatpush.bf16.msra.mxu0 %v7930
    %8444 = vmatpush.bf16.msra.mxu0 %v7918
    %8445 = vmatmul.bf16.gmra.mxu0 %v6064
    %v8446 = vpop.f32.mrf.mxu0
    %v8447 = vadd.f32 %v8434, %v8446
    %v8448 = vpop.f32.mrf.mxu0
    %8449 = vdwg.mxu0
    %8450 = vmatpush.bf16.msra.mxu0 %v7715
    %8451 = vmatpush.bf16.msra.mxu0 %v7703
    %8452 = vmatpush.bf16.msra.mxu0 %v7691
    %8453 = vmatpush.bf16.msra.mxu0 %v7679
    %8454 = vmatpush.bf16.msra.mxu0 %v7667
    %8455 = vmatpush.bf16.msra.mxu0 %v7655
    %8456 = vmatpush.bf16.msra.mxu0 %v7643
    %8457 = vmatpush.bf16.msra.mxu0 %v7631
    %8458 = vmatmul.bf16.gmra.mxu0 %v6040
    %v8459 = vpop.f32.mrf.mxu0
    %v8460 = vadd.f32 %v6455, %v8459
    %v8461 = vpop.f32.mrf.mxu0
    %8462 = vdwg.mxu0
    %8463 = vmatpush.bf16.msra.mxu0 %v7811
    %8464 = vmatpush.bf16.msra.mxu0 %v7799
    %8465 = vmatpush.bf16.msra.mxu0 %v7787
    %8466 = vmatpush.bf16.msra.mxu0 %v7775
    %8467 = vmatpush.bf16.msra.mxu0 %v7763
    %8468 = vmatpush.bf16.msra.mxu0 %v7751
    %8469 = vmatpush.bf16.msra.mxu0 %v7739
    %8470 = vmatpush.bf16.msra.mxu0 %v7727
    %8471 = vmatmul.bf16.gmra.mxu0 %v6048
    %v8472 = vpop.f32.mrf.mxu0
    %v8473 = vadd.f32 %v8460, %v8472
    %v8474 = vpop.f32.mrf.mxu0
    %8475 = vdwg.mxu0
    %8476 = vmatpush.bf16.msra.mxu0 %v7907
    %8477 = vmatpush.bf16.msra.mxu0 %v7895
    %8478 = vmatpush.bf16.msra.mxu0 %v7883
    %8479 = vmatpush.bf16.msra.mxu0 %v7871
    %8480 = vmatpush.bf16.msra.mxu0 %v7859
    %8481 = vmatpush.bf16.msra.mxu0 %v7847
    %8482 = vmatpush.bf16.msra.mxu0 %v7835
    %8483 = vmatpush.bf16.msra.mxu0 %v7823
    %8484 = vmatmul.bf16.gmra.mxu0 %v6056
    %v8485 = vpop.f32.mrf.mxu0
    %v8486 = vadd.f32 %v8473, %v8485
    %v8487 = vpop.f32.mrf.mxu0
    %8488 = vdwg.mxu0
    %8489 = vmatpush.bf16.msra.mxu0 %v8003
    %8490 = vmatpush.bf16.msra.mxu0 %v7991
    %8491 = vmatpush.bf16.msra.mxu0 %v7979
    %8492 = vmatpush.bf16.msra.mxu0 %v7967
    %8493 = vmatpush.bf16.msra.mxu0 %v7955
    %8494 = vmatpush.bf16.msra.mxu0 %v7943
    %8495 = vmatpush.bf16.msra.mxu0 %v7931
    %8496 = vmatpush.bf16.msra.mxu0 %v7919
    %8497 = vmatmul.bf16.gmra.mxu0 %v6064
    %v8498 = vpop.f32.mrf.mxu0
    %v8499 = vadd.f32 %v8486, %v8498
    %v8500 = vpop.f32.mrf.mxu0
    %8501 = vdwg.mxu0
    %8502 = vmatpush.bf16.msra.mxu0 %v7716
    %8503 = vmatpush.bf16.msra.mxu0 %v7704
    %8504 = vmatpush.bf16.msra.mxu0 %v7692
    %8505 = vmatpush.bf16.msra.mxu0 %v7680
    %8506 = vmatpush.bf16.msra.mxu0 %v7668
    %8507 = vmatpush.bf16.msra.mxu0 %v7656
    %8508 = vmatpush.bf16.msra.mxu0 %v7644
    %8509 = vmatpush.bf16.msra.mxu0 %v7632
    %8510 = vmatmul.bf16.gmra.mxu0 %v6040
    %v8511 = vpop.f32.mrf.mxu0
    %v8512 = vadd.f32 %v6456, %v8511
    %v8513 = vpop.f32.mrf.mxu0
    %8514 = vdwg.mxu0
    %8515 = vmatpush.bf16.msra.mxu0 %v7812
    %8516 = vmatpush.bf16.msra.mxu0 %v7800
    %8517 = vmatpush.bf16.msra.mxu0 %v7788
    %8518 = vmatpush.bf16.msra.mxu0 %v7776
    %8519 = vmatpush.bf16.msra.mxu0 %v7764
    %8520 = vmatpush.bf16.msra.mxu0 %v7752
    %8521 = vmatpush.bf16.msra.mxu0 %v7740
    %8522 = vmatpush.bf16.msra.mxu0 %v7728
    %8523 = vmatmul.bf16.gmra.mxu0 %v6048
    %v8524 = vpop.f32.mrf.mxu0
    %v8525 = vadd.f32 %v8512, %v8524
    %v8526 = vpop.f32.mrf.mxu0
    %8527 = vdwg.mxu0
    %8528 = vmatpush.bf16.msra.mxu0 %v7908
    %8529 = vmatpush.bf16.msra.mxu0 %v7896
    %8530 = vmatpush.bf16.msra.mxu0 %v7884
    %8531 = vmatpush.bf16.msra.mxu0 %v7872
    %8532 = vmatpush.bf16.msra.mxu0 %v7860
    %8533 = vmatpush.bf16.msra.mxu0 %v7848
    %8534 = vmatpush.bf16.msra.mxu0 %v7836
    %8535 = vmatpush.bf16.msra.mxu0 %v7824
    %8536 = vmatmul.bf16.gmra.mxu0 %v6056
    %v8537 = vpop.f32.mrf.mxu0
    %v8538 = vadd.f32 %v8525, %v8537
    %v8539 = vpop.f32.mrf.mxu0
    %8540 = vdwg.mxu0
    %8541 = vmatpush.bf16.msra.mxu0 %v8004
    %8542 = vmatpush.bf16.msra.mxu0 %v7992
    %8543 = vmatpush.bf16.msra.mxu0 %v7980
    %8544 = vmatpush.bf16.msra.mxu0 %v7968
    %8545 = vmatpush.bf16.msra.mxu0 %v7956
    %8546 = vmatpush.bf16.msra.mxu0 %v7944
    %8547 = vmatpush.bf16.msra.mxu0 %v7932
    %8548 = vmatpush.bf16.msra.mxu0 %v7920
    %8549 = vmatmul.bf16.gmra.mxu0 %v6064
    %v8550 = vpop.f32.mrf.mxu0
    %v8551 = vadd.f32 %v8538, %v8550
    %v8552 = vpop.f32.mrf.mxu0
    %8553 = vdwg.mxu0
    %8554 = vmatpush.bf16.msra.mxu0 %v7717
    %8555 = vmatpush.bf16.msra.mxu0 %v7705
    %8556 = vmatpush.bf16.msra.mxu0 %v7693
    %8557 = vmatpush.bf16.msra.mxu0 %v7681
    %8558 = vmatpush.bf16.msra.mxu0 %v7669
    %8559 = vmatpush.bf16.msra.mxu0 %v7657
    %8560 = vmatpush.bf16.msra.mxu0 %v7645
    %8561 = vmatpush.bf16.msra.mxu0 %v7633
    %8562 = vmatmul.bf16.gmra.mxu0 %v6040
    %v8563 = vpop.f32.mrf.mxu0
    %v8564 = vadd.f32 %v6457, %v8563
    %v8565 = vpop.f32.mrf.mxu0
    %8566 = vdwg.mxu0
    %8567 = vmatpush.bf16.msra.mxu0 %v7813
    %8568 = vmatpush.bf16.msra.mxu0 %v7801
    %8569 = vmatpush.bf16.msra.mxu0 %v7789
    %8570 = vmatpush.bf16.msra.mxu0 %v7777
    %8571 = vmatpush.bf16.msra.mxu0 %v7765
    %8572 = vmatpush.bf16.msra.mxu0 %v7753
    %8573 = vmatpush.bf16.msra.mxu0 %v7741
    %8574 = vmatpush.bf16.msra.mxu0 %v7729
    %8575 = vmatmul.bf16.gmra.mxu0 %v6048
    %v8576 = vpop.f32.mrf.mxu0
    %v8577 = vadd.f32 %v8564, %v8576
    %v8578 = vpop.f32.mrf.mxu0
    %8579 = vdwg.mxu0
    %8580 = vmatpush.bf16.msra.mxu0 %v7909
    %8581 = vmatpush.bf16.msra.mxu0 %v7897
    %8582 = vmatpush.bf16.msra.mxu0 %v7885
    %8583 = vmatpush.bf16.msra.mxu0 %v7873
    %8584 = vmatpush.bf16.msra.mxu0 %v7861
    %8585 = vmatpush.bf16.msra.mxu0 %v7849
    %8586 = vmatpush.bf16.msra.mxu0 %v7837
    %8587 = vmatpush.bf16.msra.mxu0 %v7825
    %8588 = vmatmul.bf16.gmra.mxu0 %v6056
    %v8589 = vpop.f32.mrf.mxu0
    %v8590 = vadd.f32 %v8577, %v8589
    %v8591 = vpop.f32.mrf.mxu0
    %8592 = vdwg.mxu0
    %8593 = vmatpush.bf16.msra.mxu0 %v8005
    %8594 = vmatpush.bf16.msra.mxu0 %v7993
    %8595 = vmatpush.bf16.msra.mxu0 %v7981
    %8596 = vmatpush.bf16.msra.mxu0 %v7969
    %8597 = vmatpush.bf16.msra.mxu0 %v7957
    %8598 = vmatpush.bf16.msra.mxu0 %v7945
    %8599 = vmatpush.bf16.msra.mxu0 %v7933
    %8600 = vmatpush.bf16.msra.mxu0 %v7921
    %8601 = vmatmul.bf16.gmra.mxu0 %v6064
    %v8602 = vpop.f32.mrf.mxu0
    %v8603 = vadd.f32 %v8590, %v8602
    %v8604 = vpop.f32.mrf.mxu0
    %8605 = vdwg.mxu0
    %8606 = vmatpush.bf16.msra.mxu0 %v7718
    %8607 = vmatpush.bf16.msra.mxu0 %v7706
    %8608 = vmatpush.bf16.msra.mxu0 %v7694
    %8609 = vmatpush.bf16.msra.mxu0 %v7682
    %8610 = vmatpush.bf16.msra.mxu0 %v7670
    %8611 = vmatpush.bf16.msra.mxu0 %v7658
    %8612 = vmatpush.bf16.msra.mxu0 %v7646
    %8613 = vmatpush.bf16.msra.mxu0 %v7634
    %8614 = vmatmul.bf16.gmra.mxu0 %v6040
    %v8615 = vpop.f32.mrf.mxu0
    %v8616 = vadd.f32 %v6458, %v8615
    %v8617 = vpop.f32.mrf.mxu0
    %8618 = vdwg.mxu0
    %8619 = vmatpush.bf16.msra.mxu0 %v7814
    %8620 = vmatpush.bf16.msra.mxu0 %v7802
    %8621 = vmatpush.bf16.msra.mxu0 %v7790
    %8622 = vmatpush.bf16.msra.mxu0 %v7778
    %8623 = vmatpush.bf16.msra.mxu0 %v7766
    %8624 = vmatpush.bf16.msra.mxu0 %v7754
    %8625 = vmatpush.bf16.msra.mxu0 %v7742
    %8626 = vmatpush.bf16.msra.mxu0 %v7730
    %8627 = vmatmul.bf16.gmra.mxu0 %v6048
    %v8628 = vpop.f32.mrf.mxu0
    %v8629 = vadd.f32 %v8616, %v8628
    %v8630 = vpop.f32.mrf.mxu0
    %8631 = vdwg.mxu0
    %8632 = vmatpush.bf16.msra.mxu0 %v7910
    %8633 = vmatpush.bf16.msra.mxu0 %v7898
    %8634 = vmatpush.bf16.msra.mxu0 %v7886
    %8635 = vmatpush.bf16.msra.mxu0 %v7874
    %8636 = vmatpush.bf16.msra.mxu0 %v7862
    %8637 = vmatpush.bf16.msra.mxu0 %v7850
    %8638 = vmatpush.bf16.msra.mxu0 %v7838
    %8639 = vmatpush.bf16.msra.mxu0 %v7826
    %8640 = vmatmul.bf16.gmra.mxu0 %v6056
    %v8641 = vpop.f32.mrf.mxu0
    %v8642 = vadd.f32 %v8629, %v8641
    %v8643 = vpop.f32.mrf.mxu0
    %8644 = vdwg.mxu0
    %8645 = vmatpush.bf16.msra.mxu0 %v8006
    %8646 = vmatpush.bf16.msra.mxu0 %v7994
    %8647 = vmatpush.bf16.msra.mxu0 %v7982
    %8648 = vmatpush.bf16.msra.mxu0 %v7970
    %8649 = vmatpush.bf16.msra.mxu0 %v7958
    %8650 = vmatpush.bf16.msra.mxu0 %v7946
    %8651 = vmatpush.bf16.msra.mxu0 %v7934
    %8652 = vmatpush.bf16.msra.mxu0 %v7922
    %8653 = vmatmul.bf16.gmra.mxu0 %v6064
    %v8654 = vpop.f32.mrf.mxu0
    %v8655 = vadd.f32 %v8642, %v8654
    %v8656 = vpop.f32.mrf.mxu0
    %8657 = vdwg.mxu0
    %8658 = vmatpush.bf16.msra.mxu0 %v7719
    %8659 = vmatpush.bf16.msra.mxu0 %v7707
    %8660 = vmatpush.bf16.msra.mxu0 %v7695
    %8661 = vmatpush.bf16.msra.mxu0 %v7683
    %8662 = vmatpush.bf16.msra.mxu0 %v7671
    %8663 = vmatpush.bf16.msra.mxu0 %v7659
    %8664 = vmatpush.bf16.msra.mxu0 %v7647
    %8665 = vmatpush.bf16.msra.mxu0 %v7635
    %8666 = vmatmul.bf16.gmra.mxu0 %v6040
    %v8667 = vpop.f32.mrf.mxu0
    %v8668 = vadd.f32 %v6459, %v8667
    %v8669 = vpop.f32.mrf.mxu0
    %8670 = vdwg.mxu0
    %8671 = vmatpush.bf16.msra.mxu0 %v7815
    %8672 = vmatpush.bf16.msra.mxu0 %v7803
    %8673 = vmatpush.bf16.msra.mxu0 %v7791
    %8674 = vmatpush.bf16.msra.mxu0 %v7779
    %8675 = vmatpush.bf16.msra.mxu0 %v7767
    %8676 = vmatpush.bf16.msra.mxu0 %v7755
    %8677 = vmatpush.bf16.msra.mxu0 %v7743
    %8678 = vmatpush.bf16.msra.mxu0 %v7731
    %8679 = vmatmul.bf16.gmra.mxu0 %v6048
    %v8680 = vpop.f32.mrf.mxu0
    %v8681 = vadd.f32 %v8668, %v8680
    %v8682 = vpop.f32.mrf.mxu0
    %8683 = vdwg.mxu0
    %8684 = vmatpush.bf16.msra.mxu0 %v7911
    %8685 = vmatpush.bf16.msra.mxu0 %v7899
    %8686 = vmatpush.bf16.msra.mxu0 %v7887
    %8687 = vmatpush.bf16.msra.mxu0 %v7875
    %8688 = vmatpush.bf16.msra.mxu0 %v7863
    %8689 = vmatpush.bf16.msra.mxu0 %v7851
    %8690 = vmatpush.bf16.msra.mxu0 %v7839
    %8691 = vmatpush.bf16.msra.mxu0 %v7827
    %8692 = vmatmul.bf16.gmra.mxu0 %v6056
    %v8693 = vpop.f32.mrf.mxu0
    %v8694 = vadd.f32 %v8681, %v8693
    %v8695 = vpop.f32.mrf.mxu0
    %8696 = vdwg.mxu0
    %8697 = vmatpush.bf16.msra.mxu0 %v8007
    %8698 = vmatpush.bf16.msra.mxu0 %v7995
    %8699 = vmatpush.bf16.msra.mxu0 %v7983
    %8700 = vmatpush.bf16.msra.mxu0 %v7971
    %8701 = vmatpush.bf16.msra.mxu0 %v7959
    %8702 = vmatpush.bf16.msra.mxu0 %v7947
    %8703 = vmatpush.bf16.msra.mxu0 %v7935
    %8704 = vmatpush.bf16.msra.mxu0 %v7923
    %8705 = vmatmul.bf16.gmra.mxu0 %v6064
    %v8706 = vpop.f32.mrf.mxu0
    %v8707 = vadd.f32 %v8694, %v8706
    %v8708 = vpop.f32.mrf.mxu0
    %8709 = vdwg.mxu0
    %8710 = vmatpush.bf16.msra.mxu0 %v7720
    %8711 = vmatpush.bf16.msra.mxu0 %v7708
    %8712 = vmatpush.bf16.msra.mxu0 %v7696
    %8713 = vmatpush.bf16.msra.mxu0 %v7684
    %8714 = vmatpush.bf16.msra.mxu0 %v7672
    %8715 = vmatpush.bf16.msra.mxu0 %v7660
    %8716 = vmatpush.bf16.msra.mxu0 %v7648
    %8717 = vmatpush.bf16.msra.mxu0 %v7636
    %8718 = vmatmul.bf16.gmra.mxu0 %v6040
    %v8719 = vpop.f32.mrf.mxu0
    %v8720 = vadd.f32 %v6460, %v8719
    %v8721 = vpop.f32.mrf.mxu0
    %8722 = vdwg.mxu0
    %8723 = vmatpush.bf16.msra.mxu0 %v7816
    %8724 = vmatpush.bf16.msra.mxu0 %v7804
    %8725 = vmatpush.bf16.msra.mxu0 %v7792
    %8726 = vmatpush.bf16.msra.mxu0 %v7780
    %8727 = vmatpush.bf16.msra.mxu0 %v7768
    %8728 = vmatpush.bf16.msra.mxu0 %v7756
    %8729 = vmatpush.bf16.msra.mxu0 %v7744
    %8730 = vmatpush.bf16.msra.mxu0 %v7732
    %8731 = vmatmul.bf16.gmra.mxu0 %v6048
    %v8732 = vpop.f32.mrf.mxu0
    %v8733 = vadd.f32 %v8720, %v8732
    %v8734 = vpop.f32.mrf.mxu0
    %8735 = vdwg.mxu0
    %8736 = vmatpush.bf16.msra.mxu0 %v7912
    %8737 = vmatpush.bf16.msra.mxu0 %v7900
    %8738 = vmatpush.bf16.msra.mxu0 %v7888
    %8739 = vmatpush.bf16.msra.mxu0 %v7876
    %8740 = vmatpush.bf16.msra.mxu0 %v7864
    %8741 = vmatpush.bf16.msra.mxu0 %v7852
    %8742 = vmatpush.bf16.msra.mxu0 %v7840
    %8743 = vmatpush.bf16.msra.mxu0 %v7828
    %8744 = vmatmul.bf16.gmra.mxu0 %v6056
    %v8745 = vpop.f32.mrf.mxu0
    %v8746 = vadd.f32 %v8733, %v8745
    %v8747 = vpop.f32.mrf.mxu0
    %8748 = vdwg.mxu0
    %8749 = vmatpush.bf16.msra.mxu0 %v8008
    %8750 = vmatpush.bf16.msra.mxu0 %v7996
    %8751 = vmatpush.bf16.msra.mxu0 %v7984
    %8752 = vmatpush.bf16.msra.mxu0 %v7972
    %8753 = vmatpush.bf16.msra.mxu0 %v7960
    %8754 = vmatpush.bf16.msra.mxu0 %v7948
    %8755 = vmatpush.bf16.msra.mxu0 %v7936
    %8756 = vmatpush.bf16.msra.mxu0 %v7924
    %8757 = vmatmul.bf16.gmra.mxu0 %v6064
    %v8758 = vpop.f32.mrf.mxu0
    %v8759 = vadd.f32 %v8746, %v8758
    %v8760 = vpop.f32.mrf.mxu0
    %8761 = vdwg.mxu0
    %8762 = vmatpush.bf16.msra.mxu0 %v7721
    %8763 = vmatpush.bf16.msra.mxu0 %v7709
    %8764 = vmatpush.bf16.msra.mxu0 %v7697
    %8765 = vmatpush.bf16.msra.mxu0 %v7685
    %8766 = vmatpush.bf16.msra.mxu0 %v7673
    %8767 = vmatpush.bf16.msra.mxu0 %v7661
    %8768 = vmatpush.bf16.msra.mxu0 %v7649
    %8769 = vmatpush.bf16.msra.mxu0 %v7637
    %8770 = vmatmul.bf16.gmra.mxu0 %v6040
    %v8771 = vpop.f32.mrf.mxu0
    %v8772 = vadd.f32 %v6461, %v8771
    %v8773 = vpop.f32.mrf.mxu0
    %8774 = vdwg.mxu0
    %8775 = vmatpush.bf16.msra.mxu0 %v7817
    %8776 = vmatpush.bf16.msra.mxu0 %v7805
    %8777 = vmatpush.bf16.msra.mxu0 %v7793
    %8778 = vmatpush.bf16.msra.mxu0 %v7781
    %8779 = vmatpush.bf16.msra.mxu0 %v7769
    %8780 = vmatpush.bf16.msra.mxu0 %v7757
    %8781 = vmatpush.bf16.msra.mxu0 %v7745
    %8782 = vmatpush.bf16.msra.mxu0 %v7733
    %8783 = vmatmul.bf16.gmra.mxu0 %v6048
    %v8784 = vpop.f32.mrf.mxu0
    %v8785 = vadd.f32 %v8772, %v8784
    %v8786 = vpop.f32.mrf.mxu0
    %8787 = vdwg.mxu0
    %8788 = vmatpush.bf16.msra.mxu0 %v7913
    %8789 = vmatpush.bf16.msra.mxu0 %v7901
    %8790 = vmatpush.bf16.msra.mxu0 %v7889
    %8791 = vmatpush.bf16.msra.mxu0 %v7877
    %8792 = vmatpush.bf16.msra.mxu0 %v7865
    %8793 = vmatpush.bf16.msra.mxu0 %v7853
    %8794 = vmatpush.bf16.msra.mxu0 %v7841
    %8795 = vmatpush.bf16.msra.mxu0 %v7829
    %8796 = vmatmul.bf16.gmra.mxu0 %v6056
    %v8797 = vpop.f32.mrf.mxu0
    %v8798 = vadd.f32 %v8785, %v8797
    %v8799 = vpop.f32.mrf.mxu0
    %8800 = vdwg.mxu0
    %8801 = vmatpush.bf16.msra.mxu0 %v8009
    %8802 = vmatpush.bf16.msra.mxu0 %v7997
    %8803 = vmatpush.bf16.msra.mxu0 %v7985
    %8804 = vmatpush.bf16.msra.mxu0 %v7973
    %8805 = vmatpush.bf16.msra.mxu0 %v7961
    %8806 = vmatpush.bf16.msra.mxu0 %v7949
    %8807 = vmatpush.bf16.msra.mxu0 %v7937
    %8808 = vmatpush.bf16.msra.mxu0 %v7925
    %8809 = vmatmul.bf16.gmra.mxu0 %v6064
    %v8810 = vpop.f32.mrf.mxu0
    %v8811 = vadd.f32 %v8798, %v8810
    %v8812 = vpop.f32.mrf.mxu0
    %8813 = vdwg.mxu0
    %8814 = vmatpush.bf16.msra.mxu0 %v7722
    %8815 = vmatpush.bf16.msra.mxu0 %v7710
    %8816 = vmatpush.bf16.msra.mxu0 %v7698
    %8817 = vmatpush.bf16.msra.mxu0 %v7686
    %8818 = vmatpush.bf16.msra.mxu0 %v7674
    %8819 = vmatpush.bf16.msra.mxu0 %v7662
    %8820 = vmatpush.bf16.msra.mxu0 %v7650
    %8821 = vmatpush.bf16.msra.mxu0 %v7638
    %8822 = vmatmul.bf16.gmra.mxu0 %v6040
    %v8823 = vpop.f32.mrf.mxu0
    %v8824 = vadd.f32 %v6462, %v8823
    %v8825 = vpop.f32.mrf.mxu0
    %8826 = vdwg.mxu0
    %8827 = vmatpush.bf16.msra.mxu0 %v7818
    %8828 = vmatpush.bf16.msra.mxu0 %v7806
    %8829 = vmatpush.bf16.msra.mxu0 %v7794
    %8830 = vmatpush.bf16.msra.mxu0 %v7782
    %8831 = vmatpush.bf16.msra.mxu0 %v7770
    %8832 = vmatpush.bf16.msra.mxu0 %v7758
    %8833 = vmatpush.bf16.msra.mxu0 %v7746
    %8834 = vmatpush.bf16.msra.mxu0 %v7734
    %8835 = vmatmul.bf16.gmra.mxu0 %v6048
    %v8836 = vpop.f32.mrf.mxu0
    %v8837 = vadd.f32 %v8824, %v8836
    %v8838 = vpop.f32.mrf.mxu0
    %8839 = vdwg.mxu0
    %8840 = vmatpush.bf16.msra.mxu0 %v7914
    %8841 = vmatpush.bf16.msra.mxu0 %v7902
    %8842 = vmatpush.bf16.msra.mxu0 %v7890
    %8843 = vmatpush.bf16.msra.mxu0 %v7878
    %8844 = vmatpush.bf16.msra.mxu0 %v7866
    %8845 = vmatpush.bf16.msra.mxu0 %v7854
    %8846 = vmatpush.bf16.msra.mxu0 %v7842
    %8847 = vmatpush.bf16.msra.mxu0 %v7830
    %8848 = vmatmul.bf16.gmra.mxu0 %v6056
    %v8849 = vpop.f32.mrf.mxu0
    %v8850 = vadd.f32 %v8837, %v8849
    %v8851 = vpop.f32.mrf.mxu0
    %8852 = vdwg.mxu0
    %8853 = vmatpush.bf16.msra.mxu0 %v8010
    %8854 = vmatpush.bf16.msra.mxu0 %v7998
    %8855 = vmatpush.bf16.msra.mxu0 %v7986
    %8856 = vmatpush.bf16.msra.mxu0 %v7974
    %8857 = vmatpush.bf16.msra.mxu0 %v7962
    %8858 = vmatpush.bf16.msra.mxu0 %v7950
    %8859 = vmatpush.bf16.msra.mxu0 %v7938
    %8860 = vmatpush.bf16.msra.mxu0 %v7926
    %8861 = vmatmul.bf16.gmra.mxu0 %v6064
    %v8862 = vpop.f32.mrf.mxu0
    %v8863 = vadd.f32 %v8850, %v8862
    %v8864 = vpop.f32.mrf.mxu0
    %8865 = vdwg.mxu0
    %8866 = vmatpush.bf16.msra.mxu0 %v7723
    %8867 = vmatpush.bf16.msra.mxu0 %v7711
    %8868 = vmatpush.bf16.msra.mxu0 %v7699
    %8869 = vmatpush.bf16.msra.mxu0 %v7687
    %8870 = vmatpush.bf16.msra.mxu0 %v7675
    %8871 = vmatpush.bf16.msra.mxu0 %v7663
    %8872 = vmatpush.bf16.msra.mxu0 %v7651
    %8873 = vmatpush.bf16.msra.mxu0 %v7639
    %8874 = vmatmul.bf16.gmra.mxu0 %v6040
    %v8875 = vpop.f32.mrf.mxu0
    %v8876 = vadd.f32 %v6463, %v8875
    %v8877 = vpop.f32.mrf.mxu0
    %8878 = vdwg.mxu0
    %8879 = vmatpush.bf16.msra.mxu0 %v7819
    %8880 = vmatpush.bf16.msra.mxu0 %v7807
    %8881 = vmatpush.bf16.msra.mxu0 %v7795
    %8882 = vmatpush.bf16.msra.mxu0 %v7783
    %8883 = vmatpush.bf16.msra.mxu0 %v7771
    %8884 = vmatpush.bf16.msra.mxu0 %v7759
    %8885 = vmatpush.bf16.msra.mxu0 %v7747
    %8886 = vmatpush.bf16.msra.mxu0 %v7735
    %8887 = vmatmul.bf16.gmra.mxu0 %v6048
    %v8888 = vpop.f32.mrf.mxu0
    %v8889 = vadd.f32 %v8876, %v8888
    %v8890 = vpop.f32.mrf.mxu0
    %8891 = vdwg.mxu0
    %8892 = vmatpush.bf16.msra.mxu0 %v7915
    %8893 = vmatpush.bf16.msra.mxu0 %v7903
    %8894 = vmatpush.bf16.msra.mxu0 %v7891
    %8895 = vmatpush.bf16.msra.mxu0 %v7879
    %8896 = vmatpush.bf16.msra.mxu0 %v7867
    %8897 = vmatpush.bf16.msra.mxu0 %v7855
    %8898 = vmatpush.bf16.msra.mxu0 %v7843
    %8899 = vmatpush.bf16.msra.mxu0 %v7831
    %8900 = vmatmul.bf16.gmra.mxu0 %v6056
    %v8901 = vpop.f32.mrf.mxu0
    %v8902 = vadd.f32 %v8889, %v8901
    %v8903 = vpop.f32.mrf.mxu0
    %8904 = vdwg.mxu0
    %8905 = vmatpush.bf16.msra.mxu0 %v8011
    %8906 = vmatpush.bf16.msra.mxu0 %v7999
    %8907 = vmatpush.bf16.msra.mxu0 %v7987
    %8908 = vmatpush.bf16.msra.mxu0 %v7975
    %8909 = vmatpush.bf16.msra.mxu0 %v7963
    %8910 = vmatpush.bf16.msra.mxu0 %v7951
    %8911 = vmatpush.bf16.msra.mxu0 %v7939
    %8912 = vmatpush.bf16.msra.mxu0 %v7927
    %8913 = vmatmul.bf16.gmra.mxu0 %v6064
    %v8914 = vpop.f32.mrf.mxu0
    %v8915 = vadd.f32 %v8902, %v8914
    %v8916 = vpop.f32.mrf.mxu0
    %8917 = vdwg.mxu0
    %8918 = vmatpush.bf16.msra.mxu0 %v7724
    %8919 = vmatpush.bf16.msra.mxu0 %v7712
    %8920 = vmatpush.bf16.msra.mxu0 %v7700
    %8921 = vmatpush.bf16.msra.mxu0 %v7688
    %8922 = vmatpush.bf16.msra.mxu0 %v7676
    %8923 = vmatpush.bf16.msra.mxu0 %v7664
    %8924 = vmatpush.bf16.msra.mxu0 %v7652
    %8925 = vmatpush.bf16.msra.mxu0 %v7640
    %8926 = vmatmul.bf16.gmra.mxu0 %v6040
    %v8927 = vpop.f32.mrf.mxu0
    %v8928 = vadd.f32 %v6464, %v8927
    %v8929 = vpop.f32.mrf.mxu0
    %8930 = vdwg.mxu0
    %8931 = vmatpush.bf16.msra.mxu0 %v7820
    %8932 = vmatpush.bf16.msra.mxu0 %v7808
    %8933 = vmatpush.bf16.msra.mxu0 %v7796
    %8934 = vmatpush.bf16.msra.mxu0 %v7784
    %8935 = vmatpush.bf16.msra.mxu0 %v7772
    %8936 = vmatpush.bf16.msra.mxu0 %v7760
    %8937 = vmatpush.bf16.msra.mxu0 %v7748
    %8938 = vmatpush.bf16.msra.mxu0 %v7736
    %8939 = vmatmul.bf16.gmra.mxu0 %v6048
    %v8940 = vpop.f32.mrf.mxu0
    %v8941 = vadd.f32 %v8928, %v8940
    %v8942 = vpop.f32.mrf.mxu0
    %8943 = vdwg.mxu0
    %8944 = vmatpush.bf16.msra.mxu0 %v7916
    %8945 = vmatpush.bf16.msra.mxu0 %v7904
    %8946 = vmatpush.bf16.msra.mxu0 %v7892
    %8947 = vmatpush.bf16.msra.mxu0 %v7880
    %8948 = vmatpush.bf16.msra.mxu0 %v7868
    %8949 = vmatpush.bf16.msra.mxu0 %v7856
    %8950 = vmatpush.bf16.msra.mxu0 %v7844
    %8951 = vmatpush.bf16.msra.mxu0 %v7832
    %8952 = vmatmul.bf16.gmra.mxu0 %v6056
    %v8953 = vpop.f32.mrf.mxu0
    %v8954 = vadd.f32 %v8941, %v8953
    %v8955 = vpop.f32.mrf.mxu0
    %8956 = vdwg.mxu0
    %8957 = vmatpush.bf16.msra.mxu0 %v8012
    %8958 = vmatpush.bf16.msra.mxu0 %v8000
    %8959 = vmatpush.bf16.msra.mxu0 %v7988
    %8960 = vmatpush.bf16.msra.mxu0 %v7976
    %8961 = vmatpush.bf16.msra.mxu0 %v7964
    %8962 = vmatpush.bf16.msra.mxu0 %v7952
    %8963 = vmatpush.bf16.msra.mxu0 %v7940
    %8964 = vmatpush.bf16.msra.mxu0 %v7928
    %8965 = vmatmul.bf16.gmra.mxu0 %v6064
    %v8966 = vpop.f32.mrf.mxu0
    %v8967 = vadd.f32 %v8954, %v8966
    %v8968 = vpop.f32.mrf.mxu0
    %8969 = vdwg.mxu0
    %8970 = vmatpush.bf16.msra.mxu0 %v7725
    %8971 = vmatpush.bf16.msra.mxu0 %v7713
    %8972 = vmatpush.bf16.msra.mxu0 %v7701
    %8973 = vmatpush.bf16.msra.mxu0 %v7689
    %8974 = vmatpush.bf16.msra.mxu0 %v7677
    %8975 = vmatpush.bf16.msra.mxu0 %v7665
    %8976 = vmatpush.bf16.msra.mxu0 %v7653
    %8977 = vmatpush.bf16.msra.mxu0 %v7641
    %8978 = vmatmul.bf16.gmra.mxu0 %v6040
    %v8979 = vpop.f32.mrf.mxu0
    %v8980 = vadd.f32 %v6465, %v8979
    %v8981 = vpop.f32.mrf.mxu0
    %8982 = vdwg.mxu0
    %8983 = vmatpush.bf16.msra.mxu0 %v7821
    %8984 = vmatpush.bf16.msra.mxu0 %v7809
    %8985 = vmatpush.bf16.msra.mxu0 %v7797
    %8986 = vmatpush.bf16.msra.mxu0 %v7785
    %8987 = vmatpush.bf16.msra.mxu0 %v7773
    %8988 = vmatpush.bf16.msra.mxu0 %v7761
    %8989 = vmatpush.bf16.msra.mxu0 %v7749
    %8990 = vmatpush.bf16.msra.mxu0 %v7737
    %8991 = vmatmul.bf16.gmra.mxu0 %v6048
    %v8992 = vpop.f32.mrf.mxu0
    %v8993 = vadd.f32 %v8980, %v8992
    %v8994 = vpop.f32.mrf.mxu0
    %8995 = vdwg.mxu0
    %8996 = vmatpush.bf16.msra.mxu0 %v7917
    %8997 = vmatpush.bf16.msra.mxu0 %v7905
    %8998 = vmatpush.bf16.msra.mxu0 %v7893
    %8999 = vmatpush.bf16.msra.mxu0 %v7881
    %9000 = vmatpush.bf16.msra.mxu0 %v7869
    %9001 = vmatpush.bf16.msra.mxu0 %v7857
    %9002 = vmatpush.bf16.msra.mxu0 %v7845
    %9003 = vmatpush.bf16.msra.mxu0 %v7833
    %9004 = vmatmul.bf16.gmra.mxu0 %v6056
    %v9005 = vpop.f32.mrf.mxu0
    %v9006 = vadd.f32 %v8993, %v9005
    %v9007 = vpop.f32.mrf.mxu0
    %9008 = vdwg.mxu0
    %9009 = vmatpush.bf16.msra.mxu0 %v8013
    %9010 = vmatpush.bf16.msra.mxu0 %v8001
    %9011 = vmatpush.bf16.msra.mxu0 %v7989
    %9012 = vmatpush.bf16.msra.mxu0 %v7977
    %9013 = vmatpush.bf16.msra.mxu0 %v7965
    %9014 = vmatpush.bf16.msra.mxu0 %v7953
    %9015 = vmatpush.bf16.msra.mxu0 %v7941
    %9016 = vmatpush.bf16.msra.mxu0 %v7929
    %9017 = vmatmul.bf16.gmra.mxu0 %v6064
    %v9018 = vpop.f32.mrf.mxu0
    %v9019 = vadd.f32 %v9006, %v9018
    %v9020 = vpop.f32.mrf.mxu0
    %9021 = vdwg.mxu0
    %v9022 = vsub.f32 %v8655, %v8759
    %v9023 = vsub.f32 %v8707, %v8811
    %v9024 = vmul.f32 %v8447, %v9022
    %v9025 = vmul.f32 %v8499, %v9023
    %v9026 = vmul.f32 %v8551, %v9022
    %v9027 = vmul.f32 %v8603, %v9023
    %v9028 = vpack.c.bf16 %v9026, %v9024
    %v9029 = vpack.c.bf16 %v9027, %v9025
    %v9030 = vld [vmem:[%s11] sm:$0xf]
    %v9031 = vld [vmem:[%s11 + $0x4] sm:$0xf]
    %v9032 = vld [vmem:[%s11 + $0x8] sm:$0xf]
    %v9033 = vld [vmem:[%s11 + $0xc] sm:$0xf]
    %v9034 = vld [vmem:[%s11 + $0x10] sm:$0xf]
    %v9035 = vld [vmem:[%s11 + $0x14] sm:$0xf]
    %v9036 = vld [vmem:[%s11 + $0x18] sm:$0xf]
    %v9037 = vld [vmem:[%s11 + $0x1c] sm:$0xf]
    %v9038 = vld [vmem:[%s11 + $0x20] sm:$0xf]
    %v9039 = vld [vmem:[%s11 + $0x24] sm:$0xf]
    %v9040 = vld [vmem:[%s11 + $0x28] sm:$0xf]
    %v9041 = vld [vmem:[%s11 + $0x2c] sm:$0xf]
    %v9042 = vld [vmem:[%s11 + $0x30] sm:$0xf]
    %v9043 = vld [vmem:[%s11 + $0x34] sm:$0xf]
    %v9044 = vld [vmem:[%s11 + $0x38] sm:$0xf]
    %v9045 = vld [vmem:[%s11 + $0x3c] sm:$0xf]
    %v9046 = vld [vmem:[%s11 + $0x40] sm:$0xf]
    %v9047 = vld [vmem:[%s11 + $0x44] sm:$0xf]
    %v9048 = vld [vmem:[%s11 + $0x48] sm:$0xf]
    %v9049 = vld [vmem:[%s11 + $0x4c] sm:$0xf]
    %v9050 = vld [vmem:[%s11 + $0x50] sm:$0xf]
    %v9051 = vld [vmem:[%s11 + $0x54] sm:$0xf]
    %v9052 = vld [vmem:[%s11 + $0x58] sm:$0xf]
    %v9053 = vld [vmem:[%s11 + $0x5c] sm:$0xf]
    %v9054 = vld [vmem:[%s11 + $0x60] sm:$0xf]
    %v9055 = vld [vmem:[%s11 + $0x64] sm:$0xf]
    %v9056 = vld [vmem:[%s11 + $0x68] sm:$0xf]
    %v9057 = vld [vmem:[%s11 + $0x6c] sm:$0xf]
    %v9058 = vld [vmem:[%s11 + $0x70] sm:$0xf]
    %v9059 = vld [vmem:[%s11 + $0x74] sm:$0xf]
    %v9060 = vld [vmem:[%s11 + $0x78] sm:$0xf]
    %v9061 = vld [vmem:[%s11 + $0x7c] sm:$0xf]
    %v9094 = vunpack.c.l.b16 %v9030
    %v9095 = vunpack.c.l.b16 %v9031
    %v9096 = vunpack.c.l.b16 %v9032
    %v9097 = vunpack.c.l.b16 %v9033
    %v9098 = vunpack.c.l.b16 %v9034
    %v9099 = vunpack.c.l.b16 %v9035
    %v9100 = vunpack.c.l.b16 %v9036
    %v9101 = vunpack.c.l.b16 %v9037
    %v9102 = vunpack.c.l.b16 %v9038
    %v9103 = vunpack.c.l.b16 %v9039
    %v9104 = vunpack.c.l.b16 %v9040
    %v9105 = vunpack.c.l.b16 %v9041
    %v9106 = vunpack.c.l.b16 %v9042
    %v9107 = vunpack.c.l.b16 %v9043
    %v9108 = vunpack.c.l.b16 %v9044
    %v9109 = vunpack.c.l.b16 %v9045
    %v9110 = vunpack.c.l.b16 %v9046
    %v9111 = vunpack.c.l.b16 %v9047
    %v9112 = vunpack.c.l.b16 %v9048
    %v9113 = vunpack.c.l.b16 %v9049
    %v9114 = vunpack.c.l.b16 %v9050
    %v9115 = vunpack.c.l.b16 %v9051
    %v9116 = vunpack.c.l.b16 %v9052
    %v9117 = vunpack.c.l.b16 %v9053
    %v9118 = vunpack.c.l.b16 %v9054
    %v9119 = vunpack.c.l.b16 %v9055
    %v9120 = vunpack.c.l.b16 %v9056
    %v9121 = vunpack.c.l.b16 %v9057
    %v9122 = vunpack.c.l.b16 %v9058
    %v9123 = vunpack.c.l.b16 %v9059
    %v9124 = vunpack.c.l.b16 %v9060
    %v9125 = vunpack.c.l.b16 %v9061
    %v9126 = vpack.c.b16 %v9095, %v9094
    %v9127 = vpack.c.b16 %v9097, %v9096
    %v9128 = vpack.c.b16 %v9099, %v9098
    %v9129 = vpack.c.b16 %v9101, %v9100
    %v9130 = vpack.c.b16 %v9103, %v9102
    %v9131 = vpack.c.b16 %v9105, %v9104
    %v9132 = vpack.c.b16 %v9107, %v9106
    %v9133 = vpack.c.b16 %v9109, %v9108
    %v9134 = vpack.c.b16 %v9111, %v9110
    %v9135 = vpack.c.b16 %v9113, %v9112
    %v9136 = vpack.c.b16 %v9115, %v9114
    %v9137 = vpack.c.b16 %v9117, %v9116
    %v9138 = vpack.c.b16 %v9119, %v9118
    %v9139 = vpack.c.b16 %v9121, %v9120
    %v9140 = vpack.c.b16 %v9123, %v9122
    %v9141 = vpack.c.b16 %v9125, %v9124
    %9158 = vmatpush.bf16.msra.mxu0 %v9133
    %9159 = vmatpush.bf16.msra.mxu0 %v9132
    %9160 = vmatpush.bf16.msra.mxu0 %v9131
    %9161 = vmatpush.bf16.msra.mxu0 %v9130
    %9162 = vmatpush.bf16.msra.mxu0 %v9129
    %9163 = vmatpush.bf16.msra.mxu0 %v9128
    %9164 = vmatpush.bf16.msra.mxu0 %v9127
    %9165 = vmatpush.bf16.msra.mxu0 %v9126
    %9166 = vmatmul.bf16.gmra.mxu0 %v9028
    %v9167 = vpop.f32.mrf.mxu0
    %v9168 = vadd.f32 0.0, %v9167
    %v9169 = vpop.f32.mrf.mxu0
    %v9170 = vadd.f32 0.0, %v9169
    %9171 = vdwg.mxu0
    %9172 = vmatpush.bf16.msra.mxu0 %v9141
    %9173 = vmatpush.bf16.msra.mxu0 %v9140
    %9174 = vmatpush.bf16.msra.mxu0 %v9139
    %9175 = vmatpush.bf16.msra.mxu0 %v9138
    %9176 = vmatpush.bf16.msra.mxu0 %v9137
    %9177 = vmatpush.bf16.msra.mxu0 %v9136
    %9178 = vmatpush.bf16.msra.mxu0 %v9135
    %9179 = vmatpush.bf16.msra.mxu0 %v9134
    %9180 = vmatmul.bf16.gmra.mxu0 %v9029
    %v9181 = vpop.f32.mrf.mxu0
    %v9182 = vadd.f32 %v9168, %v9181
    %v9183 = vpop.f32.mrf.mxu0
    %v9184 = vadd.f32 %v9170, %v9183
    %9185 = vdwg.mxu0
    %v9186 = vsub.f32 0.0, %v9182
    %v9187 = vsub.f32 0.0, %v9184
    %v9188 = vmul.f32 %v9186, 1.442695
    %v9189 = vpow.pop %v9188
    %v9190 = vmul.f32 %v9187, 1.442695
    %v9191 = vpow.pop %v9190
    %v9192 = vadd.f32 %v9189, 1.0
    %v9193 = vadd.f32 %v9191, 1.0
    %v9194 = vrcp.pop %v9192
    %v9195 = vrcp.pop %v9193
    %v9196 = vpack.c.bf16 %v9195, %v9194
    %v9197 = vld [vmem:[#allocation18] sm:$0xff]
    %v9198 = vld [vmem:[#allocation18 + $0x8] sm:$0xff]
    %v9199 = vld [vmem:[#allocation18 + $0x10] sm:$0xff]
    %v9200 = vld [vmem:[#allocation18 + $0x18] sm:$0xff]
    %v9201 = vld [vmem:[#allocation18 + $0x20] sm:$0xff]
    %v9202 = vld [vmem:[#allocation18 + $0x28] sm:$0xff]
    %v9203 = vld [vmem:[#allocation18 + $0x30] sm:$0xff]
    %v9204 = vld [vmem:[#allocation18 + $0x38] sm:$0xff]
    %v9213 = vunpack.c.l.b16 %v9197
    %v9214 = vunpack.c.h.b16 %v9197
    %v9215 = vunpack.c.l.b16 %v9198
    %v9216 = vunpack.c.h.b16 %v9198
    %v9217 = vunpack.c.l.b16 %v9199
    %v9218 = vunpack.c.h.b16 %v9199
    %v9219 = vunpack.c.l.b16 %v9200
    %v9220 = vunpack.c.h.b16 %v9200
    %v9221 = vunpack.c.l.b16 %v9201
    %v9222 = vunpack.c.h.b16 %v9201
    %v9223 = vunpack.c.l.b16 %v9202
    %v9224 = vunpack.c.h.b16 %v9202
    %v9225 = vunpack.c.l.b16 %v9203
    %v9226 = vunpack.c.h.b16 %v9203
    %v9227 = vunpack.c.l.b16 %v9204
    %v9228 = vunpack.c.h.b16 %v9204
    %v9229 = vpack.c.b16 %v9215, %v9213
    %v9230 = vpack.c.b16 %v9216, %v9214
    %v9231 = vpack.c.b16 %v9219, %v9217
    %v9232 = vpack.c.b16 %v9220, %v9218
    %v9233 = vpack.c.b16 %v9223, %v9221
    %v9234 = vpack.c.b16 %v9224, %v9222
    %v9235 = vpack.c.b16 %v9227, %v9225
    %v9236 = vpack.c.b16 %v9228, %v9226
    %v9246 = vsel %vm6035, %v9196, 0
    %9248 = vmatpush.bf16.msra.mxu0 0
    %9249 = vmatpush.bf16.msra.mxu0 0
    %9250 = vmatpush.bf16.msra.mxu0 0
    %9251 = vmatpush.bf16.msra.mxu0 0
    %9252 = vmatpush.bf16.msra.mxu0 %v9235
    %9253 = vmatpush.bf16.msra.mxu0 %v9233
    %9254 = vmatpush.bf16.msra.mxu0 %v9231
    %9255 = vmatpush.bf16.msra.mxu0 %v9229
    %9256 = vmatmul.bf16.gmra.mxu0 %v9246
    %v9257 = vpop.f32.mrf.mxu0
    %v9258 = vadd.f32 0.0, %v9257
    %v9259 = vpop.f32.mrf.mxu0
    %v9260 = vadd.f32 0.0, %v9259
    %9261 = vdwg.mxu0
    %9262 = vmatpush.bf16.msra.mxu0 0
    %9263 = vmatpush.bf16.msra.mxu0 0
    %9264 = vmatpush.bf16.msra.mxu0 0
    %9265 = vmatpush.bf16.msra.mxu0 0
    %9266 = vmatpush.bf16.msra.mxu0 %v9236
    %9267 = vmatpush.bf16.msra.mxu0 %v9234
    %9268 = vmatpush.bf16.msra.mxu0 %v9232
    %9269 = vmatpush.bf16.msra.mxu0 %v9230
    %9270 = vmatmul.bf16.gmra.mxu0 %v9246
    %v9271 = vpop.f32.mrf.mxu0
    %v9272 = vadd.f32 0.0, %v9271
    %v9273 = vpop.f32.mrf.mxu0
    %v9274 = vadd.f32 0.0, %v9273
    %9275 = vdwg.mxu0
    %v9276 = vsub.f32 %v8863, %v8967
    %v9277 = vsub.f32 %v8915, %v9019
    %v9278 = vmul.f32 %v9258, %v9276
    %v9279 = vmul.f32 %v9272, %v9277
    %v9280 = vadd.f32 %v9278, %v8967
    %v9281 = vadd.f32 %v9279, %v9019
    %v9282 = vmul.f32 %v9260, %v9276
    %v9283 = vmul.f32 %v9274, %v9277
    %v9284 = vadd.f32 %v9282, %v8967
    %v9285 = vadd.f32 %v9283, %v9019
    %v9286 = vpack.c.bf16 %v9284, %v9280
    %v9287 = vpack.c.bf16 %v9285, %v9281
    %v9288 = vld [vmem:[#allocation19] sm:$0xff]
    %v9289 = vld [vmem:[#allocation19 + $0x8] sm:$0xff]
    %v9290 = vld [vmem:[#allocation19 + $0x10] sm:$0xff]
    %v9291 = vld [vmem:[#allocation19 + $0x18] sm:$0xff]
    %v9292 = vld [vmem:[#allocation19 + $0x20] sm:$0xff]
    %v9293 = vld [vmem:[#allocation19 + $0x28] sm:$0xff]
    %v9294 = vld [vmem:[#allocation19 + $0x30] sm:$0xff]
    %v9295 = vld [vmem:[#allocation19 + $0x38] sm:$0xff]
    %v9296 = vld [vmem:[#allocation19 + $0x40] sm:$0xff]
    %v9297 = vld [vmem:[#allocation19 + $0x48] sm:$0xff]
    %v9298 = vld [vmem:[#allocation19 + $0x50] sm:$0xff]
    %v9299 = vld [vmem:[#allocation19 + $0x58] sm:$0xff]
    %v9300 = vld [vmem:[#allocation19 + $0x60] sm:$0xff]
    %v9301 = vld [vmem:[#allocation19 + $0x68] sm:$0xff]
    %v9302 = vld [vmem:[#allocation19 + $0x70] sm:$0xff]
    %v9303 = vld [vmem:[#allocation19 + $0x78] sm:$0xff]
    %v9304 = vld [vmem:[#allocation19 + $0x80] sm:$0xff]
    %v9305 = vld [vmem:[#allocation19 + $0x88] sm:$0xff]
    %v9306 = vld [vmem:[#allocation19 + $0x90] sm:$0xff]
    %v9307 = vld [vmem:[#allocation19 + $0x98] sm:$0xff]
    %v9308 = vld [vmem:[#allocation19 + $0xa0] sm:$0xff]
    %v9309 = vld [vmem:[#allocation19 + $0xa8] sm:$0xff]
    %v9310 = vld [vmem:[#allocation19 + $0xb0] sm:$0xff]
    %v9311 = vld [vmem:[#allocation19 + $0xb8] sm:$0xff]
    %v9312 = vld [vmem:[#allocation19 + $0xc0] sm:$0xff]
    %v9313 = vld [vmem:[#allocation19 + $0xc8] sm:$0xff]
    %v9314 = vld [vmem:[#allocation19 + $0xd0] sm:$0xff]
    %v9315 = vld [vmem:[#allocation19 + $0xd8] sm:$0xff]
    %v9316 = vld [vmem:[#allocation19 + $0xe0] sm:$0xff]
    %v9317 = vld [vmem:[#allocation19 + $0xe8] sm:$0xff]
    %v9318 = vld [vmem:[#allocation19 + $0xf0] sm:$0xff]
    %v9319 = vld [vmem:[#allocation19 + $0xf8] sm:$0xff]
    %v9320 = vld [vmem:[#allocation21] sm:$0x3]
    %v9322 = vperm.slane %v9320, 0
    %v9323 = vperm.slane %v9320, 1
    %v9358 = vunpack.c.l.b16 %v9288
    %v9359 = vunpack.c.h.b16 %v9288
    %v9360 = vunpack.c.l.b16 %v9289
    %v9361 = vunpack.c.h.b16 %v9289
    %v9362 = vunpack.c.l.b16 %v9290
    %v9363 = vunpack.c.h.b16 %v9290
    %v9364 = vunpack.c.l.b16 %v9291
    %v9365 = vunpack.c.h.b16 %v9291
    %v9366 = vunpack.c.l.b16 %v9292
    %v9367 = vunpack.c.h.b16 %v9292
    %v9368 = vunpack.c.l.b16 %v9293
    %v9369 = vunpack.c.h.b16 %v9293
    %v9370 = vunpack.c.l.b16 %v9294
    %v9371 = vunpack.c.h.b16 %v9294
    %v9372 = vunpack.c.l.b16 %v9295
    %v9373 = vunpack.c.h.b16 %v9295
    %v9374 = vunpack.c.l.b16 %v9296
    %v9375 = vunpack.c.h.b16 %v9296
    %v9376 = vunpack.c.l.b16 %v9297
    %v9377 = vunpack.c.h.b16 %v9297
    %v9378 = vunpack.c.l.b16 %v9298
    %v9379 = vunpack.c.h.b16 %v9298
    %v9380 = vunpack.c.l.b16 %v9299
    %v9381 = vunpack.c.h.b16 %v9299
    %v9382 = vunpack.c.l.b16 %v9300
    %v9383 = vunpack.c.h.b16 %v9300
    %v9384 = vunpack.c.l.b16 %v9301
    %v9385 = vunpack.c.h.b16 %v9301
    %v9386 = vunpack.c.l.b16 %v9302
    %v9387 = vunpack.c.h.b16 %v9302
    %v9388 = vunpack.c.l.b16 %v9303
    %v9389 = vunpack.c.h.b16 %v9303
    %v9390 = vunpack.c.l.b16 %v9304
    %v9391 = vunpack.c.h.b16 %v9304
    %v9392 = vunpack.c.l.b16 %v9305
    %v9393 = vunpack.c.h.b16 %v9305
    %v9394 = vunpack.c.l.b16 %v9306
    %v9395 = vunpack.c.h.b16 %v9306
    %v9396 = vunpack.c.l.b16 %v9307
    %v9397 = vunpack.c.h.b16 %v9307
    %v9398 = vunpack.c.l.b16 %v9308
    %v9399 = vunpack.c.h.b16 %v9308
    %v9400 = vunpack.c.l.b16 %v9309
    %v9401 = vunpack.c.h.b16 %v9309
    %v9402 = vunpack.c.l.b16 %v9310
    %v9403 = vunpack.c.h.b16 %v9310
    %v9404 = vunpack.c.l.b16 %v9311
    %v9405 = vunpack.c.h.b16 %v9311
    %v9406 = vunpack.c.l.b16 %v9312
    %v9407 = vunpack.c.h.b16 %v9312
    %v9408 = vunpack.c.l.b16 %v9313
    %v9409 = vunpack.c.h.b16 %v9313
    %v9410 = vunpack.c.l.b16 %v9314
    %v9411 = vunpack.c.h.b16 %v9314
    %v9412 = vunpack.c.l.b16 %v9315
    %v9413 = vunpack.c.h.b16 %v9315
    %v9414 = vunpack.c.l.b16 %v9316
    %v9415 = vunpack.c.h.b16 %v9316
    %v9416 = vunpack.c.l.b16 %v9317
    %v9417 = vunpack.c.h.b16 %v9317
    %v9418 = vunpack.c.l.b16 %v9318
    %v9419 = vunpack.c.h.b16 %v9318
    %v9420 = vunpack.c.l.b16 %v9319
    %v9421 = vunpack.c.h.b16 %v9319
    %v9422 = vpack.c.b16 %v9360, %v9358
    %v9423 = vpack.c.b16 %v9361, %v9359
    %v9424 = vpack.c.b16 %v9364, %v9362
    %v9425 = vpack.c.b16 %v9365, %v9363
    %v9426 = vpack.c.b16 %v9368, %v9366
    %v9427 = vpack.c.b16 %v9369, %v9367
    %v9428 = vpack.c.b16 %v9372, %v9370
    %v9429 = vpack.c.b16 %v9373, %v9371
    %v9430 = vpack.c.b16 %v9376, %v9374
    %v9431 = vpack.c.b16 %v9377, %v9375
    %v9432 = vpack.c.b16 %v9380, %v9378
    %v9433 = vpack.c.b16 %v9381, %v9379
    %v9434 = vpack.c.b16 %v9384, %v9382
    %v9435 = vpack.c.b16 %v9385, %v9383
    %v9436 = vpack.c.b16 %v9388, %v9386
    %v9437 = vpack.c.b16 %v9389, %v9387
    %v9438 = vpack.c.b16 %v9392, %v9390
    %v9439 = vpack.c.b16 %v9393, %v9391
    %v9440 = vpack.c.b16 %v9396, %v9394
    %v9441 = vpack.c.b16 %v9397, %v9395
    %v9442 = vpack.c.b16 %v9400, %v9398
    %v9443 = vpack.c.b16 %v9401, %v9399
    %v9444 = vpack.c.b16 %v9404, %v9402
    %v9445 = vpack.c.b16 %v9405, %v9403
    %v9446 = vpack.c.b16 %v9408, %v9406
    %v9447 = vpack.c.b16 %v9409, %v9407
    %v9448 = vpack.c.b16 %v9412, %v9410
    %v9449 = vpack.c.b16 %v9413, %v9411
    %v9450 = vpack.c.b16 %v9416, %v9414
    %v9451 = vpack.c.b16 %v9417, %v9415
    %v9452 = vpack.c.b16 %v9420, %v9418
    %v9453 = vpack.c.b16 %v9421, %v9419
    %9486 = vmatpush.bf16.msra.mxu0 %v9436
    %9487 = vmatpush.bf16.msra.mxu0 %v9434
    %9488 = vmatpush.bf16.msra.mxu0 %v9432
    %9489 = vmatpush.bf16.msra.mxu0 %v9430
    %9490 = vmatpush.bf16.msra.mxu0 %v9428
    %9491 = vmatpush.bf16.msra.mxu0 %v9426
    %9492 = vmatpush.bf16.msra.mxu0 %v9424
    %9493 = vmatpush.bf16.msra.mxu0 %v9422
    %9494 = vmatmul.bf16.gmra.mxu0 %v9286
    %v9495 = vpop.f32.mrf.mxu0
    %v9496 = vadd.f32 %v9322, %v9495
    %v9497 = vpop.f32.mrf.mxu0
    %v9498 = vadd.f32 %v9322, %v9497
    %9499 = vdwg.mxu0
    %9500 = vmatpush.bf16.msra.mxu0 %v9452
    %9501 = vmatpush.bf16.msra.mxu0 %v9450
    %9502 = vmatpush.bf16.msra.mxu0 %v9448
    %9503 = vmatpush.bf16.msra.mxu0 %v9446
    %9504 = vmatpush.bf16.msra.mxu0 %v9444
    %9505 = vmatpush.bf16.msra.mxu0 %v9442
    %9506 = vmatpush.bf16.msra.mxu0 %v9440
    %9507 = vmatpush.bf16.msra.mxu0 %v9438
    %9508 = vmatmul.bf16.gmra.mxu0 %v9287
    %v9509 = vpop.f32.mrf.mxu0
    %v9510 = vadd.f32 %v9496, %v9509
    %v9511 = vpop.f32.mrf.mxu0
    %v9512 = vadd.f32 %v9498, %v9511
    %9513 = vdwg.mxu0
    %9514 = vmatpush.bf16.msra.mxu0 %v9437
    %9515 = vmatpush.bf16.msra.mxu0 %v9435
    %9516 = vmatpush.bf16.msra.mxu0 %v9433
    %9517 = vmatpush.bf16.msra.mxu0 %v9431
    %9518 = vmatpush.bf16.msra.mxu0 %v9429
    %9519 = vmatpush.bf16.msra.mxu0 %v9427
    %9520 = vmatpush.bf16.msra.mxu0 %v9425
    %9521 = vmatpush.bf16.msra.mxu0 %v9423
    %9522 = vmatmul.bf16.gmra.mxu0 %v9286
    %v9523 = vpop.f32.mrf.mxu0
    %v9524 = vadd.f32 %v9323, %v9523
    %v9525 = vpop.f32.mrf.mxu0
    %v9526 = vadd.f32 %v9323, %v9525
    %9527 = vdwg.mxu0
    %9528 = vmatpush.bf16.msra.mxu0 %v9453
    %9529 = vmatpush.bf16.msra.mxu0 %v9451
    %9530 = vmatpush.bf16.msra.mxu0 %v9449
    %9531 = vmatpush.bf16.msra.mxu0 %v9447
    %9532 = vmatpush.bf16.msra.mxu0 %v9445
    %9533 = vmatpush.bf16.msra.mxu0 %v9443
    %9534 = vmatpush.bf16.msra.mxu0 %v9441
    %9535 = vmatpush.bf16.msra.mxu0 %v9439
    %9536 = vmatmul.bf16.gmra.mxu0 %v9287
    %v9537 = vpop.f32.mrf.mxu0
    %v9538 = vadd.f32 %v9524, %v9537
    %v9539 = vpop.f32.mrf.mxu0
    %v9540 = vadd.f32 %v9526, %v9539
    %9541 = vdwg.mxu0
    %v9542 = vpack.c.bf16 %v9510, %v9510
    %v9543 = vpack.c.bf16 %v9538, %v9538
    %v9544 = vpack.c.bf16 %v9512, %v9512
    %v9545 = vpack.c.bf16 %v9540, %v9540
    %v9546 = vld [vmem:[#allocation22] sm:$0xf]
    %v9547 = vld [vmem:[#allocation22 + $0x4] sm:$0xf]
    %v9548 = vld [vmem:[#allocation22 + $0x8] sm:$0xf]
    %v9549 = vld [vmem:[#allocation22 + $0xc] sm:$0xf]
    %v9550 = vld [vmem:[#allocation22 + $0x10] sm:$0xf]
    %v9551 = vld [vmem:[#allocation22 + $0x14] sm:$0xf]
    %v9552 = vld [vmem:[#allocation22 + $0x18] sm:$0xf]
    %v9553 = vld [vmem:[#allocation22 + $0x1c] sm:$0xf]
    %v9554 = vld [vmem:[#allocation22 + $0x20] sm:$0xf]
    %v9555 = vld [vmem:[#allocation22 + $0x24] sm:$0xf]
    %v9556 = vld [vmem:[#allocation22 + $0x28] sm:$0xf]
    %v9557 = vld [vmem:[#allocation22 + $0x2c] sm:$0xf]
    %v9558 = vld [vmem:[#allocation22 + $0x30] sm:$0xf]
    %v9559 = vld [vmem:[#allocation22 + $0x34] sm:$0xf]
    %v9560 = vld [vmem:[#allocation22 + $0x38] sm:$0xf]
    %v9561 = vld [vmem:[#allocation22 + $0x3c] sm:$0xf]
    %v9562 = vld [vmem:[#allocation22 + $0x40] sm:$0xf]
    %v9563 = vld [vmem:[#allocation22 + $0x44] sm:$0xf]
    %v9564 = vld [vmem:[#allocation22 + $0x48] sm:$0xf]
    %v9565 = vld [vmem:[#allocation22 + $0x4c] sm:$0xf]
    %v9566 = vld [vmem:[#allocation22 + $0x50] sm:$0xf]
    %v9567 = vld [vmem:[#allocation22 + $0x54] sm:$0xf]
    %v9568 = vld [vmem:[#allocation22 + $0x58] sm:$0xf]
    %v9569 = vld [vmem:[#allocation22 + $0x5c] sm:$0xf]
    %v9570 = vld [vmem:[#allocation22 + $0x60] sm:$0xf]
    %v9571 = vld [vmem:[#allocation22 + $0x64] sm:$0xf]
    %v9572 = vld [vmem:[#allocation22 + $0x68] sm:$0xf]
    %v9573 = vld [vmem:[#allocation22 + $0x6c] sm:$0xf]
    %v9574 = vld [vmem:[#allocation22 + $0x70] sm:$0xf]
    %v9575 = vld [vmem:[#allocation22 + $0x74] sm:$0xf]
    %v9576 = vld [vmem:[#allocation22 + $0x78] sm:$0xf]
    %v9577 = vld [vmem:[#allocation22 + $0x7c] sm:$0xf]
    %v9578 = vld [vmem:[#allocation22 + $0x80] sm:$0xf]
    %v9579 = vld [vmem:[#allocation22 + $0x84] sm:$0xf]
    %v9580 = vld [vmem:[#allocation22 + $0x88] sm:$0xf]
    %v9581 = vld [vmem:[#allocation22 + $0x8c] sm:$0xf]
    %v9582 = vld [vmem:[#allocation22 + $0x90] sm:$0xf]
    %v9583 = vld [vmem:[#allocation22 + $0x94] sm:$0xf]
    %v9584 = vld [vmem:[#allocation22 + $0x98] sm:$0xf]
    %v9585 = vld [vmem:[#allocation22 + $0x9c] sm:$0xf]
    %v9586 = vld [vmem:[#allocation22 + $0xa0] sm:$0xf]
    %v9587 = vld [vmem:[#allocation22 + $0xa4] sm:$0xf]
    %v9588 = vld [vmem:[#allocation22 + $0xa8] sm:$0xf]
    %v9589 = vld [vmem:[#allocation22 + $0xac] sm:$0xf]
    %v9590 = vld [vmem:[#allocation22 + $0xb0] sm:$0xf]
    %v9591 = vld [vmem:[#allocation22 + $0xb4] sm:$0xf]
    %v9592 = vld [vmem:[#allocation22 + $0xb8] sm:$0xf]
    %v9593 = vld [vmem:[#allocation22 + $0xbc] sm:$0xf]
    %v9594 = vld [vmem:[#allocation22 + $0xc0] sm:$0xf]
    %v9595 = vld [vmem:[#allocation22 + $0xc4] sm:$0xf]
    %v9596 = vld [vmem:[#allocation22 + $0xc8] sm:$0xf]
    %v9597 = vld [vmem:[#allocation22 + $0xcc] sm:$0xf]
    %v9598 = vld [vmem:[#allocation22 + $0xd0] sm:$0xf]
    %v9599 = vld [vmem:[#allocation22 + $0xd4] sm:$0xf]
    %v9600 = vld [vmem:[#allocation22 + $0xd8] sm:$0xf]
    %v9601 = vld [vmem:[#allocation22 + $0xdc] sm:$0xf]
    %v9602 = vld [vmem:[#allocation22 + $0xe0] sm:$0xf]
    %v9603 = vld [vmem:[#allocation22 + $0xe4] sm:$0xf]
    %v9604 = vld [vmem:[#allocation22 + $0xe8] sm:$0xf]
    %v9605 = vld [vmem:[#allocation22 + $0xec] sm:$0xf]
    %v9606 = vld [vmem:[#allocation22 + $0xf0] sm:$0xf]
    %v9607 = vld [vmem:[#allocation22 + $0xf4] sm:$0xf]
    %v9608 = vld [vmem:[#allocation22 + $0xf8] sm:$0xf]
    %v9609 = vld [vmem:[#allocation22 + $0xfc] sm:$0xf]
    %v9610 = vld [vmem:[#allocation24] sm:$0x1]
    %v9612 = vperm.slane %v9610, 0
    %v9678 = vunpack.c.l.b16 %v9546
    %v9679 = vunpack.c.l.b16 %v9547
    %v9680 = vunpack.c.l.b16 %v9548
    %v9681 = vunpack.c.l.b16 %v9549
    %v9682 = vunpack.c.l.b16 %v9550
    %v9683 = vunpack.c.l.b16 %v9551
    %v9684 = vunpack.c.l.b16 %v9552
    %v9685 = vunpack.c.l.b16 %v9553
    %v9686 = vunpack.c.l.b16 %v9554
    %v9687 = vunpack.c.l.b16 %v9555
    %v9688 = vunpack.c.l.b16 %v9556
    %v9689 = vunpack.c.l.b16 %v9557
    %v9690 = vunpack.c.l.b16 %v9558
    %v9691 = vunpack.c.l.b16 %v9559
    %v9692 = vunpack.c.l.b16 %v9560
    %v9693 = vunpack.c.l.b16 %v9561
    %v9694 = vunpack.c.l.b16 %v9562
    %v9695 = vunpack.c.l.b16 %v9563
    %v9696 = vunpack.c.l.b16 %v9564
    %v9697 = vunpack.c.l.b16 %v9565
    %v9698 = vunpack.c.l.b16 %v9566
    %v9699 = vunpack.c.l.b16 %v9567
    %v9700 = vunpack.c.l.b16 %v9568
    %v9701 = vunpack.c.l.b16 %v9569
    %v9702 = vunpack.c.l.b16 %v9570
    %v9703 = vunpack.c.l.b16 %v9571
    %v9704 = vunpack.c.l.b16 %v9572
    %v9705 = vunpack.c.l.b16 %v9573
    %v9706 = vunpack.c.l.b16 %v9574
    %v9707 = vunpack.c.l.b16 %v9575
    %v9708 = vunpack.c.l.b16 %v9576
    %v9709 = vunpack.c.l.b16 %v9577
    %v9710 = vunpack.c.l.b16 %v9578
    %v9711 = vunpack.c.l.b16 %v9579
    %v9712 = vunpack.c.l.b16 %v9580
    %v9713 = vunpack.c.l.b16 %v9581
    %v9714 = vunpack.c.l.b16 %v9582
    %v9715 = vunpack.c.l.b16 %v9583
    %v9716 = vunpack.c.l.b16 %v9584
    %v9717 = vunpack.c.l.b16 %v9585
    %v9718 = vunpack.c.l.b16 %v9586
    %v9719 = vunpack.c.l.b16 %v9587
    %v9720 = vunpack.c.l.b16 %v9588
    %v9721 = vunpack.c.l.b16 %v9589
    %v9722 = vunpack.c.l.b16 %v9590
    %v9723 = vunpack.c.l.b16 %v9591
    %v9724 = vunpack.c.l.b16 %v9592
    %v9725 = vunpack.c.l.b16 %v9593
    %v9726 = vunpack.c.l.b16 %v9594
    %v9727 = vunpack.c.l.b16 %v9595
    %v9728 = vunpack.c.l.b16 %v9596
    %v9729 = vunpack.c.l.b16 %v9597
    %v9730 = vunpack.c.l.b16 %v9598
    %v9731 = vunpack.c.l.b16 %v9599
    %v9732 = vunpack.c.l.b16 %v9600
    %v9733 = vunpack.c.l.b16 %v9601
    %v9734 = vunpack.c.l.b16 %v9602
    %v9735 = vunpack.c.l.b16 %v9603
    %v9736 = vunpack.c.l.b16 %v9604
    %v9737 = vunpack.c.l.b16 %v9605
    %v9738 = vunpack.c.l.b16 %v9606
    %v9739 = vunpack.c.l.b16 %v9607
    %v9740 = vunpack.c.l.b16 %v9608
    %v9741 = vunpack.c.l.b16 %v9609
    %v9742 = vpack.c.b16 %v9679, %v9678
    %v9743 = vpack.c.b16 %v9681, %v9680
    %v9744 = vpack.c.b16 %v9683, %v9682
    %v9745 = vpack.c.b16 %v9685, %v9684
    %v9746 = vpack.c.b16 %v9687, %v9686
    %v9747 = vpack.c.b16 %v9689, %v9688
    %v9748 = vpack.c.b16 %v9691, %v9690
    %v9749 = vpack.c.b16 %v9693, %v9692
    %v9750 = vpack.c.b16 %v9695, %v9694
    %v9751 = vpack.c.b16 %v9697, %v9696
    %v9752 = vpack.c.b16 %v9699, %v9698
    %v9753 = vpack.c.b16 %v9701, %v9700
    %v9754 = vpack.c.b16 %v9703, %v9702
    %v9755 = vpack.c.b16 %v9705, %v9704
    %v9756 = vpack.c.b16 %v9707, %v9706
    %v9757 = vpack.c.b16 %v9709, %v9708
    %v9758 = vpack.c.b16 %v9711, %v9710
    %v9759 = vpack.c.b16 %v9713, %v9712
    %v9760 = vpack.c.b16 %v9715, %v9714
    %v9761 = vpack.c.b16 %v9717, %v9716
    %v9762 = vpack.c.b16 %v9719, %v9718
    %v9763 = vpack.c.b16 %v9721, %v9720
    %v9764 = vpack.c.b16 %v9723, %v9722
    %v9765 = vpack.c.b16 %v9725, %v9724
    %v9766 = vpack.c.b16 %v9727, %v9726
    %v9767 = vpack.c.b16 %v9729, %v9728
    %v9768 = vpack.c.b16 %v9731, %v9730
    %v9769 = vpack.c.b16 %v9733, %v9732
    %v9770 = vpack.c.b16 %v9735, %v9734
    %v9771 = vpack.c.b16 %v9737, %v9736
    %v9772 = vpack.c.b16 %v9739, %v9738
    %v9773 = vpack.c.b16 %v9741, %v9740
    %9806 = vmatpush.bf16.msra.mxu0 %v9749
    %9807 = vmatpush.bf16.msra.mxu0 %v9748
    %9808 = vmatpush.bf16.msra.mxu0 %v9747
    %9809 = vmatpush.bf16.msra.mxu0 %v9746
    %9810 = vmatpush.bf16.msra.mxu0 %v9745
    %9811 = vmatpush.bf16.msra.mxu0 %v9744
    %9812 = vmatpush.bf16.msra.mxu0 %v9743
    %9813 = vmatpush.bf16.msra.mxu0 %v9742
    %9814 = vmatmul.bf16.gmra.mxu0 %v9542
    %v9815 = vpop.f32.mrf.mxu0
    %v9816 = vadd.f32 %v9612, %v9815
    %v9817 = vpop.f32.mrf.mxu0
    %9818 = vdwg.mxu0
    %9819 = vmatpush.bf16.msra.mxu0 %v9757
    %9820 = vmatpush.bf16.msra.mxu0 %v9756
    %9821 = vmatpush.bf16.msra.mxu0 %v9755
    %9822 = vmatpush.bf16.msra.mxu0 %v9754
    %9823 = vmatpush.bf16.msra.mxu0 %v9753
    %9824 = vmatpush.bf16.msra.mxu0 %v9752
    %9825 = vmatpush.bf16.msra.mxu0 %v9751
    %9826 = vmatpush.bf16.msra.mxu0 %v9750
    %9827 = vmatmul.bf16.gmra.mxu0 %v9543
    %v9828 = vpop.f32.mrf.mxu0
    %v9829 = vadd.f32 %v9816, %v9828
    %v9830 = vpop.f32.mrf.mxu0
    %9831 = vdwg.mxu0
    %9832 = vmatpush.bf16.msra.mxu0 %v9765
    %9833 = vmatpush.bf16.msra.mxu0 %v9764
    %9834 = vmatpush.bf16.msra.mxu0 %v9763
    %9835 = vmatpush.bf16.msra.mxu0 %v9762
    %9836 = vmatpush.bf16.msra.mxu0 %v9761
    %9837 = vmatpush.bf16.msra.mxu0 %v9760
    %9838 = vmatpush.bf16.msra.mxu0 %v9759
    %9839 = vmatpush.bf16.msra.mxu0 %v9758
    %9840 = vmatmul.bf16.gmra.mxu0 %v9544
    %v9841 = vpop.f32.mrf.mxu0
    %v9842 = vadd.f32 %v9829, %v9841
    %v9843 = vpop.f32.mrf.mxu0
    %9844 = vdwg.mxu0
    %9845 = vmatpush.bf16.msra.mxu0 %v9773
    %9846 = vmatpush.bf16.msra.mxu0 %v9772
    %9847 = vmatpush.bf16.msra.mxu0 %v9771
    %9848 = vmatpush.bf16.msra.mxu0 %v9770
    %9849 = vmatpush.bf16.msra.mxu0 %v9769
    %9850 = vmatpush.bf16.msra.mxu0 %v9768
    %9851 = vmatpush.bf16.msra.mxu0 %v9767
    %9852 = vmatpush.bf16.msra.mxu0 %v9766
    %9853 = vmatmul.bf16.gmra.mxu0 %v9545
    %v9854 = vpop.f32.mrf.mxu0
    %v9855 = vadd.f32 %v9842, %v9854
    %v9856 = vpop.f32.mrf.mxu0
    %9857 = vdwg.mxu0
    %v9858 = vmax.f32 %v9855, 0.0
    %9859 = vst [vmem:[%s19] sm:$0xff] %v9858
    %v9860 = vpack.c.bf16 %v9858, %v9858
    %v9861 = vld [vmem:[#allocation25] sm:$0xf]
    %v9862 = vld [vmem:[#allocation25 + $0x4] sm:$0xf]
    %v9863 = vld [vmem:[#allocation25 + $0x8] sm:$0xf]
    %v9864 = vld [vmem:[#allocation25 + $0xc] sm:$0xf]
    %v9865 = vld [vmem:[#allocation25 + $0x10] sm:$0xf]
    %v9866 = vld [vmem:[#allocation25 + $0x14] sm:$0xf]
    %v9867 = vld [vmem:[#allocation25 + $0x18] sm:$0xf]
    %v9868 = vld [vmem:[#allocation25 + $0x1c] sm:$0xf]
    %v9869 = vld [vmem:[#allocation25 + $0x20] sm:$0xf]
    %v9870 = vld [vmem:[#allocation25 + $0x24] sm:$0xf]
    %v9871 = vld [vmem:[#allocation25 + $0x28] sm:$0xf]
    %v9872 = vld [vmem:[#allocation25 + $0x2c] sm:$0xf]
    %v9873 = vld [vmem:[#allocation25 + $0x30] sm:$0xf]
    %v9874 = vld [vmem:[#allocation25 + $0x34] sm:$0xf]
    %v9875 = vld [vmem:[#allocation25 + $0x38] sm:$0xf]
    %v9876 = vld [vmem:[#allocation25 + $0x3c] sm:$0xf]
    %v9877 = vld [vmem:[#allocation27] sm:$0x1]
    %v9879 = vperm.slane %v9877, 0
    %v9897 = vunpack.c.l.b16 %v9861
    %v9898 = vunpack.c.l.b16 %v9862
    %v9899 = vunpack.c.l.b16 %v9863
    %v9900 = vunpack.c.l.b16 %v9864
    %v9901 = vunpack.c.l.b16 %v9865
    %v9902 = vunpack.c.l.b16 %v9866
    %v9903 = vunpack.c.l.b16 %v9867
    %v9904 = vunpack.c.l.b16 %v9868
    %v9905 = vunpack.c.l.b16 %v9869
    %v9906 = vunpack.c.l.b16 %v9870
    %v9907 = vunpack.c.l.b16 %v9871
    %v9908 = vunpack.c.l.b16 %v9872
    %v9909 = vunpack.c.l.b16 %v9873
    %v9910 = vunpack.c.l.b16 %v9874
    %v9911 = vunpack.c.l.b16 %v9875
    %v9912 = vunpack.c.l.b16 %v9876
    %v9913 = vpack.c.b16 %v9898, %v9897
    %v9914 = vpack.c.b16 %v9900, %v9899
    %v9915 = vpack.c.b16 %v9902, %v9901
    %v9916 = vpack.c.b16 %v9904, %v9903
    %v9917 = vpack.c.b16 %v9906, %v9905
    %v9918 = vpack.c.b16 %v9908, %v9907
    %v9919 = vpack.c.b16 %v9910, %v9909
    %v9920 = vpack.c.b16 %v9912, %v9911
    %9929 = vmatpush.bf16.msra.mxu0 %v9920
    %9930 = vmatpush.bf16.msra.mxu0 %v9919
    %9931 = vmatpush.bf16.msra.mxu0 %v9918
    %9932 = vmatpush.bf16.msra.mxu0 %v9917
    %9933 = vmatpush.bf16.msra.mxu0 %v9916
    %9934 = vmatpush.bf16.msra.mxu0 %v9915
    %9935 = vmatpush.bf16.msra.mxu0 %v9914
    %9936 = vmatpush.bf16.msra.mxu0 %v9913
    %9937 = vmatmul.bf16.gmra.mxu0 %v9860
    %v9938 = vpop.f32.mrf.mxu0
    %v9939 = vadd.f32 %v9879, %v9938
    %v9940 = vpop.f32.mrf.mxu0
    %9941 = vdwg.mxu0
    %9942 = vmax.xlane.f32.xlu0 %v9939
    %v9943 = vpop.xlane.xlu0 %9942
    %v9944 = vsub.f32 %v9939, %v9943
    %v9945 = vmul.f32 %v9944, 1.442695
    %v9946 = vpow.pop %v9945
    %9947 = vadd.xlane.f32.xlu0 %v9946
    %v9948 = vpop.xlane.xlu0 %9947
    %v9949 = vrcp.pop %v9948
    %v9950 = vmul.f32 %v9946, %v9949
    %9951 = vst [vmem:[%s20] sm:$0xff] %v9950
    // Predicated region
    $region146: #{mscnn3am_forward.1} parent=1 // pred_check
      _
    $region147: #{mscnn3am_forward.1} parent=1 // pred_check_branch
      %9953 = sbr.rel (0) target = $region149
    $region148: #{mscnn3am_forward.1} parent=1 // pred_region
      _
    $region149: #{mscnn3am_forward.1} parent=1 // pred_fallthru
      _
    // Predicated region
    $region150: #{mscnn3am_forward.1} parent=1 // pred_check
      _
    $region151: #{mscnn3am_forward.1} parent=1 // pred_check_branch
      %9955 = sbr.rel (0) target = $region153
    $region152: #{mscnn3am_forward.1} parent=1 // pred_region
      _
    $region153: #{mscnn3am_forward.1} parent=1 // pred_fallthru
      _
    // Predicated region
    $region154: #{mscnn3am_forward.1} parent=1 // pred_check
      _
    $region155: #{mscnn3am_forward.1} parent=1 // pred_check_branch
      %9957 = sbr.rel (0) target = $region157
    $region156: #{mscnn3am_forward.1} parent=1 // pred_region
      _
    $region157: #{mscnn3am_forward.1} parent=1 // pred_fallthru
      _
    // Predicated region
    $region158: #{mscnn3am_forward.1} parent=1 // pred_check
      _
    $region159: #{mscnn3am_forward.1} parent=1 // pred_check_branch
      %9959 = sbr.rel (0) target = $region161
    $region160: #{mscnn3am_forward.1} parent=1 // pred_region
      _
    $region161: #{mscnn3am_forward.1} parent=1 // pred_fallthru
      _
    %9960 = vsyncpa [#allocation3], 1
    %9961 = vsyncpa [#allocation5], 1
    %9962 = vsyncpa [#allocation8], 1
    %9963 = vsyncpa [#allocation11], 1
    %9964 = vsyncpa [#allocation14], 1
    %9965 = vsyncpa [#allocation17], 1
    %9966 = vsyncpa [#allocation20], 1
    %9967 = vsyncpa [#allocation23], 1
    %9968 = vsyncpa [#allocation26], 1

</llo_original>
